<compile_context>
chip_gen: v6e
topology: v6e:2x2x1
jax: 0.10.0
libtpu: 0.0.40
codegen_flags: <defaults>
</compile_context>

<pallas_src>
import functools

import numpy as np
import jax
import jax.numpy as jnp
from jax.experimental import pallas as pl
from jax.experimental.pallas import tpu as pltpu


def _round_up(x, m):
    return (x + m - 1) // m * m


def _adaptive_pool_matrix(in_size, out_size):
    """[out_size, in_size] averaging matrix matching torch.nn.AdaptiveAvgPool2d."""
    m = np.zeros((out_size, in_size), dtype=np.float32)
    for i in range(out_size):
        lo = (i * in_size) // out_size
        hi = -(-((i + 1) * in_size) // out_size)  # ceil
        m[i, lo:hi] = 1.0 / (hi - lo)
    return jnp.asarray(m)


def _inception_aux_kernel(xp_ref, wc_ref, bc_ref, w1_ref, b1_ref, w2_ref, b2_ref, o_ref):
    """Fused 1x1-conv(+BN+ReLU) -> fc1 -> ReLU -> fc2 on one batch-row tile.

    xp_ref: [16, TN, C]  bf16 pooled pixels (pixel-major)
    wc_ref: [C, 128]     bf16 conv weight with eval-BN scale folded in
    bc_ref: [1, 128]     f32  folded BN bias
    w1_ref: [16, 128, H] bf16 fc1 weight regrouped per pooled pixel
    b1_ref: [1, H]       f32  fc1 bias
    w2_ref: [H, OCP]     bf16 fc2 weight, classes padded to a lane multiple
    b2_ref: [1, OCP]     f32  fc2 bias (class padded)
    o_ref:  [TN, OCP]    f32  logits (padded classes sliced off by the wrapper)
    """
    tn = o_ref.shape[0]
    hidden = b1_ref.shape[1]
    acc = jnp.zeros((tn, hidden), jnp.float32)
    # 16 pooled pixels: the 1x1 conv is a [TN,C]@[C,128] matmul per pixel and
    # fc1 is accumulated as 16 [TN,128]@[128,H] matmuls, so the conv activation
    # stays in VMEM/vregs (no HBM round-trip, no lane-crossing reshape).
    for p in range(16):
        conv = jnp.dot(xp_ref[p], wc_ref[...], preferred_element_type=jnp.float32)
        conv = jnp.maximum(conv + bc_ref[...], 0.0)               # folded BN bias + ReLU
        acc = acc + jnp.dot(conv.astype(jnp.bfloat16), w1_ref[p],
                            preferred_element_type=jnp.float32)
    h = jnp.maximum(acc + b1_ref[...], 0.0)                        # fc1 bias + ReLU
    # Dropout(p=0.7) is identity in eval/inference mode.
    # TODO(synk): training-mode dropout would use pltpu.prng_seed + prng_random_bits.
    o = jnp.dot(h.astype(jnp.bfloat16), w2_ref[...], preferred_element_type=jnp.float32)
    o_ref[...] = (o + b2_ref[...]).astype(o_ref.dtype)


def prepare_inception_aux_params(conv_w, bn_gamma, bn_beta, bn_mean, bn_var,
                                 fc1_w, fc1_b, fc2_w, fc2_b, eps=1e-3):
    """One-time weight preprocessing (call ONCE, outside the jitted forward).

    Folds eval-mode BatchNorm into the conv weight/bias, regroups the fc1
    weight per pooled pixel (reproducing torch.flatten's (OC, H, W) order so
    no activation transpose is needed), pads fc2 to a lane-dense class count,
    and casts all matmul weights to bf16.
    """
    oc = conv_w.shape[0]                    # 128
    hidden, flat = fc1_w.shape              # 1024, 2048
    num_classes = fc2_w.shape[0]
    n_pix = flat // oc                      # 16

    scale = bn_gamma / jnp.sqrt(bn_var + eps)                                   # [OC]
    wc = (conv_w[:, :, 0, 0] * scale[:, None]).T.astype(jnp.bfloat16)           # [C, OC]
    bc = (bn_beta - bn_mean * scale).reshape(1, oc).astype(jnp.float32)         # [1, OC]

    # torch.flatten order is (oc, hw); regroup as w1[pixel, oc, hidden].
    w1 = fc1_w.reshape(hidden, oc, n_pix).transpose(2, 1, 0).astype(jnp.bfloat16)  # [16,128,H]
    b1 = fc1_b.reshape(1, hidden).astype(jnp.float32)

    ocp = _round_up(num_classes, 128)
    w2 = jnp.pad(fc2_w.T, ((0, 0), (0, ocp - num_classes))).astype(jnp.bfloat16)   # [H, OCP]
    b2 = jnp.pad(fc2_b, (0, ocp - num_classes)).reshape(1, ocp).astype(jnp.float32)
    return wc, bc, w1, b1, w2, b2


@functools.partial(jax.jit, static_argnames=("num_classes",))
def inception_aux(x, wc, bc, w1, b1, w2, b2, *, num_classes):
    """InceptionAux forward (inference). x: [N, C, H, W]. Returns [N, num_classes]."""
    n, c, h, w = x.shape
    n_pix, oc, hidden = w1.shape            # 16, 128, 1024
    ocp = w2.shape[1]

    # --- AdaptiveAvgPool2d((4,4)): exact PyTorch semantics via static pooling
    #     matrices (handles overlapping windows, e.g. GoogLeNet's 14x14 inputs).
    #     Cheap layout/reduction glue kept in plain JAX.
    ph = _adaptive_pool_matrix(h, 4)
    pw = _adaptive_pool_matrix(w, 4)
    pooled = jnp.einsum('nchw,ih,jw->nijc', x.astype(jnp.float32), ph, pw,
                        precision=jax.lax.Precision.HIGHEST)        # [N, 4, 4, C]
    # Pixel-major bf16 activations for the kernel: [16, N, C].
    xp = pooled.reshape(n, n_pix, c).transpose(1, 0, 2).astype(jnp.bfloat16)

    # Batch-row tiling: multiple-of-8 sublane tiles; >=2 grid steps above 128
    # rows so both v7x TensorCores get work.
    tn = _round_up(n, 8) if n <= 128 else 128
    n_pad = _round_up(n, tn)
    if n_pad != n:
        xp = jnp.pad(xp, ((0, 0), (0, n_pad - n), (0, 0)))

    out = pl.pallas_call(
        _inception_aux_kernel,
        out_shape=jax.ShapeDtypeStruct((n_pad, ocp), jnp.float32),
        grid_spec=pltpu.PrefetchScalarGridSpec(
            num_scalar_prefetch=0,
            grid=(n_pad // tn,),
            in_specs=[
                pl.BlockSpec((n_pix, tn, c), lambda i: (0, i, 0)),       # pooled pixels tile
                pl.BlockSpec((c, oc), lambda i: (0, 0)),                 # folded conv weight
                pl.BlockSpec((1, oc), lambda i: (0, 0)),                 # folded BN bias
                pl.BlockSpec((n_pix, oc, hidden), lambda i: (0, 0, 0)),  # fc1 weight (per pixel)
                pl.BlockSpec((1, hidden), lambda i: (0, 0)),             # fc1 bias
                pl.BlockSpec((hidden, ocp), lambda i: (0, 0)),           # fc2 weight (class padded)
                pl.BlockSpec((1, ocp), lambda i: (0, 0)),                # fc2 bias (class padded)
            ],
            out_specs=pl.BlockSpec((tn, ocp), lambda i: (i, 0)),
        ),
        compiler_params=pltpu.CompilerParams(
            dimension_semantics=("parallel",),
            # bf16 weights + default double-buffering need ~20 MB worst case
            # (C=528, 1024 padded classes, tn=128); 40 MiB gives headroom while
            # staying well under v7x's 64 MiB physical VMEM.
            vmem_limit_bytes=40 * 1024 * 1024,
        ),
    )(xp, wc, bc, w1, b1, w2, b2)
    return out[:n, :num_classes]


def _reference_forward(x, conv_w, bn_gamma, bn_beta, bn_mean, bn_var,
                       fc1_w, fc1_b, fc2_w, fc2_b):
    """Pure-JAX f32 reference following the PyTorch module (eval mode) exactly."""
    hp = jax.lax.Precision.HIGHEST
    n, c, h, w = x.shape
    oc = conv_w.shape[0]
    rows = []
    for i in range(4):                       # AdaptiveAvgPool2d((4,4)), torch windows
        hs, he = (i * h) // 4, -(-((i + 1) * h) // 4)
        cols = []
        for j in range(4):
            ws, we = (j * w) // 4, -(-((j + 1) * w) // 4)
            cols.append(x[:, :, hs:he, ws:we].mean(axis=(2, 3)))
        rows.append(jnp.stack(cols, axis=-1))
    pooled = jnp.stack(rows, axis=-2)                                        # [N, C, 4, 4]
    y = jnp.einsum('nchw,oc->nohw', pooled, conv_w[:, :, 0, 0], precision=hp)
    scale = bn_gamma / jnp.sqrt(bn_var + 1e-3)
    y = y * scale[None, :, None, None] + (bn_beta - bn_mean * scale)[None, :, None, None]
    y = jnp.maximum(y, 0.0)
    flat = y.reshape(n, oc * 16)                                             # torch.flatten(x, 1)
    h1 = jnp.maximum(jnp.dot(flat, fc1_w.T, precision=hp) + fc1_b, 0.0)
    return jnp.dot(h1, fc2_w.T, precision=hp) + fc2_b                        # dropout = identity


if __name__ == "__main__":
    # InceptionAux(in_channels=16, num_classes=10) on small inputs.
    C_IN, NUM_CLASSES = 16, 10
    OC, HIDDEN, FLAT = 128, 1024, 2048

    key = jax.random.PRNGKey(0)
    ks = jax.random.split(key, 10)
    conv_w = jax.random.normal(ks[1], (OC, C_IN, 1, 1), dtype=jnp.float32) * 0.2
    bn_gamma = 1.0 + 0.1 * jax.random.normal(ks[2], (OC,), dtype=jnp.float32)
    bn_beta = 0.1 * jax.random.normal(ks[3], (OC,), dtype=jnp.float32)
    bn_mean = 0.1 * jax.random.normal(ks[4], (OC,), dtype=jnp.float32)
    bn_var = 0.5 + jnp.abs(jax.random.normal(ks[5], (OC,), dtype=jnp.float32))
    fc1_w = jax.random.normal(ks[6], (HIDDEN, FLAT), dtype=jnp.float32) / jnp.sqrt(FLAT)
    fc1_b = 0.1 * jax.random.normal(ks[7], (HIDDEN,), dtype=jnp.float32)
    fc2_w = jax.random.normal(ks[8], (NUM_CLASSES, HIDDEN), dtype=jnp.float32) / jnp.sqrt(HIDDEN)
    fc2_b = 0.1 * jax.random.normal(ks[9], (NUM_CLASSES,), dtype=jnp.float32)

    # One-time weight preprocessing (hoisted out of the jitted forward).
    params = prepare_inception_aux_params(conv_w, bn_gamma, bn_beta, bn_mean, bn_var,
                                          fc1_w, fc1_b, fc2_w, fc2_b)

    # 8x8 (divisible) and 14x14 (real GoogLeNet aux input, overlapping pool windows).
    for (N, H, W) in [(2, 8, 8), (2, 14, 14)]:
        x = jax.random.normal(ks[0], (N, C_IN, H, W), dtype=jnp.float32)
        out = inception_aux(x, *params, num_classes=NUM_CLASSES)
        jax.block_until_ready(out)
        ref = _reference_forward(x, conv_w, bn_gamma, bn_beta, bn_mean, bn_var,
                                 fc1_w, fc1_b, fc2_w, fc2_b)
        assert out.shape == (N, NUM_CLASSES), out.shape
        err = float(jnp.max(jnp.abs(out - ref)))
        assert jnp.allclose(out, ref, atol=2e-2, rtol=2e-2), err

    print("KERNEL_OK")
</pallas_src>

<mosaic_0001>
module attributes {stable_mosaic.version = 11 : i64} {
  func.func @_inception_aux_kernel(%arg0: i32, %arg1: memref<16x8x16xbf16, #tpu.memory_space<vmem>>, %arg2: memref<16x128xbf16, #tpu.memory_space<vmem>>, %arg3: memref<1x128xf32, #tpu.memory_space<vmem>>, %arg4: memref<16x128x1024xbf16, #tpu.memory_space<vmem>>, %arg5: memref<1x1024xf32, #tpu.memory_space<vmem>>, %arg6: memref<1024x128xbf16, #tpu.memory_space<vmem>>, %arg7: memref<1x128xf32, #tpu.memory_space<vmem>>, %arg8: memref<8x128xf32, #tpu.memory_space<vmem>>) attributes {dimension_semantics = [#tpu.dimension_semantics<parallel>], iteration_bounds = array<i64: 1>, scalar_prefetch = 0 : i64, scratch_operands = 0 : i64, tpu.core_type = #tpu.core_type<tc>, window_params = [{transform_indices = @transform_0, window_bounds = array<i64: 16, 8, 16>}, {pipeline_mode = #tpu.pipeline_mode<synchronous>, transform_indices = @transform_1, window_bounds = array<i64: 16, 128>}, {pipeline_mode = #tpu.pipeline_mode<synchronous>, transform_indices = @transform_2, window_bounds = array<i64: 1, 128>}, {pipeline_mode = #tpu.pipeline_mode<synchronous>, transform_indices = @transform_3, window_bounds = array<i64: 16, 128, 1024>}, {pipeline_mode = #tpu.pipeline_mode<synchronous>, transform_indices = @transform_4, window_bounds = array<i64: 1, 1024>}, {pipeline_mode = #tpu.pipeline_mode<synchronous>, transform_indices = @transform_5, window_bounds = array<i64: 1024, 128>}, {pipeline_mode = #tpu.pipeline_mode<synchronous>, transform_indices = @transform_6, window_bounds = array<i64: 1, 128>}, {transform_indices = @transform_7, window_bounds = array<i64: 8, 128>}]} {
    %cst = arith.constant 0.000000e+00 : f32
    %0 = vector.broadcast %cst : f32 to vector<8x1024xf32>
    %c0 = arith.constant 0 : index
    %c0_0 = arith.constant 0 : index
    %c0_1 = arith.constant 0 : index
    %1 = vector.load %arg1[%c0, %c0_0, %c0_1] : memref<16x8x16xbf16, #tpu.memory_space<vmem>>, vector<1x8x16xbf16>
    %2 = vector.shape_cast %1 : vector<1x8x16xbf16> to vector<8x16xbf16>
    %c0_2 = arith.constant 0 : index
    %c0_3 = arith.constant 0 : index
    %3 = vector.load %arg2[%c0_2, %c0_3] : memref<16x128xbf16, #tpu.memory_space<vmem>>, vector<16x128xbf16>
    %cst_4 = arith.constant dense<0.000000e+00> : vector<8x128xf32>
    %4 = tpu.matmul %2, %3, %cst_4 {dimension_numbers = #tpu.dot_dimension_numbers<[1], [0], [0], [1], [0, 0, 1, 1], [], []>} : vector<8x16xbf16>, vector<16x128xbf16>, vector<8x128xf32> -> vector<8x128xf32>
    %c0_5 = arith.constant 0 : index
    %c0_6 = arith.constant 0 : index
    %5 = vector.load %arg3[%c0_5, %c0_6] : memref<1x128xf32, #tpu.memory_space<vmem>>, vector<1x128xf32>
    %6 = vector.broadcast %5 : vector<1x128xf32> to vector<8x128xf32>
    %7 = arith.addf %4, %6 : vector<8x128xf32>
    %cst_7 = arith.constant 0.000000e+00 : f32
    %8 = vector.broadcast %cst_7 : f32 to vector<8x128xf32>
    %9 = arith.maximumf %7, %8 : vector<8x128xf32>
    %10 = arith.truncf %9 : vector<8x128xf32> to vector<8x128xbf16>
    %c0_8 = arith.constant 0 : index
    %c0_9 = arith.constant 0 : index
    %c0_10 = arith.constant 0 : index
    %11 = vector.load %arg4[%c0_8, %c0_9, %c0_10] : memref<16x128x1024xbf16, #tpu.memory_space<vmem>>, vector<1x128x1024xbf16>
    %12 = vector.shape_cast %11 : vector<1x128x1024xbf16> to vector<128x1024xbf16>
    %cst_11 = arith.constant dense<0.000000e+00> : vector<8x1024xf32>
    %13 = tpu.matmul %10, %12, %cst_11 {dimension_numbers = #tpu.dot_dimension_numbers<[1], [0], [0], [1], [0, 0, 1, 1], [], []>} : vector<8x128xbf16>, vector<128x1024xbf16>, vector<8x1024xf32> -> vector<8x1024xf32>
    %14 = arith.addf %0, %13 : vector<8x1024xf32>
    %c1 = arith.constant 1 : index
    %c0_12 = arith.constant 0 : index
    %c0_13 = arith.constant 0 : index
    %15 = vector.load %arg1[%c1, %c0_12, %c0_13] : memref<16x8x16xbf16, #tpu.memory_space<vmem>>, vector<1x8x16xbf16>
    %16 = vector.shape_cast %15 : vector<1x8x16xbf16> to vector<8x16xbf16>
    %c0_14 = arith.constant 0 : index
    %c0_15 = arith.constant 0 : index
    %17 = vector.load %arg2[%c0_14, %c0_15] : memref<16x128xbf16, #tpu.memory_space<vmem>>, vector<16x128xbf16>
    %cst_16 = arith.constant dense<0.000000e+00> : vector<8x128xf32>
    %18 = tpu.matmul %16, %17, %cst_16 {dimension_numbers = #tpu.dot_dimension_numbers<[1], [0], [0], [1], [0, 0, 1, 1], [], []>} : vector<8x16xbf16>, vector<16x128xbf16>, vector<8x128xf32> -> vector<8x128xf32>
    %c0_17 = arith.constant 0 : index
    %c0_18 = arith.constant 0 : index
    %19 = vector.load %arg3[%c0_17, %c0_18] : memref<1x128xf32, #tpu.memory_space<vmem>>, vector<1x128xf32>
    %20 = vector.broadcast %19 : vector<1x128xf32> to vector<8x128xf32>
    %21 = arith.addf %18, %20 : vector<8x128xf32>
    %cst_19 = arith.constant 0.000000e+00 : f32
    %22 = vector.broadcast %cst_19 : f32 to vector<8x128xf32>
    %23 = arith.maximumf %21, %22 : vector<8x128xf32>
    %24 = arith.truncf %23 : vector<8x128xf32> to vector<8x128xbf16>
    %c1_20 = arith.constant 1 : index
    %c0_21 = arith.constant 0 : index
    %c0_22 = arith.constant 0 : index
    %25 = vector.load %arg4[%c1_20, %c0_21, %c0_22] : memref<16x128x1024xbf16, #tpu.memory_space<vmem>>, vector<1x128x1024xbf16>
    %26 = vector.shape_cast %25 : vector<1x128x1024xbf16> to vector<128x1024xbf16>
    %cst_23 = arith.constant dense<0.000000e+00> : vector<8x1024xf32>
    %27 = tpu.matmul %24, %26, %cst_23 {dimension_numbers = #tpu.dot_dimension_numbers<[1], [0], [0], [1], [0, 0, 1, 1], [], []>} : vector<8x128xbf16>, vector<128x1024xbf16>, vector<8x1024xf32> -> vector<8x1024xf32>
    %28 = arith.addf %14, %27 : vector<8x1024xf32>
    %c2 = arith.constant 2 : index
    %c0_24 = arith.constant 0 : index
    %c0_25 = arith.constant 0 : index
    %29 = vector.load %arg1[%c2, %c0_24, %c0_25] : memref<16x8x16xbf16, #tpu.memory_space<vmem>>, vector<1x8x16xbf16>
    %30 = vector.shape_cast %29 : vector<1x8x16xbf16> to vector<8x16xbf16>
    %c0_26 = arith.constant 0 : index
    %c0_27 = arith.constant 0 : index
    %31 = vector.load %arg2[%c0_26, %c0_27] : memref<16x128xbf16, #tpu.memory_space<vmem>>, vector<16x128xbf16>
    %cst_28 = arith.constant dense<0.000000e+00> : vector<8x128xf32>
    %32 = tpu.matmul %30, %31, %cst_28 {dimension_numbers = #tpu.dot_dimension_numbers<[1], [0], [0], [1], [0, 0, 1, 1], [], []>} : vector<8x16xbf16>, vector<16x128xbf16>, vector<8x128xf32> -> vector<8x128xf32>
    %c0_29 = arith.constant 0 : index
    %c0_30 = arith.constant 0 : index
    %33 = vector.load %arg3[%c0_29, %c0_30] : memref<1x128xf32, #tpu.memory_space<vmem>>, vector<1x128xf32>
    %34 = vector.broadcast %33 : vector<1x128xf32> to vector<8x128xf32>
    %35 = arith.addf %32, %34 : vector<8x128xf32>
    %cst_31 = arith.constant 0.000000e+00 : f32
    %36 = vector.broadcast %cst_31 : f32 to vector<8x128xf32>
    %37 = arith.maximumf %35, %36 : vector<8x128xf32>
    %38 = arith.truncf %37 : vector<8x128xf32> to vector<8x128xbf16>
    %c2_32 = arith.constant 2 : index
    %c0_33 = arith.constant 0 : index
    %c0_34 = arith.constant 0 : index
    %39 = vector.load %arg4[%c2_32, %c0_33, %c0_34] : memref<16x128x1024xbf16, #tpu.memory_space<vmem>>, vector<1x128x1024xbf16>
    %40 = vector.shape_cast %39 : vector<1x128x1024xbf16> to vector<128x1024xbf16>
    %cst_35 = arith.constant dense<0.000000e+00> : vector<8x1024xf32>
    %41 = tpu.matmul %38, %40, %cst_35 {dimension_numbers = #tpu.dot_dimension_numbers<[1], [0], [0], [1], [0, 0, 1, 1], [], []>} : vector<8x128xbf16>, vector<128x1024xbf16>, vector<8x1024xf32> -> vector<8x1024xf32>
    %42 = arith.addf %28, %41 : vector<8x1024xf32>
    %c3 = arith.constant 3 : index
    %c0_36 = arith.constant 0 : index
    %c0_37 = arith.constant 0 : index
    %43 = vector.load %arg1[%c3, %c0_36, %c0_37] : memref<16x8x16xbf16, #tpu.memory_space<vmem>>, vector<1x8x16xbf16>
    %44 = vector.shape_cast %43 : vector<1x8x16xbf16> to vector<8x16xbf16>
    %c0_38 = arith.constant 0 : index
    %c0_39 = arith.constant 0 : index
    %45 = vector.load %arg2[%c0_38, %c0_39] : memref<16x128xbf16, #tpu.memory_space<vmem>>, vector<16x128xbf16>
    %cst_40 = arith.constant dense<0.000000e+00> : vector<8x128xf32>
    %46 = tpu.matmul %44, %45, %cst_40 {dimension_numbers = #tpu.dot_dimension_numbers<[1], [0], [0], [1], [0, 0, 1, 1], [], []>} : vector<8x16xbf16>, vector<16x128xbf16>, vector<8x128xf32> -> vector<8x128xf32>
    %c0_41 = arith.constant 0 : index
    %c0_42 = arith.constant 0 : index
    %47 = vector.load %arg3[%c0_41, %c0_42] : memref<1x128xf32, #tpu.memory_space<vmem>>, vector<1x128xf32>
    %48 = vector.broadcast %47 : vector<1x128xf32> to vector<8x128xf32>
    %49 = arith.addf %46, %48 : vector<8x128xf32>
    %cst_43 = arith.constant 0.000000e+00 : f32
    %50 = vector.broadcast %cst_43 : f32 to vector<8x128xf32>
    %51 = arith.maximumf %49, %50 : vector<8x128xf32>
    %52 = arith.truncf %51 : vector<8x128xf32> to vector<8x128xbf16>
    %c3_44 = arith.constant 3 : index
    %c0_45 = arith.constant 0 : index
    %c0_46 = arith.constant 0 : index
    %53 = vector.load %arg4[%c3_44, %c0_45, %c0_46] : memref<16x128x1024xbf16, #tpu.memory_space<vmem>>, vector<1x128x1024xbf16>
    %54 = vector.shape_cast %53 : vector<1x128x1024xbf16> to vector<128x1024xbf16>
    %cst_47 = arith.constant dense<0.000000e+00> : vector<8x1024xf32>
    %55 = tpu.matmul %52, %54, %cst_47 {dimension_numbers = #tpu.dot_dimension_numbers<[1], [0], [0], [1], [0, 0, 1, 1], [], []>} : vector<8x128xbf16>, vector<128x1024xbf16>, vector<8x1024xf32> -> vector<8x1024xf32>
    %56 = arith.addf %42, %55 : vector<8x1024xf32>
    %c4 = arith.constant 4 : index
    %c0_48 = arith.constant 0 : index
    %c0_49 = arith.constant 0 : index
    %57 = vector.load %arg1[%c4, %c0_48, %c0_49] : memref<16x8x16xbf16, #tpu.memory_space<vmem>>, vector<1x8x16xbf16>
    %58 = vector.shape_cast %57 : vector<1x8x16xbf16> to vector<8x16xbf16>
    %c0_50 = arith.constant 0 : index
    %c0_51 = arith.constant 0 : index
    %59 = vector.load %arg2[%c0_50, %c0_51] : memref<16x128xbf16, #tpu.memory_space<vmem>>, vector<16x128xbf16>
    %cst_52 = arith.constant dense<0.000000e+00> : vector<8x128xf32>
    %60 = tpu.matmul %58, %59, %cst_52 {dimension_numbers = #tpu.dot_dimension_numbers<[1], [0], [0], [1], [0, 0, 1, 1], [], []>} : vector<8x16xbf16>, vector<16x128xbf16>, vector<8x128xf32> -> vector<8x128xf32>
    %c0_53 = arith.constant 0 : index
    %c0_54 = arith.constant 0 : index
    %61 = vector.load %arg3[%c0_53, %c0_54] : memref<1x128xf32, #tpu.memory_space<vmem>>, vector<1x128xf32>
    %62 = vector.broadcast %61 : vector<1x128xf32> to vector<8x128xf32>
    %63 = arith.addf %60, %62 : vector<8x128xf32>
    %cst_55 = arith.constant 0.000000e+00 : f32
    %64 = vector.broadcast %cst_55 : f32 to vector<8x128xf32>
    %65 = arith.maximumf %63, %64 : vector<8x128xf32>
    %66 = arith.truncf %65 : vector<8x128xf32> to vector<8x128xbf16>
    %c4_56 = arith.constant 4 : index
    %c0_57 = arith.constant 0 : index
    %c0_58 = arith.constant 0 : index
    %67 = vector.load %arg4[%c4_56, %c0_57, %c0_58] : memref<16x128x1024xbf16, #tpu.memory_space<vmem>>, vector<1x128x1024xbf16>
    %68 = vector.shape_cast %67 : vector<1x128x1024xbf16> to vector<128x1024xbf16>
    %cst_59 = arith.constant dense<0.000000e+00> : vector<8x1024xf32>
    %69 = tpu.matmul %66, %68, %cst_59 {dimension_numbers = #tpu.dot_dimension_numbers<[1], [0], [0], [1], [0, 0, 1, 1], [], []>} : vector<8x128xbf16>, vector<128x1024xbf16>, vector<8x1024xf32> -> vector<8x1024xf32>
    %70 = arith.addf %56, %69 : vector<8x1024xf32>
    %c5 = arith.constant 5 : index
    %c0_60 = arith.constant 0 : index
    %c0_61 = arith.constant 0 : index
    %71 = vector.load %arg1[%c5, %c0_60, %c0_61] : memref<16x8x16xbf16, #tpu.memory_space<vmem>>, vector<1x8x16xbf16>
    %72 = vector.shape_cast %71 : vector<1x8x16xbf16> to vector<8x16xbf16>
    %c0_62 = arith.constant 0 : index
    %c0_63 = arith.constant 0 : index
    %73 = vector.load %arg2[%c0_62, %c0_63] : memref<16x128xbf16, #tpu.memory_space<vmem>>, vector<16x128xbf16>
    %cst_64 = arith.constant dense<0.000000e+00> : vector<8x128xf32>
    %74 = tpu.matmul %72, %73, %cst_64 {dimension_numbers = #tpu.dot_dimension_numbers<[1], [0], [0], [1], [0, 0, 1, 1], [], []>} : vector<8x16xbf16>, vector<16x128xbf16>, vector<8x128xf32> -> vector<8x128xf32>
    %c0_65 = arith.constant 0 : index
    %c0_66 = arith.constant 0 : index
    %75 = vector.load %arg3[%c0_65, %c0_66] : memref<1x128xf32, #tpu.memory_space<vmem>>, vector<1x128xf32>
    %76 = vector.broadcast %75 : vector<1x128xf32> to vector<8x128xf32>
    %77 = arith.addf %74, %76 : vector<8x128xf32>
    %cst_67 = arith.constant 0.000000e+00 : f32
    %78 = vector.broadcast %cst_67 : f32 to vector<8x128xf32>
    %79 = arith.maximumf %77, %78 : vector<8x128xf32>
    %80 = arith.truncf %79 : vector<8x128xf32> to vector<8x128xbf16>
    %c5_68 = arith.constant 5 : index
    %c0_69 = arith.constant 0 : index
    %c0_70 = arith.constant 0 : index
    %81 = vector.load %arg4[%c5_68, %c0_69, %c0_70] : memref<16x128x1024xbf16, #tpu.memory_space<vmem>>, vector<1x128x1024xbf16>
    %82 = vector.shape_cast %81 : vector<1x128x1024xbf16> to vector<128x1024xbf16>
    %cst_71 = arith.constant dense<0.000000e+00> : vector<8x1024xf32>
    %83 = tpu.matmul %80, %82, %cst_71 {dimension_numbers = #tpu.dot_dimension_numbers<[1], [0], [0], [1], [0, 0, 1, 1], [], []>} : vector<8x128xbf16>, vector<128x1024xbf16>, vector<8x1024xf32> -> vector<8x1024xf32>
    %84 = arith.addf %70, %83 : vector<8x1024xf32>
    %c6 = arith.constant 6 : index
    %c0_72 = arith.constant 0 : index
    %c0_73 = arith.constant 0 : index
    %85 = vector.load %arg1[%c6, %c0_72, %c0_73] : memref<16x8x16xbf16, #tpu.memory_space<vmem>>, vector<1x8x16xbf16>
    %86 = vector.shape_cast %85 : vector<1x8x16xbf16> to vector<8x16xbf16>
    %c0_74 = arith.constant 0 : index
    %c0_75 = arith.constant 0 : index
    %87 = vector.load %arg2[%c0_74, %c0_75] : memref<16x128xbf16, #tpu.memory_space<vmem>>, vector<16x128xbf16>
    %cst_76 = arith.constant dense<0.000000e+00> : vector<8x128xf32>
    %88 = tpu.matmul %86, %87, %cst_76 {dimension_numbers = #tpu.dot_dimension_numbers<[1], [0], [0], [1], [0, 0, 1, 1], [], []>} : vector<8x16xbf16>, vector<16x128xbf16>, vector<8x128xf32> -> vector<8x128xf32>
    %c0_77 = arith.constant 0 : index
    %c0_78 = arith.constant 0 : index
    %89 = vector.load %arg3[%c0_77, %c0_78] : memref<1x128xf32, #tpu.memory_space<vmem>>, vector<1x128xf32>
    %90 = vector.broadcast %89 : vector<1x128xf32> to vector<8x128xf32>
    %91 = arith.addf %88, %90 : vector<8x128xf32>
    %cst_79 = arith.constant 0.000000e+00 : f32
    %92 = vector.broadcast %cst_79 : f32 to vector<8x128xf32>
    %93 = arith.maximumf %91, %92 : vector<8x128xf32>
    %94 = arith.truncf %93 : vector<8x128xf32> to vector<8x128xbf16>
    %c6_80 = arith.constant 6 : index
    %c0_81 = arith.constant 0 : index
    %c0_82 = arith.constant 0 : index
    %95 = vector.load %arg4[%c6_80, %c0_81, %c0_82] : memref<16x128x1024xbf16, #tpu.memory_space<vmem>>, vector<1x128x1024xbf16>
    %96 = vector.shape_cast %95 : vector<1x128x1024xbf16> to vector<128x1024xbf16>
    %cst_83 = arith.constant dense<0.000000e+00> : vector<8x1024xf32>
    %97 = tpu.matmul %94, %96, %cst_83 {dimension_numbers = #tpu.dot_dimension_numbers<[1], [0], [0], [1], [0, 0, 1, 1], [], []>} : vector<8x128xbf16>, vector<128x1024xbf16>, vector<8x1024xf32> -> vector<8x1024xf32>
    %98 = arith.addf %84, %97 : vector<8x1024xf32>
    %c7 = arith.constant 7 : index
    %c0_84 = arith.constant 0 : index
    %c0_85 = arith.constant 0 : index
    %99 = vector.load %arg1[%c7, %c0_84, %c0_85] : memref<16x8x16xbf16, #tpu.memory_space<vmem>>, vector<1x8x16xbf16>
    %100 = vector.shape_cast %99 : vector<1x8x16xbf16> to vector<8x16xbf16>
    %c0_86 = arith.constant 0 : index
    %c0_87 = arith.constant 0 : index
    %101 = vector.load %arg2[%c0_86, %c0_87] : memref<16x128xbf16, #tpu.memory_space<vmem>>, vector<16x128xbf16>
    %cst_88 = arith.constant dense<0.000000e+00> : vector<8x128xf32>
    %102 = tpu.matmul %100, %101, %cst_88 {dimension_numbers = #tpu.dot_dimension_numbers<[1], [0], [0], [1], [0, 0, 1, 1], [], []>} : vector<8x16xbf16>, vector<16x128xbf16>, vector<8x128xf32> -> vector<8x128xf32>
    %c0_89 = arith.constant 0 : index
    %c0_90 = arith.constant 0 : index
    %103 = vector.load %arg3[%c0_89, %c0_90] : memref<1x128xf32, #tpu.memory_space<vmem>>, vector<1x128xf32>
    %104 = vector.broadcast %103 : vector<1x128xf32> to vector<8x128xf32>
    %105 = arith.addf %102, %104 : vector<8x128xf32>
    %cst_91 = arith.constant 0.000000e+00 : f32
    %106 = vector.broadcast %cst_91 : f32 to vector<8x128xf32>
    %107 = arith.maximumf %105, %106 : vector<8x128xf32>
    %108 = arith.truncf %107 : vector<8x128xf32> to vector<8x128xbf16>
    %c7_92 = arith.constant 7 : index
    %c0_93 = arith.constant 0 : index
    %c0_94 = arith.constant 0 : index
    %109 = vector.load %arg4[%c7_92, %c0_93, %c0_94] : memref<16x128x1024xbf16, #tpu.memory_space<vmem>>, vector<1x128x1024xbf16>
    %110 = vector.shape_cast %109 : vector<1x128x1024xbf16> to vector<128x1024xbf16>
    %cst_95 = arith.constant dense<0.000000e+00> : vector<8x1024xf32>
    %111 = tpu.matmul %108, %110, %cst_95 {dimension_numbers = #tpu.dot_dimension_numbers<[1], [0], [0], [1], [0, 0, 1, 1], [], []>} : vector<8x128xbf16>, vector<128x1024xbf16>, vector<8x1024xf32> -> vector<8x1024xf32>
    %112 = arith.addf %98, %111 : vector<8x1024xf32>
    %c8 = arith.constant 8 : index
    %c0_96 = arith.constant 0 : index
    %c0_97 = arith.constant 0 : index
    %113 = vector.load %arg1[%c8, %c0_96, %c0_97] : memref<16x8x16xbf16, #tpu.memory_space<vmem>>, vector<1x8x16xbf16>
    %114 = vector.shape_cast %113 : vector<1x8x16xbf16> to vector<8x16xbf16>
    %c0_98 = arith.constant 0 : index
    %c0_99 = arith.constant 0 : index
    %115 = vector.load %arg2[%c0_98, %c0_99] : memref<16x128xbf16, #tpu.memory_space<vmem>>, vector<16x128xbf16>
    %cst_100 = arith.constant dense<0.000000e+00> : vector<8x128xf32>
    %116 = tpu.matmul %114, %115, %cst_100 {dimension_numbers = #tpu.dot_dimension_numbers<[1], [0], [0], [1], [0, 0, 1, 1], [], []>} : vector<8x16xbf16>, vector<16x128xbf16>, vector<8x128xf32> -> vector<8x128xf32>
    %c0_101 = arith.constant 0 : index
    %c0_102 = arith.constant 0 : index
    %117 = vector.load %arg3[%c0_101, %c0_102] : memref<1x128xf32, #tpu.memory_space<vmem>>, vector<1x128xf32>
    %118 = vector.broadcast %117 : vector<1x128xf32> to vector<8x128xf32>
    %119 = arith.addf %116, %118 : vector<8x128xf32>
    %cst_103 = arith.constant 0.000000e+00 : f32
    %120 = vector.broadcast %cst_103 : f32 to vector<8x128xf32>
    %121 = arith.maximumf %119, %120 : vector<8x128xf32>
    %122 = arith.truncf %121 : vector<8x128xf32> to vector<8x128xbf16>
    %c8_104 = arith.constant 8 : index
    %c0_105 = arith.constant 0 : index
    %c0_106 = arith.constant 0 : index
    %123 = vector.load %arg4[%c8_104, %c0_105, %c0_106] : memref<16x128x1024xbf16, #tpu.memory_space<vmem>>, vector<1x128x1024xbf16>
    %124 = vector.shape_cast %123 : vector<1x128x1024xbf16> to vector<128x1024xbf16>
    %cst_107 = arith.constant dense<0.000000e+00> : vector<8x1024xf32>
    %125 = tpu.matmul %122, %124, %cst_107 {dimension_numbers = #tpu.dot_dimension_numbers<[1], [0], [0], [1], [0, 0, 1, 1], [], []>} : vector<8x128xbf16>, vector<128x1024xbf16>, vector<8x1024xf32> -> vector<8x1024xf32>
    %126 = arith.addf %112, %125 : vector<8x1024xf32>
    %c9 = arith.constant 9 : index
    %c0_108 = arith.constant 0 : index
    %c0_109 = arith.constant 0 : index
    %127 = vector.load %arg1[%c9, %c0_108, %c0_109] : memref<16x8x16xbf16, #tpu.memory_space<vmem>>, vector<1x8x16xbf16>
    %128 = vector.shape_cast %127 : vector<1x8x16xbf16> to vector<8x16xbf16>
    %c0_110 = arith.constant 0 : index
    %c0_111 = arith.constant 0 : index
    %129 = vector.load %arg2[%c0_110, %c0_111] : memref<16x128xbf16, #tpu.memory_space<vmem>>, vector<16x128xbf16>
    %cst_112 = arith.constant dense<0.000000e+00> : vector<8x128xf32>
    %130 = tpu.matmul %128, %129, %cst_112 {dimension_numbers = #tpu.dot_dimension_numbers<[1], [0], [0], [1], [0, 0, 1, 1], [], []>} : vector<8x16xbf16>, vector<16x128xbf16>, vector<8x128xf32> -> vector<8x128xf32>
    %c0_113 = arith.constant 0 : index
    %c0_114 = arith.constant 0 : index
    %131 = vector.load %arg3[%c0_113, %c0_114] : memref<1x128xf32, #tpu.memory_space<vmem>>, vector<1x128xf32>
    %132 = vector.broadcast %131 : vector<1x128xf32> to vector<8x128xf32>
    %133 = arith.addf %130, %132 : vector<8x128xf32>
    %cst_115 = arith.constant 0.000000e+00 : f32
    %134 = vector.broadcast %cst_115 : f32 to vector<8x128xf32>
    %135 = arith.maximumf %133, %134 : vector<8x128xf32>
    %136 = arith.truncf %135 : vector<8x128xf32> to vector<8x128xbf16>
    %c9_116 = arith.constant 9 : index
    %c0_117 = arith.constant 0 : index
    %c0_118 = arith.constant 0 : index
    %137 = vector.load %arg4[%c9_116, %c0_117, %c0_118] : memref<16x128x1024xbf16, #tpu.memory_space<vmem>>, vector<1x128x1024xbf16>
    %138 = vector.shape_cast %137 : vector<1x128x1024xbf16> to vector<128x1024xbf16>
    %cst_119 = arith.constant dense<0.000000e+00> : vector<8x1024xf32>
    %139 = tpu.matmul %136, %138, %cst_119 {dimension_numbers = #tpu.dot_dimension_numbers<[1], [0], [0], [1], [0, 0, 1, 1], [], []>} : vector<8x128xbf16>, vector<128x1024xbf16>, vector<8x1024xf32> -> vector<8x1024xf32>
    %140 = arith.addf %126, %139 : vector<8x1024xf32>
    %c10 = arith.constant 10 : index
    %c0_120 = arith.constant 0 : index
    %c0_121 = arith.constant 0 : index
    %141 = vector.load %arg1[%c10, %c0_120, %c0_121] : memref<16x8x16xbf16, #tpu.memory_space<vmem>>, vector<1x8x16xbf16>
    %142 = vector.shape_cast %141 : vector<1x8x16xbf16> to vector<8x16xbf16>
    %c0_122 = arith.constant 0 : index
    %c0_123 = arith.constant 0 : index
    %143 = vector.load %arg2[%c0_122, %c0_123] : memref<16x128xbf16, #tpu.memory_space<vmem>>, vector<16x128xbf16>
    %cst_124 = arith.constant dense<0.000000e+00> : vector<8x128xf32>
    %144 = tpu.matmul %142, %143, %cst_124 {dimension_numbers = #tpu.dot_dimension_numbers<[1], [0], [0], [1], [0, 0, 1, 1], [], []>} : vector<8x16xbf16>, vector<16x128xbf16>, vector<8x128xf32> -> vector<8x128xf32>
    %c0_125 = arith.constant 0 : index
    %c0_126 = arith.constant 0 : index
    %145 = vector.load %arg3[%c0_125, %c0_126] : memref<1x128xf32, #tpu.memory_space<vmem>>, vector<1x128xf32>
    %146 = vector.broadcast %145 : vector<1x128xf32> to vector<8x128xf32>
    %147 = arith.addf %144, %146 : vector<8x128xf32>
    %cst_127 = arith.constant 0.000000e+00 : f32
    %148 = vector.broadcast %cst_127 : f32 to vector<8x128xf32>
    %149 = arith.maximumf %147, %148 : vector<8x128xf32>
    %150 = arith.truncf %149 : vector<8x128xf32> to vector<8x128xbf16>
    %c10_128 = arith.constant 10 : index
    %c0_129 = arith.constant 0 : index
    %c0_130 = arith.constant 0 : index
    %151 = vector.load %arg4[%c10_128, %c0_129, %c0_130] : memref<16x128x1024xbf16, #tpu.memory_space<vmem>>, vector<1x128x1024xbf16>
    %152 = vector.shape_cast %151 : vector<1x128x1024xbf16> to vector<128x1024xbf16>
    %cst_131 = arith.constant dense<0.000000e+00> : vector<8x1024xf32>
    %153 = tpu.matmul %150, %152, %cst_131 {dimension_numbers = #tpu.dot_dimension_numbers<[1], [0], [0], [1], [0, 0, 1, 1], [], []>} : vector<8x128xbf16>, vector<128x1024xbf16>, vector<8x1024xf32> -> vector<8x1024xf32>
    %154 = arith.addf %140, %153 : vector<8x1024xf32>
    %c11 = arith.constant 11 : index
    %c0_132 = arith.constant 0 : index
    %c0_133 = arith.constant 0 : index
    %155 = vector.load %arg1[%c11, %c0_132, %c0_133] : memref<16x8x16xbf16, #tpu.memory_space<vmem>>, vector<1x8x16xbf16>
    %156 = vector.shape_cast %155 : vector<1x8x16xbf16> to vector<8x16xbf16>
    %c0_134 = arith.constant 0 : index
    %c0_135 = arith.constant 0 : index
    %157 = vector.load %arg2[%c0_134, %c0_135] : memref<16x128xbf16, #tpu.memory_space<vmem>>, vector<16x128xbf16>
    %cst_136 = arith.constant dense<0.000000e+00> : vector<8x128xf32>
    %158 = tpu.matmul %156, %157, %cst_136 {dimension_numbers = #tpu.dot_dimension_numbers<[1], [0], [0], [1], [0, 0, 1, 1], [], []>} : vector<8x16xbf16>, vector<16x128xbf16>, vector<8x128xf32> -> vector<8x128xf32>
    %c0_137 = arith.constant 0 : index
    %c0_138 = arith.constant 0 : index
    %159 = vector.load %arg3[%c0_137, %c0_138] : memref<1x128xf32, #tpu.memory_space<vmem>>, vector<1x128xf32>
    %160 = vector.broadcast %159 : vector<1x128xf32> to vector<8x128xf32>
    %161 = arith.addf %158, %160 : vector<8x128xf32>
    %cst_139 = arith.constant 0.000000e+00 : f32
    %162 = vector.broadcast %cst_139 : f32 to vector<8x128xf32>
    %163 = arith.maximumf %161, %162 : vector<8x128xf32>
    %164 = arith.truncf %163 : vector<8x128xf32> to vector<8x128xbf16>
    %c11_140 = arith.constant 11 : index
    %c0_141 = arith.constant 0 : index
    %c0_142 = arith.constant 0 : index
    %165 = vector.load %arg4[%c11_140, %c0_141, %c0_142] : memref<16x128x1024xbf16, #tpu.memory_space<vmem>>, vector<1x128x1024xbf16>
    %166 = vector.shape_cast %165 : vector<1x128x1024xbf16> to vector<128x1024xbf16>
    %cst_143 = arith.constant dense<0.000000e+00> : vector<8x1024xf32>
    %167 = tpu.matmul %164, %166, %cst_143 {dimension_numbers = #tpu.dot_dimension_numbers<[1], [0], [0], [1], [0, 0, 1, 1], [], []>} : vector<8x128xbf16>, vector<128x1024xbf16>, vector<8x1024xf32> -> vector<8x1024xf32>
    %168 = arith.addf %154, %167 : vector<8x1024xf32>
    %c12 = arith.constant 12 : index
    %c0_144 = arith.constant 0 : index
    %c0_145 = arith.constant 0 : index
    %169 = vector.load %arg1[%c12, %c0_144, %c0_145] : memref<16x8x16xbf16, #tpu.memory_space<vmem>>, vector<1x8x16xbf16>
    %170 = vector.shape_cast %169 : vector<1x8x16xbf16> to vector<8x16xbf16>
    %c0_146 = arith.constant 0 : index
    %c0_147 = arith.constant 0 : index
    %171 = vector.load %arg2[%c0_146, %c0_147] : memref<16x128xbf16, #tpu.memory_space<vmem>>, vector<16x128xbf16>
    %cst_148 = arith.constant dense<0.000000e+00> : vector<8x128xf32>
    %172 = tpu.matmul %170, %171, %cst_148 {dimension_numbers = #tpu.dot_dimension_numbers<[1], [0], [0], [1], [0, 0, 1, 1], [], []>} : vector<8x16xbf16>, vector<16x128xbf16>, vector<8x128xf32> -> vector<8x128xf32>
    %c0_149 = arith.constant 0 : index
    %c0_150 = arith.constant 0 : index
    %173 = vector.load %arg3[%c0_149, %c0_150] : memref<1x128xf32, #tpu.memory_space<vmem>>, vector<1x128xf32>
    %174 = vector.broadcast %173 : vector<1x128xf32> to vector<8x128xf32>
    %175 = arith.addf %172, %174 : vector<8x128xf32>
    %cst_151 = arith.constant 0.000000e+00 : f32
    %176 = vector.broadcast %cst_151 : f32 to vector<8x128xf32>
    %177 = arith.maximumf %175, %176 : vector<8x128xf32>
    %178 = arith.truncf %177 : vector<8x128xf32> to vector<8x128xbf16>
    %c12_152 = arith.constant 12 : index
    %c0_153 = arith.constant 0 : index
    %c0_154 = arith.constant 0 : index
    %179 = vector.load %arg4[%c12_152, %c0_153, %c0_154] : memref<16x128x1024xbf16, #tpu.memory_space<vmem>>, vector<1x128x1024xbf16>
    %180 = vector.shape_cast %179 : vector<1x128x1024xbf16> to vector<128x1024xbf16>
    %cst_155 = arith.constant dense<0.000000e+00> : vector<8x1024xf32>
    %181 = tpu.matmul %178, %180, %cst_155 {dimension_numbers = #tpu.dot_dimension_numbers<[1], [0], [0], [1], [0, 0, 1, 1], [], []>} : vector<8x128xbf16>, vector<128x1024xbf16>, vector<8x1024xf32> -> vector<8x1024xf32>
    %182 = arith.addf %168, %181 : vector<8x1024xf32>
    %c13 = arith.constant 13 : index
    %c0_156 = arith.constant 0 : index
    %c0_157 = arith.constant 0 : index
    %183 = vector.load %arg1[%c13, %c0_156, %c0_157] : memref<16x8x16xbf16, #tpu.memory_space<vmem>>, vector<1x8x16xbf16>
    %184 = vector.shape_cast %183 : vector<1x8x16xbf16> to vector<8x16xbf16>
    %c0_158 = arith.constant 0 : index
    %c0_159 = arith.constant 0 : index
    %185 = vector.load %arg2[%c0_158, %c0_159] : memref<16x128xbf16, #tpu.memory_space<vmem>>, vector<16x128xbf16>
    %cst_160 = arith.constant dense<0.000000e+00> : vector<8x128xf32>
    %186 = tpu.matmul %184, %185, %cst_160 {dimension_numbers = #tpu.dot_dimension_numbers<[1], [0], [0], [1], [0, 0, 1, 1], [], []>} : vector<8x16xbf16>, vector<16x128xbf16>, vector<8x128xf32> -> vector<8x128xf32>
    %c0_161 = arith.constant 0 : index
    %c0_162 = arith.constant 0 : index
    %187 = vector.load %arg3[%c0_161, %c0_162] : memref<1x128xf32, #tpu.memory_space<vmem>>, vector<1x128xf32>
    %188 = vector.broadcast %187 : vector<1x128xf32> to vector<8x128xf32>
    %189 = arith.addf %186, %188 : vector<8x128xf32>
    %cst_163 = arith.constant 0.000000e+00 : f32
    %190 = vector.broadcast %cst_163 : f32 to vector<8x128xf32>
    %191 = arith.maximumf %189, %190 : vector<8x128xf32>
    %192 = arith.truncf %191 : vector<8x128xf32> to vector<8x128xbf16>
    %c13_164 = arith.constant 13 : index
    %c0_165 = arith.constant 0 : index
    %c0_166 = arith.constant 0 : index
    %193 = vector.load %arg4[%c13_164, %c0_165, %c0_166] : memref<16x128x1024xbf16, #tpu.memory_space<vmem>>, vector<1x128x1024xbf16>
    %194 = vector.shape_cast %193 : vector<1x128x1024xbf16> to vector<128x1024xbf16>
    %cst_167 = arith.constant dense<0.000000e+00> : vector<8x1024xf32>
    %195 = tpu.matmul %192, %194, %cst_167 {dimension_numbers = #tpu.dot_dimension_numbers<[1], [0], [0], [1], [0, 0, 1, 1], [], []>} : vector<8x128xbf16>, vector<128x1024xbf16>, vector<8x1024xf32> -> vector<8x1024xf32>
    %196 = arith.addf %182, %195 : vector<8x1024xf32>
    %c14 = arith.constant 14 : index
    %c0_168 = arith.constant 0 : index
    %c0_169 = arith.constant 0 : index
    %197 = vector.load %arg1[%c14, %c0_168, %c0_169] : memref<16x8x16xbf16, #tpu.memory_space<vmem>>, vector<1x8x16xbf16>
    %198 = vector.shape_cast %197 : vector<1x8x16xbf16> to vector<8x16xbf16>
    %c0_170 = arith.constant 0 : index
    %c0_171 = arith.constant 0 : index
    %199 = vector.load %arg2[%c0_170, %c0_171] : memref<16x128xbf16, #tpu.memory_space<vmem>>, vector<16x128xbf16>
    %cst_172 = arith.constant dense<0.000000e+00> : vector<8x128xf32>
    %200 = tpu.matmul %198, %199, %cst_172 {dimension_numbers = #tpu.dot_dimension_numbers<[1], [0], [0], [1], [0, 0, 1, 1], [], []>} : vector<8x16xbf16>, vector<16x128xbf16>, vector<8x128xf32> -> vector<8x128xf32>
    %c0_173 = arith.constant 0 : index
    %c0_174 = arith.constant 0 : index
    %201 = vector.load %arg3[%c0_173, %c0_174] : memref<1x128xf32, #tpu.memory_space<vmem>>, vector<1x128xf32>
    %202 = vector.broadcast %201 : vector<1x128xf32> to vector<8x128xf32>
    %203 = arith.addf %200, %202 : vector<8x128xf32>
    %cst_175 = arith.constant 0.000000e+00 : f32
    %204 = vector.broadcast %cst_175 : f32 to vector<8x128xf32>
    %205 = arith.maximumf %203, %204 : vector<8x128xf32>
    %206 = arith.truncf %205 : vector<8x128xf32> to vector<8x128xbf16>
    %c14_176 = arith.constant 14 : index
    %c0_177 = arith.constant 0 : index
    %c0_178 = arith.constant 0 : index
    %207 = vector.load %arg4[%c14_176, %c0_177, %c0_178] : memref<16x128x1024xbf16, #tpu.memory_space<vmem>>, vector<1x128x1024xbf16>
    %208 = vector.shape_cast %207 : vector<1x128x1024xbf16> to vector<128x1024xbf16>
    %cst_179 = arith.constant dense<0.000000e+00> : vector<8x1024xf32>
    %209 = tpu.matmul %206, %208, %cst_179 {dimension_numbers = #tpu.dot_dimension_numbers<[1], [0], [0], [1], [0, 0, 1, 1], [], []>} : vector<8x128xbf16>, vector<128x1024xbf16>, vector<8x1024xf32> -> vector<8x1024xf32>
    %210 = arith.addf %196, %209 : vector<8x1024xf32>
    %c15 = arith.constant 15 : index
    %c0_180 = arith.constant 0 : index
    %c0_181 = arith.constant 0 : index
    %211 = vector.load %arg1[%c15, %c0_180, %c0_181] : memref<16x8x16xbf16, #tpu.memory_space<vmem>>, vector<1x8x16xbf16>
    %212 = vector.shape_cast %211 : vector<1x8x16xbf16> to vector<8x16xbf16>
    %c0_182 = arith.constant 0 : index
    %c0_183 = arith.constant 0 : index
    %213 = vector.load %arg2[%c0_182, %c0_183] : memref<16x128xbf16, #tpu.memory_space<vmem>>, vector<16x128xbf16>
    %cst_184 = arith.constant dense<0.000000e+00> : vector<8x128xf32>
    %214 = tpu.matmul %212, %213, %cst_184 {dimension_numbers = #tpu.dot_dimension_numbers<[1], [0], [0], [1], [0, 0, 1, 1], [], []>} : vector<8x16xbf16>, vector<16x128xbf16>, vector<8x128xf32> -> vector<8x128xf32>
    %c0_185 = arith.constant 0 : index
    %c0_186 = arith.constant 0 : index
    %215 = vector.load %arg3[%c0_185, %c0_186] : memref<1x128xf32, #tpu.memory_space<vmem>>, vector<1x128xf32>
    %216 = vector.broadcast %215 : vector<1x128xf32> to vector<8x128xf32>
    %217 = arith.addf %214, %216 : vector<8x128xf32>
    %cst_187 = arith.constant 0.000000e+00 : f32
    %218 = vector.broadcast %cst_187 : f32 to vector<8x128xf32>
    %219 = arith.maximumf %217, %218 : vector<8x128xf32>
    %220 = arith.truncf %219 : vector<8x128xf32> to vector<8x128xbf16>
    %c15_188 = arith.constant 15 : index
    %c0_189 = arith.constant 0 : index
    %c0_190 = arith.constant 0 : index
    %221 = vector.load %arg4[%c15_188, %c0_189, %c0_190] : memref<16x128x1024xbf16, #tpu.memory_space<vmem>>, vector<1x128x1024xbf16>
    %222 = vector.shape_cast %221 : vector<1x128x1024xbf16> to vector<128x1024xbf16>
    %cst_191 = arith.constant dense<0.000000e+00> : vector<8x1024xf32>
    %223 = tpu.matmul %220, %222, %cst_191 {dimension_numbers = #tpu.dot_dimension_numbers<[1], [0], [0], [1], [0, 0, 1, 1], [], []>} : vector<8x128xbf16>, vector<128x1024xbf16>, vector<8x1024xf32> -> vector<8x1024xf32>
    %224 = arith.addf %210, %223 : vector<8x1024xf32>
    %c0_192 = arith.constant 0 : index
    %c0_193 = arith.constant 0 : index
    %225 = vector.load %arg5[%c0_192, %c0_193] : memref<1x1024xf32, #tpu.memory_space<vmem>>, vector<1x1024xf32>
    %226 = vector.broadcast %225 : vector<1x1024xf32> to vector<8x1024xf32>
    %227 = arith.addf %224, %226 : vector<8x1024xf32>
    %cst_194 = arith.constant 0.000000e+00 : f32
    %228 = vector.broadcast %cst_194 : f32 to vector<8x1024xf32>
    %229 = arith.maximumf %227, %228 : vector<8x1024xf32>
    %230 = arith.truncf %229 : vector<8x1024xf32> to vector<8x1024xbf16>
    %c0_195 = arith.constant 0 : index
    %c0_196 = arith.constant 0 : index
    %231 = vector.load %arg6[%c0_195, %c0_196] : memref<1024x128xbf16, #tpu.memory_space<vmem>>, vector<1024x128xbf16>
    %cst_197 = arith.constant dense<0.000000e+00> : vector<8x128xf32>
    %232 = tpu.matmul %230, %231, %cst_197 {dimension_numbers = #tpu.dot_dimension_numbers<[1], [0], [0], [1], [0, 0, 1, 1], [], []>} : vector<8x1024xbf16>, vector<1024x128xbf16>, vector<8x128xf32> -> vector<8x128xf32>
    %c0_198 = arith.constant 0 : index
    %c0_199 = arith.constant 0 : index
    %233 = vector.load %arg7[%c0_198, %c0_199] : memref<1x128xf32, #tpu.memory_space<vmem>>, vector<1x128xf32>
    %234 = vector.broadcast %233 : vector<1x128xf32> to vector<8x128xf32>
    %235 = arith.addf %232, %234 : vector<8x128xf32>
    %c0_200 = arith.constant 0 : index
    %c0_201 = arith.constant 0 : index
    %236 = vector.load %arg8[%c0_200, %c0_201] : memref<8x128xf32, #tpu.memory_space<vmem>>, vector<8x128xf32>
    tpu.vector_store %arg8[%c0_200, %c0_201], %235 {strides = array<i32>} : memref<8x128xf32, #tpu.memory_space<vmem>>, vector<8x128xf32>,
    return
  }
  func.func @transform_0(%arg0: i32) -> (i32, i32, i32) {
    %c0_i32 = arith.constant 0 : i32
    %c0_i32_0 = arith.constant 0 : i32
    %c0_i32_1 = arith.constant 0 : i32
    return %c0_i32, %arg0, %c0_i32_0 : i32, i32, i32
  }
  func.func @transform_1(%arg0: i32) -> (i32, i32) {
    %c0_i32 = arith.constant 0 : i32
    %c0_i32_0 = arith.constant 0 : i32
    %c0_i32_1 = arith.constant 0 : i32
    return %c0_i32, %c0_i32_0 : i32, i32
  }
  func.func @transform_2(%arg0: i32) -> (i32, i32) {
    %c0_i32 = arith.constant 0 : i32
    %c0_i32_0 = arith.constant 0 : i32
    %c0_i32_1 = arith.constant 0 : i32
    return %c0_i32, %c0_i32_0 : i32, i32
  }
  func.func @transform_3(%arg0: i32) -> (i32, i32, i32) {
    %c0_i32 = arith.constant 0 : i32
    %c0_i32_0 = arith.constant 0 : i32
    %c0_i32_1 = arith.constant 0 : i32
    %c0_i32_2 = arith.constant 0 : i32
    return %c0_i32, %c0_i32_0, %c0_i32_1 : i32, i32, i32
  }
  func.func @transform_4(%arg0: i32) -> (i32, i32) {
    %c0_i32 = arith.constant 0 : i32
    %c0_i32_0 = arith.constant 0 : i32
    %c0_i32_1 = arith.constant 0 : i32
    return %c0_i32, %c0_i32_0 : i32, i32
  }
  func.func @transform_5(%arg0: i32) -> (i32, i32) {
    %c0_i32 = arith.constant 0 : i32
    %c0_i32_0 = arith.constant 0 : i32
    %c0_i32_1 = arith.constant 0 : i32
    return %c0_i32, %c0_i32_0 : i32, i32
  }
  func.func @transform_6(%arg0: i32) -> (i32, i32) {
    %c0_i32 = arith.constant 0 : i32
    %c0_i32_0 = arith.constant 0 : i32
    %c0_i32_1 = arith.constant 0 : i32
    return %c0_i32, %c0_i32_0 : i32, i32
  }
  func.func @transform_7(%arg0: i32) -> (i32, i32) {
    %c0_i32 = arith.constant 0 : i32
    %c0_i32_0 = arith.constant 0 : i32
    return %arg0, %c0_i32 : i32, i32
  }
}

</mosaic_0001>

<llo_original>
// kernel: inception_aux.1
$region0: #{inception_aux.1}
  #allocation0 [shape = 'u32[]', space=smem, size = 0x4, offset = 0x4, fixed_abs, tag = 'smem constant byte address 0x4 - core index']
  #allocation1 [shape = 'u32[144,128]{1,0:T(1,128)}', space=vmem, size = 0x12000, scoped, tag = 'internal scratch']
  %s0 = inlined_call_operand.vmem [shape: bf16[16,8,16], index: 0, kind: input, shape index: {}]
  %s1 = inlined_call_operand.hbm [shape: bf16[16,128], index: 1, kind: input, shape index: {}]
  %s2 = inlined_call_operand.hbm [shape: f32[1,128], index: 2, kind: input, shape index: {}]
  %s3 = inlined_call_operand.hbm [shape: bf16[16,128,1024], index: 3, kind: input, shape index: {}]
  %s4 = inlined_call_operand.hbm [shape: f32[1,1024], index: 4, kind: input, shape index: {}]
  %s5 = inlined_call_operand.hbm [shape: bf16[1024,128], index: 5, kind: input, shape index: {}]
  %s6 = inlined_call_operand.hbm [shape: f32[1,128], index: 6, kind: input, shape index: {}]
  %s7 = inlined_call_operand.vmem [shape: f32[8,128], index: 7, kind: output, shape index: {}]
  %s8 = sld [smem:[#allocation0]]
  $region62: #{inception_aux.1} parent=0
    _
  %s10 = ssub.s32 1, %s8
  %s11 = scalar_select 0, %s10, %s8
  $region1: #{inception_aux.1} parent=0
    #allocation2 [shape = 'u8[4096]{0}', space=vmem, size = 0x1000, scoped, tag = 'input window, operand 1, single buffered']
    #allocation3 [shape = 's32[1]{0}', space=sflag, size = 0x4, scoped, tag = 'scoped memory for inception_aux.1']
    #allocation4 [shape = 'u8[512]{0}', space=vmem, size = 0x400, scoped, tag = 'input window, operand 2, single buffered']
    #allocation5 [shape = 's32[1]{0}', space=sflag, size = 0x4, scoped, tag = 'scoped memory for inception_aux.1']
    #allocation6 [shape = 'u8[4194304]{0}', space=vmem, size = 0x400000, scoped, tag = 'input window, operand 3, single buffered']
    #allocation7 [shape = 'u8[4096]{0}', space=vmem, size = 0x1000, scoped, tag = 'input window, operand 4, single buffered']
    #allocation8 [shape = 's32[1]{0}', space=sflag, size = 0x4, scoped, tag = 'scoped memory for inception_aux.1']
    #allocation9 [shape = 'u8[262144]{0}', space=vmem, size = 0x40000, scoped, tag = 'input window, operand 5, single buffered']
    #allocation10 [shape = 'u8[512]{0}', space=vmem, size = 0x400, scoped, tag = 'input window, operand 6, single buffered']
    #allocation11 [shape = 's32[1]{0}', space=sflag, size = 0x4, scoped, tag = 'scoped memory for inception_aux.1']
    %12 = vsyncpa [#allocation3], 0
    %13 = vsyncpa [#allocation5], 0
    %14 = vsyncpa [#allocation8], 0
    %15 = vsyncpa [#allocation11], 0
    // Predicated region
    $region2: #{inception_aux.1} parent=1 // pred_check
      _
    $region3: #{inception_aux.1} parent=1 // pred_check_branch
      %17 = sbr.rel (0) target = $region5
    $region4: #{inception_aux.1} parent=1 // pred_region
      _
    $region5: #{inception_aux.1} parent=1 // pred_fallthru
      _
    // Predicated region
    $region6: #{inception_aux.1} parent=1 // pred_check
      _
    $region7: #{inception_aux.1} parent=1 // pred_check_branch
      %19 = sbr.rel (0) target = $region9
    $region8: #{inception_aux.1} parent=1 // pred_region
      %s21 = ssub.s32 128, 128
      %22 = vsyncadd [#allocation3], %s21
      %s23 = sshll.u32 [#allocation2], 4
      %s24 = int_to_ptr.vmem [resolvable:$true] %s23
      %29 = dma.hbm_to_vmem [thread:$0]  %s1, 128, %s24, [#allocation3], 64, 64, 4
    $region9: #{inception_aux.1} parent=1 // pred_fallthru
      _
    // Predicated region
    $region10: #{inception_aux.1} parent=1 // pred_check
      _
    $region11: #{inception_aux.1} parent=1 // pred_check_branch
      %31 = sbr.rel (0) target = $region13
    $region12: #{inception_aux.1} parent=1 // pred_region
      %s33 = ssub.s32 16, 16
      %34 = vsyncadd [#allocation5], %s33
      %s36 = sshll.u32 [#allocation4], 4
      %s37 = int_to_ptr.vmem [resolvable:$true] %s36
      %39 = dma.hbm_to_vmem [thread:$0]  %s2, 16, %s37, [#allocation5]
    $region13: #{inception_aux.1} parent=1 // pred_fallthru
      _
    // Predicated region
    $region14: #{inception_aux.1} parent=1 // pred_check
      _
    $region15: #{inception_aux.1} parent=1 // pred_check_branch
      %41 = sbr.rel (0) target = $region17
    $region16: #{inception_aux.1} parent=1 // pred_region
      %s43 = ssub.s32 131072, 131072
      %44 = vsyncadd [#allocation5], %s43
      %s45 = sshll.u32 [#allocation6], 4
      %s46 = int_to_ptr.vmem [resolvable:$true] %s45
      %51 = dma.hbm_to_vmem [thread:$0]  %s3, 131072, %s46, [#allocation5], 512, 512, 32
    $region17: #{inception_aux.1} parent=1 // pred_fallthru
      _
    // Predicated region
    $region18: #{inception_aux.1} parent=1 // pred_check
      _
    $region19: #{inception_aux.1} parent=1 // pred_check_branch
      %53 = sbr.rel (0) target = $region21
    $region20: #{inception_aux.1} parent=1 // pred_region
      %s55 = ssub.s32 128, 128
      %56 = vsyncadd [#allocation8], %s55
      %s58 = sshll.u32 [#allocation7], 4
      %s59 = int_to_ptr.vmem [resolvable:$true] %s58
      %61 = dma.hbm_to_vmem [thread:$0]  %s4, 128, %s59, [#allocation8]
    $region21: #{inception_aux.1} parent=1 // pred_fallthru
      _
    // Predicated region
    $region22: #{inception_aux.1} parent=1 // pred_check
      _
    $region23: #{inception_aux.1} parent=1 // pred_check_branch
      %63 = sbr.rel (0) target = $region25
    $region24: #{inception_aux.1} parent=1 // pred_region
      %s65 = ssub.s32 8192, 8192
      %66 = vsyncadd [#allocation8], %s65
      %s67 = sshll.u32 [#allocation9], 4
      %s68 = int_to_ptr.vmem [resolvable:$true] %s67
      %73 = dma.hbm_to_vmem [thread:$0]  %s5, 8192, %s68, [#allocation8], 64, 64, 4
    $region25: #{inception_aux.1} parent=1 // pred_fallthru
      _
    // Predicated region
    $region26: #{inception_aux.1} parent=1 // pred_check
      _
    $region27: #{inception_aux.1} parent=1 // pred_check_branch
      %75 = sbr.rel (0) target = $region29
    $region28: #{inception_aux.1} parent=1 // pred_region
      %s77 = ssub.s32 16, 16
      %78 = vsyncadd [#allocation11], %s77
      %s80 = sshll.u32 [#allocation10], 4
      %s81 = int_to_ptr.vmem [resolvable:$true] %s80
      %83 = dma.hbm_to_vmem [thread:$0]  %s6, 16, %s81, [#allocation11]
    $region29: #{inception_aux.1} parent=1 // pred_fallthru
      _
    // Predicated region
    $region30: #{inception_aux.1} parent=1 // pred_check
      _
    $region31: #{inception_aux.1} parent=1 // pred_check_branch
      %85 = sbr.rel (0) target = $region33
    $region32: #{inception_aux.1} parent=1 // pred_region
      %86 = dma.done [#allocation3], 128
    $region33: #{inception_aux.1} parent=1 // pred_fallthru
      _
    // Predicated region
    $region34: #{inception_aux.1} parent=1 // pred_check
      _
    $region35: #{inception_aux.1} parent=1 // pred_check_branch
      %88 = sbr.rel (0) target = $region37
    $region36: #{inception_aux.1} parent=1 // pred_region
      %89 = dma.done [#allocation5], 16
    $region37: #{inception_aux.1} parent=1 // pred_fallthru
      _
    // Predicated region
    $region38: #{inception_aux.1} parent=1 // pred_check
      _
    $region39: #{inception_aux.1} parent=1 // pred_check_branch
      %91 = sbr.rel (0) target = $region41
    $region40: #{inception_aux.1} parent=1 // pred_region
      %92 = dma.done [#allocation5], 131072
    $region41: #{inception_aux.1} parent=1 // pred_fallthru
      _
    // Predicated region
    $region42: #{inception_aux.1} parent=1 // pred_check
      _
    $region43: #{inception_aux.1} parent=1 // pred_check_branch
      %94 = sbr.rel (0) target = $region45
    $region44: #{inception_aux.1} parent=1 // pred_region
      %95 = dma.done [#allocation8], 128
    $region45: #{inception_aux.1} parent=1 // pred_fallthru
      _
    // Predicated region
    $region46: #{inception_aux.1} parent=1 // pred_check
      _
    $region47: #{inception_aux.1} parent=1 // pred_check_branch
      %97 = sbr.rel (0) target = $region49
    $region48: #{inception_aux.1} parent=1 // pred_region
      %98 = dma.done [#allocation8], 8192
    $region49: #{inception_aux.1} parent=1 // pred_fallthru
      _
    // Predicated region
    $region50: #{inception_aux.1} parent=1 // pred_check
      _
    $region51: #{inception_aux.1} parent=1 // pred_check_branch
      %100 = sbr.rel (0) target = $region53
    $region52: #{inception_aux.1} parent=1 // pred_region
      %101 = dma.done [#allocation11], 16
    $region53: #{inception_aux.1} parent=1 // pred_fallthru
      _
    %v103 = vld [vmem:[%s0] sm:$0xf]
    %v104 = vld [vmem:[#allocation2] sm:$0xf]
    %v105 = vld [vmem:[#allocation2 + $0x4] sm:$0xf]
    %v106 = vld [vmem:[#allocation4] sm:$0x1]
    %v108 = vlaneseq
    %v109 = vshrl.u32 %v108, 7
    %v110 = vsub.s32 0, %v109
    %v111 = vrot.slane %v106, %v110
    %v115 = vunpack.c.l.b16 %v104
    %v116 = vunpack.c.l.b16 %v105
    %v117 = vpack.c.b16 %v116, %v115
    %vm119 = vcmask 130048
    %v121 = vsel %vm119, %v103, 0
    %123 = vmatprep.subr.bf16.mxu0 0
    %124 = vmatpush1.bf16.msra.mxu0 0
    %125 = vmatprep.subr.bf16.mxu0 0
    %126 = vmatpush1.bf16.msra.mxu0 0
    %127 = vmatprep.subr.bf16.mxu0 0
    %128 = vmatpush1.bf16.msra.mxu0 0
    %129 = vmatprep.subr.bf16.mxu0 0
    %130 = vmatpush1.bf16.msra.mxu0 0
    %131 = vmatprep.subr.bf16.mxu0 0
    %132 = vmatpush1.bf16.msra.mxu0 0
    %133 = vmatprep.subr.bf16.mxu0 0
    %134 = vmatpush1.bf16.msra.mxu0 0
    %135 = vmatprep.subr.bf16.mxu0 0
    %136 = vmatpush1.bf16.msra.mxu0 0
    %137 = vmatprep.subr.bf16.mxu0 0
    %138 = vmatpush1.bf16.msra.mxu0 %v117
    %139 = vmatprep.subr.bf16.mxu0 0
    %140 = vmatpush2.bf16.msra.mxu0 0
    %141 = vmatprep.subr.bf16.mxu0 0
    %142 = vmatpush2.bf16.msra.mxu0 0
    %143 = vmatprep.subr.bf16.mxu0 0
    %144 = vmatpush2.bf16.msra.mxu0 0
    %145 = vmatprep.subr.bf16.mxu0 0
    %146 = vmatpush2.bf16.msra.mxu0 0
    %147 = vmatprep.subr.bf16.mxu0 0
    %148 = vmatpush2.bf16.msra.mxu0 0
    %149 = vmatprep.subr.bf16.mxu0 0
    %150 = vmatpush2.bf16.msra.mxu0 0
    %151 = vmatprep.subr.bf16.mxu0 0
    %152 = vmatpush2.bf16.msra.mxu0 0
    %153 = vmatprep.subr.bf16.mxu0 0
    %154 = vmatpush2.bf16.msra.mxu0 0
    %155 = vmatprep.mubr.bf16.mxu0 0
    %156 = vmatmul.mubr.bf16.gmra.mxu0 %v121
    %v157 = vpop.f32.mrf.mxu0
    %v158 = vadd.f32 %v111, %v157
    %v159 = vpop.f32.mrf.mxu0
    %v160 = vpop.f32.mrf.mxu0
    %v161 = vpop.f32.mrf.mxu0
    %162 = vdwg.mxu0
    %v163 = vmax.f32 %v158, 0.0
    %v164 = vpack.c.bf16 %v163, %v163
    %v165 = vld [vmem:[#allocation6] sm:$0xff]
    %v166 = vld [vmem:[#allocation6 + $0x8] sm:$0xff]
    %v167 = vld [vmem:[#allocation6 + $0x10] sm:$0xff]
    %v168 = vld [vmem:[#allocation6 + $0x18] sm:$0xff]
    %v169 = vld [vmem:[#allocation6 + $0x20] sm:$0xff]
    %v170 = vld [vmem:[#allocation6 + $0x28] sm:$0xff]
    %v171 = vld [vmem:[#allocation6 + $0x30] sm:$0xff]
    %v172 = vld [vmem:[#allocation6 + $0x38] sm:$0xff]
    %v173 = vld [vmem:[#allocation6 + $0x40] sm:$0xff]
    %v174 = vld [vmem:[#allocation6 + $0x48] sm:$0xff]
    %v175 = vld [vmem:[#allocation6 + $0x50] sm:$0xff]
    %v176 = vld [vmem:[#allocation6 + $0x58] sm:$0xff]
    %v177 = vld [vmem:[#allocation6 + $0x60] sm:$0xff]
    %v178 = vld [vmem:[#allocation6 + $0x68] sm:$0xff]
    %v179 = vld [vmem:[#allocation6 + $0x70] sm:$0xff]
    %v180 = vld [vmem:[#allocation6 + $0x78] sm:$0xff]
    %v181 = vld [vmem:[#allocation6 + $0x80] sm:$0xff]
    %v182 = vld [vmem:[#allocation6 + $0x88] sm:$0xff]
    %v183 = vld [vmem:[#allocation6 + $0x90] sm:$0xff]
    %v184 = vld [vmem:[#allocation6 + $0x98] sm:$0xff]
    %v185 = vld [vmem:[#allocation6 + $0xa0] sm:$0xff]
    %v186 = vld [vmem:[#allocation6 + $0xa8] sm:$0xff]
    %v187 = vld [vmem:[#allocation6 + $0xb0] sm:$0xff]
    %v188 = vld [vmem:[#allocation6 + $0xb8] sm:$0xff]
    %v189 = vld [vmem:[#allocation6 + $0xc0] sm:$0xff]
    %v190 = vld [vmem:[#allocation6 + $0xc8] sm:$0xff]
    %v191 = vld [vmem:[#allocation6 + $0xd0] sm:$0xff]
    %v192 = vld [vmem:[#allocation6 + $0xd8] sm:$0xff]
    %v193 = vld [vmem:[#allocation6 + $0xe0] sm:$0xff]
    %v194 = vld [vmem:[#allocation6 + $0xe8] sm:$0xff]
    %v195 = vld [vmem:[#allocation6 + $0xf0] sm:$0xff]
    %v196 = vld [vmem:[#allocation6 + $0xf8] sm:$0xff]
    %v197 = vld [vmem:[#allocation6 + $0x100] sm:$0xff]
    %v198 = vld [vmem:[#allocation6 + $0x108] sm:$0xff]
    %v199 = vld [vmem:[#allocation6 + $0x110] sm:$0xff]
    %v200 = vld [vmem:[#allocation6 + $0x118] sm:$0xff]
    %v201 = vld [vmem:[#allocation6 + $0x120] sm:$0xff]
    %v202 = vld [vmem:[#allocation6 + $0x128] sm:$0xff]
    %v203 = vld [vmem:[#allocation6 + $0x130] sm:$0xff]
    %v204 = vld [vmem:[#allocation6 + $0x138] sm:$0xff]
    %v205 = vld [vmem:[#allocation6 + $0x140] sm:$0xff]
    %v206 = vld [vmem:[#allocation6 + $0x148] sm:$0xff]
    %v207 = vld [vmem:[#allocation6 + $0x150] sm:$0xff]
    %v208 = vld [vmem:[#allocation6 + $0x158] sm:$0xff]
    %v209 = vld [vmem:[#allocation6 + $0x160] sm:$0xff]
    %v210 = vld [vmem:[#allocation6 + $0x168] sm:$0xff]
    %v211 = vld [vmem:[#allocation6 + $0x170] sm:$0xff]
    %v212 = vld [vmem:[#allocation6 + $0x178] sm:$0xff]
    %v213 = vld [vmem:[#allocation6 + $0x180] sm:$0xff]
    %v214 = vld [vmem:[#allocation6 + $0x188] sm:$0xff]
    %v215 = vld [vmem:[#allocation6 + $0x190] sm:$0xff]
    %v216 = vld [vmem:[#allocation6 + $0x198] sm:$0xff]
    %v217 = vld [vmem:[#allocation6 + $0x1a0] sm:$0xff]
    %v218 = vld [vmem:[#allocation6 + $0x1a8] sm:$0xff]
    %v219 = vld [vmem:[#allocation6 + $0x1b0] sm:$0xff]
    %v220 = vld [vmem:[#allocation6 + $0x1b8] sm:$0xff]
    %v221 = vld [vmem:[#allocation6 + $0x1c0] sm:$0xff]
    %v222 = vld [vmem:[#allocation6 + $0x1c8] sm:$0xff]
    %v223 = vld [vmem:[#allocation6 + $0x1d0] sm:$0xff]
    %v224 = vld [vmem:[#allocation6 + $0x1d8] sm:$0xff]
    %v225 = vld [vmem:[#allocation6 + $0x1e0] sm:$0xff]
    %v226 = vld [vmem:[#allocation6 + $0x1e8] sm:$0xff]
    %v227 = vld [vmem:[#allocation6 + $0x1f0] sm:$0xff]
    %v228 = vld [vmem:[#allocation6 + $0x1f8] sm:$0xff]
    %s229 = scalar_lea.vmem %s0, 4
    %v230 = vld [vmem:[%s229] sm:$0xf]
    %v232 = vsel %vm119, %v230, 0
    %234 = vmatprep.subr.bf16.mxu0 0
    %235 = vmatpush1.bf16.msra.mxu0 0
    %236 = vmatprep.subr.bf16.mxu0 0
    %237 = vmatpush1.bf16.msra.mxu0 0
    %238 = vmatprep.subr.bf16.mxu0 0
    %239 = vmatpush1.bf16.msra.mxu0 0
    %240 = vmatprep.subr.bf16.mxu0 0
    %241 = vmatpush1.bf16.msra.mxu0 0
    %242 = vmatprep.subr.bf16.mxu0 0
    %243 = vmatpush1.bf16.msra.mxu0 0
    %244 = vmatprep.subr.bf16.mxu0 0
    %245 = vmatpush1.bf16.msra.mxu0 0
    %246 = vmatprep.subr.bf16.mxu0 0
    %247 = vmatpush1.bf16.msra.mxu0 0
    %248 = vmatprep.subr.bf16.mxu0 0
    %249 = vmatpush1.bf16.msra.mxu0 %v117
    %250 = vmatprep.subr.bf16.mxu0 0
    %251 = vmatpush2.bf16.msra.mxu0 0
    %252 = vmatprep.subr.bf16.mxu0 0
    %253 = vmatpush2.bf16.msra.mxu0 0
    %254 = vmatprep.subr.bf16.mxu0 0
    %255 = vmatpush2.bf16.msra.mxu0 0
    %256 = vmatprep.subr.bf16.mxu0 0
    %257 = vmatpush2.bf16.msra.mxu0 0
    %258 = vmatprep.subr.bf16.mxu0 0
    %259 = vmatpush2.bf16.msra.mxu0 0
    %260 = vmatprep.subr.bf16.mxu0 0
    %261 = vmatpush2.bf16.msra.mxu0 0
    %262 = vmatprep.subr.bf16.mxu0 0
    %263 = vmatpush2.bf16.msra.mxu0 0
    %264 = vmatprep.subr.bf16.mxu0 0
    %265 = vmatpush2.bf16.msra.mxu0 0
    %266 = vmatprep.mubr.bf16.mxu0 0
    %267 = vmatmul.mubr.bf16.gmra.mxu0 %v232
    %v268 = vpop.f32.mrf.mxu0
    %v269 = vadd.f32 %v111, %v268
    %v270 = vpop.f32.mrf.mxu0
    %v271 = vpop.f32.mrf.mxu0
    %v272 = vpop.f32.mrf.mxu0
    %273 = vdwg.mxu0
    %v274 = vmax.f32 %v269, 0.0
    %v275 = vpack.c.bf16 %v274, %v274
    %s276 = scalar_lea.vmem [#allocation6], 512
    %v277 = vld [vmem:[%s276] sm:$0xff]
    %v278 = vld [vmem:[%s276 + $0x8] sm:$0xff]
    %v279 = vld [vmem:[%s276 + $0x10] sm:$0xff]
    %v280 = vld [vmem:[%s276 + $0x18] sm:$0xff]
    %v281 = vld [vmem:[%s276 + $0x20] sm:$0xff]
    %v282 = vld [vmem:[%s276 + $0x28] sm:$0xff]
    %v283 = vld [vmem:[%s276 + $0x30] sm:$0xff]
    %v284 = vld [vmem:[%s276 + $0x38] sm:$0xff]
    %v285 = vld [vmem:[%s276 + $0x40] sm:$0xff]
    %v286 = vld [vmem:[%s276 + $0x48] sm:$0xff]
    %v287 = vld [vmem:[%s276 + $0x50] sm:$0xff]
    %v288 = vld [vmem:[%s276 + $0x58] sm:$0xff]
    %v289 = vld [vmem:[%s276 + $0x60] sm:$0xff]
    %v290 = vld [vmem:[%s276 + $0x68] sm:$0xff]
    %v291 = vld [vmem:[%s276 + $0x70] sm:$0xff]
    %v292 = vld [vmem:[%s276 + $0x78] sm:$0xff]
    %v293 = vld [vmem:[%s276 + $0x80] sm:$0xff]
    %v294 = vld [vmem:[%s276 + $0x88] sm:$0xff]
    %v295 = vld [vmem:[%s276 + $0x90] sm:$0xff]
    %v296 = vld [vmem:[%s276 + $0x98] sm:$0xff]
    %v297 = vld [vmem:[%s276 + $0xa0] sm:$0xff]
    %v298 = vld [vmem:[%s276 + $0xa8] sm:$0xff]
    %v299 = vld [vmem:[%s276 + $0xb0] sm:$0xff]
    %v300 = vld [vmem:[%s276 + $0xb8] sm:$0xff]
    %v301 = vld [vmem:[%s276 + $0xc0] sm:$0xff]
    %v302 = vld [vmem:[%s276 + $0xc8] sm:$0xff]
    %v303 = vld [vmem:[%s276 + $0xd0] sm:$0xff]
    %v304 = vld [vmem:[%s276 + $0xd8] sm:$0xff]
    %v305 = vld [vmem:[%s276 + $0xe0] sm:$0xff]
    %v306 = vld [vmem:[%s276 + $0xe8] sm:$0xff]
    %v307 = vld [vmem:[%s276 + $0xf0] sm:$0xff]
    %v308 = vld [vmem:[%s276 + $0xf8] sm:$0xff]
    %v309 = vld [vmem:[%s276 + $0x100] sm:$0xff]
    %v310 = vld [vmem:[%s276 + $0x108] sm:$0xff]
    %v311 = vld [vmem:[%s276 + $0x110] sm:$0xff]
    %v312 = vld [vmem:[%s276 + $0x118] sm:$0xff]
    %v313 = vld [vmem:[%s276 + $0x120] sm:$0xff]
    %v314 = vld [vmem:[%s276 + $0x128] sm:$0xff]
    %v315 = vld [vmem:[%s276 + $0x130] sm:$0xff]
    %v316 = vld [vmem:[%s276 + $0x138] sm:$0xff]
    %v317 = vld [vmem:[%s276 + $0x140] sm:$0xff]
    %v318 = vld [vmem:[%s276 + $0x148] sm:$0xff]
    %v319 = vld [vmem:[%s276 + $0x150] sm:$0xff]
    %v320 = vld [vmem:[%s276 + $0x158] sm:$0xff]
    %v321 = vld [vmem:[%s276 + $0x160] sm:$0xff]
    %v322 = vld [vmem:[%s276 + $0x168] sm:$0xff]
    %v323 = vld [vmem:[%s276 + $0x170] sm:$0xff]
    %v324 = vld [vmem:[%s276 + $0x178] sm:$0xff]
    %v325 = vld [vmem:[%s276 + $0x180] sm:$0xff]
    %v326 = vld [vmem:[%s276 + $0x188] sm:$0xff]
    %v327 = vld [vmem:[%s276 + $0x190] sm:$0xff]
    %v328 = vld [vmem:[%s276 + $0x198] sm:$0xff]
    %v329 = vld [vmem:[%s276 + $0x1a0] sm:$0xff]
    %v330 = vld [vmem:[%s276 + $0x1a8] sm:$0xff]
    %v331 = vld [vmem:[%s276 + $0x1b0] sm:$0xff]
    %v332 = vld [vmem:[%s276 + $0x1b8] sm:$0xff]
    %v333 = vld [vmem:[%s276 + $0x1c0] sm:$0xff]
    %v334 = vld [vmem:[%s276 + $0x1c8] sm:$0xff]
    %v335 = vld [vmem:[%s276 + $0x1d0] sm:$0xff]
    %v336 = vld [vmem:[%s276 + $0x1d8] sm:$0xff]
    %v337 = vld [vmem:[%s276 + $0x1e0] sm:$0xff]
    %v338 = vld [vmem:[%s276 + $0x1e8] sm:$0xff]
    %v339 = vld [vmem:[%s276 + $0x1f0] sm:$0xff]
    %v340 = vld [vmem:[%s276 + $0x1f8] sm:$0xff]
    %v405 = vunpack.c.l.b16 %v277
    %v406 = vunpack.c.h.b16 %v277
    %v407 = vunpack.c.l.b16 %v278
    %v408 = vunpack.c.h.b16 %v278
    %v409 = vunpack.c.l.b16 %v279
    %v410 = vunpack.c.h.b16 %v279
    %v411 = vunpack.c.l.b16 %v280
    %v412 = vunpack.c.h.b16 %v280
    %v413 = vunpack.c.l.b16 %v281
    %v414 = vunpack.c.h.b16 %v281
    %v415 = vunpack.c.l.b16 %v282
    %v416 = vunpack.c.h.b16 %v282
    %v417 = vunpack.c.l.b16 %v283
    %v418 = vunpack.c.h.b16 %v283
    %v419 = vunpack.c.l.b16 %v284
    %v420 = vunpack.c.h.b16 %v284
    %v421 = vunpack.c.l.b16 %v285
    %v422 = vunpack.c.h.b16 %v285
    %v423 = vunpack.c.l.b16 %v286
    %v424 = vunpack.c.h.b16 %v286
    %v425 = vunpack.c.l.b16 %v287
    %v426 = vunpack.c.h.b16 %v287
    %v427 = vunpack.c.l.b16 %v288
    %v428 = vunpack.c.h.b16 %v288
    %v429 = vunpack.c.l.b16 %v289
    %v430 = vunpack.c.h.b16 %v289
    %v431 = vunpack.c.l.b16 %v290
    %v432 = vunpack.c.h.b16 %v290
    %v433 = vunpack.c.l.b16 %v291
    %v434 = vunpack.c.h.b16 %v291
    %v435 = vunpack.c.l.b16 %v292
    %v436 = vunpack.c.h.b16 %v292
    %v437 = vunpack.c.l.b16 %v293
    %v438 = vunpack.c.h.b16 %v293
    %v439 = vunpack.c.l.b16 %v294
    %v440 = vunpack.c.h.b16 %v294
    %v441 = vunpack.c.l.b16 %v295
    %v442 = vunpack.c.h.b16 %v295
    %v443 = vunpack.c.l.b16 %v296
    %v444 = vunpack.c.h.b16 %v296
    %v445 = vunpack.c.l.b16 %v297
    %v446 = vunpack.c.h.b16 %v297
    %v447 = vunpack.c.l.b16 %v298
    %v448 = vunpack.c.h.b16 %v298
    %v449 = vunpack.c.l.b16 %v299
    %v450 = vunpack.c.h.b16 %v299
    %v451 = vunpack.c.l.b16 %v300
    %v452 = vunpack.c.h.b16 %v300
    %v453 = vunpack.c.l.b16 %v301
    %v454 = vunpack.c.h.b16 %v301
    %v455 = vunpack.c.l.b16 %v302
    %v456 = vunpack.c.h.b16 %v302
    %v457 = vunpack.c.l.b16 %v303
    %v458 = vunpack.c.h.b16 %v303
    %v459 = vunpack.c.l.b16 %v304
    %v460 = vunpack.c.h.b16 %v304
    %v461 = vunpack.c.l.b16 %v305
    %v462 = vunpack.c.h.b16 %v305
    %v463 = vunpack.c.l.b16 %v306
    %v464 = vunpack.c.h.b16 %v306
    %v465 = vunpack.c.l.b16 %v307
    %v466 = vunpack.c.h.b16 %v307
    %v467 = vunpack.c.l.b16 %v308
    %v468 = vunpack.c.h.b16 %v308
    %v469 = vunpack.c.l.b16 %v309
    %v470 = vunpack.c.h.b16 %v309
    %v471 = vunpack.c.l.b16 %v310
    %v472 = vunpack.c.h.b16 %v310
    %v473 = vunpack.c.l.b16 %v311
    %v474 = vunpack.c.h.b16 %v311
    %v475 = vunpack.c.l.b16 %v312
    %v476 = vunpack.c.h.b16 %v312
    %v477 = vunpack.c.l.b16 %v313
    %v478 = vunpack.c.h.b16 %v313
    %v479 = vunpack.c.l.b16 %v314
    %v480 = vunpack.c.h.b16 %v314
    %v481 = vunpack.c.l.b16 %v315
    %v482 = vunpack.c.h.b16 %v315
    %v483 = vunpack.c.l.b16 %v316
    %v484 = vunpack.c.h.b16 %v316
    %v485 = vunpack.c.l.b16 %v317
    %v486 = vunpack.c.h.b16 %v317
    %v487 = vunpack.c.l.b16 %v318
    %v488 = vunpack.c.h.b16 %v318
    %v489 = vunpack.c.l.b16 %v319
    %v490 = vunpack.c.h.b16 %v319
    %v491 = vunpack.c.l.b16 %v320
    %v492 = vunpack.c.h.b16 %v320
    %v493 = vunpack.c.l.b16 %v321
    %v494 = vunpack.c.h.b16 %v321
    %v495 = vunpack.c.l.b16 %v322
    %v496 = vunpack.c.h.b16 %v322
    %v497 = vunpack.c.l.b16 %v323
    %v498 = vunpack.c.h.b16 %v323
    %v499 = vunpack.c.l.b16 %v324
    %v500 = vunpack.c.h.b16 %v324
    %v501 = vunpack.c.l.b16 %v325
    %v502 = vunpack.c.h.b16 %v325
    %v503 = vunpack.c.l.b16 %v326
    %v504 = vunpack.c.h.b16 %v326
    %v505 = vunpack.c.l.b16 %v327
    %v506 = vunpack.c.h.b16 %v327
    %v507 = vunpack.c.l.b16 %v328
    %v508 = vunpack.c.h.b16 %v328
    %v509 = vunpack.c.l.b16 %v329
    %v510 = vunpack.c.h.b16 %v329
    %v511 = vunpack.c.l.b16 %v330
    %v512 = vunpack.c.h.b16 %v330
    %v513 = vunpack.c.l.b16 %v331
    %v514 = vunpack.c.h.b16 %v331
    %v515 = vunpack.c.l.b16 %v332
    %v516 = vunpack.c.h.b16 %v332
    %v517 = vunpack.c.l.b16 %v333
    %v518 = vunpack.c.h.b16 %v333
    %v519 = vunpack.c.l.b16 %v334
    %v520 = vunpack.c.h.b16 %v334
    %v521 = vunpack.c.l.b16 %v335
    %v522 = vunpack.c.h.b16 %v335
    %v523 = vunpack.c.l.b16 %v336
    %v524 = vunpack.c.h.b16 %v336
    %v525 = vunpack.c.l.b16 %v337
    %v526 = vunpack.c.h.b16 %v337
    %v527 = vunpack.c.l.b16 %v338
    %v528 = vunpack.c.h.b16 %v338
    %v529 = vunpack.c.l.b16 %v339
    %v530 = vunpack.c.h.b16 %v339
    %v531 = vunpack.c.l.b16 %v340
    %v532 = vunpack.c.h.b16 %v340
    %v533 = vpack.c.b16 %v413, %v405
    %v534 = vpack.c.b16 %v414, %v406
    %v535 = vpack.c.b16 %v415, %v407
    %v536 = vpack.c.b16 %v416, %v408
    %v537 = vpack.c.b16 %v417, %v409
    %v538 = vpack.c.b16 %v418, %v410
    %v539 = vpack.c.b16 %v419, %v411
    %v540 = vpack.c.b16 %v420, %v412
    %v541 = vpack.c.b16 %v429, %v421
    %v542 = vpack.c.b16 %v430, %v422
    %v543 = vpack.c.b16 %v431, %v423
    %v544 = vpack.c.b16 %v432, %v424
    %v545 = vpack.c.b16 %v433, %v425
    %v546 = vpack.c.b16 %v434, %v426
    %v547 = vpack.c.b16 %v435, %v427
    %v548 = vpack.c.b16 %v436, %v428
    %v549 = vpack.c.b16 %v445, %v437
    %v550 = vpack.c.b16 %v446, %v438
    %v551 = vpack.c.b16 %v447, %v439
    %v552 = vpack.c.b16 %v448, %v440
    %v553 = vpack.c.b16 %v449, %v441
    %v554 = vpack.c.b16 %v450, %v442
    %v555 = vpack.c.b16 %v451, %v443
    %v556 = vpack.c.b16 %v452, %v444
    %v557 = vpack.c.b16 %v461, %v453
    %v558 = vpack.c.b16 %v462, %v454
    %v559 = vpack.c.b16 %v463, %v455
    %v560 = vpack.c.b16 %v464, %v456
    %v561 = vpack.c.b16 %v465, %v457
    %v562 = vpack.c.b16 %v466, %v458
    %v563 = vpack.c.b16 %v467, %v459
    %v564 = vpack.c.b16 %v468, %v460
    %v565 = vpack.c.b16 %v477, %v469
    %v566 = vpack.c.b16 %v478, %v470
    %v567 = vpack.c.b16 %v479, %v471
    %v568 = vpack.c.b16 %v480, %v472
    %v569 = vpack.c.b16 %v481, %v473
    %v570 = vpack.c.b16 %v482, %v474
    %v571 = vpack.c.b16 %v483, %v475
    %v572 = vpack.c.b16 %v484, %v476
    %v573 = vpack.c.b16 %v493, %v485
    %v574 = vpack.c.b16 %v494, %v486
    %v575 = vpack.c.b16 %v495, %v487
    %v576 = vpack.c.b16 %v496, %v488
    %v577 = vpack.c.b16 %v497, %v489
    %v578 = vpack.c.b16 %v498, %v490
    %v579 = vpack.c.b16 %v499, %v491
    %v580 = vpack.c.b16 %v500, %v492
    %v581 = vpack.c.b16 %v509, %v501
    %v582 = vpack.c.b16 %v510, %v502
    %v583 = vpack.c.b16 %v511, %v503
    %v584 = vpack.c.b16 %v512, %v504
    %v585 = vpack.c.b16 %v513, %v505
    %v586 = vpack.c.b16 %v514, %v506
    %v587 = vpack.c.b16 %v515, %v507
    %v588 = vpack.c.b16 %v516, %v508
    %v589 = vpack.c.b16 %v525, %v517
    %v590 = vpack.c.b16 %v526, %v518
    %v591 = vpack.c.b16 %v527, %v519
    %v592 = vpack.c.b16 %v528, %v520
    %v593 = vpack.c.b16 %v529, %v521
    %v594 = vpack.c.b16 %v530, %v522
    %v595 = vpack.c.b16 %v531, %v523
    %v596 = vpack.c.b16 %v532, %v524
    %661 = vmatprep.subr.bf16.mxu0 %v590
    %662 = vmatpush1.bf16.msra.mxu0 %v589
    %663 = vmatprep.subr.bf16.mxu0 %v582
    %664 = vmatpush1.bf16.msra.mxu0 %v581
    %665 = vmatprep.subr.bf16.mxu0 %v574
    %666 = vmatpush1.bf16.msra.mxu0 %v573
    %667 = vmatprep.subr.bf16.mxu0 %v566
    %668 = vmatpush1.bf16.msra.mxu0 %v565
    %669 = vmatprep.subr.bf16.mxu0 %v558
    %670 = vmatpush1.bf16.msra.mxu0 %v557
    %671 = vmatprep.subr.bf16.mxu0 %v550
    %672 = vmatpush1.bf16.msra.mxu0 %v549
    %673 = vmatprep.subr.bf16.mxu0 %v542
    %674 = vmatpush1.bf16.msra.mxu0 %v541
    %675 = vmatprep.subr.bf16.mxu0 %v534
    %676 = vmatpush1.bf16.msra.mxu0 %v533
    %677 = vmatprep.subr.bf16.mxu0 0
    %678 = vmatpush2.bf16.msra.mxu0 0
    %679 = vmatprep.subr.bf16.mxu0 0
    %680 = vmatpush2.bf16.msra.mxu0 0
    %681 = vmatprep.subr.bf16.mxu0 0
    %682 = vmatpush2.bf16.msra.mxu0 0
    %683 = vmatprep.subr.bf16.mxu0 0
    %684 = vmatpush2.bf16.msra.mxu0 0
    %685 = vmatprep.subr.bf16.mxu0 0
    %686 = vmatpush2.bf16.msra.mxu0 0
    %687 = vmatprep.subr.bf16.mxu0 0
    %688 = vmatpush2.bf16.msra.mxu0 0
    %689 = vmatprep.subr.bf16.mxu0 0
    %690 = vmatpush2.bf16.msra.mxu0 0
    %691 = vmatprep.subr.bf16.mxu0 0
    %692 = vmatpush2.bf16.msra.mxu0 0
    %693 = vmatprep.mubr.bf16.mxu0 0
    %694 = vmatmul.mubr.bf16.gmra.mxu0 %v275
    %v695 = vpop.f32.mrf.mxu0
    %v696 = vadd.f32 0.0, %v695
    %v697 = vpop.f32.mrf.mxu0
    %v698 = vadd.f32 0.0, %v697
    %v699 = vpop.f32.mrf.mxu0
    %v700 = vpop.f32.mrf.mxu0
    %701 = vdwg.mxu0
    %702 = vmatprep.subr.bf16.mxu0 %v592
    %703 = vmatpush1.bf16.msra.mxu0 %v591
    %704 = vmatprep.subr.bf16.mxu0 %v584
    %705 = vmatpush1.bf16.msra.mxu0 %v583
    %706 = vmatprep.subr.bf16.mxu0 %v576
    %707 = vmatpush1.bf16.msra.mxu0 %v575
    %708 = vmatprep.subr.bf16.mxu0 %v568
    %709 = vmatpush1.bf16.msra.mxu0 %v567
    %710 = vmatprep.subr.bf16.mxu0 %v560
    %711 = vmatpush1.bf16.msra.mxu0 %v559
    %712 = vmatprep.subr.bf16.mxu0 %v552
    %713 = vmatpush1.bf16.msra.mxu0 %v551
    %714 = vmatprep.subr.bf16.mxu0 %v544
    %715 = vmatpush1.bf16.msra.mxu0 %v543
    %716 = vmatprep.subr.bf16.mxu0 %v536
    %717 = vmatpush1.bf16.msra.mxu0 %v535
    %718 = vmatprep.subr.bf16.mxu0 0
    %719 = vmatpush2.bf16.msra.mxu0 0
    %720 = vmatprep.subr.bf16.mxu0 0
    %721 = vmatpush2.bf16.msra.mxu0 0
    %722 = vmatprep.subr.bf16.mxu0 0
    %723 = vmatpush2.bf16.msra.mxu0 0
    %724 = vmatprep.subr.bf16.mxu0 0
    %725 = vmatpush2.bf16.msra.mxu0 0
    %726 = vmatprep.subr.bf16.mxu0 0
    %727 = vmatpush2.bf16.msra.mxu0 0
    %728 = vmatprep.subr.bf16.mxu0 0
    %729 = vmatpush2.bf16.msra.mxu0 0
    %730 = vmatprep.subr.bf16.mxu0 0
    %731 = vmatpush2.bf16.msra.mxu0 0
    %732 = vmatprep.subr.bf16.mxu0 0
    %733 = vmatpush2.bf16.msra.mxu0 0
    %734 = vmatprep.mubr.bf16.mxu0 0
    %735 = vmatmul.mubr.bf16.gmra.mxu0 %v275
    %v736 = vpop.f32.mrf.mxu0
    %v737 = vadd.f32 0.0, %v736
    %v738 = vpop.f32.mrf.mxu0
    %v739 = vadd.f32 0.0, %v738
    %v740 = vpop.f32.mrf.mxu0
    %v741 = vpop.f32.mrf.mxu0
    %742 = vdwg.mxu0
    %743 = vmatprep.subr.bf16.mxu0 %v594
    %744 = vmatpush1.bf16.msra.mxu0 %v593
    %745 = vmatprep.subr.bf16.mxu0 %v586
    %746 = vmatpush1.bf16.msra.mxu0 %v585
    %747 = vmatprep.subr.bf16.mxu0 %v578
    %748 = vmatpush1.bf16.msra.mxu0 %v577
    %749 = vmatprep.subr.bf16.mxu0 %v570
    %750 = vmatpush1.bf16.msra.mxu0 %v569
    %751 = vmatprep.subr.bf16.mxu0 %v562
    %752 = vmatpush1.bf16.msra.mxu0 %v561
    %753 = vmatprep.subr.bf16.mxu0 %v554
    %754 = vmatpush1.bf16.msra.mxu0 %v553
    %755 = vmatprep.subr.bf16.mxu0 %v546
    %756 = vmatpush1.bf16.msra.mxu0 %v545
    %757 = vmatprep.subr.bf16.mxu0 %v538
    %758 = vmatpush1.bf16.msra.mxu0 %v537
    %759 = vmatprep.subr.bf16.mxu0 0
    %760 = vmatpush2.bf16.msra.mxu0 0
    %761 = vmatprep.subr.bf16.mxu0 0
    %762 = vmatpush2.bf16.msra.mxu0 0
    %763 = vmatprep.subr.bf16.mxu0 0
    %764 = vmatpush2.bf16.msra.mxu0 0
    %765 = vmatprep.subr.bf16.mxu0 0
    %766 = vmatpush2.bf16.msra.mxu0 0
    %767 = vmatprep.subr.bf16.mxu0 0
    %768 = vmatpush2.bf16.msra.mxu0 0
    %769 = vmatprep.subr.bf16.mxu0 0
    %770 = vmatpush2.bf16.msra.mxu0 0
    %771 = vmatprep.subr.bf16.mxu0 0
    %772 = vmatpush2.bf16.msra.mxu0 0
    %773 = vmatprep.subr.bf16.mxu0 0
    %774 = vmatpush2.bf16.msra.mxu0 0
    %775 = vmatprep.mubr.bf16.mxu0 0
    %776 = vmatmul.mubr.bf16.gmra.mxu0 %v275
    %v777 = vpop.f32.mrf.mxu0
    %v778 = vadd.f32 0.0, %v777
    %v779 = vpop.f32.mrf.mxu0
    %v780 = vadd.f32 0.0, %v779
    %v781 = vpop.f32.mrf.mxu0
    %v782 = vpop.f32.mrf.mxu0
    %783 = vdwg.mxu0
    %784 = vmatprep.subr.bf16.mxu0 %v596
    %785 = vmatpush1.bf16.msra.mxu0 %v595
    %786 = vmatprep.subr.bf16.mxu0 %v588
    %787 = vmatpush1.bf16.msra.mxu0 %v587
    %788 = vmatprep.subr.bf16.mxu0 %v580
    %789 = vmatpush1.bf16.msra.mxu0 %v579
    %790 = vmatprep.subr.bf16.mxu0 %v572
    %791 = vmatpush1.bf16.msra.mxu0 %v571
    %792 = vmatprep.subr.bf16.mxu0 %v564
    %793 = vmatpush1.bf16.msra.mxu0 %v563
    %794 = vmatprep.subr.bf16.mxu0 %v556
    %795 = vmatpush1.bf16.msra.mxu0 %v555
    %796 = vmatprep.subr.bf16.mxu0 %v548
    %797 = vmatpush1.bf16.msra.mxu0 %v547
    %798 = vmatprep.subr.bf16.mxu0 %v540
    %799 = vmatpush1.bf16.msra.mxu0 %v539
    %800 = vmatprep.subr.bf16.mxu0 0
    %801 = vmatpush2.bf16.msra.mxu0 0
    %802 = vmatprep.subr.bf16.mxu0 0
    %803 = vmatpush2.bf16.msra.mxu0 0
    %804 = vmatprep.subr.bf16.mxu0 0
    %805 = vmatpush2.bf16.msra.mxu0 0
    %806 = vmatprep.subr.bf16.mxu0 0
    %807 = vmatpush2.bf16.msra.mxu0 0
    %808 = vmatprep.subr.bf16.mxu0 0
    %809 = vmatpush2.bf16.msra.mxu0 0
    %810 = vmatprep.subr.bf16.mxu0 0
    %811 = vmatpush2.bf16.msra.mxu0 0
    %812 = vmatprep.subr.bf16.mxu0 0
    %813 = vmatpush2.bf16.msra.mxu0 0
    %814 = vmatprep.subr.bf16.mxu0 0
    %815 = vmatpush2.bf16.msra.mxu0 0
    %816 = vmatprep.mubr.bf16.mxu0 0
    %817 = vmatmul.mubr.bf16.gmra.mxu0 %v275
    %v818 = vpop.f32.mrf.mxu0
    %v819 = vadd.f32 0.0, %v818
    %v820 = vpop.f32.mrf.mxu0
    %v821 = vadd.f32 0.0, %v820
    %v822 = vpop.f32.mrf.mxu0
    %v823 = vpop.f32.mrf.mxu0
    %824 = vdwg.mxu0
    %v889 = vunpack.c.l.b16 %v165
    %v890 = vunpack.c.h.b16 %v165
    %v891 = vunpack.c.l.b16 %v166
    %v892 = vunpack.c.h.b16 %v166
    %v893 = vunpack.c.l.b16 %v167
    %v894 = vunpack.c.h.b16 %v167
    %v895 = vunpack.c.l.b16 %v168
    %v896 = vunpack.c.h.b16 %v168
    %v897 = vunpack.c.l.b16 %v169
    %v898 = vunpack.c.h.b16 %v169
    %v899 = vunpack.c.l.b16 %v170
    %v900 = vunpack.c.h.b16 %v170
    %v901 = vunpack.c.l.b16 %v171
    %v902 = vunpack.c.h.b16 %v171
    %v903 = vunpack.c.l.b16 %v172
    %v904 = vunpack.c.h.b16 %v172
    %v905 = vunpack.c.l.b16 %v173
    %v906 = vunpack.c.h.b16 %v173
    %v907 = vunpack.c.l.b16 %v174
    %v908 = vunpack.c.h.b16 %v174
    %v909 = vunpack.c.l.b16 %v175
    %v910 = vunpack.c.h.b16 %v175
    %v911 = vunpack.c.l.b16 %v176
    %v912 = vunpack.c.h.b16 %v176
    %v913 = vunpack.c.l.b16 %v177
    %v914 = vunpack.c.h.b16 %v177
    %v915 = vunpack.c.l.b16 %v178
    %v916 = vunpack.c.h.b16 %v178
    %v917 = vunpack.c.l.b16 %v179
    %v918 = vunpack.c.h.b16 %v179
    %v919 = vunpack.c.l.b16 %v180
    %v920 = vunpack.c.h.b16 %v180
    %v921 = vunpack.c.l.b16 %v181
    %v922 = vunpack.c.h.b16 %v181
    %v923 = vunpack.c.l.b16 %v182
    %v924 = vunpack.c.h.b16 %v182
    %v925 = vunpack.c.l.b16 %v183
    %v926 = vunpack.c.h.b16 %v183
    %v927 = vunpack.c.l.b16 %v184
    %v928 = vunpack.c.h.b16 %v184
    %v929 = vunpack.c.l.b16 %v185
    %v930 = vunpack.c.h.b16 %v185
    %v931 = vunpack.c.l.b16 %v186
    %v932 = vunpack.c.h.b16 %v186
    %v933 = vunpack.c.l.b16 %v187
    %v934 = vunpack.c.h.b16 %v187
    %v935 = vunpack.c.l.b16 %v188
    %v936 = vunpack.c.h.b16 %v188
    %v937 = vunpack.c.l.b16 %v189
    %v938 = vunpack.c.h.b16 %v189
    %v939 = vunpack.c.l.b16 %v190
    %v940 = vunpack.c.h.b16 %v190
    %v941 = vunpack.c.l.b16 %v191
    %v942 = vunpack.c.h.b16 %v191
    %v943 = vunpack.c.l.b16 %v192
    %v944 = vunpack.c.h.b16 %v192
    %v945 = vunpack.c.l.b16 %v193
    %v946 = vunpack.c.h.b16 %v193
    %v947 = vunpack.c.l.b16 %v194
    %v948 = vunpack.c.h.b16 %v194
    %v949 = vunpack.c.l.b16 %v195
    %v950 = vunpack.c.h.b16 %v195
    %v951 = vunpack.c.l.b16 %v196
    %v952 = vunpack.c.h.b16 %v196
    %v953 = vunpack.c.l.b16 %v197
    %v954 = vunpack.c.h.b16 %v197
    %v955 = vunpack.c.l.b16 %v198
    %v956 = vunpack.c.h.b16 %v198
    %v957 = vunpack.c.l.b16 %v199
    %v958 = vunpack.c.h.b16 %v199
    %v959 = vunpack.c.l.b16 %v200
    %v960 = vunpack.c.h.b16 %v200
    %v961 = vunpack.c.l.b16 %v201
    %v962 = vunpack.c.h.b16 %v201
    %v963 = vunpack.c.l.b16 %v202
    %v964 = vunpack.c.h.b16 %v202
    %v965 = vunpack.c.l.b16 %v203
    %v966 = vunpack.c.h.b16 %v203
    %v967 = vunpack.c.l.b16 %v204
    %v968 = vunpack.c.h.b16 %v204
    %v969 = vunpack.c.l.b16 %v205
    %v970 = vunpack.c.h.b16 %v205
    %v971 = vunpack.c.l.b16 %v206
    %v972 = vunpack.c.h.b16 %v206
    %v973 = vunpack.c.l.b16 %v207
    %v974 = vunpack.c.h.b16 %v207
    %v975 = vunpack.c.l.b16 %v208
    %v976 = vunpack.c.h.b16 %v208
    %v977 = vunpack.c.l.b16 %v209
    %v978 = vunpack.c.h.b16 %v209
    %v979 = vunpack.c.l.b16 %v210
    %v980 = vunpack.c.h.b16 %v210
    %v981 = vunpack.c.l.b16 %v211
    %v982 = vunpack.c.h.b16 %v211
    %v983 = vunpack.c.l.b16 %v212
    %v984 = vunpack.c.h.b16 %v212
    %v985 = vunpack.c.l.b16 %v213
    %v986 = vunpack.c.h.b16 %v213
    %v987 = vunpack.c.l.b16 %v214
    %v988 = vunpack.c.h.b16 %v214
    %v989 = vunpack.c.l.b16 %v215
    %v990 = vunpack.c.h.b16 %v215
    %v991 = vunpack.c.l.b16 %v216
    %v992 = vunpack.c.h.b16 %v216
    %v993 = vunpack.c.l.b16 %v217
    %v994 = vunpack.c.h.b16 %v217
    %v995 = vunpack.c.l.b16 %v218
    %v996 = vunpack.c.h.b16 %v218
    %v997 = vunpack.c.l.b16 %v219
    %v998 = vunpack.c.h.b16 %v219
    %v999 = vunpack.c.l.b16 %v220
    %v1000 = vunpack.c.h.b16 %v220
    %v1001 = vunpack.c.l.b16 %v221
    %v1002 = vunpack.c.h.b16 %v221
    %v1003 = vunpack.c.l.b16 %v222
    %v1004 = vunpack.c.h.b16 %v222
    %v1005 = vunpack.c.l.b16 %v223
    %v1006 = vunpack.c.h.b16 %v223
    %v1007 = vunpack.c.l.b16 %v224
    %v1008 = vunpack.c.h.b16 %v224
    %v1009 = vunpack.c.l.b16 %v225
    %v1010 = vunpack.c.h.b16 %v225
    %v1011 = vunpack.c.l.b16 %v226
    %v1012 = vunpack.c.h.b16 %v226
    %v1013 = vunpack.c.l.b16 %v227
    %v1014 = vunpack.c.h.b16 %v227
    %v1015 = vunpack.c.l.b16 %v228
    %v1016 = vunpack.c.h.b16 %v228
    %v1017 = vpack.c.b16 %v897, %v889
    %v1018 = vpack.c.b16 %v898, %v890
    %v1019 = vpack.c.b16 %v899, %v891
    %v1020 = vpack.c.b16 %v900, %v892
    %v1021 = vpack.c.b16 %v901, %v893
    %v1022 = vpack.c.b16 %v902, %v894
    %v1023 = vpack.c.b16 %v903, %v895
    %v1024 = vpack.c.b16 %v904, %v896
    %v1025 = vpack.c.b16 %v913, %v905
    %v1026 = vpack.c.b16 %v914, %v906
    %v1027 = vpack.c.b16 %v915, %v907
    %v1028 = vpack.c.b16 %v916, %v908
    %v1029 = vpack.c.b16 %v917, %v909
    %v1030 = vpack.c.b16 %v918, %v910
    %v1031 = vpack.c.b16 %v919, %v911
    %v1032 = vpack.c.b16 %v920, %v912
    %v1033 = vpack.c.b16 %v929, %v921
    %v1034 = vpack.c.b16 %v930, %v922
    %v1035 = vpack.c.b16 %v931, %v923
    %v1036 = vpack.c.b16 %v932, %v924
    %v1037 = vpack.c.b16 %v933, %v925
    %v1038 = vpack.c.b16 %v934, %v926
    %v1039 = vpack.c.b16 %v935, %v927
    %v1040 = vpack.c.b16 %v936, %v928
    %v1041 = vpack.c.b16 %v945, %v937
    %v1042 = vpack.c.b16 %v946, %v938
    %v1043 = vpack.c.b16 %v947, %v939
    %v1044 = vpack.c.b16 %v948, %v940
    %v1045 = vpack.c.b16 %v949, %v941
    %v1046 = vpack.c.b16 %v950, %v942
    %v1047 = vpack.c.b16 %v951, %v943
    %v1048 = vpack.c.b16 %v952, %v944
    %v1049 = vpack.c.b16 %v961, %v953
    %v1050 = vpack.c.b16 %v962, %v954
    %v1051 = vpack.c.b16 %v963, %v955
    %v1052 = vpack.c.b16 %v964, %v956
    %v1053 = vpack.c.b16 %v965, %v957
    %v1054 = vpack.c.b16 %v966, %v958
    %v1055 = vpack.c.b16 %v967, %v959
    %v1056 = vpack.c.b16 %v968, %v960
    %v1057 = vpack.c.b16 %v977, %v969
    %v1058 = vpack.c.b16 %v978, %v970
    %v1059 = vpack.c.b16 %v979, %v971
    %v1060 = vpack.c.b16 %v980, %v972
    %v1061 = vpack.c.b16 %v981, %v973
    %v1062 = vpack.c.b16 %v982, %v974
    %v1063 = vpack.c.b16 %v983, %v975
    %v1064 = vpack.c.b16 %v984, %v976
    %v1065 = vpack.c.b16 %v993, %v985
    %v1066 = vpack.c.b16 %v994, %v986
    %v1067 = vpack.c.b16 %v995, %v987
    %v1068 = vpack.c.b16 %v996, %v988
    %v1069 = vpack.c.b16 %v997, %v989
    %v1070 = vpack.c.b16 %v998, %v990
    %v1071 = vpack.c.b16 %v999, %v991
    %v1072 = vpack.c.b16 %v1000, %v992
    %v1073 = vpack.c.b16 %v1009, %v1001
    %v1074 = vpack.c.b16 %v1010, %v1002
    %v1075 = vpack.c.b16 %v1011, %v1003
    %v1076 = vpack.c.b16 %v1012, %v1004
    %v1077 = vpack.c.b16 %v1013, %v1005
    %v1078 = vpack.c.b16 %v1014, %v1006
    %v1079 = vpack.c.b16 %v1015, %v1007
    %v1080 = vpack.c.b16 %v1016, %v1008
    %1145 = vmatprep.subr.bf16.mxu0 %v1074
    %1146 = vmatpush1.bf16.msra.mxu0 %v1073
    %1147 = vmatprep.subr.bf16.mxu0 %v1066
    %1148 = vmatpush1.bf16.msra.mxu0 %v1065
    %1149 = vmatprep.subr.bf16.mxu0 %v1058
    %1150 = vmatpush1.bf16.msra.mxu0 %v1057
    %1151 = vmatprep.subr.bf16.mxu0 %v1050
    %1152 = vmatpush1.bf16.msra.mxu0 %v1049
    %1153 = vmatprep.subr.bf16.mxu0 %v1042
    %1154 = vmatpush1.bf16.msra.mxu0 %v1041
    %1155 = vmatprep.subr.bf16.mxu0 %v1034
    %1156 = vmatpush1.bf16.msra.mxu0 %v1033
    %1157 = vmatprep.subr.bf16.mxu0 %v1026
    %1158 = vmatpush1.bf16.msra.mxu0 %v1025
    %1159 = vmatprep.subr.bf16.mxu0 %v1018
    %1160 = vmatpush1.bf16.msra.mxu0 %v1017
    %1161 = vmatprep.subr.bf16.mxu0 0
    %1162 = vmatpush2.bf16.msra.mxu0 0
    %1163 = vmatprep.subr.bf16.mxu0 0
    %1164 = vmatpush2.bf16.msra.mxu0 0
    %1165 = vmatprep.subr.bf16.mxu0 0
    %1166 = vmatpush2.bf16.msra.mxu0 0
    %1167 = vmatprep.subr.bf16.mxu0 0
    %1168 = vmatpush2.bf16.msra.mxu0 0
    %1169 = vmatprep.subr.bf16.mxu0 0
    %1170 = vmatpush2.bf16.msra.mxu0 0
    %1171 = vmatprep.subr.bf16.mxu0 0
    %1172 = vmatpush2.bf16.msra.mxu0 0
    %1173 = vmatprep.subr.bf16.mxu0 0
    %1174 = vmatpush2.bf16.msra.mxu0 0
    %1175 = vmatprep.subr.bf16.mxu0 0
    %1176 = vmatpush2.bf16.msra.mxu0 0
    %1177 = vmatprep.mubr.bf16.mxu0 0
    %1178 = vmatmul.mubr.bf16.gmra.mxu0 %v164
    %v1179 = vpop.f32.mrf.mxu0
    %v1180 = vadd.f32 %v696, %v1179
    %v1181 = vpop.f32.mrf.mxu0
    %v1182 = vadd.f32 %v698, %v1181
    %v1183 = vpop.f32.mrf.mxu0
    %v1184 = vpop.f32.mrf.mxu0
    %1185 = vdwg.mxu0
    %1186 = vmatprep.subr.bf16.mxu0 %v1076
    %1187 = vmatpush1.bf16.msra.mxu0 %v1075
    %1188 = vmatprep.subr.bf16.mxu0 %v1068
    %1189 = vmatpush1.bf16.msra.mxu0 %v1067
    %1190 = vmatprep.subr.bf16.mxu0 %v1060
    %1191 = vmatpush1.bf16.msra.mxu0 %v1059
    %1192 = vmatprep.subr.bf16.mxu0 %v1052
    %1193 = vmatpush1.bf16.msra.mxu0 %v1051
    %1194 = vmatprep.subr.bf16.mxu0 %v1044
    %1195 = vmatpush1.bf16.msra.mxu0 %v1043
    %1196 = vmatprep.subr.bf16.mxu0 %v1036
    %1197 = vmatpush1.bf16.msra.mxu0 %v1035
    %1198 = vmatprep.subr.bf16.mxu0 %v1028
    %1199 = vmatpush1.bf16.msra.mxu0 %v1027
    %1200 = vmatprep.subr.bf16.mxu0 %v1020
    %1201 = vmatpush1.bf16.msra.mxu0 %v1019
    %1202 = vmatprep.subr.bf16.mxu0 0
    %1203 = vmatpush2.bf16.msra.mxu0 0
    %1204 = vmatprep.subr.bf16.mxu0 0
    %1205 = vmatpush2.bf16.msra.mxu0 0
    %1206 = vmatprep.subr.bf16.mxu0 0
    %1207 = vmatpush2.bf16.msra.mxu0 0
    %1208 = vmatprep.subr.bf16.mxu0 0
    %1209 = vmatpush2.bf16.msra.mxu0 0
    %1210 = vmatprep.subr.bf16.mxu0 0
    %1211 = vmatpush2.bf16.msra.mxu0 0
    %1212 = vmatprep.subr.bf16.mxu0 0
    %1213 = vmatpush2.bf16.msra.mxu0 0
    %1214 = vmatprep.subr.bf16.mxu0 0
    %1215 = vmatpush2.bf16.msra.mxu0 0
    %1216 = vmatprep.subr.bf16.mxu0 0
    %1217 = vmatpush2.bf16.msra.mxu0 0
    %1218 = vmatprep.mubr.bf16.mxu0 0
    %1219 = vmatmul.mubr.bf16.gmra.mxu0 %v164
    %v1220 = vpop.f32.mrf.mxu0
    %v1221 = vadd.f32 %v737, %v1220
    %v1222 = vpop.f32.mrf.mxu0
    %v1223 = vadd.f32 %v739, %v1222
    %v1224 = vpop.f32.mrf.mxu0
    %v1225 = vpop.f32.mrf.mxu0
    %1226 = vdwg.mxu0
    %1227 = vmatprep.subr.bf16.mxu0 %v1078
    %1228 = vmatpush1.bf16.msra.mxu0 %v1077
    %1229 = vmatprep.subr.bf16.mxu0 %v1070
    %1230 = vmatpush1.bf16.msra.mxu0 %v1069
    %1231 = vmatprep.subr.bf16.mxu0 %v1062
    %1232 = vmatpush1.bf16.msra.mxu0 %v1061
    %1233 = vmatprep.subr.bf16.mxu0 %v1054
    %1234 = vmatpush1.bf16.msra.mxu0 %v1053
    %1235 = vmatprep.subr.bf16.mxu0 %v1046
    %1236 = vmatpush1.bf16.msra.mxu0 %v1045
    %1237 = vmatprep.subr.bf16.mxu0 %v1038
    %1238 = vmatpush1.bf16.msra.mxu0 %v1037
    %1239 = vmatprep.subr.bf16.mxu0 %v1030
    %1240 = vmatpush1.bf16.msra.mxu0 %v1029
    %1241 = vmatprep.subr.bf16.mxu0 %v1022
    %1242 = vmatpush1.bf16.msra.mxu0 %v1021
    %1243 = vmatprep.subr.bf16.mxu0 0
    %1244 = vmatpush2.bf16.msra.mxu0 0
    %1245 = vmatprep.subr.bf16.mxu0 0
    %1246 = vmatpush2.bf16.msra.mxu0 0
    %1247 = vmatprep.subr.bf16.mxu0 0
    %1248 = vmatpush2.bf16.msra.mxu0 0
    %1249 = vmatprep.subr.bf16.mxu0 0
    %1250 = vmatpush2.bf16.msra.mxu0 0
    %1251 = vmatprep.subr.bf16.mxu0 0
    %1252 = vmatpush2.bf16.msra.mxu0 0
    %1253 = vmatprep.subr.bf16.mxu0 0
    %1254 = vmatpush2.bf16.msra.mxu0 0
    %1255 = vmatprep.subr.bf16.mxu0 0
    %1256 = vmatpush2.bf16.msra.mxu0 0
    %1257 = vmatprep.subr.bf16.mxu0 0
    %1258 = vmatpush2.bf16.msra.mxu0 0
    %1259 = vmatprep.mubr.bf16.mxu0 0
    %1260 = vmatmul.mubr.bf16.gmra.mxu0 %v164
    %v1261 = vpop.f32.mrf.mxu0
    %v1262 = vadd.f32 %v778, %v1261
    %v1263 = vpop.f32.mrf.mxu0
    %v1264 = vadd.f32 %v780, %v1263
    %v1265 = vpop.f32.mrf.mxu0
    %v1266 = vpop.f32.mrf.mxu0
    %1267 = vdwg.mxu0
    %1268 = vmatprep.subr.bf16.mxu0 %v1080
    %1269 = vmatpush1.bf16.msra.mxu0 %v1079
    %1270 = vmatprep.subr.bf16.mxu0 %v1072
    %1271 = vmatpush1.bf16.msra.mxu0 %v1071
    %1272 = vmatprep.subr.bf16.mxu0 %v1064
    %1273 = vmatpush1.bf16.msra.mxu0 %v1063
    %1274 = vmatprep.subr.bf16.mxu0 %v1056
    %1275 = vmatpush1.bf16.msra.mxu0 %v1055
    %1276 = vmatprep.subr.bf16.mxu0 %v1048
    %1277 = vmatpush1.bf16.msra.mxu0 %v1047
    %1278 = vmatprep.subr.bf16.mxu0 %v1040
    %1279 = vmatpush1.bf16.msra.mxu0 %v1039
    %1280 = vmatprep.subr.bf16.mxu0 %v1032
    %1281 = vmatpush1.bf16.msra.mxu0 %v1031
    %1282 = vmatprep.subr.bf16.mxu0 %v1024
    %1283 = vmatpush1.bf16.msra.mxu0 %v1023
    %1284 = vmatprep.subr.bf16.mxu0 0
    %1285 = vmatpush2.bf16.msra.mxu0 0
    %1286 = vmatprep.subr.bf16.mxu0 0
    %1287 = vmatpush2.bf16.msra.mxu0 0
    %1288 = vmatprep.subr.bf16.mxu0 0
    %1289 = vmatpush2.bf16.msra.mxu0 0
    %1290 = vmatprep.subr.bf16.mxu0 0
    %1291 = vmatpush2.bf16.msra.mxu0 0
    %1292 = vmatprep.subr.bf16.mxu0 0
    %1293 = vmatpush2.bf16.msra.mxu0 0
    %1294 = vmatprep.subr.bf16.mxu0 0
    %1295 = vmatpush2.bf16.msra.mxu0 0
    %1296 = vmatprep.subr.bf16.mxu0 0
    %1297 = vmatpush2.bf16.msra.mxu0 0
    %1298 = vmatprep.subr.bf16.mxu0 0
    %1299 = vmatpush2.bf16.msra.mxu0 0
    %1300 = vmatprep.mubr.bf16.mxu0 0
    %1301 = vmatmul.mubr.bf16.gmra.mxu0 %v164
    %v1302 = vpop.f32.mrf.mxu0
    %v1303 = vadd.f32 %v819, %v1302
    %v1304 = vpop.f32.mrf.mxu0
    %v1305 = vadd.f32 %v821, %v1304
    %v1306 = vpop.f32.mrf.mxu0
    %v1307 = vpop.f32.mrf.mxu0
    %1308 = vdwg.mxu0
    %s1309 = scalar_lea.vmem %s0, 8
    %v1310 = vld [vmem:[%s1309] sm:$0xf]
    %v1312 = vsel %vm119, %v1310, 0
    %1314 = vmatprep.subr.bf16.mxu0 0
    %1315 = vmatpush1.bf16.msra.mxu0 0
    %1316 = vmatprep.subr.bf16.mxu0 0
    %1317 = vmatpush1.bf16.msra.mxu0 0
    %1318 = vmatprep.subr.bf16.mxu0 0
    %1319 = vmatpush1.bf16.msra.mxu0 0
    %1320 = vmatprep.subr.bf16.mxu0 0
    %1321 = vmatpush1.bf16.msra.mxu0 0
    %1322 = vmatprep.subr.bf16.mxu0 0
    %1323 = vmatpush1.bf16.msra.mxu0 0
    %1324 = vmatprep.subr.bf16.mxu0 0
    %1325 = vmatpush1.bf16.msra.mxu0 0
    %1326 = vmatprep.subr.bf16.mxu0 0
    %1327 = vmatpush1.bf16.msra.mxu0 0
    %1328 = vmatprep.subr.bf16.mxu0 0
    %1329 = vmatpush1.bf16.msra.mxu0 %v117
    %1330 = vmatprep.subr.bf16.mxu0 0
    %1331 = vmatpush2.bf16.msra.mxu0 0
    %1332 = vmatprep.subr.bf16.mxu0 0
    %1333 = vmatpush2.bf16.msra.mxu0 0
    %1334 = vmatprep.subr.bf16.mxu0 0
    %1335 = vmatpush2.bf16.msra.mxu0 0
    %1336 = vmatprep.subr.bf16.mxu0 0
    %1337 = vmatpush2.bf16.msra.mxu0 0
    %1338 = vmatprep.subr.bf16.mxu0 0
    %1339 = vmatpush2.bf16.msra.mxu0 0
    %1340 = vmatprep.subr.bf16.mxu0 0
    %1341 = vmatpush2.bf16.msra.mxu0 0
    %1342 = vmatprep.subr.bf16.mxu0 0
    %1343 = vmatpush2.bf16.msra.mxu0 0
    %1344 = vmatprep.subr.bf16.mxu0 0
    %1345 = vmatpush2.bf16.msra.mxu0 0
    %1346 = vmatprep.mubr.bf16.mxu0 0
    %1347 = vmatmul.mubr.bf16.gmra.mxu0 %v1312
    %v1348 = vpop.f32.mrf.mxu0
    %v1349 = vadd.f32 %v111, %v1348
    %v1350 = vpop.f32.mrf.mxu0
    %v1351 = vpop.f32.mrf.mxu0
    %v1352 = vpop.f32.mrf.mxu0
    %1353 = vdwg.mxu0
    %v1354 = vmax.f32 %v1349, 0.0
    %v1355 = vpack.c.bf16 %v1354, %v1354
    %s1356 = scalar_lea.vmem [#allocation6], 1024
    %v1357 = vld [vmem:[%s1356] sm:$0xff]
    %v1358 = vld [vmem:[%s1356 + $0x8] sm:$0xff]
    %v1359 = vld [vmem:[%s1356 + $0x10] sm:$0xff]
    %v1360 = vld [vmem:[%s1356 + $0x18] sm:$0xff]
    %v1361 = vld [vmem:[%s1356 + $0x20] sm:$0xff]
    %v1362 = vld [vmem:[%s1356 + $0x28] sm:$0xff]
    %v1363 = vld [vmem:[%s1356 + $0x30] sm:$0xff]
    %v1364 = vld [vmem:[%s1356 + $0x38] sm:$0xff]
    %v1365 = vld [vmem:[%s1356 + $0x40] sm:$0xff]
    %v1366 = vld [vmem:[%s1356 + $0x48] sm:$0xff]
    %v1367 = vld [vmem:[%s1356 + $0x50] sm:$0xff]
    %v1368 = vld [vmem:[%s1356 + $0x58] sm:$0xff]
    %v1369 = vld [vmem:[%s1356 + $0x60] sm:$0xff]
    %v1370 = vld [vmem:[%s1356 + $0x68] sm:$0xff]
    %v1371 = vld [vmem:[%s1356 + $0x70] sm:$0xff]
    %v1372 = vld [vmem:[%s1356 + $0x78] sm:$0xff]
    %v1373 = vld [vmem:[%s1356 + $0x80] sm:$0xff]
    %v1374 = vld [vmem:[%s1356 + $0x88] sm:$0xff]
    %v1375 = vld [vmem:[%s1356 + $0x90] sm:$0xff]
    %v1376 = vld [vmem:[%s1356 + $0x98] sm:$0xff]
    %v1377 = vld [vmem:[%s1356 + $0xa0] sm:$0xff]
    %v1378 = vld [vmem:[%s1356 + $0xa8] sm:$0xff]
    %v1379 = vld [vmem:[%s1356 + $0xb0] sm:$0xff]
    %v1380 = vld [vmem:[%s1356 + $0xb8] sm:$0xff]
    %v1381 = vld [vmem:[%s1356 + $0xc0] sm:$0xff]
    %v1382 = vld [vmem:[%s1356 + $0xc8] sm:$0xff]
    %v1383 = vld [vmem:[%s1356 + $0xd0] sm:$0xff]
    %v1384 = vld [vmem:[%s1356 + $0xd8] sm:$0xff]
    %v1385 = vld [vmem:[%s1356 + $0xe0] sm:$0xff]
    %v1386 = vld [vmem:[%s1356 + $0xe8] sm:$0xff]
    %v1387 = vld [vmem:[%s1356 + $0xf0] sm:$0xff]
    %v1388 = vld [vmem:[%s1356 + $0xf8] sm:$0xff]
    %v1389 = vld [vmem:[%s1356 + $0x100] sm:$0xff]
    %v1390 = vld [vmem:[%s1356 + $0x108] sm:$0xff]
    %v1391 = vld [vmem:[%s1356 + $0x110] sm:$0xff]
    %v1392 = vld [vmem:[%s1356 + $0x118] sm:$0xff]
    %v1393 = vld [vmem:[%s1356 + $0x120] sm:$0xff]
    %v1394 = vld [vmem:[%s1356 + $0x128] sm:$0xff]
    %v1395 = vld [vmem:[%s1356 + $0x130] sm:$0xff]
    %v1396 = vld [vmem:[%s1356 + $0x138] sm:$0xff]
    %v1397 = vld [vmem:[%s1356 + $0x140] sm:$0xff]
    %v1398 = vld [vmem:[%s1356 + $0x148] sm:$0xff]
    %v1399 = vld [vmem:[%s1356 + $0x150] sm:$0xff]
    %v1400 = vld [vmem:[%s1356 + $0x158] sm:$0xff]
    %v1401 = vld [vmem:[%s1356 + $0x160] sm:$0xff]
    %v1402 = vld [vmem:[%s1356 + $0x168] sm:$0xff]
    %v1403 = vld [vmem:[%s1356 + $0x170] sm:$0xff]
    %v1404 = vld [vmem:[%s1356 + $0x178] sm:$0xff]
    %v1405 = vld [vmem:[%s1356 + $0x180] sm:$0xff]
    %v1406 = vld [vmem:[%s1356 + $0x188] sm:$0xff]
    %v1407 = vld [vmem:[%s1356 + $0x190] sm:$0xff]
    %v1408 = vld [vmem:[%s1356 + $0x198] sm:$0xff]
    %v1409 = vld [vmem:[%s1356 + $0x1a0] sm:$0xff]
    %v1410 = vld [vmem:[%s1356 + $0x1a8] sm:$0xff]
    %v1411 = vld [vmem:[%s1356 + $0x1b0] sm:$0xff]
    %v1412 = vld [vmem:[%s1356 + $0x1b8] sm:$0xff]
    %v1413 = vld [vmem:[%s1356 + $0x1c0] sm:$0xff]
    %v1414 = vld [vmem:[%s1356 + $0x1c8] sm:$0xff]
    %v1415 = vld [vmem:[%s1356 + $0x1d0] sm:$0xff]
    %v1416 = vld [vmem:[%s1356 + $0x1d8] sm:$0xff]
    %v1417 = vld [vmem:[%s1356 + $0x1e0] sm:$0xff]
    %v1418 = vld [vmem:[%s1356 + $0x1e8] sm:$0xff]
    %v1419 = vld [vmem:[%s1356 + $0x1f0] sm:$0xff]
    %v1420 = vld [vmem:[%s1356 + $0x1f8] sm:$0xff]
    %v1485 = vunpack.c.l.b16 %v1357
    %v1486 = vunpack.c.h.b16 %v1357
    %v1487 = vunpack.c.l.b16 %v1358
    %v1488 = vunpack.c.h.b16 %v1358
    %v1489 = vunpack.c.l.b16 %v1359
    %v1490 = vunpack.c.h.b16 %v1359
    %v1491 = vunpack.c.l.b16 %v1360
    %v1492 = vunpack.c.h.b16 %v1360
    %v1493 = vunpack.c.l.b16 %v1361
    %v1494 = vunpack.c.h.b16 %v1361
    %v1495 = vunpack.c.l.b16 %v1362
    %v1496 = vunpack.c.h.b16 %v1362
    %v1497 = vunpack.c.l.b16 %v1363
    %v1498 = vunpack.c.h.b16 %v1363
    %v1499 = vunpack.c.l.b16 %v1364
    %v1500 = vunpack.c.h.b16 %v1364
    %v1501 = vunpack.c.l.b16 %v1365
    %v1502 = vunpack.c.h.b16 %v1365
    %v1503 = vunpack.c.l.b16 %v1366
    %v1504 = vunpack.c.h.b16 %v1366
    %v1505 = vunpack.c.l.b16 %v1367
    %v1506 = vunpack.c.h.b16 %v1367
    %v1507 = vunpack.c.l.b16 %v1368
    %v1508 = vunpack.c.h.b16 %v1368
    %v1509 = vunpack.c.l.b16 %v1369
    %v1510 = vunpack.c.h.b16 %v1369
    %v1511 = vunpack.c.l.b16 %v1370
    %v1512 = vunpack.c.h.b16 %v1370
    %v1513 = vunpack.c.l.b16 %v1371
    %v1514 = vunpack.c.h.b16 %v1371
    %v1515 = vunpack.c.l.b16 %v1372
    %v1516 = vunpack.c.h.b16 %v1372
    %v1517 = vunpack.c.l.b16 %v1373
    %v1518 = vunpack.c.h.b16 %v1373
    %v1519 = vunpack.c.l.b16 %v1374
    %v1520 = vunpack.c.h.b16 %v1374
    %v1521 = vunpack.c.l.b16 %v1375
    %v1522 = vunpack.c.h.b16 %v1375
    %v1523 = vunpack.c.l.b16 %v1376
    %v1524 = vunpack.c.h.b16 %v1376
    %v1525 = vunpack.c.l.b16 %v1377
    %v1526 = vunpack.c.h.b16 %v1377
    %v1527 = vunpack.c.l.b16 %v1378
    %v1528 = vunpack.c.h.b16 %v1378
    %v1529 = vunpack.c.l.b16 %v1379
    %v1530 = vunpack.c.h.b16 %v1379
    %v1531 = vunpack.c.l.b16 %v1380
    %v1532 = vunpack.c.h.b16 %v1380
    %v1533 = vunpack.c.l.b16 %v1381
    %v1534 = vunpack.c.h.b16 %v1381
    %v1535 = vunpack.c.l.b16 %v1382
    %v1536 = vunpack.c.h.b16 %v1382
    %v1537 = vunpack.c.l.b16 %v1383
    %v1538 = vunpack.c.h.b16 %v1383
    %v1539 = vunpack.c.l.b16 %v1384
    %v1540 = vunpack.c.h.b16 %v1384
    %v1541 = vunpack.c.l.b16 %v1385
    %v1542 = vunpack.c.h.b16 %v1385
    %v1543 = vunpack.c.l.b16 %v1386
    %v1544 = vunpack.c.h.b16 %v1386
    %v1545 = vunpack.c.l.b16 %v1387
    %v1546 = vunpack.c.h.b16 %v1387
    %v1547 = vunpack.c.l.b16 %v1388
    %v1548 = vunpack.c.h.b16 %v1388
    %v1549 = vunpack.c.l.b16 %v1389
    %v1550 = vunpack.c.h.b16 %v1389
    %v1551 = vunpack.c.l.b16 %v1390
    %v1552 = vunpack.c.h.b16 %v1390
    %v1553 = vunpack.c.l.b16 %v1391
    %v1554 = vunpack.c.h.b16 %v1391
    %v1555 = vunpack.c.l.b16 %v1392
    %v1556 = vunpack.c.h.b16 %v1392
    %v1557 = vunpack.c.l.b16 %v1393
    %v1558 = vunpack.c.h.b16 %v1393
    %v1559 = vunpack.c.l.b16 %v1394
    %v1560 = vunpack.c.h.b16 %v1394
    %v1561 = vunpack.c.l.b16 %v1395
    %v1562 = vunpack.c.h.b16 %v1395
    %v1563 = vunpack.c.l.b16 %v1396
    %v1564 = vunpack.c.h.b16 %v1396
    %v1565 = vunpack.c.l.b16 %v1397
    %v1566 = vunpack.c.h.b16 %v1397
    %v1567 = vunpack.c.l.b16 %v1398
    %v1568 = vunpack.c.h.b16 %v1398
    %v1569 = vunpack.c.l.b16 %v1399
    %v1570 = vunpack.c.h.b16 %v1399
    %v1571 = vunpack.c.l.b16 %v1400
    %v1572 = vunpack.c.h.b16 %v1400
    %v1573 = vunpack.c.l.b16 %v1401
    %v1574 = vunpack.c.h.b16 %v1401
    %v1575 = vunpack.c.l.b16 %v1402
    %v1576 = vunpack.c.h.b16 %v1402
    %v1577 = vunpack.c.l.b16 %v1403
    %v1578 = vunpack.c.h.b16 %v1403
    %v1579 = vunpack.c.l.b16 %v1404
    %v1580 = vunpack.c.h.b16 %v1404
    %v1581 = vunpack.c.l.b16 %v1405
    %v1582 = vunpack.c.h.b16 %v1405
    %v1583 = vunpack.c.l.b16 %v1406
    %v1584 = vunpack.c.h.b16 %v1406
    %v1585 = vunpack.c.l.b16 %v1407
    %v1586 = vunpack.c.h.b16 %v1407
    %v1587 = vunpack.c.l.b16 %v1408
    %v1588 = vunpack.c.h.b16 %v1408
    %v1589 = vunpack.c.l.b16 %v1409
    %v1590 = vunpack.c.h.b16 %v1409
    %v1591 = vunpack.c.l.b16 %v1410
    %v1592 = vunpack.c.h.b16 %v1410
    %v1593 = vunpack.c.l.b16 %v1411
    %v1594 = vunpack.c.h.b16 %v1411
    %v1595 = vunpack.c.l.b16 %v1412
    %v1596 = vunpack.c.h.b16 %v1412
    %v1597 = vunpack.c.l.b16 %v1413
    %v1598 = vunpack.c.h.b16 %v1413
    %v1599 = vunpack.c.l.b16 %v1414
    %v1600 = vunpack.c.h.b16 %v1414
    %v1601 = vunpack.c.l.b16 %v1415
    %v1602 = vunpack.c.h.b16 %v1415
    %v1603 = vunpack.c.l.b16 %v1416
    %v1604 = vunpack.c.h.b16 %v1416
    %v1605 = vunpack.c.l.b16 %v1417
    %v1606 = vunpack.c.h.b16 %v1417
    %v1607 = vunpack.c.l.b16 %v1418
    %v1608 = vunpack.c.h.b16 %v1418
    %v1609 = vunpack.c.l.b16 %v1419
    %v1610 = vunpack.c.h.b16 %v1419
    %v1611 = vunpack.c.l.b16 %v1420
    %v1612 = vunpack.c.h.b16 %v1420
    %v1613 = vpack.c.b16 %v1493, %v1485
    %v1614 = vpack.c.b16 %v1494, %v1486
    %v1615 = vpack.c.b16 %v1495, %v1487
    %v1616 = vpack.c.b16 %v1496, %v1488
    %v1617 = vpack.c.b16 %v1497, %v1489
    %v1618 = vpack.c.b16 %v1498, %v1490
    %v1619 = vpack.c.b16 %v1499, %v1491
    %v1620 = vpack.c.b16 %v1500, %v1492
    %v1621 = vpack.c.b16 %v1509, %v1501
    %v1622 = vpack.c.b16 %v1510, %v1502
    %v1623 = vpack.c.b16 %v1511, %v1503
    %v1624 = vpack.c.b16 %v1512, %v1504
    %v1625 = vpack.c.b16 %v1513, %v1505
    %v1626 = vpack.c.b16 %v1514, %v1506
    %v1627 = vpack.c.b16 %v1515, %v1507
    %v1628 = vpack.c.b16 %v1516, %v1508
    %v1629 = vpack.c.b16 %v1525, %v1517
    %v1630 = vpack.c.b16 %v1526, %v1518
    %v1631 = vpack.c.b16 %v1527, %v1519
    %v1632 = vpack.c.b16 %v1528, %v1520
    %v1633 = vpack.c.b16 %v1529, %v1521
    %v1634 = vpack.c.b16 %v1530, %v1522
    %v1635 = vpack.c.b16 %v1531, %v1523
    %v1636 = vpack.c.b16 %v1532, %v1524
    %v1637 = vpack.c.b16 %v1541, %v1533
    %v1638 = vpack.c.b16 %v1542, %v1534
    %v1639 = vpack.c.b16 %v1543, %v1535
    %v1640 = vpack.c.b16 %v1544, %v1536
    %v1641 = vpack.c.b16 %v1545, %v1537
    %v1642 = vpack.c.b16 %v1546, %v1538
    %v1643 = vpack.c.b16 %v1547, %v1539
    %v1644 = vpack.c.b16 %v1548, %v1540
    %v1645 = vpack.c.b16 %v1557, %v1549
    %v1646 = vpack.c.b16 %v1558, %v1550
    %v1647 = vpack.c.b16 %v1559, %v1551
    %v1648 = vpack.c.b16 %v1560, %v1552
    %v1649 = vpack.c.b16 %v1561, %v1553
    %v1650 = vpack.c.b16 %v1562, %v1554
    %v1651 = vpack.c.b16 %v1563, %v1555
    %v1652 = vpack.c.b16 %v1564, %v1556
    %v1653 = vpack.c.b16 %v1573, %v1565
    %v1654 = vpack.c.b16 %v1574, %v1566
    %v1655 = vpack.c.b16 %v1575, %v1567
    %v1656 = vpack.c.b16 %v1576, %v1568
    %v1657 = vpack.c.b16 %v1577, %v1569
    %v1658 = vpack.c.b16 %v1578, %v1570
    %v1659 = vpack.c.b16 %v1579, %v1571
    %v1660 = vpack.c.b16 %v1580, %v1572
    %v1661 = vpack.c.b16 %v1589, %v1581
    %v1662 = vpack.c.b16 %v1590, %v1582
    %v1663 = vpack.c.b16 %v1591, %v1583
    %v1664 = vpack.c.b16 %v1592, %v1584
    %v1665 = vpack.c.b16 %v1593, %v1585
    %v1666 = vpack.c.b16 %v1594, %v1586
    %v1667 = vpack.c.b16 %v1595, %v1587
    %v1668 = vpack.c.b16 %v1596, %v1588
    %v1669 = vpack.c.b16 %v1605, %v1597
    %v1670 = vpack.c.b16 %v1606, %v1598
    %v1671 = vpack.c.b16 %v1607, %v1599
    %v1672 = vpack.c.b16 %v1608, %v1600
    %v1673 = vpack.c.b16 %v1609, %v1601
    %v1674 = vpack.c.b16 %v1610, %v1602
    %v1675 = vpack.c.b16 %v1611, %v1603
    %v1676 = vpack.c.b16 %v1612, %v1604
    %1741 = vmatprep.subr.bf16.mxu0 %v1670
    %1742 = vmatpush1.bf16.msra.mxu0 %v1669
    %1743 = vmatprep.subr.bf16.mxu0 %v1662
    %1744 = vmatpush1.bf16.msra.mxu0 %v1661
    %1745 = vmatprep.subr.bf16.mxu0 %v1654
    %1746 = vmatpush1.bf16.msra.mxu0 %v1653
    %1747 = vmatprep.subr.bf16.mxu0 %v1646
    %1748 = vmatpush1.bf16.msra.mxu0 %v1645
    %1749 = vmatprep.subr.bf16.mxu0 %v1638
    %1750 = vmatpush1.bf16.msra.mxu0 %v1637
    %1751 = vmatprep.subr.bf16.mxu0 %v1630
    %1752 = vmatpush1.bf16.msra.mxu0 %v1629
    %1753 = vmatprep.subr.bf16.mxu0 %v1622
    %1754 = vmatpush1.bf16.msra.mxu0 %v1621
    %1755 = vmatprep.subr.bf16.mxu0 %v1614
    %1756 = vmatpush1.bf16.msra.mxu0 %v1613
    %1757 = vmatprep.subr.bf16.mxu0 0
    %1758 = vmatpush2.bf16.msra.mxu0 0
    %1759 = vmatprep.subr.bf16.mxu0 0
    %1760 = vmatpush2.bf16.msra.mxu0 0
    %1761 = vmatprep.subr.bf16.mxu0 0
    %1762 = vmatpush2.bf16.msra.mxu0 0
    %1763 = vmatprep.subr.bf16.mxu0 0
    %1764 = vmatpush2.bf16.msra.mxu0 0
    %1765 = vmatprep.subr.bf16.mxu0 0
    %1766 = vmatpush2.bf16.msra.mxu0 0
    %1767 = vmatprep.subr.bf16.mxu0 0
    %1768 = vmatpush2.bf16.msra.mxu0 0
    %1769 = vmatprep.subr.bf16.mxu0 0
    %1770 = vmatpush2.bf16.msra.mxu0 0
    %1771 = vmatprep.subr.bf16.mxu0 0
    %1772 = vmatpush2.bf16.msra.mxu0 0
    %1773 = vmatprep.mubr.bf16.mxu0 0
    %1774 = vmatmul.mubr.bf16.gmra.mxu0 %v1355
    %v1775 = vpop.f32.mrf.mxu0
    %v1776 = vadd.f32 0.0, %v1775
    %v1777 = vpop.f32.mrf.mxu0
    %v1778 = vadd.f32 0.0, %v1777
    %v1779 = vpop.f32.mrf.mxu0
    %v1780 = vpop.f32.mrf.mxu0
    %1781 = vdwg.mxu0
    %1782 = vmatprep.subr.bf16.mxu0 %v1672
    %1783 = vmatpush1.bf16.msra.mxu0 %v1671
    %1784 = vmatprep.subr.bf16.mxu0 %v1664
    %1785 = vmatpush1.bf16.msra.mxu0 %v1663
    %1786 = vmatprep.subr.bf16.mxu0 %v1656
    %1787 = vmatpush1.bf16.msra.mxu0 %v1655
    %1788 = vmatprep.subr.bf16.mxu0 %v1648
    %1789 = vmatpush1.bf16.msra.mxu0 %v1647
    %1790 = vmatprep.subr.bf16.mxu0 %v1640
    %1791 = vmatpush1.bf16.msra.mxu0 %v1639
    %1792 = vmatprep.subr.bf16.mxu0 %v1632
    %1793 = vmatpush1.bf16.msra.mxu0 %v1631
    %1794 = vmatprep.subr.bf16.mxu0 %v1624
    %1795 = vmatpush1.bf16.msra.mxu0 %v1623
    %1796 = vmatprep.subr.bf16.mxu0 %v1616
    %1797 = vmatpush1.bf16.msra.mxu0 %v1615
    %1798 = vmatprep.subr.bf16.mxu0 0
    %1799 = vmatpush2.bf16.msra.mxu0 0
    %1800 = vmatprep.subr.bf16.mxu0 0
    %1801 = vmatpush2.bf16.msra.mxu0 0
    %1802 = vmatprep.subr.bf16.mxu0 0
    %1803 = vmatpush2.bf16.msra.mxu0 0
    %1804 = vmatprep.subr.bf16.mxu0 0
    %1805 = vmatpush2.bf16.msra.mxu0 0
    %1806 = vmatprep.subr.bf16.mxu0 0
    %1807 = vmatpush2.bf16.msra.mxu0 0
    %1808 = vmatprep.subr.bf16.mxu0 0
    %1809 = vmatpush2.bf16.msra.mxu0 0
    %1810 = vmatprep.subr.bf16.mxu0 0
    %1811 = vmatpush2.bf16.msra.mxu0 0
    %1812 = vmatprep.subr.bf16.mxu0 0
    %1813 = vmatpush2.bf16.msra.mxu0 0
    %1814 = vmatprep.mubr.bf16.mxu0 0
    %1815 = vmatmul.mubr.bf16.gmra.mxu0 %v1355
    %v1816 = vpop.f32.mrf.mxu0
    %v1817 = vadd.f32 0.0, %v1816
    %v1818 = vpop.f32.mrf.mxu0
    %v1819 = vadd.f32 0.0, %v1818
    %v1820 = vpop.f32.mrf.mxu0
    %v1821 = vpop.f32.mrf.mxu0
    %1822 = vdwg.mxu0
    %1823 = vmatprep.subr.bf16.mxu0 %v1674
    %1824 = vmatpush1.bf16.msra.mxu0 %v1673
    %1825 = vmatprep.subr.bf16.mxu0 %v1666
    %1826 = vmatpush1.bf16.msra.mxu0 %v1665
    %1827 = vmatprep.subr.bf16.mxu0 %v1658
    %1828 = vmatpush1.bf16.msra.mxu0 %v1657
    %1829 = vmatprep.subr.bf16.mxu0 %v1650
    %1830 = vmatpush1.bf16.msra.mxu0 %v1649
    %1831 = vmatprep.subr.bf16.mxu0 %v1642
    %1832 = vmatpush1.bf16.msra.mxu0 %v1641
    %1833 = vmatprep.subr.bf16.mxu0 %v1634
    %1834 = vmatpush1.bf16.msra.mxu0 %v1633
    %1835 = vmatprep.subr.bf16.mxu0 %v1626
    %1836 = vmatpush1.bf16.msra.mxu0 %v1625
    %1837 = vmatprep.subr.bf16.mxu0 %v1618
    %1838 = vmatpush1.bf16.msra.mxu0 %v1617
    %1839 = vmatprep.subr.bf16.mxu0 0
    %1840 = vmatpush2.bf16.msra.mxu0 0
    %1841 = vmatprep.subr.bf16.mxu0 0
    %1842 = vmatpush2.bf16.msra.mxu0 0
    %1843 = vmatprep.subr.bf16.mxu0 0
    %1844 = vmatpush2.bf16.msra.mxu0 0
    %1845 = vmatprep.subr.bf16.mxu0 0
    %1846 = vmatpush2.bf16.msra.mxu0 0
    %1847 = vmatprep.subr.bf16.mxu0 0
    %1848 = vmatpush2.bf16.msra.mxu0 0
    %1849 = vmatprep.subr.bf16.mxu0 0
    %1850 = vmatpush2.bf16.msra.mxu0 0
    %1851 = vmatprep.subr.bf16.mxu0 0
    %1852 = vmatpush2.bf16.msra.mxu0 0
    %1853 = vmatprep.subr.bf16.mxu0 0
    %1854 = vmatpush2.bf16.msra.mxu0 0
    %1855 = vmatprep.mubr.bf16.mxu0 0
    %1856 = vmatmul.mubr.bf16.gmra.mxu0 %v1355
    %v1857 = vpop.f32.mrf.mxu0
    %v1858 = vadd.f32 0.0, %v1857
    %v1859 = vpop.f32.mrf.mxu0
    %v1860 = vadd.f32 0.0, %v1859
    %v1861 = vpop.f32.mrf.mxu0
    %v1862 = vpop.f32.mrf.mxu0
    %1863 = vdwg.mxu0
    %1864 = vmatprep.subr.bf16.mxu0 %v1676
    %1865 = vmatpush1.bf16.msra.mxu0 %v1675
    %1866 = vmatprep.subr.bf16.mxu0 %v1668
    %1867 = vmatpush1.bf16.msra.mxu0 %v1667
    %1868 = vmatprep.subr.bf16.mxu0 %v1660
    %1869 = vmatpush1.bf16.msra.mxu0 %v1659
    %1870 = vmatprep.subr.bf16.mxu0 %v1652
    %1871 = vmatpush1.bf16.msra.mxu0 %v1651
    %1872 = vmatprep.subr.bf16.mxu0 %v1644
    %1873 = vmatpush1.bf16.msra.mxu0 %v1643
    %1874 = vmatprep.subr.bf16.mxu0 %v1636
    %1875 = vmatpush1.bf16.msra.mxu0 %v1635
    %1876 = vmatprep.subr.bf16.mxu0 %v1628
    %1877 = vmatpush1.bf16.msra.mxu0 %v1627
    %1878 = vmatprep.subr.bf16.mxu0 %v1620
    %1879 = vmatpush1.bf16.msra.mxu0 %v1619
    %1880 = vmatprep.subr.bf16.mxu0 0
    %1881 = vmatpush2.bf16.msra.mxu0 0
    %1882 = vmatprep.subr.bf16.mxu0 0
    %1883 = vmatpush2.bf16.msra.mxu0 0
    %1884 = vmatprep.subr.bf16.mxu0 0
    %1885 = vmatpush2.bf16.msra.mxu0 0
    %1886 = vmatprep.subr.bf16.mxu0 0
    %1887 = vmatpush2.bf16.msra.mxu0 0
    %1888 = vmatprep.subr.bf16.mxu0 0
    %1889 = vmatpush2.bf16.msra.mxu0 0
    %1890 = vmatprep.subr.bf16.mxu0 0
    %1891 = vmatpush2.bf16.msra.mxu0 0
    %1892 = vmatprep.subr.bf16.mxu0 0
    %1893 = vmatpush2.bf16.msra.mxu0 0
    %1894 = vmatprep.subr.bf16.mxu0 0
    %1895 = vmatpush2.bf16.msra.mxu0 0
    %1896 = vmatprep.mubr.bf16.mxu0 0
    %1897 = vmatmul.mubr.bf16.gmra.mxu0 %v1355
    %v1898 = vpop.f32.mrf.mxu0
    %v1899 = vadd.f32 0.0, %v1898
    %v1900 = vpop.f32.mrf.mxu0
    %v1901 = vadd.f32 0.0, %v1900
    %v1902 = vpop.f32.mrf.mxu0
    %v1903 = vpop.f32.mrf.mxu0
    %1904 = vdwg.mxu0
    %v1905 = vadd.f32 %v1180, %v1776
    %v1906 = vadd.f32 %v1182, %v1778
    %v1907 = vadd.f32 %v1221, %v1817
    %v1908 = vadd.f32 %v1223, %v1819
    %v1909 = vadd.f32 %v1262, %v1858
    %v1910 = vadd.f32 %v1264, %v1860
    %v1911 = vadd.f32 %v1303, %v1899
    %v1912 = vadd.f32 %v1305, %v1901
    %s1913 = scalar_lea.vmem %s0, 12
    %v1914 = vld [vmem:[%s1913] sm:$0xf]
    %v1916 = vsel %vm119, %v1914, 0
    %1918 = vmatprep.subr.bf16.mxu0 0
    %1919 = vmatpush1.bf16.msra.mxu0 0
    %1920 = vmatprep.subr.bf16.mxu0 0
    %1921 = vmatpush1.bf16.msra.mxu0 0
    %1922 = vmatprep.subr.bf16.mxu0 0
    %1923 = vmatpush1.bf16.msra.mxu0 0
    %1924 = vmatprep.subr.bf16.mxu0 0
    %1925 = vmatpush1.bf16.msra.mxu0 0
    %1926 = vmatprep.subr.bf16.mxu0 0
    %1927 = vmatpush1.bf16.msra.mxu0 0
    %1928 = vmatprep.subr.bf16.mxu0 0
    %1929 = vmatpush1.bf16.msra.mxu0 0
    %1930 = vmatprep.subr.bf16.mxu0 0
    %1931 = vmatpush1.bf16.msra.mxu0 0
    %1932 = vmatprep.subr.bf16.mxu0 0
    %1933 = vmatpush1.bf16.msra.mxu0 %v117
    %1934 = vmatprep.subr.bf16.mxu0 0
    %1935 = vmatpush2.bf16.msra.mxu0 0
    %1936 = vmatprep.subr.bf16.mxu0 0
    %1937 = vmatpush2.bf16.msra.mxu0 0
    %1938 = vmatprep.subr.bf16.mxu0 0
    %1939 = vmatpush2.bf16.msra.mxu0 0
    %1940 = vmatprep.subr.bf16.mxu0 0
    %1941 = vmatpush2.bf16.msra.mxu0 0
    %1942 = vmatprep.subr.bf16.mxu0 0
    %1943 = vmatpush2.bf16.msra.mxu0 0
    %1944 = vmatprep.subr.bf16.mxu0 0
    %1945 = vmatpush2.bf16.msra.mxu0 0
    %1946 = vmatprep.subr.bf16.mxu0 0
    %1947 = vmatpush2.bf16.msra.mxu0 0
    %1948 = vmatprep.subr.bf16.mxu0 0
    %1949 = vmatpush2.bf16.msra.mxu0 0
    %1950 = vmatprep.mubr.bf16.mxu0 0
    %1951 = vmatmul.mubr.bf16.gmra.mxu0 %v1916
    %v1952 = vpop.f32.mrf.mxu0
    %v1953 = vadd.f32 %v111, %v1952
    %v1954 = vpop.f32.mrf.mxu0
    %v1955 = vpop.f32.mrf.mxu0
    %v1956 = vpop.f32.mrf.mxu0
    %1957 = vdwg.mxu0
    %v1958 = vmax.f32 %v1953, 0.0
    %v1959 = vpack.c.bf16 %v1958, %v1958
    %s1960 = scalar_lea.vmem [#allocation6], 1536
    %v1961 = vld [vmem:[%s1960] sm:$0xff]
    %v1962 = vld [vmem:[%s1960 + $0x8] sm:$0xff]
    %v1963 = vld [vmem:[%s1960 + $0x10] sm:$0xff]
    %v1964 = vld [vmem:[%s1960 + $0x18] sm:$0xff]
    %v1965 = vld [vmem:[%s1960 + $0x20] sm:$0xff]
    %v1966 = vld [vmem:[%s1960 + $0x28] sm:$0xff]
    %v1967 = vld [vmem:[%s1960 + $0x30] sm:$0xff]
    %v1968 = vld [vmem:[%s1960 + $0x38] sm:$0xff]
    %v1969 = vld [vmem:[%s1960 + $0x40] sm:$0xff]
    %v1970 = vld [vmem:[%s1960 + $0x48] sm:$0xff]
    %v1971 = vld [vmem:[%s1960 + $0x50] sm:$0xff]
    %v1972 = vld [vmem:[%s1960 + $0x58] sm:$0xff]
    %v1973 = vld [vmem:[%s1960 + $0x60] sm:$0xff]
    %v1974 = vld [vmem:[%s1960 + $0x68] sm:$0xff]
    %v1975 = vld [vmem:[%s1960 + $0x70] sm:$0xff]
    %v1976 = vld [vmem:[%s1960 + $0x78] sm:$0xff]
    %v1977 = vld [vmem:[%s1960 + $0x80] sm:$0xff]
    %v1978 = vld [vmem:[%s1960 + $0x88] sm:$0xff]
    %v1979 = vld [vmem:[%s1960 + $0x90] sm:$0xff]
    %v1980 = vld [vmem:[%s1960 + $0x98] sm:$0xff]
    %v1981 = vld [vmem:[%s1960 + $0xa0] sm:$0xff]
    %v1982 = vld [vmem:[%s1960 + $0xa8] sm:$0xff]
    %v1983 = vld [vmem:[%s1960 + $0xb0] sm:$0xff]
    %v1984 = vld [vmem:[%s1960 + $0xb8] sm:$0xff]
    %v1985 = vld [vmem:[%s1960 + $0xc0] sm:$0xff]
    %v1986 = vld [vmem:[%s1960 + $0xc8] sm:$0xff]
    %v1987 = vld [vmem:[%s1960 + $0xd0] sm:$0xff]
    %v1988 = vld [vmem:[%s1960 + $0xd8] sm:$0xff]
    %v1989 = vld [vmem:[%s1960 + $0xe0] sm:$0xff]
    %v1990 = vld [vmem:[%s1960 + $0xe8] sm:$0xff]
    %v1991 = vld [vmem:[%s1960 + $0xf0] sm:$0xff]
    %v1992 = vld [vmem:[%s1960 + $0xf8] sm:$0xff]
    %v1993 = vld [vmem:[%s1960 + $0x100] sm:$0xff]
    %v1994 = vld [vmem:[%s1960 + $0x108] sm:$0xff]
    %v1995 = vld [vmem:[%s1960 + $0x110] sm:$0xff]
    %v1996 = vld [vmem:[%s1960 + $0x118] sm:$0xff]
    %v1997 = vld [vmem:[%s1960 + $0x120] sm:$0xff]
    %v1998 = vld [vmem:[%s1960 + $0x128] sm:$0xff]
    %v1999 = vld [vmem:[%s1960 + $0x130] sm:$0xff]
    %v2000 = vld [vmem:[%s1960 + $0x138] sm:$0xff]
    %v2001 = vld [vmem:[%s1960 + $0x140] sm:$0xff]
    %v2002 = vld [vmem:[%s1960 + $0x148] sm:$0xff]
    %v2003 = vld [vmem:[%s1960 + $0x150] sm:$0xff]
    %v2004 = vld [vmem:[%s1960 + $0x158] sm:$0xff]
    %v2005 = vld [vmem:[%s1960 + $0x160] sm:$0xff]
    %v2006 = vld [vmem:[%s1960 + $0x168] sm:$0xff]
    %v2007 = vld [vmem:[%s1960 + $0x170] sm:$0xff]
    %v2008 = vld [vmem:[%s1960 + $0x178] sm:$0xff]
    %v2009 = vld [vmem:[%s1960 + $0x180] sm:$0xff]
    %v2010 = vld [vmem:[%s1960 + $0x188] sm:$0xff]
    %v2011 = vld [vmem:[%s1960 + $0x190] sm:$0xff]
    %v2012 = vld [vmem:[%s1960 + $0x198] sm:$0xff]
    %v2013 = vld [vmem:[%s1960 + $0x1a0] sm:$0xff]
    %v2014 = vld [vmem:[%s1960 + $0x1a8] sm:$0xff]
    %v2015 = vld [vmem:[%s1960 + $0x1b0] sm:$0xff]
    %v2016 = vld [vmem:[%s1960 + $0x1b8] sm:$0xff]
    %v2017 = vld [vmem:[%s1960 + $0x1c0] sm:$0xff]
    %v2018 = vld [vmem:[%s1960 + $0x1c8] sm:$0xff]
    %v2019 = vld [vmem:[%s1960 + $0x1d0] sm:$0xff]
    %v2020 = vld [vmem:[%s1960 + $0x1d8] sm:$0xff]
    %v2021 = vld [vmem:[%s1960 + $0x1e0] sm:$0xff]
    %v2022 = vld [vmem:[%s1960 + $0x1e8] sm:$0xff]
    %v2023 = vld [vmem:[%s1960 + $0x1f0] sm:$0xff]
    %v2024 = vld [vmem:[%s1960 + $0x1f8] sm:$0xff]
    %v2089 = vunpack.c.l.b16 %v1961
    %v2090 = vunpack.c.h.b16 %v1961
    %v2091 = vunpack.c.l.b16 %v1962
    %v2092 = vunpack.c.h.b16 %v1962
    %v2093 = vunpack.c.l.b16 %v1963
    %v2094 = vunpack.c.h.b16 %v1963
    %v2095 = vunpack.c.l.b16 %v1964
    %v2096 = vunpack.c.h.b16 %v1964
    %v2097 = vunpack.c.l.b16 %v1965
    %v2098 = vunpack.c.h.b16 %v1965
    %v2099 = vunpack.c.l.b16 %v1966
    %v2100 = vunpack.c.h.b16 %v1966
    %v2101 = vunpack.c.l.b16 %v1967
    %v2102 = vunpack.c.h.b16 %v1967
    %v2103 = vunpack.c.l.b16 %v1968
    %v2104 = vunpack.c.h.b16 %v1968
    %v2105 = vunpack.c.l.b16 %v1969
    %v2106 = vunpack.c.h.b16 %v1969
    %v2107 = vunpack.c.l.b16 %v1970
    %v2108 = vunpack.c.h.b16 %v1970
    %v2109 = vunpack.c.l.b16 %v1971
    %v2110 = vunpack.c.h.b16 %v1971
    %v2111 = vunpack.c.l.b16 %v1972
    %v2112 = vunpack.c.h.b16 %v1972
    %v2113 = vunpack.c.l.b16 %v1973
    %v2114 = vunpack.c.h.b16 %v1973
    %v2115 = vunpack.c.l.b16 %v1974
    %v2116 = vunpack.c.h.b16 %v1974
    %v2117 = vunpack.c.l.b16 %v1975
    %v2118 = vunpack.c.h.b16 %v1975
    %v2119 = vunpack.c.l.b16 %v1976
    %v2120 = vunpack.c.h.b16 %v1976
    %v2121 = vunpack.c.l.b16 %v1977
    %v2122 = vunpack.c.h.b16 %v1977
    %v2123 = vunpack.c.l.b16 %v1978
    %v2124 = vunpack.c.h.b16 %v1978
    %v2125 = vunpack.c.l.b16 %v1979
    %v2126 = vunpack.c.h.b16 %v1979
    %v2127 = vunpack.c.l.b16 %v1980
    %v2128 = vunpack.c.h.b16 %v1980
    %v2129 = vunpack.c.l.b16 %v1981
    %v2130 = vunpack.c.h.b16 %v1981
    %v2131 = vunpack.c.l.b16 %v1982
    %v2132 = vunpack.c.h.b16 %v1982
    %v2133 = vunpack.c.l.b16 %v1983
    %v2134 = vunpack.c.h.b16 %v1983
    %v2135 = vunpack.c.l.b16 %v1984
    %v2136 = vunpack.c.h.b16 %v1984
    %v2137 = vunpack.c.l.b16 %v1985
    %v2138 = vunpack.c.h.b16 %v1985
    %v2139 = vunpack.c.l.b16 %v1986
    %v2140 = vunpack.c.h.b16 %v1986
    %v2141 = vunpack.c.l.b16 %v1987
    %v2142 = vunpack.c.h.b16 %v1987
    %v2143 = vunpack.c.l.b16 %v1988
    %v2144 = vunpack.c.h.b16 %v1988
    %v2145 = vunpack.c.l.b16 %v1989
    %v2146 = vunpack.c.h.b16 %v1989
    %v2147 = vunpack.c.l.b16 %v1990
    %v2148 = vunpack.c.h.b16 %v1990
    %v2149 = vunpack.c.l.b16 %v1991
    %v2150 = vunpack.c.h.b16 %v1991
    %v2151 = vunpack.c.l.b16 %v1992
    %v2152 = vunpack.c.h.b16 %v1992
    %v2153 = vunpack.c.l.b16 %v1993
    %v2154 = vunpack.c.h.b16 %v1993
    %v2155 = vunpack.c.l.b16 %v1994
    %v2156 = vunpack.c.h.b16 %v1994
    %v2157 = vunpack.c.l.b16 %v1995
    %v2158 = vunpack.c.h.b16 %v1995
    %v2159 = vunpack.c.l.b16 %v1996
    %v2160 = vunpack.c.h.b16 %v1996
    %v2161 = vunpack.c.l.b16 %v1997
    %v2162 = vunpack.c.h.b16 %v1997
    %v2163 = vunpack.c.l.b16 %v1998
    %v2164 = vunpack.c.h.b16 %v1998
    %v2165 = vunpack.c.l.b16 %v1999
    %v2166 = vunpack.c.h.b16 %v1999
    %v2167 = vunpack.c.l.b16 %v2000
    %v2168 = vunpack.c.h.b16 %v2000
    %v2169 = vunpack.c.l.b16 %v2001
    %v2170 = vunpack.c.h.b16 %v2001
    %v2171 = vunpack.c.l.b16 %v2002
    %v2172 = vunpack.c.h.b16 %v2002
    %v2173 = vunpack.c.l.b16 %v2003
    %v2174 = vunpack.c.h.b16 %v2003
    %v2175 = vunpack.c.l.b16 %v2004
    %v2176 = vunpack.c.h.b16 %v2004
    %v2177 = vunpack.c.l.b16 %v2005
    %v2178 = vunpack.c.h.b16 %v2005
    %v2179 = vunpack.c.l.b16 %v2006
    %v2180 = vunpack.c.h.b16 %v2006
    %v2181 = vunpack.c.l.b16 %v2007
    %v2182 = vunpack.c.h.b16 %v2007
    %v2183 = vunpack.c.l.b16 %v2008
    %v2184 = vunpack.c.h.b16 %v2008
    %v2185 = vunpack.c.l.b16 %v2009
    %v2186 = vunpack.c.h.b16 %v2009
    %v2187 = vunpack.c.l.b16 %v2010
    %v2188 = vunpack.c.h.b16 %v2010
    %v2189 = vunpack.c.l.b16 %v2011
    %v2190 = vunpack.c.h.b16 %v2011
    %v2191 = vunpack.c.l.b16 %v2012
    %v2192 = vunpack.c.h.b16 %v2012
    %v2193 = vunpack.c.l.b16 %v2013
    %v2194 = vunpack.c.h.b16 %v2013
    %v2195 = vunpack.c.l.b16 %v2014
    %v2196 = vunpack.c.h.b16 %v2014
    %v2197 = vunpack.c.l.b16 %v2015
    %v2198 = vunpack.c.h.b16 %v2015
    %v2199 = vunpack.c.l.b16 %v2016
    %v2200 = vunpack.c.h.b16 %v2016
    %v2201 = vunpack.c.l.b16 %v2017
    %v2202 = vunpack.c.h.b16 %v2017
    %v2203 = vunpack.c.l.b16 %v2018
    %v2204 = vunpack.c.h.b16 %v2018
    %v2205 = vunpack.c.l.b16 %v2019
    %v2206 = vunpack.c.h.b16 %v2019
    %v2207 = vunpack.c.l.b16 %v2020
    %v2208 = vunpack.c.h.b16 %v2020
    %v2209 = vunpack.c.l.b16 %v2021
    %v2210 = vunpack.c.h.b16 %v2021
    %v2211 = vunpack.c.l.b16 %v2022
    %v2212 = vunpack.c.h.b16 %v2022
    %v2213 = vunpack.c.l.b16 %v2023
    %v2214 = vunpack.c.h.b16 %v2023
    %v2215 = vunpack.c.l.b16 %v2024
    %v2216 = vunpack.c.h.b16 %v2024
    %v2217 = vpack.c.b16 %v2097, %v2089
    %v2218 = vpack.c.b16 %v2098, %v2090
    %v2219 = vpack.c.b16 %v2099, %v2091
    %v2220 = vpack.c.b16 %v2100, %v2092
    %v2221 = vpack.c.b16 %v2101, %v2093
    %v2222 = vpack.c.b16 %v2102, %v2094
    %v2223 = vpack.c.b16 %v2103, %v2095
    %v2224 = vpack.c.b16 %v2104, %v2096
    %v2225 = vpack.c.b16 %v2113, %v2105
    %v2226 = vpack.c.b16 %v2114, %v2106
    %v2227 = vpack.c.b16 %v2115, %v2107
    %v2228 = vpack.c.b16 %v2116, %v2108
    %v2229 = vpack.c.b16 %v2117, %v2109
    %v2230 = vpack.c.b16 %v2118, %v2110
    %v2231 = vpack.c.b16 %v2119, %v2111
    %v2232 = vpack.c.b16 %v2120, %v2112
    %v2233 = vpack.c.b16 %v2129, %v2121
    %v2234 = vpack.c.b16 %v2130, %v2122
    %v2235 = vpack.c.b16 %v2131, %v2123
    %v2236 = vpack.c.b16 %v2132, %v2124
    %v2237 = vpack.c.b16 %v2133, %v2125
    %v2238 = vpack.c.b16 %v2134, %v2126
    %v2239 = vpack.c.b16 %v2135, %v2127
    %v2240 = vpack.c.b16 %v2136, %v2128
    %v2241 = vpack.c.b16 %v2145, %v2137
    %v2242 = vpack.c.b16 %v2146, %v2138
    %v2243 = vpack.c.b16 %v2147, %v2139
    %v2244 = vpack.c.b16 %v2148, %v2140
    %v2245 = vpack.c.b16 %v2149, %v2141
    %v2246 = vpack.c.b16 %v2150, %v2142
    %v2247 = vpack.c.b16 %v2151, %v2143
    %v2248 = vpack.c.b16 %v2152, %v2144
    %v2249 = vpack.c.b16 %v2161, %v2153
    %v2250 = vpack.c.b16 %v2162, %v2154
    %v2251 = vpack.c.b16 %v2163, %v2155
    %v2252 = vpack.c.b16 %v2164, %v2156
    %v2253 = vpack.c.b16 %v2165, %v2157
    %v2254 = vpack.c.b16 %v2166, %v2158
    %v2255 = vpack.c.b16 %v2167, %v2159
    %v2256 = vpack.c.b16 %v2168, %v2160
    %v2257 = vpack.c.b16 %v2177, %v2169
    %v2258 = vpack.c.b16 %v2178, %v2170
    %v2259 = vpack.c.b16 %v2179, %v2171
    %v2260 = vpack.c.b16 %v2180, %v2172
    %v2261 = vpack.c.b16 %v2181, %v2173
    %v2262 = vpack.c.b16 %v2182, %v2174
    %v2263 = vpack.c.b16 %v2183, %v2175
    %v2264 = vpack.c.b16 %v2184, %v2176
    %v2265 = vpack.c.b16 %v2193, %v2185
    %v2266 = vpack.c.b16 %v2194, %v2186
    %v2267 = vpack.c.b16 %v2195, %v2187
    %v2268 = vpack.c.b16 %v2196, %v2188
    %v2269 = vpack.c.b16 %v2197, %v2189
    %v2270 = vpack.c.b16 %v2198, %v2190
    %v2271 = vpack.c.b16 %v2199, %v2191
    %v2272 = vpack.c.b16 %v2200, %v2192
    %v2273 = vpack.c.b16 %v2209, %v2201
    %v2274 = vpack.c.b16 %v2210, %v2202
    %v2275 = vpack.c.b16 %v2211, %v2203
    %v2276 = vpack.c.b16 %v2212, %v2204
    %v2277 = vpack.c.b16 %v2213, %v2205
    %v2278 = vpack.c.b16 %v2214, %v2206
    %v2279 = vpack.c.b16 %v2215, %v2207
    %v2280 = vpack.c.b16 %v2216, %v2208
    %2345 = vmatprep.subr.bf16.mxu0 %v2274
    %2346 = vmatpush1.bf16.msra.mxu0 %v2273
    %2347 = vmatprep.subr.bf16.mxu0 %v2266
    %2348 = vmatpush1.bf16.msra.mxu0 %v2265
    %2349 = vmatprep.subr.bf16.mxu0 %v2258
    %2350 = vmatpush1.bf16.msra.mxu0 %v2257
    %2351 = vmatprep.subr.bf16.mxu0 %v2250
    %2352 = vmatpush1.bf16.msra.mxu0 %v2249
    %2353 = vmatprep.subr.bf16.mxu0 %v2242
    %2354 = vmatpush1.bf16.msra.mxu0 %v2241
    %2355 = vmatprep.subr.bf16.mxu0 %v2234
    %2356 = vmatpush1.bf16.msra.mxu0 %v2233
    %2357 = vmatprep.subr.bf16.mxu0 %v2226
    %2358 = vmatpush1.bf16.msra.mxu0 %v2225
    %2359 = vmatprep.subr.bf16.mxu0 %v2218
    %2360 = vmatpush1.bf16.msra.mxu0 %v2217
    %2361 = vmatprep.subr.bf16.mxu0 0
    %2362 = vmatpush2.bf16.msra.mxu0 0
    %2363 = vmatprep.subr.bf16.mxu0 0
    %2364 = vmatpush2.bf16.msra.mxu0 0
    %2365 = vmatprep.subr.bf16.mxu0 0
    %2366 = vmatpush2.bf16.msra.mxu0 0
    %2367 = vmatprep.subr.bf16.mxu0 0
    %2368 = vmatpush2.bf16.msra.mxu0 0
    %2369 = vmatprep.subr.bf16.mxu0 0
    %2370 = vmatpush2.bf16.msra.mxu0 0
    %2371 = vmatprep.subr.bf16.mxu0 0
    %2372 = vmatpush2.bf16.msra.mxu0 0
    %2373 = vmatprep.subr.bf16.mxu0 0
    %2374 = vmatpush2.bf16.msra.mxu0 0
    %2375 = vmatprep.subr.bf16.mxu0 0
    %2376 = vmatpush2.bf16.msra.mxu0 0
    %2377 = vmatprep.mubr.bf16.mxu0 0
    %2378 = vmatmul.mubr.bf16.gmra.mxu0 %v1959
    %v2379 = vpop.f32.mrf.mxu0
    %v2380 = vadd.f32 0.0, %v2379
    %v2381 = vpop.f32.mrf.mxu0
    %v2382 = vadd.f32 0.0, %v2381
    %v2383 = vpop.f32.mrf.mxu0
    %v2384 = vpop.f32.mrf.mxu0
    %2385 = vdwg.mxu0
    %2386 = vmatprep.subr.bf16.mxu0 %v2276
    %2387 = vmatpush1.bf16.msra.mxu0 %v2275
    %2388 = vmatprep.subr.bf16.mxu0 %v2268
    %2389 = vmatpush1.bf16.msra.mxu0 %v2267
    %2390 = vmatprep.subr.bf16.mxu0 %v2260
    %2391 = vmatpush1.bf16.msra.mxu0 %v2259
    %2392 = vmatprep.subr.bf16.mxu0 %v2252
    %2393 = vmatpush1.bf16.msra.mxu0 %v2251
    %2394 = vmatprep.subr.bf16.mxu0 %v2244
    %2395 = vmatpush1.bf16.msra.mxu0 %v2243
    %2396 = vmatprep.subr.bf16.mxu0 %v2236
    %2397 = vmatpush1.bf16.msra.mxu0 %v2235
    %2398 = vmatprep.subr.bf16.mxu0 %v2228
    %2399 = vmatpush1.bf16.msra.mxu0 %v2227
    %2400 = vmatprep.subr.bf16.mxu0 %v2220
    %2401 = vmatpush1.bf16.msra.mxu0 %v2219
    %2402 = vmatprep.subr.bf16.mxu0 0
    %2403 = vmatpush2.bf16.msra.mxu0 0
    %2404 = vmatprep.subr.bf16.mxu0 0
    %2405 = vmatpush2.bf16.msra.mxu0 0
    %2406 = vmatprep.subr.bf16.mxu0 0
    %2407 = vmatpush2.bf16.msra.mxu0 0
    %2408 = vmatprep.subr.bf16.mxu0 0
    %2409 = vmatpush2.bf16.msra.mxu0 0
    %2410 = vmatprep.subr.bf16.mxu0 0
    %2411 = vmatpush2.bf16.msra.mxu0 0
    %2412 = vmatprep.subr.bf16.mxu0 0
    %2413 = vmatpush2.bf16.msra.mxu0 0
    %2414 = vmatprep.subr.bf16.mxu0 0
    %2415 = vmatpush2.bf16.msra.mxu0 0
    %2416 = vmatprep.subr.bf16.mxu0 0
    %2417 = vmatpush2.bf16.msra.mxu0 0
    %2418 = vmatprep.mubr.bf16.mxu0 0
    %2419 = vmatmul.mubr.bf16.gmra.mxu0 %v1959
    %v2420 = vpop.f32.mrf.mxu0
    %v2421 = vadd.f32 0.0, %v2420
    %v2422 = vpop.f32.mrf.mxu0
    %v2423 = vadd.f32 0.0, %v2422
    %v2424 = vpop.f32.mrf.mxu0
    %v2425 = vpop.f32.mrf.mxu0
    %2426 = vdwg.mxu0
    %2427 = vmatprep.subr.bf16.mxu0 %v2278
    %2428 = vmatpush1.bf16.msra.mxu0 %v2277
    %2429 = vmatprep.subr.bf16.mxu0 %v2270
    %2430 = vmatpush1.bf16.msra.mxu0 %v2269
    %2431 = vmatprep.subr.bf16.mxu0 %v2262
    %2432 = vmatpush1.bf16.msra.mxu0 %v2261
    %2433 = vmatprep.subr.bf16.mxu0 %v2254
    %2434 = vmatpush1.bf16.msra.mxu0 %v2253
    %2435 = vmatprep.subr.bf16.mxu0 %v2246
    %2436 = vmatpush1.bf16.msra.mxu0 %v2245
    %2437 = vmatprep.subr.bf16.mxu0 %v2238
    %2438 = vmatpush1.bf16.msra.mxu0 %v2237
    %2439 = vmatprep.subr.bf16.mxu0 %v2230
    %2440 = vmatpush1.bf16.msra.mxu0 %v2229
    %2441 = vmatprep.subr.bf16.mxu0 %v2222
    %2442 = vmatpush1.bf16.msra.mxu0 %v2221
    %2443 = vmatprep.subr.bf16.mxu0 0
    %2444 = vmatpush2.bf16.msra.mxu0 0
    %2445 = vmatprep.subr.bf16.mxu0 0
    %2446 = vmatpush2.bf16.msra.mxu0 0
    %2447 = vmatprep.subr.bf16.mxu0 0
    %2448 = vmatpush2.bf16.msra.mxu0 0
    %2449 = vmatprep.subr.bf16.mxu0 0
    %2450 = vmatpush2.bf16.msra.mxu0 0
    %2451 = vmatprep.subr.bf16.mxu0 0
    %2452 = vmatpush2.bf16.msra.mxu0 0
    %2453 = vmatprep.subr.bf16.mxu0 0
    %2454 = vmatpush2.bf16.msra.mxu0 0
    %2455 = vmatprep.subr.bf16.mxu0 0
    %2456 = vmatpush2.bf16.msra.mxu0 0
    %2457 = vmatprep.subr.bf16.mxu0 0
    %2458 = vmatpush2.bf16.msra.mxu0 0
    %2459 = vmatprep.mubr.bf16.mxu0 0
    %2460 = vmatmul.mubr.bf16.gmra.mxu0 %v1959
    %v2461 = vpop.f32.mrf.mxu0
    %v2462 = vadd.f32 0.0, %v2461
    %v2463 = vpop.f32.mrf.mxu0
    %v2464 = vadd.f32 0.0, %v2463
    %v2465 = vpop.f32.mrf.mxu0
    %v2466 = vpop.f32.mrf.mxu0
    %2467 = vdwg.mxu0
    %2468 = vmatprep.subr.bf16.mxu0 %v2280
    %2469 = vmatpush1.bf16.msra.mxu0 %v2279
    %2470 = vmatprep.subr.bf16.mxu0 %v2272
    %2471 = vmatpush1.bf16.msra.mxu0 %v2271
    %2472 = vmatprep.subr.bf16.mxu0 %v2264
    %2473 = vmatpush1.bf16.msra.mxu0 %v2263
    %2474 = vmatprep.subr.bf16.mxu0 %v2256
    %2475 = vmatpush1.bf16.msra.mxu0 %v2255
    %2476 = vmatprep.subr.bf16.mxu0 %v2248
    %2477 = vmatpush1.bf16.msra.mxu0 %v2247
    %2478 = vmatprep.subr.bf16.mxu0 %v2240
    %2479 = vmatpush1.bf16.msra.mxu0 %v2239
    %2480 = vmatprep.subr.bf16.mxu0 %v2232
    %2481 = vmatpush1.bf16.msra.mxu0 %v2231
    %2482 = vmatprep.subr.bf16.mxu0 %v2224
    %2483 = vmatpush1.bf16.msra.mxu0 %v2223
    %2484 = vmatprep.subr.bf16.mxu0 0
    %2485 = vmatpush2.bf16.msra.mxu0 0
    %2486 = vmatprep.subr.bf16.mxu0 0
    %2487 = vmatpush2.bf16.msra.mxu0 0
    %2488 = vmatprep.subr.bf16.mxu0 0
    %2489 = vmatpush2.bf16.msra.mxu0 0
    %2490 = vmatprep.subr.bf16.mxu0 0
    %2491 = vmatpush2.bf16.msra.mxu0 0
    %2492 = vmatprep.subr.bf16.mxu0 0
    %2493 = vmatpush2.bf16.msra.mxu0 0
    %2494 = vmatprep.subr.bf16.mxu0 0
    %2495 = vmatpush2.bf16.msra.mxu0 0
    %2496 = vmatprep.subr.bf16.mxu0 0
    %2497 = vmatpush2.bf16.msra.mxu0 0
    %2498 = vmatprep.subr.bf16.mxu0 0
    %2499 = vmatpush2.bf16.msra.mxu0 0
    %2500 = vmatprep.mubr.bf16.mxu0 0
    %2501 = vmatmul.mubr.bf16.gmra.mxu0 %v1959
    %v2502 = vpop.f32.mrf.mxu0
    %v2503 = vadd.f32 0.0, %v2502
    %v2504 = vpop.f32.mrf.mxu0
    %v2505 = vadd.f32 0.0, %v2504
    %v2506 = vpop.f32.mrf.mxu0
    %v2507 = vpop.f32.mrf.mxu0
    %2508 = vdwg.mxu0
    %v2509 = vadd.f32 %v1905, %v2380
    %v2510 = vadd.f32 %v1906, %v2382
    %v2511 = vadd.f32 %v1907, %v2421
    %v2512 = vadd.f32 %v1908, %v2423
    %v2513 = vadd.f32 %v1909, %v2462
    %v2514 = vadd.f32 %v1910, %v2464
    %v2515 = vadd.f32 %v1911, %v2503
    %v2516 = vadd.f32 %v1912, %v2505
    %s2517 = scalar_lea.vmem %s0, 16
    %v2518 = vld [vmem:[%s2517] sm:$0xf]
    %v2520 = vsel %vm119, %v2518, 0
    %2522 = vmatprep.subr.bf16.mxu0 0
    %2523 = vmatpush1.bf16.msra.mxu0 0
    %2524 = vmatprep.subr.bf16.mxu0 0
    %2525 = vmatpush1.bf16.msra.mxu0 0
    %2526 = vmatprep.subr.bf16.mxu0 0
    %2527 = vmatpush1.bf16.msra.mxu0 0
    %2528 = vmatprep.subr.bf16.mxu0 0
    %2529 = vmatpush1.bf16.msra.mxu0 0
    %2530 = vmatprep.subr.bf16.mxu0 0
    %2531 = vmatpush1.bf16.msra.mxu0 0
    %2532 = vmatprep.subr.bf16.mxu0 0
    %2533 = vmatpush1.bf16.msra.mxu0 0
    %2534 = vmatprep.subr.bf16.mxu0 0
    %2535 = vmatpush1.bf16.msra.mxu0 0
    %2536 = vmatprep.subr.bf16.mxu0 0
    %2537 = vmatpush1.bf16.msra.mxu0 %v117
    %2538 = vmatprep.subr.bf16.mxu0 0
    %2539 = vmatpush2.bf16.msra.mxu0 0
    %2540 = vmatprep.subr.bf16.mxu0 0
    %2541 = vmatpush2.bf16.msra.mxu0 0
    %2542 = vmatprep.subr.bf16.mxu0 0
    %2543 = vmatpush2.bf16.msra.mxu0 0
    %2544 = vmatprep.subr.bf16.mxu0 0
    %2545 = vmatpush2.bf16.msra.mxu0 0
    %2546 = vmatprep.subr.bf16.mxu0 0
    %2547 = vmatpush2.bf16.msra.mxu0 0
    %2548 = vmatprep.subr.bf16.mxu0 0
    %2549 = vmatpush2.bf16.msra.mxu0 0
    %2550 = vmatprep.subr.bf16.mxu0 0
    %2551 = vmatpush2.bf16.msra.mxu0 0
    %2552 = vmatprep.subr.bf16.mxu0 0
    %2553 = vmatpush2.bf16.msra.mxu0 0
    %2554 = vmatprep.mubr.bf16.mxu0 0
    %2555 = vmatmul.mubr.bf16.gmra.mxu0 %v2520
    %v2556 = vpop.f32.mrf.mxu0
    %v2557 = vadd.f32 %v111, %v2556
    %v2558 = vpop.f32.mrf.mxu0
    %v2559 = vpop.f32.mrf.mxu0
    %v2560 = vpop.f32.mrf.mxu0
    %2561 = vdwg.mxu0
    %v2562 = vmax.f32 %v2557, 0.0
    %v2563 = vpack.c.bf16 %v2562, %v2562
    %s2564 = scalar_lea.vmem [#allocation6], 2048
    %v2565 = vld [vmem:[%s2564] sm:$0xff]
    %v2566 = vld [vmem:[%s2564 + $0x8] sm:$0xff]
    %v2567 = vld [vmem:[%s2564 + $0x10] sm:$0xff]
    %v2568 = vld [vmem:[%s2564 + $0x18] sm:$0xff]
    %v2569 = vld [vmem:[%s2564 + $0x20] sm:$0xff]
    %v2570 = vld [vmem:[%s2564 + $0x28] sm:$0xff]
    %v2571 = vld [vmem:[%s2564 + $0x30] sm:$0xff]
    %v2572 = vld [vmem:[%s2564 + $0x38] sm:$0xff]
    %v2573 = vld [vmem:[%s2564 + $0x40] sm:$0xff]
    %v2574 = vld [vmem:[%s2564 + $0x48] sm:$0xff]
    %v2575 = vld [vmem:[%s2564 + $0x50] sm:$0xff]
    %v2576 = vld [vmem:[%s2564 + $0x58] sm:$0xff]
    %v2577 = vld [vmem:[%s2564 + $0x60] sm:$0xff]
    %v2578 = vld [vmem:[%s2564 + $0x68] sm:$0xff]
    %v2579 = vld [vmem:[%s2564 + $0x70] sm:$0xff]
    %v2580 = vld [vmem:[%s2564 + $0x78] sm:$0xff]
    %v2581 = vld [vmem:[%s2564 + $0x80] sm:$0xff]
    %v2582 = vld [vmem:[%s2564 + $0x88] sm:$0xff]
    %v2583 = vld [vmem:[%s2564 + $0x90] sm:$0xff]
    %v2584 = vld [vmem:[%s2564 + $0x98] sm:$0xff]
    %v2585 = vld [vmem:[%s2564 + $0xa0] sm:$0xff]
    %v2586 = vld [vmem:[%s2564 + $0xa8] sm:$0xff]
    %v2587 = vld [vmem:[%s2564 + $0xb0] sm:$0xff]
    %v2588 = vld [vmem:[%s2564 + $0xb8] sm:$0xff]
    %v2589 = vld [vmem:[%s2564 + $0xc0] sm:$0xff]
    %v2590 = vld [vmem:[%s2564 + $0xc8] sm:$0xff]
    %v2591 = vld [vmem:[%s2564 + $0xd0] sm:$0xff]
    %v2592 = vld [vmem:[%s2564 + $0xd8] sm:$0xff]
    %v2593 = vld [vmem:[%s2564 + $0xe0] sm:$0xff]
    %v2594 = vld [vmem:[%s2564 + $0xe8] sm:$0xff]
    %v2595 = vld [vmem:[%s2564 + $0xf0] sm:$0xff]
    %v2596 = vld [vmem:[%s2564 + $0xf8] sm:$0xff]
    %v2597 = vld [vmem:[%s2564 + $0x100] sm:$0xff]
    %v2598 = vld [vmem:[%s2564 + $0x108] sm:$0xff]
    %v2599 = vld [vmem:[%s2564 + $0x110] sm:$0xff]
    %v2600 = vld [vmem:[%s2564 + $0x118] sm:$0xff]
    %v2601 = vld [vmem:[%s2564 + $0x120] sm:$0xff]
    %v2602 = vld [vmem:[%s2564 + $0x128] sm:$0xff]
    %v2603 = vld [vmem:[%s2564 + $0x130] sm:$0xff]
    %v2604 = vld [vmem:[%s2564 + $0x138] sm:$0xff]
    %v2605 = vld [vmem:[%s2564 + $0x140] sm:$0xff]
    %v2606 = vld [vmem:[%s2564 + $0x148] sm:$0xff]
    %v2607 = vld [vmem:[%s2564 + $0x150] sm:$0xff]
    %v2608 = vld [vmem:[%s2564 + $0x158] sm:$0xff]
    %v2609 = vld [vmem:[%s2564 + $0x160] sm:$0xff]
    %v2610 = vld [vmem:[%s2564 + $0x168] sm:$0xff]
    %v2611 = vld [vmem:[%s2564 + $0x170] sm:$0xff]
    %v2612 = vld [vmem:[%s2564 + $0x178] sm:$0xff]
    %v2613 = vld [vmem:[%s2564 + $0x180] sm:$0xff]
    %v2614 = vld [vmem:[%s2564 + $0x188] sm:$0xff]
    %v2615 = vld [vmem:[%s2564 + $0x190] sm:$0xff]
    %v2616 = vld [vmem:[%s2564 + $0x198] sm:$0xff]
    %v2617 = vld [vmem:[%s2564 + $0x1a0] sm:$0xff]
    %v2618 = vld [vmem:[%s2564 + $0x1a8] sm:$0xff]
    %v2619 = vld [vmem:[%s2564 + $0x1b0] sm:$0xff]
    %v2620 = vld [vmem:[%s2564 + $0x1b8] sm:$0xff]
    %v2621 = vld [vmem:[%s2564 + $0x1c0] sm:$0xff]
    %v2622 = vld [vmem:[%s2564 + $0x1c8] sm:$0xff]
    %v2623 = vld [vmem:[%s2564 + $0x1d0] sm:$0xff]
    %v2624 = vld [vmem:[%s2564 + $0x1d8] sm:$0xff]
    %v2625 = vld [vmem:[%s2564 + $0x1e0] sm:$0xff]
    %v2626 = vld [vmem:[%s2564 + $0x1e8] sm:$0xff]
    %v2627 = vld [vmem:[%s2564 + $0x1f0] sm:$0xff]
    %v2628 = vld [vmem:[%s2564 + $0x1f8] sm:$0xff]
    %v2693 = vunpack.c.l.b16 %v2565
    %v2694 = vunpack.c.h.b16 %v2565
    %v2695 = vunpack.c.l.b16 %v2566
    %v2696 = vunpack.c.h.b16 %v2566
    %v2697 = vunpack.c.l.b16 %v2567
    %v2698 = vunpack.c.h.b16 %v2567
    %v2699 = vunpack.c.l.b16 %v2568
    %v2700 = vunpack.c.h.b16 %v2568
    %v2701 = vunpack.c.l.b16 %v2569
    %v2702 = vunpack.c.h.b16 %v2569
    %v2703 = vunpack.c.l.b16 %v2570
    %v2704 = vunpack.c.h.b16 %v2570
    %v2705 = vunpack.c.l.b16 %v2571
    %v2706 = vunpack.c.h.b16 %v2571
    %v2707 = vunpack.c.l.b16 %v2572
    %v2708 = vunpack.c.h.b16 %v2572
    %v2709 = vunpack.c.l.b16 %v2573
    %v2710 = vunpack.c.h.b16 %v2573
    %v2711 = vunpack.c.l.b16 %v2574
    %v2712 = vunpack.c.h.b16 %v2574
    %v2713 = vunpack.c.l.b16 %v2575
    %v2714 = vunpack.c.h.b16 %v2575
    %v2715 = vunpack.c.l.b16 %v2576
    %v2716 = vunpack.c.h.b16 %v2576
    %v2717 = vunpack.c.l.b16 %v2577
    %v2718 = vunpack.c.h.b16 %v2577
    %v2719 = vunpack.c.l.b16 %v2578
    %v2720 = vunpack.c.h.b16 %v2578
    %v2721 = vunpack.c.l.b16 %v2579
    %v2722 = vunpack.c.h.b16 %v2579
    %v2723 = vunpack.c.l.b16 %v2580
    %v2724 = vunpack.c.h.b16 %v2580
    %v2725 = vunpack.c.l.b16 %v2581
    %v2726 = vunpack.c.h.b16 %v2581
    %v2727 = vunpack.c.l.b16 %v2582
    %v2728 = vunpack.c.h.b16 %v2582
    %v2729 = vunpack.c.l.b16 %v2583
    %v2730 = vunpack.c.h.b16 %v2583
    %v2731 = vunpack.c.l.b16 %v2584
    %v2732 = vunpack.c.h.b16 %v2584
    %v2733 = vunpack.c.l.b16 %v2585
    %v2734 = vunpack.c.h.b16 %v2585
    %v2735 = vunpack.c.l.b16 %v2586
    %v2736 = vunpack.c.h.b16 %v2586
    %v2737 = vunpack.c.l.b16 %v2587
    %v2738 = vunpack.c.h.b16 %v2587
    %v2739 = vunpack.c.l.b16 %v2588
    %v2740 = vunpack.c.h.b16 %v2588
    %v2741 = vunpack.c.l.b16 %v2589
    %v2742 = vunpack.c.h.b16 %v2589
    %v2743 = vunpack.c.l.b16 %v2590
    %v2744 = vunpack.c.h.b16 %v2590
    %v2745 = vunpack.c.l.b16 %v2591
    %v2746 = vunpack.c.h.b16 %v2591
    %v2747 = vunpack.c.l.b16 %v2592
    %v2748 = vunpack.c.h.b16 %v2592
    %v2749 = vunpack.c.l.b16 %v2593
    %v2750 = vunpack.c.h.b16 %v2593
    %v2751 = vunpack.c.l.b16 %v2594
    %v2752 = vunpack.c.h.b16 %v2594
    %v2753 = vunpack.c.l.b16 %v2595
    %v2754 = vunpack.c.h.b16 %v2595
    %v2755 = vunpack.c.l.b16 %v2596
    %v2756 = vunpack.c.h.b16 %v2596
    %v2757 = vunpack.c.l.b16 %v2597
    %v2758 = vunpack.c.h.b16 %v2597
    %v2759 = vunpack.c.l.b16 %v2598
    %v2760 = vunpack.c.h.b16 %v2598
    %v2761 = vunpack.c.l.b16 %v2599
    %v2762 = vunpack.c.h.b16 %v2599
    %v2763 = vunpack.c.l.b16 %v2600
    %v2764 = vunpack.c.h.b16 %v2600
    %v2765 = vunpack.c.l.b16 %v2601
    %v2766 = vunpack.c.h.b16 %v2601
    %v2767 = vunpack.c.l.b16 %v2602
    %v2768 = vunpack.c.h.b16 %v2602
    %v2769 = vunpack.c.l.b16 %v2603
    %v2770 = vunpack.c.h.b16 %v2603
    %v2771 = vunpack.c.l.b16 %v2604
    %v2772 = vunpack.c.h.b16 %v2604
    %v2773 = vunpack.c.l.b16 %v2605
    %v2774 = vunpack.c.h.b16 %v2605
    %v2775 = vunpack.c.l.b16 %v2606
    %v2776 = vunpack.c.h.b16 %v2606
    %v2777 = vunpack.c.l.b16 %v2607
    %v2778 = vunpack.c.h.b16 %v2607
    %v2779 = vunpack.c.l.b16 %v2608
    %v2780 = vunpack.c.h.b16 %v2608
    %v2781 = vunpack.c.l.b16 %v2609
    %v2782 = vunpack.c.h.b16 %v2609
    %v2783 = vunpack.c.l.b16 %v2610
    %v2784 = vunpack.c.h.b16 %v2610
    %v2785 = vunpack.c.l.b16 %v2611
    %v2786 = vunpack.c.h.b16 %v2611
    %v2787 = vunpack.c.l.b16 %v2612
    %v2788 = vunpack.c.h.b16 %v2612
    %v2789 = vunpack.c.l.b16 %v2613
    %v2790 = vunpack.c.h.b16 %v2613
    %v2791 = vunpack.c.l.b16 %v2614
    %v2792 = vunpack.c.h.b16 %v2614
    %v2793 = vunpack.c.l.b16 %v2615
    %v2794 = vunpack.c.h.b16 %v2615
    %v2795 = vunpack.c.l.b16 %v2616
    %v2796 = vunpack.c.h.b16 %v2616
    %v2797 = vunpack.c.l.b16 %v2617
    %v2798 = vunpack.c.h.b16 %v2617
    %v2799 = vunpack.c.l.b16 %v2618
    %v2800 = vunpack.c.h.b16 %v2618
    %v2801 = vunpack.c.l.b16 %v2619
    %v2802 = vunpack.c.h.b16 %v2619
    %v2803 = vunpack.c.l.b16 %v2620
    %v2804 = vunpack.c.h.b16 %v2620
    %v2805 = vunpack.c.l.b16 %v2621
    %v2806 = vunpack.c.h.b16 %v2621
    %v2807 = vunpack.c.l.b16 %v2622
    %v2808 = vunpack.c.h.b16 %v2622
    %v2809 = vunpack.c.l.b16 %v2623
    %v2810 = vunpack.c.h.b16 %v2623
    %v2811 = vunpack.c.l.b16 %v2624
    %v2812 = vunpack.c.h.b16 %v2624
    %v2813 = vunpack.c.l.b16 %v2625
    %v2814 = vunpack.c.h.b16 %v2625
    %v2815 = vunpack.c.l.b16 %v2626
    %v2816 = vunpack.c.h.b16 %v2626
    %v2817 = vunpack.c.l.b16 %v2627
    %v2818 = vunpack.c.h.b16 %v2627
    %v2819 = vunpack.c.l.b16 %v2628
    %v2820 = vunpack.c.h.b16 %v2628
    %v2821 = vpack.c.b16 %v2701, %v2693
    %v2822 = vpack.c.b16 %v2702, %v2694
    %v2823 = vpack.c.b16 %v2703, %v2695
    %v2824 = vpack.c.b16 %v2704, %v2696
    %v2825 = vpack.c.b16 %v2705, %v2697
    %v2826 = vpack.c.b16 %v2706, %v2698
    %v2827 = vpack.c.b16 %v2707, %v2699
    %v2828 = vpack.c.b16 %v2708, %v2700
    %v2829 = vpack.c.b16 %v2717, %v2709
    %v2830 = vpack.c.b16 %v2718, %v2710
    %v2831 = vpack.c.b16 %v2719, %v2711
    %v2832 = vpack.c.b16 %v2720, %v2712
    %v2833 = vpack.c.b16 %v2721, %v2713
    %v2834 = vpack.c.b16 %v2722, %v2714
    %v2835 = vpack.c.b16 %v2723, %v2715
    %v2836 = vpack.c.b16 %v2724, %v2716
    %v2837 = vpack.c.b16 %v2733, %v2725
    %v2838 = vpack.c.b16 %v2734, %v2726
    %v2839 = vpack.c.b16 %v2735, %v2727
    %v2840 = vpack.c.b16 %v2736, %v2728
    %v2841 = vpack.c.b16 %v2737, %v2729
    %v2842 = vpack.c.b16 %v2738, %v2730
    %v2843 = vpack.c.b16 %v2739, %v2731
    %v2844 = vpack.c.b16 %v2740, %v2732
    %v2845 = vpack.c.b16 %v2749, %v2741
    %v2846 = vpack.c.b16 %v2750, %v2742
    %v2847 = vpack.c.b16 %v2751, %v2743
    %v2848 = vpack.c.b16 %v2752, %v2744
    %v2849 = vpack.c.b16 %v2753, %v2745
    %v2850 = vpack.c.b16 %v2754, %v2746
    %v2851 = vpack.c.b16 %v2755, %v2747
    %v2852 = vpack.c.b16 %v2756, %v2748
    %v2853 = vpack.c.b16 %v2765, %v2757
    %v2854 = vpack.c.b16 %v2766, %v2758
    %v2855 = vpack.c.b16 %v2767, %v2759
    %v2856 = vpack.c.b16 %v2768, %v2760
    %v2857 = vpack.c.b16 %v2769, %v2761
    %v2858 = vpack.c.b16 %v2770, %v2762
    %v2859 = vpack.c.b16 %v2771, %v2763
    %v2860 = vpack.c.b16 %v2772, %v2764
    %v2861 = vpack.c.b16 %v2781, %v2773
    %v2862 = vpack.c.b16 %v2782, %v2774
    %v2863 = vpack.c.b16 %v2783, %v2775
    %v2864 = vpack.c.b16 %v2784, %v2776
    %v2865 = vpack.c.b16 %v2785, %v2777
    %v2866 = vpack.c.b16 %v2786, %v2778
    %v2867 = vpack.c.b16 %v2787, %v2779
    %v2868 = vpack.c.b16 %v2788, %v2780
    %v2869 = vpack.c.b16 %v2797, %v2789
    %v2870 = vpack.c.b16 %v2798, %v2790
    %v2871 = vpack.c.b16 %v2799, %v2791
    %v2872 = vpack.c.b16 %v2800, %v2792
    %v2873 = vpack.c.b16 %v2801, %v2793
    %v2874 = vpack.c.b16 %v2802, %v2794
    %v2875 = vpack.c.b16 %v2803, %v2795
    %v2876 = vpack.c.b16 %v2804, %v2796
    %v2877 = vpack.c.b16 %v2813, %v2805
    %v2878 = vpack.c.b16 %v2814, %v2806
    %v2879 = vpack.c.b16 %v2815, %v2807
    %v2880 = vpack.c.b16 %v2816, %v2808
    %v2881 = vpack.c.b16 %v2817, %v2809
    %v2882 = vpack.c.b16 %v2818, %v2810
    %v2883 = vpack.c.b16 %v2819, %v2811
    %v2884 = vpack.c.b16 %v2820, %v2812
    %2949 = vmatprep.subr.bf16.mxu0 %v2878
    %2950 = vmatpush1.bf16.msra.mxu0 %v2877
    %2951 = vmatprep.subr.bf16.mxu0 %v2870
    %2952 = vmatpush1.bf16.msra.mxu0 %v2869
    %2953 = vmatprep.subr.bf16.mxu0 %v2862
    %2954 = vmatpush1.bf16.msra.mxu0 %v2861
    %2955 = vmatprep.subr.bf16.mxu0 %v2854
    %2956 = vmatpush1.bf16.msra.mxu0 %v2853
    %2957 = vmatprep.subr.bf16.mxu0 %v2846
    %2958 = vmatpush1.bf16.msra.mxu0 %v2845
    %2959 = vmatprep.subr.bf16.mxu0 %v2838
    %2960 = vmatpush1.bf16.msra.mxu0 %v2837
    %2961 = vmatprep.subr.bf16.mxu0 %v2830
    %2962 = vmatpush1.bf16.msra.mxu0 %v2829
    %2963 = vmatprep.subr.bf16.mxu0 %v2822
    %2964 = vmatpush1.bf16.msra.mxu0 %v2821
    %2965 = vmatprep.subr.bf16.mxu0 0
    %2966 = vmatpush2.bf16.msra.mxu0 0
    %2967 = vmatprep.subr.bf16.mxu0 0
    %2968 = vmatpush2.bf16.msra.mxu0 0
    %2969 = vmatprep.subr.bf16.mxu0 0
    %2970 = vmatpush2.bf16.msra.mxu0 0
    %2971 = vmatprep.subr.bf16.mxu0 0
    %2972 = vmatpush2.bf16.msra.mxu0 0
    %2973 = vmatprep.subr.bf16.mxu0 0
    %2974 = vmatpush2.bf16.msra.mxu0 0
    %2975 = vmatprep.subr.bf16.mxu0 0
    %2976 = vmatpush2.bf16.msra.mxu0 0
    %2977 = vmatprep.subr.bf16.mxu0 0
    %2978 = vmatpush2.bf16.msra.mxu0 0
    %2979 = vmatprep.subr.bf16.mxu0 0
    %2980 = vmatpush2.bf16.msra.mxu0 0
    %2981 = vmatprep.mubr.bf16.mxu0 0
    %2982 = vmatmul.mubr.bf16.gmra.mxu0 %v2563
    %v2983 = vpop.f32.mrf.mxu0
    %v2984 = vadd.f32 0.0, %v2983
    %v2985 = vpop.f32.mrf.mxu0
    %v2986 = vadd.f32 0.0, %v2985
    %v2987 = vpop.f32.mrf.mxu0
    %v2988 = vpop.f32.mrf.mxu0
    %2989 = vdwg.mxu0
    %2990 = vmatprep.subr.bf16.mxu0 %v2880
    %2991 = vmatpush1.bf16.msra.mxu0 %v2879
    %2992 = vmatprep.subr.bf16.mxu0 %v2872
    %2993 = vmatpush1.bf16.msra.mxu0 %v2871
    %2994 = vmatprep.subr.bf16.mxu0 %v2864
    %2995 = vmatpush1.bf16.msra.mxu0 %v2863
    %2996 = vmatprep.subr.bf16.mxu0 %v2856
    %2997 = vmatpush1.bf16.msra.mxu0 %v2855
    %2998 = vmatprep.subr.bf16.mxu0 %v2848
    %2999 = vmatpush1.bf16.msra.mxu0 %v2847
    %3000 = vmatprep.subr.bf16.mxu0 %v2840
    %3001 = vmatpush1.bf16.msra.mxu0 %v2839
    %3002 = vmatprep.subr.bf16.mxu0 %v2832
    %3003 = vmatpush1.bf16.msra.mxu0 %v2831
    %3004 = vmatprep.subr.bf16.mxu0 %v2824
    %3005 = vmatpush1.bf16.msra.mxu0 %v2823
    %3006 = vmatprep.subr.bf16.mxu0 0
    %3007 = vmatpush2.bf16.msra.mxu0 0
    %3008 = vmatprep.subr.bf16.mxu0 0
    %3009 = vmatpush2.bf16.msra.mxu0 0
    %3010 = vmatprep.subr.bf16.mxu0 0
    %3011 = vmatpush2.bf16.msra.mxu0 0
    %3012 = vmatprep.subr.bf16.mxu0 0
    %3013 = vmatpush2.bf16.msra.mxu0 0
    %3014 = vmatprep.subr.bf16.mxu0 0
    %3015 = vmatpush2.bf16.msra.mxu0 0
    %3016 = vmatprep.subr.bf16.mxu0 0
    %3017 = vmatpush2.bf16.msra.mxu0 0
    %3018 = vmatprep.subr.bf16.mxu0 0
    %3019 = vmatpush2.bf16.msra.mxu0 0
    %3020 = vmatprep.subr.bf16.mxu0 0
    %3021 = vmatpush2.bf16.msra.mxu0 0
    %3022 = vmatprep.mubr.bf16.mxu0 0
    %3023 = vmatmul.mubr.bf16.gmra.mxu0 %v2563
    %v3024 = vpop.f32.mrf.mxu0
    %v3025 = vadd.f32 0.0, %v3024
    %v3026 = vpop.f32.mrf.mxu0
    %v3027 = vadd.f32 0.0, %v3026
    %v3028 = vpop.f32.mrf.mxu0
    %v3029 = vpop.f32.mrf.mxu0
    %3030 = vdwg.mxu0
    %3031 = vmatprep.subr.bf16.mxu0 %v2882
    %3032 = vmatpush1.bf16.msra.mxu0 %v2881
    %3033 = vmatprep.subr.bf16.mxu0 %v2874
    %3034 = vmatpush1.bf16.msra.mxu0 %v2873
    %3035 = vmatprep.subr.bf16.mxu0 %v2866
    %3036 = vmatpush1.bf16.msra.mxu0 %v2865
    %3037 = vmatprep.subr.bf16.mxu0 %v2858
    %3038 = vmatpush1.bf16.msra.mxu0 %v2857
    %3039 = vmatprep.subr.bf16.mxu0 %v2850
    %3040 = vmatpush1.bf16.msra.mxu0 %v2849
    %3041 = vmatprep.subr.bf16.mxu0 %v2842
    %3042 = vmatpush1.bf16.msra.mxu0 %v2841
    %3043 = vmatprep.subr.bf16.mxu0 %v2834
    %3044 = vmatpush1.bf16.msra.mxu0 %v2833
    %3045 = vmatprep.subr.bf16.mxu0 %v2826
    %3046 = vmatpush1.bf16.msra.mxu0 %v2825
    %3047 = vmatprep.subr.bf16.mxu0 0
    %3048 = vmatpush2.bf16.msra.mxu0 0
    %3049 = vmatprep.subr.bf16.mxu0 0
    %3050 = vmatpush2.bf16.msra.mxu0 0
    %3051 = vmatprep.subr.bf16.mxu0 0
    %3052 = vmatpush2.bf16.msra.mxu0 0
    %3053 = vmatprep.subr.bf16.mxu0 0
    %3054 = vmatpush2.bf16.msra.mxu0 0
    %3055 = vmatprep.subr.bf16.mxu0 0
    %3056 = vmatpush2.bf16.msra.mxu0 0
    %3057 = vmatprep.subr.bf16.mxu0 0
    %3058 = vmatpush2.bf16.msra.mxu0 0
    %3059 = vmatprep.subr.bf16.mxu0 0
    %3060 = vmatpush2.bf16.msra.mxu0 0
    %3061 = vmatprep.subr.bf16.mxu0 0
    %3062 = vmatpush2.bf16.msra.mxu0 0
    %3063 = vmatprep.mubr.bf16.mxu0 0
    %3064 = vmatmul.mubr.bf16.gmra.mxu0 %v2563
    %v3065 = vpop.f32.mrf.mxu0
    %v3066 = vadd.f32 0.0, %v3065
    %v3067 = vpop.f32.mrf.mxu0
    %v3068 = vadd.f32 0.0, %v3067
    %v3069 = vpop.f32.mrf.mxu0
    %v3070 = vpop.f32.mrf.mxu0
    %3071 = vdwg.mxu0
    %3072 = vmatprep.subr.bf16.mxu0 %v2884
    %3073 = vmatpush1.bf16.msra.mxu0 %v2883
    %3074 = vmatprep.subr.bf16.mxu0 %v2876
    %3075 = vmatpush1.bf16.msra.mxu0 %v2875
    %3076 = vmatprep.subr.bf16.mxu0 %v2868
    %3077 = vmatpush1.bf16.msra.mxu0 %v2867
    %3078 = vmatprep.subr.bf16.mxu0 %v2860
    %3079 = vmatpush1.bf16.msra.mxu0 %v2859
    %3080 = vmatprep.subr.bf16.mxu0 %v2852
    %3081 = vmatpush1.bf16.msra.mxu0 %v2851
    %3082 = vmatprep.subr.bf16.mxu0 %v2844
    %3083 = vmatpush1.bf16.msra.mxu0 %v2843
    %3084 = vmatprep.subr.bf16.mxu0 %v2836
    %3085 = vmatpush1.bf16.msra.mxu0 %v2835
    %3086 = vmatprep.subr.bf16.mxu0 %v2828
    %3087 = vmatpush1.bf16.msra.mxu0 %v2827
    %3088 = vmatprep.subr.bf16.mxu0 0
    %3089 = vmatpush2.bf16.msra.mxu0 0
    %3090 = vmatprep.subr.bf16.mxu0 0
    %3091 = vmatpush2.bf16.msra.mxu0 0
    %3092 = vmatprep.subr.bf16.mxu0 0
    %3093 = vmatpush2.bf16.msra.mxu0 0
    %3094 = vmatprep.subr.bf16.mxu0 0
    %3095 = vmatpush2.bf16.msra.mxu0 0
    %3096 = vmatprep.subr.bf16.mxu0 0
    %3097 = vmatpush2.bf16.msra.mxu0 0
    %3098 = vmatprep.subr.bf16.mxu0 0
    %3099 = vmatpush2.bf16.msra.mxu0 0
    %3100 = vmatprep.subr.bf16.mxu0 0
    %3101 = vmatpush2.bf16.msra.mxu0 0
    %3102 = vmatprep.subr.bf16.mxu0 0
    %3103 = vmatpush2.bf16.msra.mxu0 0
    %3104 = vmatprep.mubr.bf16.mxu0 0
    %3105 = vmatmul.mubr.bf16.gmra.mxu0 %v2563
    %v3106 = vpop.f32.mrf.mxu0
    %v3107 = vadd.f32 0.0, %v3106
    %v3108 = vpop.f32.mrf.mxu0
    %v3109 = vadd.f32 0.0, %v3108
    %v3110 = vpop.f32.mrf.mxu0
    %v3111 = vpop.f32.mrf.mxu0
    %3112 = vdwg.mxu0
    %v3113 = vadd.f32 %v2509, %v2984
    %v3114 = vadd.f32 %v2510, %v2986
    %v3115 = vadd.f32 %v2511, %v3025
    %v3116 = vadd.f32 %v2512, %v3027
    %v3117 = vadd.f32 %v2513, %v3066
    %v3118 = vadd.f32 %v2514, %v3068
    %v3119 = vadd.f32 %v2515, %v3107
    %v3120 = vadd.f32 %v2516, %v3109
    %s3121 = scalar_lea.vmem %s0, 20
    %v3122 = vld [vmem:[%s3121] sm:$0xf]
    %v3124 = vsel %vm119, %v3122, 0
    %3126 = vmatprep.subr.bf16.mxu0 0
    %3127 = vmatpush1.bf16.msra.mxu0 0
    %3128 = vmatprep.subr.bf16.mxu0 0
    %3129 = vmatpush1.bf16.msra.mxu0 0
    %3130 = vmatprep.subr.bf16.mxu0 0
    %3131 = vmatpush1.bf16.msra.mxu0 0
    %3132 = vmatprep.subr.bf16.mxu0 0
    %3133 = vmatpush1.bf16.msra.mxu0 0
    %3134 = vmatprep.subr.bf16.mxu0 0
    %3135 = vmatpush1.bf16.msra.mxu0 0
    %3136 = vmatprep.subr.bf16.mxu0 0
    %3137 = vmatpush1.bf16.msra.mxu0 0
    %3138 = vmatprep.subr.bf16.mxu0 0
    %3139 = vmatpush1.bf16.msra.mxu0 0
    %3140 = vmatprep.subr.bf16.mxu0 0
    %3141 = vmatpush1.bf16.msra.mxu0 %v117
    %3142 = vmatprep.subr.bf16.mxu0 0
    %3143 = vmatpush2.bf16.msra.mxu0 0
    %3144 = vmatprep.subr.bf16.mxu0 0
    %3145 = vmatpush2.bf16.msra.mxu0 0
    %3146 = vmatprep.subr.bf16.mxu0 0
    %3147 = vmatpush2.bf16.msra.mxu0 0
    %3148 = vmatprep.subr.bf16.mxu0 0
    %3149 = vmatpush2.bf16.msra.mxu0 0
    %3150 = vmatprep.subr.bf16.mxu0 0
    %3151 = vmatpush2.bf16.msra.mxu0 0
    %3152 = vmatprep.subr.bf16.mxu0 0
    %3153 = vmatpush2.bf16.msra.mxu0 0
    %3154 = vmatprep.subr.bf16.mxu0 0
    %3155 = vmatpush2.bf16.msra.mxu0 0
    %3156 = vmatprep.subr.bf16.mxu0 0
    %3157 = vmatpush2.bf16.msra.mxu0 0
    %3158 = vmatprep.mubr.bf16.mxu0 0
    %3159 = vmatmul.mubr.bf16.gmra.mxu0 %v3124
    %v3160 = vpop.f32.mrf.mxu0
    %v3161 = vadd.f32 %v111, %v3160
    %v3162 = vpop.f32.mrf.mxu0
    %v3163 = vpop.f32.mrf.mxu0
    %v3164 = vpop.f32.mrf.mxu0
    %3165 = vdwg.mxu0
    %v3166 = vmax.f32 %v3161, 0.0
    %v3167 = vpack.c.bf16 %v3166, %v3166
    %s3168 = scalar_lea.vmem [#allocation6], 2560
    %v3169 = vld [vmem:[%s3168] sm:$0xff]
    %v3170 = vld [vmem:[%s3168 + $0x8] sm:$0xff]
    %v3171 = vld [vmem:[%s3168 + $0x10] sm:$0xff]
    %v3172 = vld [vmem:[%s3168 + $0x18] sm:$0xff]
    %v3173 = vld [vmem:[%s3168 + $0x20] sm:$0xff]
    %v3174 = vld [vmem:[%s3168 + $0x28] sm:$0xff]
    %v3175 = vld [vmem:[%s3168 + $0x30] sm:$0xff]
    %v3176 = vld [vmem:[%s3168 + $0x38] sm:$0xff]
    %v3177 = vld [vmem:[%s3168 + $0x40] sm:$0xff]
    %v3178 = vld [vmem:[%s3168 + $0x48] sm:$0xff]
    %v3179 = vld [vmem:[%s3168 + $0x50] sm:$0xff]
    %v3180 = vld [vmem:[%s3168 + $0x58] sm:$0xff]
    %v3181 = vld [vmem:[%s3168 + $0x60] sm:$0xff]
    %v3182 = vld [vmem:[%s3168 + $0x68] sm:$0xff]
    %v3183 = vld [vmem:[%s3168 + $0x70] sm:$0xff]
    %v3184 = vld [vmem:[%s3168 + $0x78] sm:$0xff]
    %v3185 = vld [vmem:[%s3168 + $0x80] sm:$0xff]
    %v3186 = vld [vmem:[%s3168 + $0x88] sm:$0xff]
    %v3187 = vld [vmem:[%s3168 + $0x90] sm:$0xff]
    %v3188 = vld [vmem:[%s3168 + $0x98] sm:$0xff]
    %v3189 = vld [vmem:[%s3168 + $0xa0] sm:$0xff]
    %v3190 = vld [vmem:[%s3168 + $0xa8] sm:$0xff]
    %v3191 = vld [vmem:[%s3168 + $0xb0] sm:$0xff]
    %v3192 = vld [vmem:[%s3168 + $0xb8] sm:$0xff]
    %v3193 = vld [vmem:[%s3168 + $0xc0] sm:$0xff]
    %v3194 = vld [vmem:[%s3168 + $0xc8] sm:$0xff]
    %v3195 = vld [vmem:[%s3168 + $0xd0] sm:$0xff]
    %v3196 = vld [vmem:[%s3168 + $0xd8] sm:$0xff]
    %v3197 = vld [vmem:[%s3168 + $0xe0] sm:$0xff]
    %v3198 = vld [vmem:[%s3168 + $0xe8] sm:$0xff]
    %v3199 = vld [vmem:[%s3168 + $0xf0] sm:$0xff]
    %v3200 = vld [vmem:[%s3168 + $0xf8] sm:$0xff]
    %v3201 = vld [vmem:[%s3168 + $0x100] sm:$0xff]
    %v3202 = vld [vmem:[%s3168 + $0x108] sm:$0xff]
    %v3203 = vld [vmem:[%s3168 + $0x110] sm:$0xff]
    %v3204 = vld [vmem:[%s3168 + $0x118] sm:$0xff]
    %v3205 = vld [vmem:[%s3168 + $0x120] sm:$0xff]
    %v3206 = vld [vmem:[%s3168 + $0x128] sm:$0xff]
    %v3207 = vld [vmem:[%s3168 + $0x130] sm:$0xff]
    %v3208 = vld [vmem:[%s3168 + $0x138] sm:$0xff]
    %v3209 = vld [vmem:[%s3168 + $0x140] sm:$0xff]
    %v3210 = vld [vmem:[%s3168 + $0x148] sm:$0xff]
    %v3211 = vld [vmem:[%s3168 + $0x150] sm:$0xff]
    %v3212 = vld [vmem:[%s3168 + $0x158] sm:$0xff]
    %v3213 = vld [vmem:[%s3168 + $0x160] sm:$0xff]
    %v3214 = vld [vmem:[%s3168 + $0x168] sm:$0xff]
    %v3215 = vld [vmem:[%s3168 + $0x170] sm:$0xff]
    %v3216 = vld [vmem:[%s3168 + $0x178] sm:$0xff]
    %v3217 = vld [vmem:[%s3168 + $0x180] sm:$0xff]
    %v3218 = vld [vmem:[%s3168 + $0x188] sm:$0xff]
    %v3219 = vld [vmem:[%s3168 + $0x190] sm:$0xff]
    %v3220 = vld [vmem:[%s3168 + $0x198] sm:$0xff]
    %v3221 = vld [vmem:[%s3168 + $0x1a0] sm:$0xff]
    %v3222 = vld [vmem:[%s3168 + $0x1a8] sm:$0xff]
    %v3223 = vld [vmem:[%s3168 + $0x1b0] sm:$0xff]
    %v3224 = vld [vmem:[%s3168 + $0x1b8] sm:$0xff]
    %v3225 = vld [vmem:[%s3168 + $0x1c0] sm:$0xff]
    %v3226 = vld [vmem:[%s3168 + $0x1c8] sm:$0xff]
    %v3227 = vld [vmem:[%s3168 + $0x1d0] sm:$0xff]
    %v3228 = vld [vmem:[%s3168 + $0x1d8] sm:$0xff]
    %v3229 = vld [vmem:[%s3168 + $0x1e0] sm:$0xff]
    %v3230 = vld [vmem:[%s3168 + $0x1e8] sm:$0xff]
    %v3231 = vld [vmem:[%s3168 + $0x1f0] sm:$0xff]
    %v3232 = vld [vmem:[%s3168 + $0x1f8] sm:$0xff]
    %v3297 = vunpack.c.l.b16 %v3169
    %v3298 = vunpack.c.h.b16 %v3169
    %v3299 = vunpack.c.l.b16 %v3170
    %v3300 = vunpack.c.h.b16 %v3170
    %v3301 = vunpack.c.l.b16 %v3171
    %v3302 = vunpack.c.h.b16 %v3171
    %v3303 = vunpack.c.l.b16 %v3172
    %v3304 = vunpack.c.h.b16 %v3172
    %v3305 = vunpack.c.l.b16 %v3173
    %v3306 = vunpack.c.h.b16 %v3173
    %v3307 = vunpack.c.l.b16 %v3174
    %v3308 = vunpack.c.h.b16 %v3174
    %v3309 = vunpack.c.l.b16 %v3175
    %v3310 = vunpack.c.h.b16 %v3175
    %v3311 = vunpack.c.l.b16 %v3176
    %v3312 = vunpack.c.h.b16 %v3176
    %v3313 = vunpack.c.l.b16 %v3177
    %v3314 = vunpack.c.h.b16 %v3177
    %v3315 = vunpack.c.l.b16 %v3178
    %v3316 = vunpack.c.h.b16 %v3178
    %v3317 = vunpack.c.l.b16 %v3179
    %v3318 = vunpack.c.h.b16 %v3179
    %v3319 = vunpack.c.l.b16 %v3180
    %v3320 = vunpack.c.h.b16 %v3180
    %v3321 = vunpack.c.l.b16 %v3181
    %v3322 = vunpack.c.h.b16 %v3181
    %v3323 = vunpack.c.l.b16 %v3182
    %v3324 = vunpack.c.h.b16 %v3182
    %v3325 = vunpack.c.l.b16 %v3183
    %v3326 = vunpack.c.h.b16 %v3183
    %v3327 = vunpack.c.l.b16 %v3184
    %v3328 = vunpack.c.h.b16 %v3184
    %v3329 = vunpack.c.l.b16 %v3185
    %v3330 = vunpack.c.h.b16 %v3185
    %v3331 = vunpack.c.l.b16 %v3186
    %v3332 = vunpack.c.h.b16 %v3186
    %v3333 = vunpack.c.l.b16 %v3187
    %v3334 = vunpack.c.h.b16 %v3187
    %v3335 = vunpack.c.l.b16 %v3188
    %v3336 = vunpack.c.h.b16 %v3188
    %v3337 = vunpack.c.l.b16 %v3189
    %v3338 = vunpack.c.h.b16 %v3189
    %v3339 = vunpack.c.l.b16 %v3190
    %v3340 = vunpack.c.h.b16 %v3190
    %v3341 = vunpack.c.l.b16 %v3191
    %v3342 = vunpack.c.h.b16 %v3191
    %v3343 = vunpack.c.l.b16 %v3192
    %v3344 = vunpack.c.h.b16 %v3192
    %v3345 = vunpack.c.l.b16 %v3193
    %v3346 = vunpack.c.h.b16 %v3193
    %v3347 = vunpack.c.l.b16 %v3194
    %v3348 = vunpack.c.h.b16 %v3194
    %v3349 = vunpack.c.l.b16 %v3195
    %v3350 = vunpack.c.h.b16 %v3195
    %v3351 = vunpack.c.l.b16 %v3196
    %v3352 = vunpack.c.h.b16 %v3196
    %v3353 = vunpack.c.l.b16 %v3197
    %v3354 = vunpack.c.h.b16 %v3197
    %v3355 = vunpack.c.l.b16 %v3198
    %v3356 = vunpack.c.h.b16 %v3198
    %v3357 = vunpack.c.l.b16 %v3199
    %v3358 = vunpack.c.h.b16 %v3199
    %v3359 = vunpack.c.l.b16 %v3200
    %v3360 = vunpack.c.h.b16 %v3200
    %v3361 = vunpack.c.l.b16 %v3201
    %v3362 = vunpack.c.h.b16 %v3201
    %v3363 = vunpack.c.l.b16 %v3202
    %v3364 = vunpack.c.h.b16 %v3202
    %v3365 = vunpack.c.l.b16 %v3203
    %v3366 = vunpack.c.h.b16 %v3203
    %v3367 = vunpack.c.l.b16 %v3204
    %v3368 = vunpack.c.h.b16 %v3204
    %v3369 = vunpack.c.l.b16 %v3205
    %v3370 = vunpack.c.h.b16 %v3205
    %v3371 = vunpack.c.l.b16 %v3206
    %v3372 = vunpack.c.h.b16 %v3206
    %v3373 = vunpack.c.l.b16 %v3207
    %v3374 = vunpack.c.h.b16 %v3207
    %v3375 = vunpack.c.l.b16 %v3208
    %v3376 = vunpack.c.h.b16 %v3208
    %v3377 = vunpack.c.l.b16 %v3209
    %v3378 = vunpack.c.h.b16 %v3209
    %v3379 = vunpack.c.l.b16 %v3210
    %v3380 = vunpack.c.h.b16 %v3210
    %v3381 = vunpack.c.l.b16 %v3211
    %v3382 = vunpack.c.h.b16 %v3211
    %v3383 = vunpack.c.l.b16 %v3212
    %v3384 = vunpack.c.h.b16 %v3212
    %v3385 = vunpack.c.l.b16 %v3213
    %v3386 = vunpack.c.h.b16 %v3213
    %v3387 = vunpack.c.l.b16 %v3214
    %v3388 = vunpack.c.h.b16 %v3214
    %v3389 = vunpack.c.l.b16 %v3215
    %v3390 = vunpack.c.h.b16 %v3215
    %v3391 = vunpack.c.l.b16 %v3216
    %v3392 = vunpack.c.h.b16 %v3216
    %v3393 = vunpack.c.l.b16 %v3217
    %v3394 = vunpack.c.h.b16 %v3217
    %v3395 = vunpack.c.l.b16 %v3218
    %v3396 = vunpack.c.h.b16 %v3218
    %v3397 = vunpack.c.l.b16 %v3219
    %v3398 = vunpack.c.h.b16 %v3219
    %v3399 = vunpack.c.l.b16 %v3220
    %v3400 = vunpack.c.h.b16 %v3220
    %v3401 = vunpack.c.l.b16 %v3221
    %v3402 = vunpack.c.h.b16 %v3221
    %v3403 = vunpack.c.l.b16 %v3222
    %v3404 = vunpack.c.h.b16 %v3222
    %v3405 = vunpack.c.l.b16 %v3223
    %v3406 = vunpack.c.h.b16 %v3223
    %v3407 = vunpack.c.l.b16 %v3224
    %v3408 = vunpack.c.h.b16 %v3224
    %v3409 = vunpack.c.l.b16 %v3225
    %v3410 = vunpack.c.h.b16 %v3225
    %v3411 = vunpack.c.l.b16 %v3226
    %v3412 = vunpack.c.h.b16 %v3226
    %v3413 = vunpack.c.l.b16 %v3227
    %v3414 = vunpack.c.h.b16 %v3227
    %v3415 = vunpack.c.l.b16 %v3228
    %v3416 = vunpack.c.h.b16 %v3228
    %v3417 = vunpack.c.l.b16 %v3229
    %v3418 = vunpack.c.h.b16 %v3229
    %v3419 = vunpack.c.l.b16 %v3230
    %v3420 = vunpack.c.h.b16 %v3230
    %v3421 = vunpack.c.l.b16 %v3231
    %v3422 = vunpack.c.h.b16 %v3231
    %v3423 = vunpack.c.l.b16 %v3232
    %v3424 = vunpack.c.h.b16 %v3232
    %v3425 = vpack.c.b16 %v3305, %v3297
    %v3426 = vpack.c.b16 %v3306, %v3298
    %v3427 = vpack.c.b16 %v3307, %v3299
    %v3428 = vpack.c.b16 %v3308, %v3300
    %v3429 = vpack.c.b16 %v3309, %v3301
    %v3430 = vpack.c.b16 %v3310, %v3302
    %v3431 = vpack.c.b16 %v3311, %v3303
    %v3432 = vpack.c.b16 %v3312, %v3304
    %v3433 = vpack.c.b16 %v3321, %v3313
    %v3434 = vpack.c.b16 %v3322, %v3314
    %v3435 = vpack.c.b16 %v3323, %v3315
    %v3436 = vpack.c.b16 %v3324, %v3316
    %v3437 = vpack.c.b16 %v3325, %v3317
    %v3438 = vpack.c.b16 %v3326, %v3318
    %v3439 = vpack.c.b16 %v3327, %v3319
    %v3440 = vpack.c.b16 %v3328, %v3320
    %v3441 = vpack.c.b16 %v3337, %v3329
    %v3442 = vpack.c.b16 %v3338, %v3330
    %v3443 = vpack.c.b16 %v3339, %v3331
    %v3444 = vpack.c.b16 %v3340, %v3332
    %v3445 = vpack.c.b16 %v3341, %v3333
    %v3446 = vpack.c.b16 %v3342, %v3334
    %v3447 = vpack.c.b16 %v3343, %v3335
    %v3448 = vpack.c.b16 %v3344, %v3336
    %v3449 = vpack.c.b16 %v3353, %v3345
    %v3450 = vpack.c.b16 %v3354, %v3346
    %v3451 = vpack.c.b16 %v3355, %v3347
    %v3452 = vpack.c.b16 %v3356, %v3348
    %v3453 = vpack.c.b16 %v3357, %v3349
    %v3454 = vpack.c.b16 %v3358, %v3350
    %v3455 = vpack.c.b16 %v3359, %v3351
    %v3456 = vpack.c.b16 %v3360, %v3352
    %v3457 = vpack.c.b16 %v3369, %v3361
    %v3458 = vpack.c.b16 %v3370, %v3362
    %v3459 = vpack.c.b16 %v3371, %v3363
    %v3460 = vpack.c.b16 %v3372, %v3364
    %v3461 = vpack.c.b16 %v3373, %v3365
    %v3462 = vpack.c.b16 %v3374, %v3366
    %v3463 = vpack.c.b16 %v3375, %v3367
    %v3464 = vpack.c.b16 %v3376, %v3368
    %v3465 = vpack.c.b16 %v3385, %v3377
    %v3466 = vpack.c.b16 %v3386, %v3378
    %v3467 = vpack.c.b16 %v3387, %v3379
    %v3468 = vpack.c.b16 %v3388, %v3380
    %v3469 = vpack.c.b16 %v3389, %v3381
    %v3470 = vpack.c.b16 %v3390, %v3382
    %v3471 = vpack.c.b16 %v3391, %v3383
    %v3472 = vpack.c.b16 %v3392, %v3384
    %v3473 = vpack.c.b16 %v3401, %v3393
    %v3474 = vpack.c.b16 %v3402, %v3394
    %v3475 = vpack.c.b16 %v3403, %v3395
    %v3476 = vpack.c.b16 %v3404, %v3396
    %v3477 = vpack.c.b16 %v3405, %v3397
    %v3478 = vpack.c.b16 %v3406, %v3398
    %v3479 = vpack.c.b16 %v3407, %v3399
    %v3480 = vpack.c.b16 %v3408, %v3400
    %v3481 = vpack.c.b16 %v3417, %v3409
    %v3482 = vpack.c.b16 %v3418, %v3410
    %v3483 = vpack.c.b16 %v3419, %v3411
    %v3484 = vpack.c.b16 %v3420, %v3412
    %v3485 = vpack.c.b16 %v3421, %v3413
    %v3486 = vpack.c.b16 %v3422, %v3414
    %v3487 = vpack.c.b16 %v3423, %v3415
    %v3488 = vpack.c.b16 %v3424, %v3416
    %3553 = vmatprep.subr.bf16.mxu0 %v3482
    %3554 = vmatpush1.bf16.msra.mxu0 %v3481
    %3555 = vmatprep.subr.bf16.mxu0 %v3474
    %3556 = vmatpush1.bf16.msra.mxu0 %v3473
    %3557 = vmatprep.subr.bf16.mxu0 %v3466
    %3558 = vmatpush1.bf16.msra.mxu0 %v3465
    %3559 = vmatprep.subr.bf16.mxu0 %v3458
    %3560 = vmatpush1.bf16.msra.mxu0 %v3457
    %3561 = vmatprep.subr.bf16.mxu0 %v3450
    %3562 = vmatpush1.bf16.msra.mxu0 %v3449
    %3563 = vmatprep.subr.bf16.mxu0 %v3442
    %3564 = vmatpush1.bf16.msra.mxu0 %v3441
    %3565 = vmatprep.subr.bf16.mxu0 %v3434
    %3566 = vmatpush1.bf16.msra.mxu0 %v3433
    %3567 = vmatprep.subr.bf16.mxu0 %v3426
    %3568 = vmatpush1.bf16.msra.mxu0 %v3425
    %3569 = vmatprep.subr.bf16.mxu0 0
    %3570 = vmatpush2.bf16.msra.mxu0 0
    %3571 = vmatprep.subr.bf16.mxu0 0
    %3572 = vmatpush2.bf16.msra.mxu0 0
    %3573 = vmatprep.subr.bf16.mxu0 0
    %3574 = vmatpush2.bf16.msra.mxu0 0
    %3575 = vmatprep.subr.bf16.mxu0 0
    %3576 = vmatpush2.bf16.msra.mxu0 0
    %3577 = vmatprep.subr.bf16.mxu0 0
    %3578 = vmatpush2.bf16.msra.mxu0 0
    %3579 = vmatprep.subr.bf16.mxu0 0
    %3580 = vmatpush2.bf16.msra.mxu0 0
    %3581 = vmatprep.subr.bf16.mxu0 0
    %3582 = vmatpush2.bf16.msra.mxu0 0
    %3583 = vmatprep.subr.bf16.mxu0 0
    %3584 = vmatpush2.bf16.msra.mxu0 0
    %3585 = vmatprep.mubr.bf16.mxu0 0
    %3586 = vmatmul.mubr.bf16.gmra.mxu0 %v3167
    %v3587 = vpop.f32.mrf.mxu0
    %v3588 = vadd.f32 0.0, %v3587
    %v3589 = vpop.f32.mrf.mxu0
    %v3590 = vadd.f32 0.0, %v3589
    %v3591 = vpop.f32.mrf.mxu0
    %v3592 = vpop.f32.mrf.mxu0
    %3593 = vdwg.mxu0
    %3594 = vmatprep.subr.bf16.mxu0 %v3484
    %3595 = vmatpush1.bf16.msra.mxu0 %v3483
    %3596 = vmatprep.subr.bf16.mxu0 %v3476
    %3597 = vmatpush1.bf16.msra.mxu0 %v3475
    %3598 = vmatprep.subr.bf16.mxu0 %v3468
    %3599 = vmatpush1.bf16.msra.mxu0 %v3467
    %3600 = vmatprep.subr.bf16.mxu0 %v3460
    %3601 = vmatpush1.bf16.msra.mxu0 %v3459
    %3602 = vmatprep.subr.bf16.mxu0 %v3452
    %3603 = vmatpush1.bf16.msra.mxu0 %v3451
    %3604 = vmatprep.subr.bf16.mxu0 %v3444
    %3605 = vmatpush1.bf16.msra.mxu0 %v3443
    %3606 = vmatprep.subr.bf16.mxu0 %v3436
    %3607 = vmatpush1.bf16.msra.mxu0 %v3435
    %3608 = vmatprep.subr.bf16.mxu0 %v3428
    %3609 = vmatpush1.bf16.msra.mxu0 %v3427
    %3610 = vmatprep.subr.bf16.mxu0 0
    %3611 = vmatpush2.bf16.msra.mxu0 0
    %3612 = vmatprep.subr.bf16.mxu0 0
    %3613 = vmatpush2.bf16.msra.mxu0 0
    %3614 = vmatprep.subr.bf16.mxu0 0
    %3615 = vmatpush2.bf16.msra.mxu0 0
    %3616 = vmatprep.subr.bf16.mxu0 0
    %3617 = vmatpush2.bf16.msra.mxu0 0
    %3618 = vmatprep.subr.bf16.mxu0 0
    %3619 = vmatpush2.bf16.msra.mxu0 0
    %3620 = vmatprep.subr.bf16.mxu0 0
    %3621 = vmatpush2.bf16.msra.mxu0 0
    %3622 = vmatprep.subr.bf16.mxu0 0
    %3623 = vmatpush2.bf16.msra.mxu0 0
    %3624 = vmatprep.subr.bf16.mxu0 0
    %3625 = vmatpush2.bf16.msra.mxu0 0
    %3626 = vmatprep.mubr.bf16.mxu0 0
    %3627 = vmatmul.mubr.bf16.gmra.mxu0 %v3167
    %v3628 = vpop.f32.mrf.mxu0
    %v3629 = vadd.f32 0.0, %v3628
    %v3630 = vpop.f32.mrf.mxu0
    %v3631 = vadd.f32 0.0, %v3630
    %v3632 = vpop.f32.mrf.mxu0
    %v3633 = vpop.f32.mrf.mxu0
    %3634 = vdwg.mxu0
    %3635 = vmatprep.subr.bf16.mxu0 %v3486
    %3636 = vmatpush1.bf16.msra.mxu0 %v3485
    %3637 = vmatprep.subr.bf16.mxu0 %v3478
    %3638 = vmatpush1.bf16.msra.mxu0 %v3477
    %3639 = vmatprep.subr.bf16.mxu0 %v3470
    %3640 = vmatpush1.bf16.msra.mxu0 %v3469
    %3641 = vmatprep.subr.bf16.mxu0 %v3462
    %3642 = vmatpush1.bf16.msra.mxu0 %v3461
    %3643 = vmatprep.subr.bf16.mxu0 %v3454
    %3644 = vmatpush1.bf16.msra.mxu0 %v3453
    %3645 = vmatprep.subr.bf16.mxu0 %v3446
    %3646 = vmatpush1.bf16.msra.mxu0 %v3445
    %3647 = vmatprep.subr.bf16.mxu0 %v3438
    %3648 = vmatpush1.bf16.msra.mxu0 %v3437
    %3649 = vmatprep.subr.bf16.mxu0 %v3430
    %3650 = vmatpush1.bf16.msra.mxu0 %v3429
    %3651 = vmatprep.subr.bf16.mxu0 0
    %3652 = vmatpush2.bf16.msra.mxu0 0
    %3653 = vmatprep.subr.bf16.mxu0 0
    %3654 = vmatpush2.bf16.msra.mxu0 0
    %3655 = vmatprep.subr.bf16.mxu0 0
    %3656 = vmatpush2.bf16.msra.mxu0 0
    %3657 = vmatprep.subr.bf16.mxu0 0
    %3658 = vmatpush2.bf16.msra.mxu0 0
    %3659 = vmatprep.subr.bf16.mxu0 0
    %3660 = vmatpush2.bf16.msra.mxu0 0
    %3661 = vmatprep.subr.bf16.mxu0 0
    %3662 = vmatpush2.bf16.msra.mxu0 0
    %3663 = vmatprep.subr.bf16.mxu0 0
    %3664 = vmatpush2.bf16.msra.mxu0 0
    %3665 = vmatprep.subr.bf16.mxu0 0
    %3666 = vmatpush2.bf16.msra.mxu0 0
    %3667 = vmatprep.mubr.bf16.mxu0 0
    %3668 = vmatmul.mubr.bf16.gmra.mxu0 %v3167
    %v3669 = vpop.f32.mrf.mxu0
    %v3670 = vadd.f32 0.0, %v3669
    %v3671 = vpop.f32.mrf.mxu0
    %v3672 = vadd.f32 0.0, %v3671
    %v3673 = vpop.f32.mrf.mxu0
    %v3674 = vpop.f32.mrf.mxu0
    %3675 = vdwg.mxu0
    %3676 = vmatprep.subr.bf16.mxu0 %v3488
    %3677 = vmatpush1.bf16.msra.mxu0 %v3487
    %3678 = vmatprep.subr.bf16.mxu0 %v3480
    %3679 = vmatpush1.bf16.msra.mxu0 %v3479
    %3680 = vmatprep.subr.bf16.mxu0 %v3472
    %3681 = vmatpush1.bf16.msra.mxu0 %v3471
    %3682 = vmatprep.subr.bf16.mxu0 %v3464
    %3683 = vmatpush1.bf16.msra.mxu0 %v3463
    %3684 = vmatprep.subr.bf16.mxu0 %v3456
    %3685 = vmatpush1.bf16.msra.mxu0 %v3455
    %3686 = vmatprep.subr.bf16.mxu0 %v3448
    %3687 = vmatpush1.bf16.msra.mxu0 %v3447
    %3688 = vmatprep.subr.bf16.mxu0 %v3440
    %3689 = vmatpush1.bf16.msra.mxu0 %v3439
    %3690 = vmatprep.subr.bf16.mxu0 %v3432
    %3691 = vmatpush1.bf16.msra.mxu0 %v3431
    %3692 = vmatprep.subr.bf16.mxu0 0
    %3693 = vmatpush2.bf16.msra.mxu0 0
    %3694 = vmatprep.subr.bf16.mxu0 0
    %3695 = vmatpush2.bf16.msra.mxu0 0
    %3696 = vmatprep.subr.bf16.mxu0 0
    %3697 = vmatpush2.bf16.msra.mxu0 0
    %3698 = vmatprep.subr.bf16.mxu0 0
    %3699 = vmatpush2.bf16.msra.mxu0 0
    %3700 = vmatprep.subr.bf16.mxu0 0
    %3701 = vmatpush2.bf16.msra.mxu0 0
    %3702 = vmatprep.subr.bf16.mxu0 0
    %3703 = vmatpush2.bf16.msra.mxu0 0
    %3704 = vmatprep.subr.bf16.mxu0 0
    %3705 = vmatpush2.bf16.msra.mxu0 0
    %3706 = vmatprep.subr.bf16.mxu0 0
    %3707 = vmatpush2.bf16.msra.mxu0 0
    %3708 = vmatprep.mubr.bf16.mxu0 0
    %3709 = vmatmul.mubr.bf16.gmra.mxu0 %v3167
    %v3710 = vpop.f32.mrf.mxu0
    %v3711 = vadd.f32 0.0, %v3710
    %v3712 = vpop.f32.mrf.mxu0
    %v3713 = vadd.f32 0.0, %v3712
    %v3714 = vpop.f32.mrf.mxu0
    %v3715 = vpop.f32.mrf.mxu0
    %3716 = vdwg.mxu0
    %v3717 = vadd.f32 %v3113, %v3588
    %v3718 = vadd.f32 %v3114, %v3590
    %v3719 = vadd.f32 %v3115, %v3629
    %v3720 = vadd.f32 %v3116, %v3631
    %v3721 = vadd.f32 %v3117, %v3670
    %v3722 = vadd.f32 %v3118, %v3672
    %v3723 = vadd.f32 %v3119, %v3711
    %v3724 = vadd.f32 %v3120, %v3713
    %s3725 = scalar_lea.vmem %s0, 24
    %v3726 = vld [vmem:[%s3725] sm:$0xf]
    %v3728 = vsel %vm119, %v3726, 0
    %3730 = vmatprep.subr.bf16.mxu0 0
    %3731 = vmatpush1.bf16.msra.mxu0 0
    %3732 = vmatprep.subr.bf16.mxu0 0
    %3733 = vmatpush1.bf16.msra.mxu0 0
    %3734 = vmatprep.subr.bf16.mxu0 0
    %3735 = vmatpush1.bf16.msra.mxu0 0
    %3736 = vmatprep.subr.bf16.mxu0 0
    %3737 = vmatpush1.bf16.msra.mxu0 0
    %3738 = vmatprep.subr.bf16.mxu0 0
    %3739 = vmatpush1.bf16.msra.mxu0 0
    %3740 = vmatprep.subr.bf16.mxu0 0
    %3741 = vmatpush1.bf16.msra.mxu0 0
    %3742 = vmatprep.subr.bf16.mxu0 0
    %3743 = vmatpush1.bf16.msra.mxu0 0
    %3744 = vmatprep.subr.bf16.mxu0 0
    %3745 = vmatpush1.bf16.msra.mxu0 %v117
    %3746 = vmatprep.subr.bf16.mxu0 0
    %3747 = vmatpush2.bf16.msra.mxu0 0
    %3748 = vmatprep.subr.bf16.mxu0 0
    %3749 = vmatpush2.bf16.msra.mxu0 0
    %3750 = vmatprep.subr.bf16.mxu0 0
    %3751 = vmatpush2.bf16.msra.mxu0 0
    %3752 = vmatprep.subr.bf16.mxu0 0
    %3753 = vmatpush2.bf16.msra.mxu0 0
    %3754 = vmatprep.subr.bf16.mxu0 0
    %3755 = vmatpush2.bf16.msra.mxu0 0
    %3756 = vmatprep.subr.bf16.mxu0 0
    %3757 = vmatpush2.bf16.msra.mxu0 0
    %3758 = vmatprep.subr.bf16.mxu0 0
    %3759 = vmatpush2.bf16.msra.mxu0 0
    %3760 = vmatprep.subr.bf16.mxu0 0
    %3761 = vmatpush2.bf16.msra.mxu0 0
    %3762 = vmatprep.mubr.bf16.mxu0 0
    %3763 = vmatmul.mubr.bf16.gmra.mxu0 %v3728
    %v3764 = vpop.f32.mrf.mxu0
    %v3765 = vadd.f32 %v111, %v3764
    %v3766 = vpop.f32.mrf.mxu0
    %v3767 = vpop.f32.mrf.mxu0
    %v3768 = vpop.f32.mrf.mxu0
    %3769 = vdwg.mxu0
    %v3770 = vmax.f32 %v3765, 0.0
    %v3771 = vpack.c.bf16 %v3770, %v3770
    %s3772 = scalar_lea.vmem [#allocation6], 3072
    %v3773 = vld [vmem:[%s3772] sm:$0xff]
    %v3774 = vld [vmem:[%s3772 + $0x8] sm:$0xff]
    %v3775 = vld [vmem:[%s3772 + $0x10] sm:$0xff]
    %v3776 = vld [vmem:[%s3772 + $0x18] sm:$0xff]
    %v3777 = vld [vmem:[%s3772 + $0x20] sm:$0xff]
    %v3778 = vld [vmem:[%s3772 + $0x28] sm:$0xff]
    %v3779 = vld [vmem:[%s3772 + $0x30] sm:$0xff]
    %v3780 = vld [vmem:[%s3772 + $0x38] sm:$0xff]
    %v3781 = vld [vmem:[%s3772 + $0x40] sm:$0xff]
    %v3782 = vld [vmem:[%s3772 + $0x48] sm:$0xff]
    %v3783 = vld [vmem:[%s3772 + $0x50] sm:$0xff]
    %v3784 = vld [vmem:[%s3772 + $0x58] sm:$0xff]
    %v3785 = vld [vmem:[%s3772 + $0x60] sm:$0xff]
    %v3786 = vld [vmem:[%s3772 + $0x68] sm:$0xff]
    %v3787 = vld [vmem:[%s3772 + $0x70] sm:$0xff]
    %v3788 = vld [vmem:[%s3772 + $0x78] sm:$0xff]
    %v3789 = vld [vmem:[%s3772 + $0x80] sm:$0xff]
    %v3790 = vld [vmem:[%s3772 + $0x88] sm:$0xff]
    %v3791 = vld [vmem:[%s3772 + $0x90] sm:$0xff]
    %v3792 = vld [vmem:[%s3772 + $0x98] sm:$0xff]
    %v3793 = vld [vmem:[%s3772 + $0xa0] sm:$0xff]
    %v3794 = vld [vmem:[%s3772 + $0xa8] sm:$0xff]
    %v3795 = vld [vmem:[%s3772 + $0xb0] sm:$0xff]
    %v3796 = vld [vmem:[%s3772 + $0xb8] sm:$0xff]
    %v3797 = vld [vmem:[%s3772 + $0xc0] sm:$0xff]
    %v3798 = vld [vmem:[%s3772 + $0xc8] sm:$0xff]
    %v3799 = vld [vmem:[%s3772 + $0xd0] sm:$0xff]
    %v3800 = vld [vmem:[%s3772 + $0xd8] sm:$0xff]
    %v3801 = vld [vmem:[%s3772 + $0xe0] sm:$0xff]
    %v3802 = vld [vmem:[%s3772 + $0xe8] sm:$0xff]
    %v3803 = vld [vmem:[%s3772 + $0xf0] sm:$0xff]
    %v3804 = vld [vmem:[%s3772 + $0xf8] sm:$0xff]
    %v3805 = vld [vmem:[%s3772 + $0x100] sm:$0xff]
    %v3806 = vld [vmem:[%s3772 + $0x108] sm:$0xff]
    %v3807 = vld [vmem:[%s3772 + $0x110] sm:$0xff]
    %v3808 = vld [vmem:[%s3772 + $0x118] sm:$0xff]
    %v3809 = vld [vmem:[%s3772 + $0x120] sm:$0xff]
    %v3810 = vld [vmem:[%s3772 + $0x128] sm:$0xff]
    %v3811 = vld [vmem:[%s3772 + $0x130] sm:$0xff]
    %v3812 = vld [vmem:[%s3772 + $0x138] sm:$0xff]
    %v3813 = vld [vmem:[%s3772 + $0x140] sm:$0xff]
    %v3814 = vld [vmem:[%s3772 + $0x148] sm:$0xff]
    %v3815 = vld [vmem:[%s3772 + $0x150] sm:$0xff]
    %v3816 = vld [vmem:[%s3772 + $0x158] sm:$0xff]
    %v3817 = vld [vmem:[%s3772 + $0x160] sm:$0xff]
    %v3818 = vld [vmem:[%s3772 + $0x168] sm:$0xff]
    %v3819 = vld [vmem:[%s3772 + $0x170] sm:$0xff]
    %v3820 = vld [vmem:[%s3772 + $0x178] sm:$0xff]
    %v3821 = vld [vmem:[%s3772 + $0x180] sm:$0xff]
    %v3822 = vld [vmem:[%s3772 + $0x188] sm:$0xff]
    %v3823 = vld [vmem:[%s3772 + $0x190] sm:$0xff]
    %v3824 = vld [vmem:[%s3772 + $0x198] sm:$0xff]
    %v3825 = vld [vmem:[%s3772 + $0x1a0] sm:$0xff]
    %v3826 = vld [vmem:[%s3772 + $0x1a8] sm:$0xff]
    %v3827 = vld [vmem:[%s3772 + $0x1b0] sm:$0xff]
    %v3828 = vld [vmem:[%s3772 + $0x1b8] sm:$0xff]
    %v3829 = vld [vmem:[%s3772 + $0x1c0] sm:$0xff]
    %v3830 = vld [vmem:[%s3772 + $0x1c8] sm:$0xff]
    %v3831 = vld [vmem:[%s3772 + $0x1d0] sm:$0xff]
    %v3832 = vld [vmem:[%s3772 + $0x1d8] sm:$0xff]
    %v3833 = vld [vmem:[%s3772 + $0x1e0] sm:$0xff]
    %v3834 = vld [vmem:[%s3772 + $0x1e8] sm:$0xff]
    %v3835 = vld [vmem:[%s3772 + $0x1f0] sm:$0xff]
    %v3836 = vld [vmem:[%s3772 + $0x1f8] sm:$0xff]
    %v3901 = vunpack.c.l.b16 %v3773
    %v3902 = vunpack.c.h.b16 %v3773
    %v3903 = vunpack.c.l.b16 %v3774
    %v3904 = vunpack.c.h.b16 %v3774
    %v3905 = vunpack.c.l.b16 %v3775
    %v3906 = vunpack.c.h.b16 %v3775
    %v3907 = vunpack.c.l.b16 %v3776
    %v3908 = vunpack.c.h.b16 %v3776
    %v3909 = vunpack.c.l.b16 %v3777
    %v3910 = vunpack.c.h.b16 %v3777
    %v3911 = vunpack.c.l.b16 %v3778
    %v3912 = vunpack.c.h.b16 %v3778
    %v3913 = vunpack.c.l.b16 %v3779
    %v3914 = vunpack.c.h.b16 %v3779
    %v3915 = vunpack.c.l.b16 %v3780
    %v3916 = vunpack.c.h.b16 %v3780
    %v3917 = vunpack.c.l.b16 %v3781
    %v3918 = vunpack.c.h.b16 %v3781
    %v3919 = vunpack.c.l.b16 %v3782
    %v3920 = vunpack.c.h.b16 %v3782
    %v3921 = vunpack.c.l.b16 %v3783
    %v3922 = vunpack.c.h.b16 %v3783
    %v3923 = vunpack.c.l.b16 %v3784
    %v3924 = vunpack.c.h.b16 %v3784
    %v3925 = vunpack.c.l.b16 %v3785
    %v3926 = vunpack.c.h.b16 %v3785
    %v3927 = vunpack.c.l.b16 %v3786
    %v3928 = vunpack.c.h.b16 %v3786
    %v3929 = vunpack.c.l.b16 %v3787
    %v3930 = vunpack.c.h.b16 %v3787
    %v3931 = vunpack.c.l.b16 %v3788
    %v3932 = vunpack.c.h.b16 %v3788
    %v3933 = vunpack.c.l.b16 %v3789
    %v3934 = vunpack.c.h.b16 %v3789
    %v3935 = vunpack.c.l.b16 %v3790
    %v3936 = vunpack.c.h.b16 %v3790
    %v3937 = vunpack.c.l.b16 %v3791
    %v3938 = vunpack.c.h.b16 %v3791
    %v3939 = vunpack.c.l.b16 %v3792
    %v3940 = vunpack.c.h.b16 %v3792
    %v3941 = vunpack.c.l.b16 %v3793
    %v3942 = vunpack.c.h.b16 %v3793
    %v3943 = vunpack.c.l.b16 %v3794
    %v3944 = vunpack.c.h.b16 %v3794
    %v3945 = vunpack.c.l.b16 %v3795
    %v3946 = vunpack.c.h.b16 %v3795
    %v3947 = vunpack.c.l.b16 %v3796
    %v3948 = vunpack.c.h.b16 %v3796
    %v3949 = vunpack.c.l.b16 %v3797
    %v3950 = vunpack.c.h.b16 %v3797
    %v3951 = vunpack.c.l.b16 %v3798
    %v3952 = vunpack.c.h.b16 %v3798
    %v3953 = vunpack.c.l.b16 %v3799
    %v3954 = vunpack.c.h.b16 %v3799
    %v3955 = vunpack.c.l.b16 %v3800
    %v3956 = vunpack.c.h.b16 %v3800
    %v3957 = vunpack.c.l.b16 %v3801
    %v3958 = vunpack.c.h.b16 %v3801
    %v3959 = vunpack.c.l.b16 %v3802
    %v3960 = vunpack.c.h.b16 %v3802
    %v3961 = vunpack.c.l.b16 %v3803
    %v3962 = vunpack.c.h.b16 %v3803
    %v3963 = vunpack.c.l.b16 %v3804
    %v3964 = vunpack.c.h.b16 %v3804
    %v3965 = vunpack.c.l.b16 %v3805
    %v3966 = vunpack.c.h.b16 %v3805
    %v3967 = vunpack.c.l.b16 %v3806
    %v3968 = vunpack.c.h.b16 %v3806
    %v3969 = vunpack.c.l.b16 %v3807
    %v3970 = vunpack.c.h.b16 %v3807
    %v3971 = vunpack.c.l.b16 %v3808
    %v3972 = vunpack.c.h.b16 %v3808
    %v3973 = vunpack.c.l.b16 %v3809
    %v3974 = vunpack.c.h.b16 %v3809
    %v3975 = vunpack.c.l.b16 %v3810
    %v3976 = vunpack.c.h.b16 %v3810
    %v3977 = vunpack.c.l.b16 %v3811
    %v3978 = vunpack.c.h.b16 %v3811
    %v3979 = vunpack.c.l.b16 %v3812
    %v3980 = vunpack.c.h.b16 %v3812
    %v3981 = vunpack.c.l.b16 %v3813
    %v3982 = vunpack.c.h.b16 %v3813
    %v3983 = vunpack.c.l.b16 %v3814
    %v3984 = vunpack.c.h.b16 %v3814
    %v3985 = vunpack.c.l.b16 %v3815
    %v3986 = vunpack.c.h.b16 %v3815
    %v3987 = vunpack.c.l.b16 %v3816
    %v3988 = vunpack.c.h.b16 %v3816
    %v3989 = vunpack.c.l.b16 %v3817
    %v3990 = vunpack.c.h.b16 %v3817
    %v3991 = vunpack.c.l.b16 %v3818
    %v3992 = vunpack.c.h.b16 %v3818
    %v3993 = vunpack.c.l.b16 %v3819
    %v3994 = vunpack.c.h.b16 %v3819
    %v3995 = vunpack.c.l.b16 %v3820
    %v3996 = vunpack.c.h.b16 %v3820
    %v3997 = vunpack.c.l.b16 %v3821
    %v3998 = vunpack.c.h.b16 %v3821
    %v3999 = vunpack.c.l.b16 %v3822
    %v4000 = vunpack.c.h.b16 %v3822
    %v4001 = vunpack.c.l.b16 %v3823
    %v4002 = vunpack.c.h.b16 %v3823
    %v4003 = vunpack.c.l.b16 %v3824
    %v4004 = vunpack.c.h.b16 %v3824
    %v4005 = vunpack.c.l.b16 %v3825
    %v4006 = vunpack.c.h.b16 %v3825
    %v4007 = vunpack.c.l.b16 %v3826
    %v4008 = vunpack.c.h.b16 %v3826
    %v4009 = vunpack.c.l.b16 %v3827
    %v4010 = vunpack.c.h.b16 %v3827
    %v4011 = vunpack.c.l.b16 %v3828
    %v4012 = vunpack.c.h.b16 %v3828
    %v4013 = vunpack.c.l.b16 %v3829
    %v4014 = vunpack.c.h.b16 %v3829
    %v4015 = vunpack.c.l.b16 %v3830
    %v4016 = vunpack.c.h.b16 %v3830
    %v4017 = vunpack.c.l.b16 %v3831
    %v4018 = vunpack.c.h.b16 %v3831
    %v4019 = vunpack.c.l.b16 %v3832
    %v4020 = vunpack.c.h.b16 %v3832
    %v4021 = vunpack.c.l.b16 %v3833
    %v4022 = vunpack.c.h.b16 %v3833
    %v4023 = vunpack.c.l.b16 %v3834
    %v4024 = vunpack.c.h.b16 %v3834
    %v4025 = vunpack.c.l.b16 %v3835
    %v4026 = vunpack.c.h.b16 %v3835
    %v4027 = vunpack.c.l.b16 %v3836
    %v4028 = vunpack.c.h.b16 %v3836
    %v4029 = vpack.c.b16 %v3909, %v3901
    %v4030 = vpack.c.b16 %v3910, %v3902
    %v4031 = vpack.c.b16 %v3911, %v3903
    %v4032 = vpack.c.b16 %v3912, %v3904
    %v4033 = vpack.c.b16 %v3913, %v3905
    %v4034 = vpack.c.b16 %v3914, %v3906
    %v4035 = vpack.c.b16 %v3915, %v3907
    %v4036 = vpack.c.b16 %v3916, %v3908
    %v4037 = vpack.c.b16 %v3925, %v3917
    %v4038 = vpack.c.b16 %v3926, %v3918
    %v4039 = vpack.c.b16 %v3927, %v3919
    %v4040 = vpack.c.b16 %v3928, %v3920
    %v4041 = vpack.c.b16 %v3929, %v3921
    %v4042 = vpack.c.b16 %v3930, %v3922
    %v4043 = vpack.c.b16 %v3931, %v3923
    %v4044 = vpack.c.b16 %v3932, %v3924
    %v4045 = vpack.c.b16 %v3941, %v3933
    %v4046 = vpack.c.b16 %v3942, %v3934
    %v4047 = vpack.c.b16 %v3943, %v3935
    %v4048 = vpack.c.b16 %v3944, %v3936
    %v4049 = vpack.c.b16 %v3945, %v3937
    %v4050 = vpack.c.b16 %v3946, %v3938
    %v4051 = vpack.c.b16 %v3947, %v3939
    %v4052 = vpack.c.b16 %v3948, %v3940
    %v4053 = vpack.c.b16 %v3957, %v3949
    %v4054 = vpack.c.b16 %v3958, %v3950
    %v4055 = vpack.c.b16 %v3959, %v3951
    %v4056 = vpack.c.b16 %v3960, %v3952
    %v4057 = vpack.c.b16 %v3961, %v3953
    %v4058 = vpack.c.b16 %v3962, %v3954
    %v4059 = vpack.c.b16 %v3963, %v3955
    %v4060 = vpack.c.b16 %v3964, %v3956
    %v4061 = vpack.c.b16 %v3973, %v3965
    %v4062 = vpack.c.b16 %v3974, %v3966
    %v4063 = vpack.c.b16 %v3975, %v3967
    %v4064 = vpack.c.b16 %v3976, %v3968
    %v4065 = vpack.c.b16 %v3977, %v3969
    %v4066 = vpack.c.b16 %v3978, %v3970
    %v4067 = vpack.c.b16 %v3979, %v3971
    %v4068 = vpack.c.b16 %v3980, %v3972
    %v4069 = vpack.c.b16 %v3989, %v3981
    %v4070 = vpack.c.b16 %v3990, %v3982
    %v4071 = vpack.c.b16 %v3991, %v3983
    %v4072 = vpack.c.b16 %v3992, %v3984
    %v4073 = vpack.c.b16 %v3993, %v3985
    %v4074 = vpack.c.b16 %v3994, %v3986
    %v4075 = vpack.c.b16 %v3995, %v3987
    %v4076 = vpack.c.b16 %v3996, %v3988
    %v4077 = vpack.c.b16 %v4005, %v3997
    %v4078 = vpack.c.b16 %v4006, %v3998
    %v4079 = vpack.c.b16 %v4007, %v3999
    %v4080 = vpack.c.b16 %v4008, %v4000
    %v4081 = vpack.c.b16 %v4009, %v4001
    %v4082 = vpack.c.b16 %v4010, %v4002
    %v4083 = vpack.c.b16 %v4011, %v4003
    %v4084 = vpack.c.b16 %v4012, %v4004
    %v4085 = vpack.c.b16 %v4021, %v4013
    %v4086 = vpack.c.b16 %v4022, %v4014
    %v4087 = vpack.c.b16 %v4023, %v4015
    %v4088 = vpack.c.b16 %v4024, %v4016
    %v4089 = vpack.c.b16 %v4025, %v4017
    %v4090 = vpack.c.b16 %v4026, %v4018
    %v4091 = vpack.c.b16 %v4027, %v4019
    %v4092 = vpack.c.b16 %v4028, %v4020
    %4157 = vmatprep.subr.bf16.mxu0 %v4086
    %4158 = vmatpush1.bf16.msra.mxu0 %v4085
    %4159 = vmatprep.subr.bf16.mxu0 %v4078
    %4160 = vmatpush1.bf16.msra.mxu0 %v4077
    %4161 = vmatprep.subr.bf16.mxu0 %v4070
    %4162 = vmatpush1.bf16.msra.mxu0 %v4069
    %4163 = vmatprep.subr.bf16.mxu0 %v4062
    %4164 = vmatpush1.bf16.msra.mxu0 %v4061
    %4165 = vmatprep.subr.bf16.mxu0 %v4054
    %4166 = vmatpush1.bf16.msra.mxu0 %v4053
    %4167 = vmatprep.subr.bf16.mxu0 %v4046
    %4168 = vmatpush1.bf16.msra.mxu0 %v4045
    %4169 = vmatprep.subr.bf16.mxu0 %v4038
    %4170 = vmatpush1.bf16.msra.mxu0 %v4037
    %4171 = vmatprep.subr.bf16.mxu0 %v4030
    %4172 = vmatpush1.bf16.msra.mxu0 %v4029
    %4173 = vmatprep.subr.bf16.mxu0 0
    %4174 = vmatpush2.bf16.msra.mxu0 0
    %4175 = vmatprep.subr.bf16.mxu0 0
    %4176 = vmatpush2.bf16.msra.mxu0 0
    %4177 = vmatprep.subr.bf16.mxu0 0
    %4178 = vmatpush2.bf16.msra.mxu0 0
    %4179 = vmatprep.subr.bf16.mxu0 0
    %4180 = vmatpush2.bf16.msra.mxu0 0
    %4181 = vmatprep.subr.bf16.mxu0 0
    %4182 = vmatpush2.bf16.msra.mxu0 0
    %4183 = vmatprep.subr.bf16.mxu0 0
    %4184 = vmatpush2.bf16.msra.mxu0 0
    %4185 = vmatprep.subr.bf16.mxu0 0
    %4186 = vmatpush2.bf16.msra.mxu0 0
    %4187 = vmatprep.subr.bf16.mxu0 0
    %4188 = vmatpush2.bf16.msra.mxu0 0
    %4189 = vmatprep.mubr.bf16.mxu0 0
    %4190 = vmatmul.mubr.bf16.gmra.mxu0 %v3771
    %v4191 = vpop.f32.mrf.mxu0
    %v4192 = vadd.f32 0.0, %v4191
    %v4193 = vpop.f32.mrf.mxu0
    %v4194 = vadd.f32 0.0, %v4193
    %v4195 = vpop.f32.mrf.mxu0
    %v4196 = vpop.f32.mrf.mxu0
    %4197 = vdwg.mxu0
    %4198 = vmatprep.subr.bf16.mxu0 %v4088
    %4199 = vmatpush1.bf16.msra.mxu0 %v4087
    %4200 = vmatprep.subr.bf16.mxu0 %v4080
    %4201 = vmatpush1.bf16.msra.mxu0 %v4079
    %4202 = vmatprep.subr.bf16.mxu0 %v4072
    %4203 = vmatpush1.bf16.msra.mxu0 %v4071
    %4204 = vmatprep.subr.bf16.mxu0 %v4064
    %4205 = vmatpush1.bf16.msra.mxu0 %v4063
    %4206 = vmatprep.subr.bf16.mxu0 %v4056
    %4207 = vmatpush1.bf16.msra.mxu0 %v4055
    %4208 = vmatprep.subr.bf16.mxu0 %v4048
    %4209 = vmatpush1.bf16.msra.mxu0 %v4047
    %4210 = vmatprep.subr.bf16.mxu0 %v4040
    %4211 = vmatpush1.bf16.msra.mxu0 %v4039
    %4212 = vmatprep.subr.bf16.mxu0 %v4032
    %4213 = vmatpush1.bf16.msra.mxu0 %v4031
    %4214 = vmatprep.subr.bf16.mxu0 0
    %4215 = vmatpush2.bf16.msra.mxu0 0
    %4216 = vmatprep.subr.bf16.mxu0 0
    %4217 = vmatpush2.bf16.msra.mxu0 0
    %4218 = vmatprep.subr.bf16.mxu0 0
    %4219 = vmatpush2.bf16.msra.mxu0 0
    %4220 = vmatprep.subr.bf16.mxu0 0
    %4221 = vmatpush2.bf16.msra.mxu0 0
    %4222 = vmatprep.subr.bf16.mxu0 0
    %4223 = vmatpush2.bf16.msra.mxu0 0
    %4224 = vmatprep.subr.bf16.mxu0 0
    %4225 = vmatpush2.bf16.msra.mxu0 0
    %4226 = vmatprep.subr.bf16.mxu0 0
    %4227 = vmatpush2.bf16.msra.mxu0 0
    %4228 = vmatprep.subr.bf16.mxu0 0
    %4229 = vmatpush2.bf16.msra.mxu0 0
    %4230 = vmatprep.mubr.bf16.mxu0 0
    %4231 = vmatmul.mubr.bf16.gmra.mxu0 %v3771
    %v4232 = vpop.f32.mrf.mxu0
    %v4233 = vadd.f32 0.0, %v4232
    %v4234 = vpop.f32.mrf.mxu0
    %v4235 = vadd.f32 0.0, %v4234
    %v4236 = vpop.f32.mrf.mxu0
    %v4237 = vpop.f32.mrf.mxu0
    %4238 = vdwg.mxu0
    %4239 = vmatprep.subr.bf16.mxu0 %v4090
    %4240 = vmatpush1.bf16.msra.mxu0 %v4089
    %4241 = vmatprep.subr.bf16.mxu0 %v4082
    %4242 = vmatpush1.bf16.msra.mxu0 %v4081
    %4243 = vmatprep.subr.bf16.mxu0 %v4074
    %4244 = vmatpush1.bf16.msra.mxu0 %v4073
    %4245 = vmatprep.subr.bf16.mxu0 %v4066
    %4246 = vmatpush1.bf16.msra.mxu0 %v4065
    %4247 = vmatprep.subr.bf16.mxu0 %v4058
    %4248 = vmatpush1.bf16.msra.mxu0 %v4057
    %4249 = vmatprep.subr.bf16.mxu0 %v4050
    %4250 = vmatpush1.bf16.msra.mxu0 %v4049
    %4251 = vmatprep.subr.bf16.mxu0 %v4042
    %4252 = vmatpush1.bf16.msra.mxu0 %v4041
    %4253 = vmatprep.subr.bf16.mxu0 %v4034
    %4254 = vmatpush1.bf16.msra.mxu0 %v4033
    %4255 = vmatprep.subr.bf16.mxu0 0
    %4256 = vmatpush2.bf16.msra.mxu0 0
    %4257 = vmatprep.subr.bf16.mxu0 0
    %4258 = vmatpush2.bf16.msra.mxu0 0
    %4259 = vmatprep.subr.bf16.mxu0 0
    %4260 = vmatpush2.bf16.msra.mxu0 0
    %4261 = vmatprep.subr.bf16.mxu0 0
    %4262 = vmatpush2.bf16.msra.mxu0 0
    %4263 = vmatprep.subr.bf16.mxu0 0
    %4264 = vmatpush2.bf16.msra.mxu0 0
    %4265 = vmatprep.subr.bf16.mxu0 0
    %4266 = vmatpush2.bf16.msra.mxu0 0
    %4267 = vmatprep.subr.bf16.mxu0 0
    %4268 = vmatpush2.bf16.msra.mxu0 0
    %4269 = vmatprep.subr.bf16.mxu0 0
    %4270 = vmatpush2.bf16.msra.mxu0 0
    %4271 = vmatprep.mubr.bf16.mxu0 0
    %4272 = vmatmul.mubr.bf16.gmra.mxu0 %v3771
    %v4273 = vpop.f32.mrf.mxu0
    %v4274 = vadd.f32 0.0, %v4273
    %v4275 = vpop.f32.mrf.mxu0
    %v4276 = vadd.f32 0.0, %v4275
    %v4277 = vpop.f32.mrf.mxu0
    %v4278 = vpop.f32.mrf.mxu0
    %4279 = vdwg.mxu0
    %4280 = vmatprep.subr.bf16.mxu0 %v4092
    %4281 = vmatpush1.bf16.msra.mxu0 %v4091
    %4282 = vmatprep.subr.bf16.mxu0 %v4084
    %4283 = vmatpush1.bf16.msra.mxu0 %v4083
    %4284 = vmatprep.subr.bf16.mxu0 %v4076
    %4285 = vmatpush1.bf16.msra.mxu0 %v4075
    %4286 = vmatprep.subr.bf16.mxu0 %v4068
    %4287 = vmatpush1.bf16.msra.mxu0 %v4067
    %4288 = vmatprep.subr.bf16.mxu0 %v4060
    %4289 = vmatpush1.bf16.msra.mxu0 %v4059
    %4290 = vmatprep.subr.bf16.mxu0 %v4052
    %4291 = vmatpush1.bf16.msra.mxu0 %v4051
    %4292 = vmatprep.subr.bf16.mxu0 %v4044
    %4293 = vmatpush1.bf16.msra.mxu0 %v4043
    %4294 = vmatprep.subr.bf16.mxu0 %v4036
    %4295 = vmatpush1.bf16.msra.mxu0 %v4035
    %4296 = vmatprep.subr.bf16.mxu0 0
    %4297 = vmatpush2.bf16.msra.mxu0 0
    %4298 = vmatprep.subr.bf16.mxu0 0
    %4299 = vmatpush2.bf16.msra.mxu0 0
    %4300 = vmatprep.subr.bf16.mxu0 0
    %4301 = vmatpush2.bf16.msra.mxu0 0
    %4302 = vmatprep.subr.bf16.mxu0 0
    %4303 = vmatpush2.bf16.msra.mxu0 0
    %4304 = vmatprep.subr.bf16.mxu0 0
    %4305 = vmatpush2.bf16.msra.mxu0 0
    %4306 = vmatprep.subr.bf16.mxu0 0
    %4307 = vmatpush2.bf16.msra.mxu0 0
    %4308 = vmatprep.subr.bf16.mxu0 0
    %4309 = vmatpush2.bf16.msra.mxu0 0
    %4310 = vmatprep.subr.bf16.mxu0 0
    %4311 = vmatpush2.bf16.msra.mxu0 0
    %4312 = vmatprep.mubr.bf16.mxu0 0
    %4313 = vmatmul.mubr.bf16.gmra.mxu0 %v3771
    %v4314 = vpop.f32.mrf.mxu0
    %v4315 = vadd.f32 0.0, %v4314
    %v4316 = vpop.f32.mrf.mxu0
    %v4317 = vadd.f32 0.0, %v4316
    %v4318 = vpop.f32.mrf.mxu0
    %v4319 = vpop.f32.mrf.mxu0
    %4320 = vdwg.mxu0
    %v4321 = vadd.f32 %v3717, %v4192
    %v4322 = vadd.f32 %v3718, %v4194
    %v4323 = vadd.f32 %v3719, %v4233
    %v4324 = vadd.f32 %v3720, %v4235
    %v4325 = vadd.f32 %v3721, %v4274
    %v4326 = vadd.f32 %v3722, %v4276
    %v4327 = vadd.f32 %v3723, %v4315
    %v4328 = vadd.f32 %v3724, %v4317
    %s4329 = scalar_lea.vmem %s0, 28
    %v4330 = vld [vmem:[%s4329] sm:$0xf]
    %v4332 = vsel %vm119, %v4330, 0
    %4334 = vmatprep.subr.bf16.mxu0 0
    %4335 = vmatpush1.bf16.msra.mxu0 0
    %4336 = vmatprep.subr.bf16.mxu0 0
    %4337 = vmatpush1.bf16.msra.mxu0 0
    %4338 = vmatprep.subr.bf16.mxu0 0
    %4339 = vmatpush1.bf16.msra.mxu0 0
    %4340 = vmatprep.subr.bf16.mxu0 0
    %4341 = vmatpush1.bf16.msra.mxu0 0
    %4342 = vmatprep.subr.bf16.mxu0 0
    %4343 = vmatpush1.bf16.msra.mxu0 0
    %4344 = vmatprep.subr.bf16.mxu0 0
    %4345 = vmatpush1.bf16.msra.mxu0 0
    %4346 = vmatprep.subr.bf16.mxu0 0
    %4347 = vmatpush1.bf16.msra.mxu0 0
    %4348 = vmatprep.subr.bf16.mxu0 0
    %4349 = vmatpush1.bf16.msra.mxu0 %v117
    %4350 = vmatprep.subr.bf16.mxu0 0
    %4351 = vmatpush2.bf16.msra.mxu0 0
    %4352 = vmatprep.subr.bf16.mxu0 0
    %4353 = vmatpush2.bf16.msra.mxu0 0
    %4354 = vmatprep.subr.bf16.mxu0 0
    %4355 = vmatpush2.bf16.msra.mxu0 0
    %4356 = vmatprep.subr.bf16.mxu0 0
    %4357 = vmatpush2.bf16.msra.mxu0 0
    %4358 = vmatprep.subr.bf16.mxu0 0
    %4359 = vmatpush2.bf16.msra.mxu0 0
    %4360 = vmatprep.subr.bf16.mxu0 0
    %4361 = vmatpush2.bf16.msra.mxu0 0
    %4362 = vmatprep.subr.bf16.mxu0 0
    %4363 = vmatpush2.bf16.msra.mxu0 0
    %4364 = vmatprep.subr.bf16.mxu0 0
    %4365 = vmatpush2.bf16.msra.mxu0 0
    %4366 = vmatprep.mubr.bf16.mxu0 0
    %4367 = vmatmul.mubr.bf16.gmra.mxu0 %v4332
    %v4368 = vpop.f32.mrf.mxu0
    %v4369 = vadd.f32 %v111, %v4368
    %v4370 = vpop.f32.mrf.mxu0
    %v4371 = vpop.f32.mrf.mxu0
    %v4372 = vpop.f32.mrf.mxu0
    %4373 = vdwg.mxu0
    %v4374 = vmax.f32 %v4369, 0.0
    %v4375 = vpack.c.bf16 %v4374, %v4374
    %s4376 = scalar_lea.vmem [#allocation6], 3584
    %v4377 = vld [vmem:[%s4376] sm:$0xff]
    %v4378 = vld [vmem:[%s4376 + $0x8] sm:$0xff]
    %v4379 = vld [vmem:[%s4376 + $0x10] sm:$0xff]
    %v4380 = vld [vmem:[%s4376 + $0x18] sm:$0xff]
    %v4381 = vld [vmem:[%s4376 + $0x20] sm:$0xff]
    %v4382 = vld [vmem:[%s4376 + $0x28] sm:$0xff]
    %v4383 = vld [vmem:[%s4376 + $0x30] sm:$0xff]
    %v4384 = vld [vmem:[%s4376 + $0x38] sm:$0xff]
    %v4385 = vld [vmem:[%s4376 + $0x40] sm:$0xff]
    %v4386 = vld [vmem:[%s4376 + $0x48] sm:$0xff]
    %v4387 = vld [vmem:[%s4376 + $0x50] sm:$0xff]
    %v4388 = vld [vmem:[%s4376 + $0x58] sm:$0xff]
    %v4389 = vld [vmem:[%s4376 + $0x60] sm:$0xff]
    %v4390 = vld [vmem:[%s4376 + $0x68] sm:$0xff]
    %v4391 = vld [vmem:[%s4376 + $0x70] sm:$0xff]
    %v4392 = vld [vmem:[%s4376 + $0x78] sm:$0xff]
    %v4393 = vld [vmem:[%s4376 + $0x80] sm:$0xff]
    %v4394 = vld [vmem:[%s4376 + $0x88] sm:$0xff]
    %v4395 = vld [vmem:[%s4376 + $0x90] sm:$0xff]
    %v4396 = vld [vmem:[%s4376 + $0x98] sm:$0xff]
    %v4397 = vld [vmem:[%s4376 + $0xa0] sm:$0xff]
    %v4398 = vld [vmem:[%s4376 + $0xa8] sm:$0xff]
    %v4399 = vld [vmem:[%s4376 + $0xb0] sm:$0xff]
    %v4400 = vld [vmem:[%s4376 + $0xb8] sm:$0xff]
    %v4401 = vld [vmem:[%s4376 + $0xc0] sm:$0xff]
    %v4402 = vld [vmem:[%s4376 + $0xc8] sm:$0xff]
    %v4403 = vld [vmem:[%s4376 + $0xd0] sm:$0xff]
    %v4404 = vld [vmem:[%s4376 + $0xd8] sm:$0xff]
    %v4405 = vld [vmem:[%s4376 + $0xe0] sm:$0xff]
    %v4406 = vld [vmem:[%s4376 + $0xe8] sm:$0xff]
    %v4407 = vld [vmem:[%s4376 + $0xf0] sm:$0xff]
    %v4408 = vld [vmem:[%s4376 + $0xf8] sm:$0xff]
    %v4409 = vld [vmem:[%s4376 + $0x100] sm:$0xff]
    %v4410 = vld [vmem:[%s4376 + $0x108] sm:$0xff]
    %v4411 = vld [vmem:[%s4376 + $0x110] sm:$0xff]
    %v4412 = vld [vmem:[%s4376 + $0x118] sm:$0xff]
    %v4413 = vld [vmem:[%s4376 + $0x120] sm:$0xff]
    %v4414 = vld [vmem:[%s4376 + $0x128] sm:$0xff]
    %v4415 = vld [vmem:[%s4376 + $0x130] sm:$0xff]
    %v4416 = vld [vmem:[%s4376 + $0x138] sm:$0xff]
    %v4417 = vld [vmem:[%s4376 + $0x140] sm:$0xff]
    %v4418 = vld [vmem:[%s4376 + $0x148] sm:$0xff]
    %v4419 = vld [vmem:[%s4376 + $0x150] sm:$0xff]
    %v4420 = vld [vmem:[%s4376 + $0x158] sm:$0xff]
    %v4421 = vld [vmem:[%s4376 + $0x160] sm:$0xff]
    %v4422 = vld [vmem:[%s4376 + $0x168] sm:$0xff]
    %v4423 = vld [vmem:[%s4376 + $0x170] sm:$0xff]
    %v4424 = vld [vmem:[%s4376 + $0x178] sm:$0xff]
    %v4425 = vld [vmem:[%s4376 + $0x180] sm:$0xff]
    %v4426 = vld [vmem:[%s4376 + $0x188] sm:$0xff]
    %v4427 = vld [vmem:[%s4376 + $0x190] sm:$0xff]
    %v4428 = vld [vmem:[%s4376 + $0x198] sm:$0xff]
    %v4429 = vld [vmem:[%s4376 + $0x1a0] sm:$0xff]
    %v4430 = vld [vmem:[%s4376 + $0x1a8] sm:$0xff]
    %v4431 = vld [vmem:[%s4376 + $0x1b0] sm:$0xff]
    %v4432 = vld [vmem:[%s4376 + $0x1b8] sm:$0xff]
    %v4433 = vld [vmem:[%s4376 + $0x1c0] sm:$0xff]
    %v4434 = vld [vmem:[%s4376 + $0x1c8] sm:$0xff]
    %v4435 = vld [vmem:[%s4376 + $0x1d0] sm:$0xff]
    %v4436 = vld [vmem:[%s4376 + $0x1d8] sm:$0xff]
    %v4437 = vld [vmem:[%s4376 + $0x1e0] sm:$0xff]
    %v4438 = vld [vmem:[%s4376 + $0x1e8] sm:$0xff]
    %v4439 = vld [vmem:[%s4376 + $0x1f0] sm:$0xff]
    %v4440 = vld [vmem:[%s4376 + $0x1f8] sm:$0xff]
    %v4505 = vunpack.c.l.b16 %v4377
    %v4506 = vunpack.c.h.b16 %v4377
    %v4507 = vunpack.c.l.b16 %v4378
    %v4508 = vunpack.c.h.b16 %v4378
    %v4509 = vunpack.c.l.b16 %v4379
    %v4510 = vunpack.c.h.b16 %v4379
    %v4511 = vunpack.c.l.b16 %v4380
    %v4512 = vunpack.c.h.b16 %v4380
    %v4513 = vunpack.c.l.b16 %v4381
    %v4514 = vunpack.c.h.b16 %v4381
    %v4515 = vunpack.c.l.b16 %v4382
    %v4516 = vunpack.c.h.b16 %v4382
    %v4517 = vunpack.c.l.b16 %v4383
    %v4518 = vunpack.c.h.b16 %v4383
    %v4519 = vunpack.c.l.b16 %v4384
    %v4520 = vunpack.c.h.b16 %v4384
    %v4521 = vunpack.c.l.b16 %v4385
    %v4522 = vunpack.c.h.b16 %v4385
    %v4523 = vunpack.c.l.b16 %v4386
    %v4524 = vunpack.c.h.b16 %v4386
    %v4525 = vunpack.c.l.b16 %v4387
    %v4526 = vunpack.c.h.b16 %v4387
    %v4527 = vunpack.c.l.b16 %v4388
    %v4528 = vunpack.c.h.b16 %v4388
    %v4529 = vunpack.c.l.b16 %v4389
    %v4530 = vunpack.c.h.b16 %v4389
    %v4531 = vunpack.c.l.b16 %v4390
    %v4532 = vunpack.c.h.b16 %v4390
    %v4533 = vunpack.c.l.b16 %v4391
    %v4534 = vunpack.c.h.b16 %v4391
    %v4535 = vunpack.c.l.b16 %v4392
    %v4536 = vunpack.c.h.b16 %v4392
    %v4537 = vunpack.c.l.b16 %v4393
    %v4538 = vunpack.c.h.b16 %v4393
    %v4539 = vunpack.c.l.b16 %v4394
    %v4540 = vunpack.c.h.b16 %v4394
    %v4541 = vunpack.c.l.b16 %v4395
    %v4542 = vunpack.c.h.b16 %v4395
    %v4543 = vunpack.c.l.b16 %v4396
    %v4544 = vunpack.c.h.b16 %v4396
    %v4545 = vunpack.c.l.b16 %v4397
    %v4546 = vunpack.c.h.b16 %v4397
    %v4547 = vunpack.c.l.b16 %v4398
    %v4548 = vunpack.c.h.b16 %v4398
    %v4549 = vunpack.c.l.b16 %v4399
    %v4550 = vunpack.c.h.b16 %v4399
    %v4551 = vunpack.c.l.b16 %v4400
    %v4552 = vunpack.c.h.b16 %v4400
    %v4553 = vunpack.c.l.b16 %v4401
    %v4554 = vunpack.c.h.b16 %v4401
    %v4555 = vunpack.c.l.b16 %v4402
    %v4556 = vunpack.c.h.b16 %v4402
    %v4557 = vunpack.c.l.b16 %v4403
    %v4558 = vunpack.c.h.b16 %v4403
    %v4559 = vunpack.c.l.b16 %v4404
    %v4560 = vunpack.c.h.b16 %v4404
    %v4561 = vunpack.c.l.b16 %v4405
    %v4562 = vunpack.c.h.b16 %v4405
    %v4563 = vunpack.c.l.b16 %v4406
    %v4564 = vunpack.c.h.b16 %v4406
    %v4565 = vunpack.c.l.b16 %v4407
    %v4566 = vunpack.c.h.b16 %v4407
    %v4567 = vunpack.c.l.b16 %v4408
    %v4568 = vunpack.c.h.b16 %v4408
    %v4569 = vunpack.c.l.b16 %v4409
    %v4570 = vunpack.c.h.b16 %v4409
    %v4571 = vunpack.c.l.b16 %v4410
    %v4572 = vunpack.c.h.b16 %v4410
    %v4573 = vunpack.c.l.b16 %v4411
    %v4574 = vunpack.c.h.b16 %v4411
    %v4575 = vunpack.c.l.b16 %v4412
    %v4576 = vunpack.c.h.b16 %v4412
    %v4577 = vunpack.c.l.b16 %v4413
    %v4578 = vunpack.c.h.b16 %v4413
    %v4579 = vunpack.c.l.b16 %v4414
    %v4580 = vunpack.c.h.b16 %v4414
    %v4581 = vunpack.c.l.b16 %v4415
    %v4582 = vunpack.c.h.b16 %v4415
    %v4583 = vunpack.c.l.b16 %v4416
    %v4584 = vunpack.c.h.b16 %v4416
    %v4585 = vunpack.c.l.b16 %v4417
    %v4586 = vunpack.c.h.b16 %v4417
    %v4587 = vunpack.c.l.b16 %v4418
    %v4588 = vunpack.c.h.b16 %v4418
    %v4589 = vunpack.c.l.b16 %v4419
    %v4590 = vunpack.c.h.b16 %v4419
    %v4591 = vunpack.c.l.b16 %v4420
    %v4592 = vunpack.c.h.b16 %v4420
    %v4593 = vunpack.c.l.b16 %v4421
    %v4594 = vunpack.c.h.b16 %v4421
    %v4595 = vunpack.c.l.b16 %v4422
    %v4596 = vunpack.c.h.b16 %v4422
    %v4597 = vunpack.c.l.b16 %v4423
    %v4598 = vunpack.c.h.b16 %v4423
    %v4599 = vunpack.c.l.b16 %v4424
    %v4600 = vunpack.c.h.b16 %v4424
    %v4601 = vunpack.c.l.b16 %v4425
    %v4602 = vunpack.c.h.b16 %v4425
    %v4603 = vunpack.c.l.b16 %v4426
    %v4604 = vunpack.c.h.b16 %v4426
    %v4605 = vunpack.c.l.b16 %v4427
    %v4606 = vunpack.c.h.b16 %v4427
    %v4607 = vunpack.c.l.b16 %v4428
    %v4608 = vunpack.c.h.b16 %v4428
    %v4609 = vunpack.c.l.b16 %v4429
    %v4610 = vunpack.c.h.b16 %v4429
    %v4611 = vunpack.c.l.b16 %v4430
    %v4612 = vunpack.c.h.b16 %v4430
    %v4613 = vunpack.c.l.b16 %v4431
    %v4614 = vunpack.c.h.b16 %v4431
    %v4615 = vunpack.c.l.b16 %v4432
    %v4616 = vunpack.c.h.b16 %v4432
    %v4617 = vunpack.c.l.b16 %v4433
    %v4618 = vunpack.c.h.b16 %v4433
    %v4619 = vunpack.c.l.b16 %v4434
    %v4620 = vunpack.c.h.b16 %v4434
    %v4621 = vunpack.c.l.b16 %v4435
    %v4622 = vunpack.c.h.b16 %v4435
    %v4623 = vunpack.c.l.b16 %v4436
    %v4624 = vunpack.c.h.b16 %v4436
    %v4625 = vunpack.c.l.b16 %v4437
    %v4626 = vunpack.c.h.b16 %v4437
    %v4627 = vunpack.c.l.b16 %v4438
    %v4628 = vunpack.c.h.b16 %v4438
    %v4629 = vunpack.c.l.b16 %v4439
    %v4630 = vunpack.c.h.b16 %v4439
    %v4631 = vunpack.c.l.b16 %v4440
    %v4632 = vunpack.c.h.b16 %v4440
    %v4633 = vpack.c.b16 %v4513, %v4505
    %v4634 = vpack.c.b16 %v4514, %v4506
    %v4635 = vpack.c.b16 %v4515, %v4507
    %v4636 = vpack.c.b16 %v4516, %v4508
    %v4637 = vpack.c.b16 %v4517, %v4509
    %v4638 = vpack.c.b16 %v4518, %v4510
    %v4639 = vpack.c.b16 %v4519, %v4511
    %v4640 = vpack.c.b16 %v4520, %v4512
    %v4641 = vpack.c.b16 %v4529, %v4521
    %v4642 = vpack.c.b16 %v4530, %v4522
    %v4643 = vpack.c.b16 %v4531, %v4523
    %v4644 = vpack.c.b16 %v4532, %v4524
    %v4645 = vpack.c.b16 %v4533, %v4525
    %v4646 = vpack.c.b16 %v4534, %v4526
    %v4647 = vpack.c.b16 %v4535, %v4527
    %v4648 = vpack.c.b16 %v4536, %v4528
    %v4649 = vpack.c.b16 %v4545, %v4537
    %v4650 = vpack.c.b16 %v4546, %v4538
    %v4651 = vpack.c.b16 %v4547, %v4539
    %v4652 = vpack.c.b16 %v4548, %v4540
    %v4653 = vpack.c.b16 %v4549, %v4541
    %v4654 = vpack.c.b16 %v4550, %v4542
    %v4655 = vpack.c.b16 %v4551, %v4543
    %v4656 = vpack.c.b16 %v4552, %v4544
    %v4657 = vpack.c.b16 %v4561, %v4553
    %v4658 = vpack.c.b16 %v4562, %v4554
    %v4659 = vpack.c.b16 %v4563, %v4555
    %v4660 = vpack.c.b16 %v4564, %v4556
    %v4661 = vpack.c.b16 %v4565, %v4557
    %v4662 = vpack.c.b16 %v4566, %v4558
    %v4663 = vpack.c.b16 %v4567, %v4559
    %v4664 = vpack.c.b16 %v4568, %v4560
    %v4665 = vpack.c.b16 %v4577, %v4569
    %v4666 = vpack.c.b16 %v4578, %v4570
    %v4667 = vpack.c.b16 %v4579, %v4571
    %v4668 = vpack.c.b16 %v4580, %v4572
    %v4669 = vpack.c.b16 %v4581, %v4573
    %v4670 = vpack.c.b16 %v4582, %v4574
    %v4671 = vpack.c.b16 %v4583, %v4575
    %v4672 = vpack.c.b16 %v4584, %v4576
    %v4673 = vpack.c.b16 %v4593, %v4585
    %v4674 = vpack.c.b16 %v4594, %v4586
    %v4675 = vpack.c.b16 %v4595, %v4587
    %v4676 = vpack.c.b16 %v4596, %v4588
    %v4677 = vpack.c.b16 %v4597, %v4589
    %v4678 = vpack.c.b16 %v4598, %v4590
    %v4679 = vpack.c.b16 %v4599, %v4591
    %v4680 = vpack.c.b16 %v4600, %v4592
    %v4681 = vpack.c.b16 %v4609, %v4601
    %v4682 = vpack.c.b16 %v4610, %v4602
    %v4683 = vpack.c.b16 %v4611, %v4603
    %v4684 = vpack.c.b16 %v4612, %v4604
    %v4685 = vpack.c.b16 %v4613, %v4605
    %v4686 = vpack.c.b16 %v4614, %v4606
    %v4687 = vpack.c.b16 %v4615, %v4607
    %v4688 = vpack.c.b16 %v4616, %v4608
    %v4689 = vpack.c.b16 %v4625, %v4617
    %v4690 = vpack.c.b16 %v4626, %v4618
    %v4691 = vpack.c.b16 %v4627, %v4619
    %v4692 = vpack.c.b16 %v4628, %v4620
    %v4693 = vpack.c.b16 %v4629, %v4621
    %v4694 = vpack.c.b16 %v4630, %v4622
    %v4695 = vpack.c.b16 %v4631, %v4623
    %v4696 = vpack.c.b16 %v4632, %v4624
    %4761 = vmatprep.subr.bf16.mxu0 %v4690
    %4762 = vmatpush1.bf16.msra.mxu0 %v4689
    %4763 = vmatprep.subr.bf16.mxu0 %v4682
    %4764 = vmatpush1.bf16.msra.mxu0 %v4681
    %4765 = vmatprep.subr.bf16.mxu0 %v4674
    %4766 = vmatpush1.bf16.msra.mxu0 %v4673
    %4767 = vmatprep.subr.bf16.mxu0 %v4666
    %4768 = vmatpush1.bf16.msra.mxu0 %v4665
    %4769 = vmatprep.subr.bf16.mxu0 %v4658
    %4770 = vmatpush1.bf16.msra.mxu0 %v4657
    %4771 = vmatprep.subr.bf16.mxu0 %v4650
    %4772 = vmatpush1.bf16.msra.mxu0 %v4649
    %4773 = vmatprep.subr.bf16.mxu0 %v4642
    %4774 = vmatpush1.bf16.msra.mxu0 %v4641
    %4775 = vmatprep.subr.bf16.mxu0 %v4634
    %4776 = vmatpush1.bf16.msra.mxu0 %v4633
    %4777 = vmatprep.subr.bf16.mxu0 0
    %4778 = vmatpush2.bf16.msra.mxu0 0
    %4779 = vmatprep.subr.bf16.mxu0 0
    %4780 = vmatpush2.bf16.msra.mxu0 0
    %4781 = vmatprep.subr.bf16.mxu0 0
    %4782 = vmatpush2.bf16.msra.mxu0 0
    %4783 = vmatprep.subr.bf16.mxu0 0
    %4784 = vmatpush2.bf16.msra.mxu0 0
    %4785 = vmatprep.subr.bf16.mxu0 0
    %4786 = vmatpush2.bf16.msra.mxu0 0
    %4787 = vmatprep.subr.bf16.mxu0 0
    %4788 = vmatpush2.bf16.msra.mxu0 0
    %4789 = vmatprep.subr.bf16.mxu0 0
    %4790 = vmatpush2.bf16.msra.mxu0 0
    %4791 = vmatprep.subr.bf16.mxu0 0
    %4792 = vmatpush2.bf16.msra.mxu0 0
    %4793 = vmatprep.mubr.bf16.mxu0 0
    %4794 = vmatmul.mubr.bf16.gmra.mxu0 %v4375
    %v4795 = vpop.f32.mrf.mxu0
    %v4796 = vadd.f32 0.0, %v4795
    %v4797 = vpop.f32.mrf.mxu0
    %v4798 = vadd.f32 0.0, %v4797
    %v4799 = vpop.f32.mrf.mxu0
    %v4800 = vpop.f32.mrf.mxu0
    %4801 = vdwg.mxu0
    %4802 = vmatprep.subr.bf16.mxu0 %v4692
    %4803 = vmatpush1.bf16.msra.mxu0 %v4691
    %4804 = vmatprep.subr.bf16.mxu0 %v4684
    %4805 = vmatpush1.bf16.msra.mxu0 %v4683
    %4806 = vmatprep.subr.bf16.mxu0 %v4676
    %4807 = vmatpush1.bf16.msra.mxu0 %v4675
    %4808 = vmatprep.subr.bf16.mxu0 %v4668
    %4809 = vmatpush1.bf16.msra.mxu0 %v4667
    %4810 = vmatprep.subr.bf16.mxu0 %v4660
    %4811 = vmatpush1.bf16.msra.mxu0 %v4659
    %4812 = vmatprep.subr.bf16.mxu0 %v4652
    %4813 = vmatpush1.bf16.msra.mxu0 %v4651
    %4814 = vmatprep.subr.bf16.mxu0 %v4644
    %4815 = vmatpush1.bf16.msra.mxu0 %v4643
    %4816 = vmatprep.subr.bf16.mxu0 %v4636
    %4817 = vmatpush1.bf16.msra.mxu0 %v4635
    %4818 = vmatprep.subr.bf16.mxu0 0
    %4819 = vmatpush2.bf16.msra.mxu0 0
    %4820 = vmatprep.subr.bf16.mxu0 0
    %4821 = vmatpush2.bf16.msra.mxu0 0
    %4822 = vmatprep.subr.bf16.mxu0 0
    %4823 = vmatpush2.bf16.msra.mxu0 0
    %4824 = vmatprep.subr.bf16.mxu0 0
    %4825 = vmatpush2.bf16.msra.mxu0 0
    %4826 = vmatprep.subr.bf16.mxu0 0
    %4827 = vmatpush2.bf16.msra.mxu0 0
    %4828 = vmatprep.subr.bf16.mxu0 0
    %4829 = vmatpush2.bf16.msra.mxu0 0
    %4830 = vmatprep.subr.bf16.mxu0 0
    %4831 = vmatpush2.bf16.msra.mxu0 0
    %4832 = vmatprep.subr.bf16.mxu0 0
    %4833 = vmatpush2.bf16.msra.mxu0 0
    %4834 = vmatprep.mubr.bf16.mxu0 0
    %4835 = vmatmul.mubr.bf16.gmra.mxu0 %v4375
    %v4836 = vpop.f32.mrf.mxu0
    %v4837 = vadd.f32 0.0, %v4836
    %v4838 = vpop.f32.mrf.mxu0
    %v4839 = vadd.f32 0.0, %v4838
    %v4840 = vpop.f32.mrf.mxu0
    %v4841 = vpop.f32.mrf.mxu0
    %4842 = vdwg.mxu0
    %4843 = vmatprep.subr.bf16.mxu0 %v4694
    %4844 = vmatpush1.bf16.msra.mxu0 %v4693
    %4845 = vmatprep.subr.bf16.mxu0 %v4686
    %4846 = vmatpush1.bf16.msra.mxu0 %v4685
    %4847 = vmatprep.subr.bf16.mxu0 %v4678
    %4848 = vmatpush1.bf16.msra.mxu0 %v4677
    %4849 = vmatprep.subr.bf16.mxu0 %v4670
    %4850 = vmatpush1.bf16.msra.mxu0 %v4669
    %4851 = vmatprep.subr.bf16.mxu0 %v4662
    %4852 = vmatpush1.bf16.msra.mxu0 %v4661
    %4853 = vmatprep.subr.bf16.mxu0 %v4654
    %4854 = vmatpush1.bf16.msra.mxu0 %v4653
    %4855 = vmatprep.subr.bf16.mxu0 %v4646
    %4856 = vmatpush1.bf16.msra.mxu0 %v4645
    %4857 = vmatprep.subr.bf16.mxu0 %v4638
    %4858 = vmatpush1.bf16.msra.mxu0 %v4637
    %4859 = vmatprep.subr.bf16.mxu0 0
    %4860 = vmatpush2.bf16.msra.mxu0 0
    %4861 = vmatprep.subr.bf16.mxu0 0
    %4862 = vmatpush2.bf16.msra.mxu0 0
    %4863 = vmatprep.subr.bf16.mxu0 0
    %4864 = vmatpush2.bf16.msra.mxu0 0
    %4865 = vmatprep.subr.bf16.mxu0 0
    %4866 = vmatpush2.bf16.msra.mxu0 0
    %4867 = vmatprep.subr.bf16.mxu0 0
    %4868 = vmatpush2.bf16.msra.mxu0 0
    %4869 = vmatprep.subr.bf16.mxu0 0
    %4870 = vmatpush2.bf16.msra.mxu0 0
    %4871 = vmatprep.subr.bf16.mxu0 0
    %4872 = vmatpush2.bf16.msra.mxu0 0
    %4873 = vmatprep.subr.bf16.mxu0 0
    %4874 = vmatpush2.bf16.msra.mxu0 0
    %4875 = vmatprep.mubr.bf16.mxu0 0
    %4876 = vmatmul.mubr.bf16.gmra.mxu0 %v4375
    %v4877 = vpop.f32.mrf.mxu0
    %v4878 = vadd.f32 0.0, %v4877
    %v4879 = vpop.f32.mrf.mxu0
    %v4880 = vadd.f32 0.0, %v4879
    %v4881 = vpop.f32.mrf.mxu0
    %v4882 = vpop.f32.mrf.mxu0
    %4883 = vdwg.mxu0
    %4884 = vmatprep.subr.bf16.mxu0 %v4696
    %4885 = vmatpush1.bf16.msra.mxu0 %v4695
    %4886 = vmatprep.subr.bf16.mxu0 %v4688
    %4887 = vmatpush1.bf16.msra.mxu0 %v4687
    %4888 = vmatprep.subr.bf16.mxu0 %v4680
    %4889 = vmatpush1.bf16.msra.mxu0 %v4679
    %4890 = vmatprep.subr.bf16.mxu0 %v4672
    %4891 = vmatpush1.bf16.msra.mxu0 %v4671
    %4892 = vmatprep.subr.bf16.mxu0 %v4664
    %4893 = vmatpush1.bf16.msra.mxu0 %v4663
    %4894 = vmatprep.subr.bf16.mxu0 %v4656
    %4895 = vmatpush1.bf16.msra.mxu0 %v4655
    %4896 = vmatprep.subr.bf16.mxu0 %v4648
    %4897 = vmatpush1.bf16.msra.mxu0 %v4647
    %4898 = vmatprep.subr.bf16.mxu0 %v4640
    %4899 = vmatpush1.bf16.msra.mxu0 %v4639
    %4900 = vmatprep.subr.bf16.mxu0 0
    %4901 = vmatpush2.bf16.msra.mxu0 0
    %4902 = vmatprep.subr.bf16.mxu0 0
    %4903 = vmatpush2.bf16.msra.mxu0 0
    %4904 = vmatprep.subr.bf16.mxu0 0
    %4905 = vmatpush2.bf16.msra.mxu0 0
    %4906 = vmatprep.subr.bf16.mxu0 0
    %4907 = vmatpush2.bf16.msra.mxu0 0
    %4908 = vmatprep.subr.bf16.mxu0 0
    %4909 = vmatpush2.bf16.msra.mxu0 0
    %4910 = vmatprep.subr.bf16.mxu0 0
    %4911 = vmatpush2.bf16.msra.mxu0 0
    %4912 = vmatprep.subr.bf16.mxu0 0
    %4913 = vmatpush2.bf16.msra.mxu0 0
    %4914 = vmatprep.subr.bf16.mxu0 0
    %4915 = vmatpush2.bf16.msra.mxu0 0
    %4916 = vmatprep.mubr.bf16.mxu0 0
    %4917 = vmatmul.mubr.bf16.gmra.mxu0 %v4375
    %v4918 = vpop.f32.mrf.mxu0
    %v4919 = vadd.f32 0.0, %v4918
    %v4920 = vpop.f32.mrf.mxu0
    %v4921 = vadd.f32 0.0, %v4920
    %v4922 = vpop.f32.mrf.mxu0
    %v4923 = vpop.f32.mrf.mxu0
    %4924 = vdwg.mxu0
    %v4925 = vadd.f32 %v4321, %v4796
    %v4926 = vadd.f32 %v4322, %v4798
    %v4927 = vadd.f32 %v4323, %v4837
    %v4928 = vadd.f32 %v4324, %v4839
    %v4929 = vadd.f32 %v4325, %v4878
    %v4930 = vadd.f32 %v4326, %v4880
    %v4931 = vadd.f32 %v4327, %v4919
    %v4932 = vadd.f32 %v4328, %v4921
    %s4933 = scalar_lea.vmem %s0, 32
    %v4934 = vld [vmem:[%s4933] sm:$0xf]
    %v4936 = vsel %vm119, %v4934, 0
    %4938 = vmatprep.subr.bf16.mxu0 0
    %4939 = vmatpush1.bf16.msra.mxu0 0
    %4940 = vmatprep.subr.bf16.mxu0 0
    %4941 = vmatpush1.bf16.msra.mxu0 0
    %4942 = vmatprep.subr.bf16.mxu0 0
    %4943 = vmatpush1.bf16.msra.mxu0 0
    %4944 = vmatprep.subr.bf16.mxu0 0
    %4945 = vmatpush1.bf16.msra.mxu0 0
    %4946 = vmatprep.subr.bf16.mxu0 0
    %4947 = vmatpush1.bf16.msra.mxu0 0
    %4948 = vmatprep.subr.bf16.mxu0 0
    %4949 = vmatpush1.bf16.msra.mxu0 0
    %4950 = vmatprep.subr.bf16.mxu0 0
    %4951 = vmatpush1.bf16.msra.mxu0 0
    %4952 = vmatprep.subr.bf16.mxu0 0
    %4953 = vmatpush1.bf16.msra.mxu0 %v117
    %4954 = vmatprep.subr.bf16.mxu0 0
    %4955 = vmatpush2.bf16.msra.mxu0 0
    %4956 = vmatprep.subr.bf16.mxu0 0
    %4957 = vmatpush2.bf16.msra.mxu0 0
    %4958 = vmatprep.subr.bf16.mxu0 0
    %4959 = vmatpush2.bf16.msra.mxu0 0
    %4960 = vmatprep.subr.bf16.mxu0 0
    %4961 = vmatpush2.bf16.msra.mxu0 0
    %4962 = vmatprep.subr.bf16.mxu0 0
    %4963 = vmatpush2.bf16.msra.mxu0 0
    %4964 = vmatprep.subr.bf16.mxu0 0
    %4965 = vmatpush2.bf16.msra.mxu0 0
    %4966 = vmatprep.subr.bf16.mxu0 0
    %4967 = vmatpush2.bf16.msra.mxu0 0
    %4968 = vmatprep.subr.bf16.mxu0 0
    %4969 = vmatpush2.bf16.msra.mxu0 0
    %4970 = vmatprep.mubr.bf16.mxu0 0
    %4971 = vmatmul.mubr.bf16.gmra.mxu0 %v4936
    %v4972 = vpop.f32.mrf.mxu0
    %v4973 = vadd.f32 %v111, %v4972
    %v4974 = vpop.f32.mrf.mxu0
    %v4975 = vpop.f32.mrf.mxu0
    %v4976 = vpop.f32.mrf.mxu0
    %4977 = vdwg.mxu0
    %v4978 = vmax.f32 %v4973, 0.0
    %v4979 = vpack.c.bf16 %v4978, %v4978
    %s4980 = scalar_lea.vmem [#allocation6], 4096
    %v4981 = vld [vmem:[%s4980] sm:$0xff]
    %v4982 = vld [vmem:[%s4980 + $0x8] sm:$0xff]
    %v4983 = vld [vmem:[%s4980 + $0x10] sm:$0xff]
    %v4984 = vld [vmem:[%s4980 + $0x18] sm:$0xff]
    %v4985 = vld [vmem:[%s4980 + $0x20] sm:$0xff]
    %v4986 = vld [vmem:[%s4980 + $0x28] sm:$0xff]
    %v4987 = vld [vmem:[%s4980 + $0x30] sm:$0xff]
    %v4988 = vld [vmem:[%s4980 + $0x38] sm:$0xff]
    %v4989 = vld [vmem:[%s4980 + $0x40] sm:$0xff]
    %v4990 = vld [vmem:[%s4980 + $0x48] sm:$0xff]
    %v4991 = vld [vmem:[%s4980 + $0x50] sm:$0xff]
    %v4992 = vld [vmem:[%s4980 + $0x58] sm:$0xff]
    %v4993 = vld [vmem:[%s4980 + $0x60] sm:$0xff]
    %v4994 = vld [vmem:[%s4980 + $0x68] sm:$0xff]
    %v4995 = vld [vmem:[%s4980 + $0x70] sm:$0xff]
    %v4996 = vld [vmem:[%s4980 + $0x78] sm:$0xff]
    %v4997 = vld [vmem:[%s4980 + $0x80] sm:$0xff]
    %v4998 = vld [vmem:[%s4980 + $0x88] sm:$0xff]
    %v4999 = vld [vmem:[%s4980 + $0x90] sm:$0xff]
    %v5000 = vld [vmem:[%s4980 + $0x98] sm:$0xff]
    %v5001 = vld [vmem:[%s4980 + $0xa0] sm:$0xff]
    %v5002 = vld [vmem:[%s4980 + $0xa8] sm:$0xff]
    %v5003 = vld [vmem:[%s4980 + $0xb0] sm:$0xff]
    %v5004 = vld [vmem:[%s4980 + $0xb8] sm:$0xff]
    %v5005 = vld [vmem:[%s4980 + $0xc0] sm:$0xff]
    %v5006 = vld [vmem:[%s4980 + $0xc8] sm:$0xff]
    %v5007 = vld [vmem:[%s4980 + $0xd0] sm:$0xff]
    %v5008 = vld [vmem:[%s4980 + $0xd8] sm:$0xff]
    %v5009 = vld [vmem:[%s4980 + $0xe0] sm:$0xff]
    %v5010 = vld [vmem:[%s4980 + $0xe8] sm:$0xff]
    %v5011 = vld [vmem:[%s4980 + $0xf0] sm:$0xff]
    %v5012 = vld [vmem:[%s4980 + $0xf8] sm:$0xff]
    %v5013 = vld [vmem:[%s4980 + $0x100] sm:$0xff]
    %v5014 = vld [vmem:[%s4980 + $0x108] sm:$0xff]
    %v5015 = vld [vmem:[%s4980 + $0x110] sm:$0xff]
    %v5016 = vld [vmem:[%s4980 + $0x118] sm:$0xff]
    %v5017 = vld [vmem:[%s4980 + $0x120] sm:$0xff]
    %v5018 = vld [vmem:[%s4980 + $0x128] sm:$0xff]
    %v5019 = vld [vmem:[%s4980 + $0x130] sm:$0xff]
    %v5020 = vld [vmem:[%s4980 + $0x138] sm:$0xff]
    %v5021 = vld [vmem:[%s4980 + $0x140] sm:$0xff]
    %v5022 = vld [vmem:[%s4980 + $0x148] sm:$0xff]
    %v5023 = vld [vmem:[%s4980 + $0x150] sm:$0xff]
    %v5024 = vld [vmem:[%s4980 + $0x158] sm:$0xff]
    %v5025 = vld [vmem:[%s4980 + $0x160] sm:$0xff]
    %v5026 = vld [vmem:[%s4980 + $0x168] sm:$0xff]
    %v5027 = vld [vmem:[%s4980 + $0x170] sm:$0xff]
    %v5028 = vld [vmem:[%s4980 + $0x178] sm:$0xff]
    %v5029 = vld [vmem:[%s4980 + $0x180] sm:$0xff]
    %v5030 = vld [vmem:[%s4980 + $0x188] sm:$0xff]
    %v5031 = vld [vmem:[%s4980 + $0x190] sm:$0xff]
    %v5032 = vld [vmem:[%s4980 + $0x198] sm:$0xff]
    %v5033 = vld [vmem:[%s4980 + $0x1a0] sm:$0xff]
    %v5034 = vld [vmem:[%s4980 + $0x1a8] sm:$0xff]
    %v5035 = vld [vmem:[%s4980 + $0x1b0] sm:$0xff]
    %v5036 = vld [vmem:[%s4980 + $0x1b8] sm:$0xff]
    %v5037 = vld [vmem:[%s4980 + $0x1c0] sm:$0xff]
    %v5038 = vld [vmem:[%s4980 + $0x1c8] sm:$0xff]
    %v5039 = vld [vmem:[%s4980 + $0x1d0] sm:$0xff]
    %v5040 = vld [vmem:[%s4980 + $0x1d8] sm:$0xff]
    %v5041 = vld [vmem:[%s4980 + $0x1e0] sm:$0xff]
    %v5042 = vld [vmem:[%s4980 + $0x1e8] sm:$0xff]
    %v5043 = vld [vmem:[%s4980 + $0x1f0] sm:$0xff]
    %v5044 = vld [vmem:[%s4980 + $0x1f8] sm:$0xff]
    %v5109 = vunpack.c.l.b16 %v4981
    %v5110 = vunpack.c.h.b16 %v4981
    %v5111 = vunpack.c.l.b16 %v4982
    %v5112 = vunpack.c.h.b16 %v4982
    %v5113 = vunpack.c.l.b16 %v4983
    %v5114 = vunpack.c.h.b16 %v4983
    %v5115 = vunpack.c.l.b16 %v4984
    %v5116 = vunpack.c.h.b16 %v4984
    %v5117 = vunpack.c.l.b16 %v4985
    %v5118 = vunpack.c.h.b16 %v4985
    %v5119 = vunpack.c.l.b16 %v4986
    %v5120 = vunpack.c.h.b16 %v4986
    %v5121 = vunpack.c.l.b16 %v4987
    %v5122 = vunpack.c.h.b16 %v4987
    %v5123 = vunpack.c.l.b16 %v4988
    %v5124 = vunpack.c.h.b16 %v4988
    %v5125 = vunpack.c.l.b16 %v4989
    %v5126 = vunpack.c.h.b16 %v4989
    %v5127 = vunpack.c.l.b16 %v4990
    %v5128 = vunpack.c.h.b16 %v4990
    %v5129 = vunpack.c.l.b16 %v4991
    %v5130 = vunpack.c.h.b16 %v4991
    %v5131 = vunpack.c.l.b16 %v4992
    %v5132 = vunpack.c.h.b16 %v4992
    %v5133 = vunpack.c.l.b16 %v4993
    %v5134 = vunpack.c.h.b16 %v4993
    %v5135 = vunpack.c.l.b16 %v4994
    %v5136 = vunpack.c.h.b16 %v4994
    %v5137 = vunpack.c.l.b16 %v4995
    %v5138 = vunpack.c.h.b16 %v4995
    %v5139 = vunpack.c.l.b16 %v4996
    %v5140 = vunpack.c.h.b16 %v4996
    %v5141 = vunpack.c.l.b16 %v4997
    %v5142 = vunpack.c.h.b16 %v4997
    %v5143 = vunpack.c.l.b16 %v4998
    %v5144 = vunpack.c.h.b16 %v4998
    %v5145 = vunpack.c.l.b16 %v4999
    %v5146 = vunpack.c.h.b16 %v4999
    %v5147 = vunpack.c.l.b16 %v5000
    %v5148 = vunpack.c.h.b16 %v5000
    %v5149 = vunpack.c.l.b16 %v5001
    %v5150 = vunpack.c.h.b16 %v5001
    %v5151 = vunpack.c.l.b16 %v5002
    %v5152 = vunpack.c.h.b16 %v5002
    %v5153 = vunpack.c.l.b16 %v5003
    %v5154 = vunpack.c.h.b16 %v5003
    %v5155 = vunpack.c.l.b16 %v5004
    %v5156 = vunpack.c.h.b16 %v5004
    %v5157 = vunpack.c.l.b16 %v5005
    %v5158 = vunpack.c.h.b16 %v5005
    %v5159 = vunpack.c.l.b16 %v5006
    %v5160 = vunpack.c.h.b16 %v5006
    %v5161 = vunpack.c.l.b16 %v5007
    %v5162 = vunpack.c.h.b16 %v5007
    %v5163 = vunpack.c.l.b16 %v5008
    %v5164 = vunpack.c.h.b16 %v5008
    %v5165 = vunpack.c.l.b16 %v5009
    %v5166 = vunpack.c.h.b16 %v5009
    %v5167 = vunpack.c.l.b16 %v5010
    %v5168 = vunpack.c.h.b16 %v5010
    %v5169 = vunpack.c.l.b16 %v5011
    %v5170 = vunpack.c.h.b16 %v5011
    %v5171 = vunpack.c.l.b16 %v5012
    %v5172 = vunpack.c.h.b16 %v5012
    %v5173 = vunpack.c.l.b16 %v5013
    %v5174 = vunpack.c.h.b16 %v5013
    %v5175 = vunpack.c.l.b16 %v5014
    %v5176 = vunpack.c.h.b16 %v5014
    %v5177 = vunpack.c.l.b16 %v5015
    %v5178 = vunpack.c.h.b16 %v5015
    %v5179 = vunpack.c.l.b16 %v5016
    %v5180 = vunpack.c.h.b16 %v5016
    %v5181 = vunpack.c.l.b16 %v5017
    %v5182 = vunpack.c.h.b16 %v5017
    %v5183 = vunpack.c.l.b16 %v5018
    %v5184 = vunpack.c.h.b16 %v5018
    %v5185 = vunpack.c.l.b16 %v5019
    %v5186 = vunpack.c.h.b16 %v5019
    %v5187 = vunpack.c.l.b16 %v5020
    %v5188 = vunpack.c.h.b16 %v5020
    %v5189 = vunpack.c.l.b16 %v5021
    %v5190 = vunpack.c.h.b16 %v5021
    %v5191 = vunpack.c.l.b16 %v5022
    %v5192 = vunpack.c.h.b16 %v5022
    %v5193 = vunpack.c.l.b16 %v5023
    %v5194 = vunpack.c.h.b16 %v5023
    %v5195 = vunpack.c.l.b16 %v5024
    %v5196 = vunpack.c.h.b16 %v5024
    %v5197 = vunpack.c.l.b16 %v5025
    %v5198 = vunpack.c.h.b16 %v5025
    %v5199 = vunpack.c.l.b16 %v5026
    %v5200 = vunpack.c.h.b16 %v5026
    %v5201 = vunpack.c.l.b16 %v5027
    %v5202 = vunpack.c.h.b16 %v5027
    %v5203 = vunpack.c.l.b16 %v5028
    %v5204 = vunpack.c.h.b16 %v5028
    %v5205 = vunpack.c.l.b16 %v5029
    %v5206 = vunpack.c.h.b16 %v5029
    %v5207 = vunpack.c.l.b16 %v5030
    %v5208 = vunpack.c.h.b16 %v5030
    %v5209 = vunpack.c.l.b16 %v5031
    %v5210 = vunpack.c.h.b16 %v5031
    %v5211 = vunpack.c.l.b16 %v5032
    %v5212 = vunpack.c.h.b16 %v5032
    %v5213 = vunpack.c.l.b16 %v5033
    %v5214 = vunpack.c.h.b16 %v5033
    %v5215 = vunpack.c.l.b16 %v5034
    %v5216 = vunpack.c.h.b16 %v5034
    %v5217 = vunpack.c.l.b16 %v5035
    %v5218 = vunpack.c.h.b16 %v5035
    %v5219 = vunpack.c.l.b16 %v5036
    %v5220 = vunpack.c.h.b16 %v5036
    %v5221 = vunpack.c.l.b16 %v5037
    %v5222 = vunpack.c.h.b16 %v5037
    %v5223 = vunpack.c.l.b16 %v5038
    %v5224 = vunpack.c.h.b16 %v5038
    %v5225 = vunpack.c.l.b16 %v5039
    %v5226 = vunpack.c.h.b16 %v5039
    %v5227 = vunpack.c.l.b16 %v5040
    %v5228 = vunpack.c.h.b16 %v5040
    %v5229 = vunpack.c.l.b16 %v5041
    %v5230 = vunpack.c.h.b16 %v5041
    %v5231 = vunpack.c.l.b16 %v5042
    %v5232 = vunpack.c.h.b16 %v5042
    %v5233 = vunpack.c.l.b16 %v5043
    %v5234 = vunpack.c.h.b16 %v5043
    %v5235 = vunpack.c.l.b16 %v5044
    %v5236 = vunpack.c.h.b16 %v5044
    %v5237 = vpack.c.b16 %v5117, %v5109
    %v5238 = vpack.c.b16 %v5118, %v5110
    %v5239 = vpack.c.b16 %v5119, %v5111
    %v5240 = vpack.c.b16 %v5120, %v5112
    %v5241 = vpack.c.b16 %v5121, %v5113
    %v5242 = vpack.c.b16 %v5122, %v5114
    %v5243 = vpack.c.b16 %v5123, %v5115
    %v5244 = vpack.c.b16 %v5124, %v5116
    %v5245 = vpack.c.b16 %v5133, %v5125
    %v5246 = vpack.c.b16 %v5134, %v5126
    %v5247 = vpack.c.b16 %v5135, %v5127
    %v5248 = vpack.c.b16 %v5136, %v5128
    %v5249 = vpack.c.b16 %v5137, %v5129
    %v5250 = vpack.c.b16 %v5138, %v5130
    %v5251 = vpack.c.b16 %v5139, %v5131
    %v5252 = vpack.c.b16 %v5140, %v5132
    %v5253 = vpack.c.b16 %v5149, %v5141
    %v5254 = vpack.c.b16 %v5150, %v5142
    %v5255 = vpack.c.b16 %v5151, %v5143
    %v5256 = vpack.c.b16 %v5152, %v5144
    %v5257 = vpack.c.b16 %v5153, %v5145
    %v5258 = vpack.c.b16 %v5154, %v5146
    %v5259 = vpack.c.b16 %v5155, %v5147
    %v5260 = vpack.c.b16 %v5156, %v5148
    %v5261 = vpack.c.b16 %v5165, %v5157
    %v5262 = vpack.c.b16 %v5166, %v5158
    %v5263 = vpack.c.b16 %v5167, %v5159
    %v5264 = vpack.c.b16 %v5168, %v5160
    %v5265 = vpack.c.b16 %v5169, %v5161
    %v5266 = vpack.c.b16 %v5170, %v5162
    %v5267 = vpack.c.b16 %v5171, %v5163
    %v5268 = vpack.c.b16 %v5172, %v5164
    %v5269 = vpack.c.b16 %v5181, %v5173
    %v5270 = vpack.c.b16 %v5182, %v5174
    %v5271 = vpack.c.b16 %v5183, %v5175
    %v5272 = vpack.c.b16 %v5184, %v5176
    %v5273 = vpack.c.b16 %v5185, %v5177
    %v5274 = vpack.c.b16 %v5186, %v5178
    %v5275 = vpack.c.b16 %v5187, %v5179
    %v5276 = vpack.c.b16 %v5188, %v5180
    %v5277 = vpack.c.b16 %v5197, %v5189
    %v5278 = vpack.c.b16 %v5198, %v5190
    %v5279 = vpack.c.b16 %v5199, %v5191
    %v5280 = vpack.c.b16 %v5200, %v5192
    %v5281 = vpack.c.b16 %v5201, %v5193
    %v5282 = vpack.c.b16 %v5202, %v5194
    %v5283 = vpack.c.b16 %v5203, %v5195
    %v5284 = vpack.c.b16 %v5204, %v5196
    %v5285 = vpack.c.b16 %v5213, %v5205
    %v5286 = vpack.c.b16 %v5214, %v5206
    %v5287 = vpack.c.b16 %v5215, %v5207
    %v5288 = vpack.c.b16 %v5216, %v5208
    %v5289 = vpack.c.b16 %v5217, %v5209
    %v5290 = vpack.c.b16 %v5218, %v5210
    %v5291 = vpack.c.b16 %v5219, %v5211
    %v5292 = vpack.c.b16 %v5220, %v5212
    %v5293 = vpack.c.b16 %v5229, %v5221
    %v5294 = vpack.c.b16 %v5230, %v5222
    %v5295 = vpack.c.b16 %v5231, %v5223
    %v5296 = vpack.c.b16 %v5232, %v5224
    %v5297 = vpack.c.b16 %v5233, %v5225
    %v5298 = vpack.c.b16 %v5234, %v5226
    %v5299 = vpack.c.b16 %v5235, %v5227
    %v5300 = vpack.c.b16 %v5236, %v5228
    %5365 = vmatprep.subr.bf16.mxu0 %v5294
    %5366 = vmatpush1.bf16.msra.mxu0 %v5293
    %5367 = vmatprep.subr.bf16.mxu0 %v5286
    %5368 = vmatpush1.bf16.msra.mxu0 %v5285
    %5369 = vmatprep.subr.bf16.mxu0 %v5278
    %5370 = vmatpush1.bf16.msra.mxu0 %v5277
    %5371 = vmatprep.subr.bf16.mxu0 %v5270
    %5372 = vmatpush1.bf16.msra.mxu0 %v5269
    %5373 = vmatprep.subr.bf16.mxu0 %v5262
    %5374 = vmatpush1.bf16.msra.mxu0 %v5261
    %5375 = vmatprep.subr.bf16.mxu0 %v5254
    %5376 = vmatpush1.bf16.msra.mxu0 %v5253
    %5377 = vmatprep.subr.bf16.mxu0 %v5246
    %5378 = vmatpush1.bf16.msra.mxu0 %v5245
    %5379 = vmatprep.subr.bf16.mxu0 %v5238
    %5380 = vmatpush1.bf16.msra.mxu0 %v5237
    %5381 = vmatprep.subr.bf16.mxu0 0
    %5382 = vmatpush2.bf16.msra.mxu0 0
    %5383 = vmatprep.subr.bf16.mxu0 0
    %5384 = vmatpush2.bf16.msra.mxu0 0
    %5385 = vmatprep.subr.bf16.mxu0 0
    %5386 = vmatpush2.bf16.msra.mxu0 0
    %5387 = vmatprep.subr.bf16.mxu0 0
    %5388 = vmatpush2.bf16.msra.mxu0 0
    %5389 = vmatprep.subr.bf16.mxu0 0
    %5390 = vmatpush2.bf16.msra.mxu0 0
    %5391 = vmatprep.subr.bf16.mxu0 0
    %5392 = vmatpush2.bf16.msra.mxu0 0
    %5393 = vmatprep.subr.bf16.mxu0 0
    %5394 = vmatpush2.bf16.msra.mxu0 0
    %5395 = vmatprep.subr.bf16.mxu0 0
    %5396 = vmatpush2.bf16.msra.mxu0 0
    %5397 = vmatprep.mubr.bf16.mxu0 0
    %5398 = vmatmul.mubr.bf16.gmra.mxu0 %v4979
    %v5399 = vpop.f32.mrf.mxu0
    %v5400 = vadd.f32 0.0, %v5399
    %v5401 = vpop.f32.mrf.mxu0
    %v5402 = vadd.f32 0.0, %v5401
    %v5403 = vpop.f32.mrf.mxu0
    %v5404 = vpop.f32.mrf.mxu0
    %5405 = vdwg.mxu0
    %5406 = vmatprep.subr.bf16.mxu0 %v5296
    %5407 = vmatpush1.bf16.msra.mxu0 %v5295
    %5408 = vmatprep.subr.bf16.mxu0 %v5288
    %5409 = vmatpush1.bf16.msra.mxu0 %v5287
    %5410 = vmatprep.subr.bf16.mxu0 %v5280
    %5411 = vmatpush1.bf16.msra.mxu0 %v5279
    %5412 = vmatprep.subr.bf16.mxu0 %v5272
    %5413 = vmatpush1.bf16.msra.mxu0 %v5271
    %5414 = vmatprep.subr.bf16.mxu0 %v5264
    %5415 = vmatpush1.bf16.msra.mxu0 %v5263
    %5416 = vmatprep.subr.bf16.mxu0 %v5256
    %5417 = vmatpush1.bf16.msra.mxu0 %v5255
    %5418 = vmatprep.subr.bf16.mxu0 %v5248
    %5419 = vmatpush1.bf16.msra.mxu0 %v5247
    %5420 = vmatprep.subr.bf16.mxu0 %v5240
    %5421 = vmatpush1.bf16.msra.mxu0 %v5239
    %5422 = vmatprep.subr.bf16.mxu0 0
    %5423 = vmatpush2.bf16.msra.mxu0 0
    %5424 = vmatprep.subr.bf16.mxu0 0
    %5425 = vmatpush2.bf16.msra.mxu0 0
    %5426 = vmatprep.subr.bf16.mxu0 0
    %5427 = vmatpush2.bf16.msra.mxu0 0
    %5428 = vmatprep.subr.bf16.mxu0 0
    %5429 = vmatpush2.bf16.msra.mxu0 0
    %5430 = vmatprep.subr.bf16.mxu0 0
    %5431 = vmatpush2.bf16.msra.mxu0 0
    %5432 = vmatprep.subr.bf16.mxu0 0
    %5433 = vmatpush2.bf16.msra.mxu0 0
    %5434 = vmatprep.subr.bf16.mxu0 0
    %5435 = vmatpush2.bf16.msra.mxu0 0
    %5436 = vmatprep.subr.bf16.mxu0 0
    %5437 = vmatpush2.bf16.msra.mxu0 0
    %5438 = vmatprep.mubr.bf16.mxu0 0
    %5439 = vmatmul.mubr.bf16.gmra.mxu0 %v4979
    %v5440 = vpop.f32.mrf.mxu0
    %v5441 = vadd.f32 0.0, %v5440
    %v5442 = vpop.f32.mrf.mxu0
    %v5443 = vadd.f32 0.0, %v5442
    %v5444 = vpop.f32.mrf.mxu0
    %v5445 = vpop.f32.mrf.mxu0
    %5446 = vdwg.mxu0
    %5447 = vmatprep.subr.bf16.mxu0 %v5298
    %5448 = vmatpush1.bf16.msra.mxu0 %v5297
    %5449 = vmatprep.subr.bf16.mxu0 %v5290
    %5450 = vmatpush1.bf16.msra.mxu0 %v5289
    %5451 = vmatprep.subr.bf16.mxu0 %v5282
    %5452 = vmatpush1.bf16.msra.mxu0 %v5281
    %5453 = vmatprep.subr.bf16.mxu0 %v5274
    %5454 = vmatpush1.bf16.msra.mxu0 %v5273
    %5455 = vmatprep.subr.bf16.mxu0 %v5266
    %5456 = vmatpush1.bf16.msra.mxu0 %v5265
    %5457 = vmatprep.subr.bf16.mxu0 %v5258
    %5458 = vmatpush1.bf16.msra.mxu0 %v5257
    %5459 = vmatprep.subr.bf16.mxu0 %v5250
    %5460 = vmatpush1.bf16.msra.mxu0 %v5249
    %5461 = vmatprep.subr.bf16.mxu0 %v5242
    %5462 = vmatpush1.bf16.msra.mxu0 %v5241
    %5463 = vmatprep.subr.bf16.mxu0 0
    %5464 = vmatpush2.bf16.msra.mxu0 0
    %5465 = vmatprep.subr.bf16.mxu0 0
    %5466 = vmatpush2.bf16.msra.mxu0 0
    %5467 = vmatprep.subr.bf16.mxu0 0
    %5468 = vmatpush2.bf16.msra.mxu0 0
    %5469 = vmatprep.subr.bf16.mxu0 0
    %5470 = vmatpush2.bf16.msra.mxu0 0
    %5471 = vmatprep.subr.bf16.mxu0 0
    %5472 = vmatpush2.bf16.msra.mxu0 0
    %5473 = vmatprep.subr.bf16.mxu0 0
    %5474 = vmatpush2.bf16.msra.mxu0 0
    %5475 = vmatprep.subr.bf16.mxu0 0
    %5476 = vmatpush2.bf16.msra.mxu0 0
    %5477 = vmatprep.subr.bf16.mxu0 0
    %5478 = vmatpush2.bf16.msra.mxu0 0
    %5479 = vmatprep.mubr.bf16.mxu0 0
    %5480 = vmatmul.mubr.bf16.gmra.mxu0 %v4979
    %v5481 = vpop.f32.mrf.mxu0
    %v5482 = vadd.f32 0.0, %v5481
    %v5483 = vpop.f32.mrf.mxu0
    %v5484 = vadd.f32 0.0, %v5483
    %v5485 = vpop.f32.mrf.mxu0
    %v5486 = vpop.f32.mrf.mxu0
    %5487 = vdwg.mxu0
    %5488 = vmatprep.subr.bf16.mxu0 %v5300
    %5489 = vmatpush1.bf16.msra.mxu0 %v5299
    %5490 = vmatprep.subr.bf16.mxu0 %v5292
    %5491 = vmatpush1.bf16.msra.mxu0 %v5291
    %5492 = vmatprep.subr.bf16.mxu0 %v5284
    %5493 = vmatpush1.bf16.msra.mxu0 %v5283
    %5494 = vmatprep.subr.bf16.mxu0 %v5276
    %5495 = vmatpush1.bf16.msra.mxu0 %v5275
    %5496 = vmatprep.subr.bf16.mxu0 %v5268
    %5497 = vmatpush1.bf16.msra.mxu0 %v5267
    %5498 = vmatprep.subr.bf16.mxu0 %v5260
    %5499 = vmatpush1.bf16.msra.mxu0 %v5259
    %5500 = vmatprep.subr.bf16.mxu0 %v5252
    %5501 = vmatpush1.bf16.msra.mxu0 %v5251
    %5502 = vmatprep.subr.bf16.mxu0 %v5244
    %5503 = vmatpush1.bf16.msra.mxu0 %v5243
    %5504 = vmatprep.subr.bf16.mxu0 0
    %5505 = vmatpush2.bf16.msra.mxu0 0
    %5506 = vmatprep.subr.bf16.mxu0 0
    %5507 = vmatpush2.bf16.msra.mxu0 0
    %5508 = vmatprep.subr.bf16.mxu0 0
    %5509 = vmatpush2.bf16.msra.mxu0 0
    %5510 = vmatprep.subr.bf16.mxu0 0
    %5511 = vmatpush2.bf16.msra.mxu0 0
    %5512 = vmatprep.subr.bf16.mxu0 0
    %5513 = vmatpush2.bf16.msra.mxu0 0
    %5514 = vmatprep.subr.bf16.mxu0 0
    %5515 = vmatpush2.bf16.msra.mxu0 0
    %5516 = vmatprep.subr.bf16.mxu0 0
    %5517 = vmatpush2.bf16.msra.mxu0 0
    %5518 = vmatprep.subr.bf16.mxu0 0
    %5519 = vmatpush2.bf16.msra.mxu0 0
    %5520 = vmatprep.mubr.bf16.mxu0 0
    %5521 = vmatmul.mubr.bf16.gmra.mxu0 %v4979
    %v5522 = vpop.f32.mrf.mxu0
    %v5523 = vadd.f32 0.0, %v5522
    %v5524 = vpop.f32.mrf.mxu0
    %v5525 = vadd.f32 0.0, %v5524
    %v5526 = vpop.f32.mrf.mxu0
    %v5527 = vpop.f32.mrf.mxu0
    %5528 = vdwg.mxu0
    %v5529 = vadd.f32 %v4925, %v5400
    %v5530 = vadd.f32 %v4926, %v5402
    %v5531 = vadd.f32 %v4927, %v5441
    %v5532 = vadd.f32 %v4928, %v5443
    %v5533 = vadd.f32 %v4929, %v5482
    %v5534 = vadd.f32 %v4930, %v5484
    %v5535 = vadd.f32 %v4931, %v5523
    %v5536 = vadd.f32 %v4932, %v5525
    %s5537 = scalar_lea.vmem %s0, 36
    %v5538 = vld [vmem:[%s5537] sm:$0xf]
    %v5540 = vsel %vm119, %v5538, 0
    %5542 = vmatprep.subr.bf16.mxu0 0
    %5543 = vmatpush1.bf16.msra.mxu0 0
    %5544 = vmatprep.subr.bf16.mxu0 0
    %5545 = vmatpush1.bf16.msra.mxu0 0
    %5546 = vmatprep.subr.bf16.mxu0 0
    %5547 = vmatpush1.bf16.msra.mxu0 0
    %5548 = vmatprep.subr.bf16.mxu0 0
    %5549 = vmatpush1.bf16.msra.mxu0 0
    %5550 = vmatprep.subr.bf16.mxu0 0
    %5551 = vmatpush1.bf16.msra.mxu0 0
    %5552 = vmatprep.subr.bf16.mxu0 0
    %5553 = vmatpush1.bf16.msra.mxu0 0
    %5554 = vmatprep.subr.bf16.mxu0 0
    %5555 = vmatpush1.bf16.msra.mxu0 0
    %5556 = vmatprep.subr.bf16.mxu0 0
    %5557 = vmatpush1.bf16.msra.mxu0 %v117
    %5558 = vmatprep.subr.bf16.mxu0 0
    %5559 = vmatpush2.bf16.msra.mxu0 0
    %5560 = vmatprep.subr.bf16.mxu0 0
    %5561 = vmatpush2.bf16.msra.mxu0 0
    %5562 = vmatprep.subr.bf16.mxu0 0
    %5563 = vmatpush2.bf16.msra.mxu0 0
    %5564 = vmatprep.subr.bf16.mxu0 0
    %5565 = vmatpush2.bf16.msra.mxu0 0
    %5566 = vmatprep.subr.bf16.mxu0 0
    %5567 = vmatpush2.bf16.msra.mxu0 0
    %5568 = vmatprep.subr.bf16.mxu0 0
    %5569 = vmatpush2.bf16.msra.mxu0 0
    %5570 = vmatprep.subr.bf16.mxu0 0
    %5571 = vmatpush2.bf16.msra.mxu0 0
    %5572 = vmatprep.subr.bf16.mxu0 0
    %5573 = vmatpush2.bf16.msra.mxu0 0
    %5574 = vmatprep.mubr.bf16.mxu0 0
    %5575 = vmatmul.mubr.bf16.gmra.mxu0 %v5540
    %v5576 = vpop.f32.mrf.mxu0
    %v5577 = vadd.f32 %v111, %v5576
    %v5578 = vpop.f32.mrf.mxu0
    %v5579 = vpop.f32.mrf.mxu0
    %v5580 = vpop.f32.mrf.mxu0
    %5581 = vdwg.mxu0
    %v5582 = vmax.f32 %v5577, 0.0
    %v5583 = vpack.c.bf16 %v5582, %v5582
    %s5584 = scalar_lea.vmem [#allocation6], 4608
    %v5585 = vld [vmem:[%s5584] sm:$0xff]
    %v5586 = vld [vmem:[%s5584 + $0x8] sm:$0xff]
    %v5587 = vld [vmem:[%s5584 + $0x10] sm:$0xff]
    %v5588 = vld [vmem:[%s5584 + $0x18] sm:$0xff]
    %v5589 = vld [vmem:[%s5584 + $0x20] sm:$0xff]
    %v5590 = vld [vmem:[%s5584 + $0x28] sm:$0xff]
    %v5591 = vld [vmem:[%s5584 + $0x30] sm:$0xff]
    %v5592 = vld [vmem:[%s5584 + $0x38] sm:$0xff]
    %v5593 = vld [vmem:[%s5584 + $0x40] sm:$0xff]
    %v5594 = vld [vmem:[%s5584 + $0x48] sm:$0xff]
    %v5595 = vld [vmem:[%s5584 + $0x50] sm:$0xff]
    %v5596 = vld [vmem:[%s5584 + $0x58] sm:$0xff]
    %v5597 = vld [vmem:[%s5584 + $0x60] sm:$0xff]
    %v5598 = vld [vmem:[%s5584 + $0x68] sm:$0xff]
    %v5599 = vld [vmem:[%s5584 + $0x70] sm:$0xff]
    %v5600 = vld [vmem:[%s5584 + $0x78] sm:$0xff]
    %v5601 = vld [vmem:[%s5584 + $0x80] sm:$0xff]
    %v5602 = vld [vmem:[%s5584 + $0x88] sm:$0xff]
    %v5603 = vld [vmem:[%s5584 + $0x90] sm:$0xff]
    %v5604 = vld [vmem:[%s5584 + $0x98] sm:$0xff]
    %v5605 = vld [vmem:[%s5584 + $0xa0] sm:$0xff]
    %v5606 = vld [vmem:[%s5584 + $0xa8] sm:$0xff]
    %v5607 = vld [vmem:[%s5584 + $0xb0] sm:$0xff]
    %v5608 = vld [vmem:[%s5584 + $0xb8] sm:$0xff]
    %v5609 = vld [vmem:[%s5584 + $0xc0] sm:$0xff]
    %v5610 = vld [vmem:[%s5584 + $0xc8] sm:$0xff]
    %v5611 = vld [vmem:[%s5584 + $0xd0] sm:$0xff]
    %v5612 = vld [vmem:[%s5584 + $0xd8] sm:$0xff]
    %v5613 = vld [vmem:[%s5584 + $0xe0] sm:$0xff]
    %v5614 = vld [vmem:[%s5584 + $0xe8] sm:$0xff]
    %v5615 = vld [vmem:[%s5584 + $0xf0] sm:$0xff]
    %v5616 = vld [vmem:[%s5584 + $0xf8] sm:$0xff]
    %v5617 = vld [vmem:[%s5584 + $0x100] sm:$0xff]
    %v5618 = vld [vmem:[%s5584 + $0x108] sm:$0xff]
    %v5619 = vld [vmem:[%s5584 + $0x110] sm:$0xff]
    %v5620 = vld [vmem:[%s5584 + $0x118] sm:$0xff]
    %v5621 = vld [vmem:[%s5584 + $0x120] sm:$0xff]
    %v5622 = vld [vmem:[%s5584 + $0x128] sm:$0xff]
    %v5623 = vld [vmem:[%s5584 + $0x130] sm:$0xff]
    %v5624 = vld [vmem:[%s5584 + $0x138] sm:$0xff]
    %v5625 = vld [vmem:[%s5584 + $0x140] sm:$0xff]
    %v5626 = vld [vmem:[%s5584 + $0x148] sm:$0xff]
    %v5627 = vld [vmem:[%s5584 + $0x150] sm:$0xff]
    %v5628 = vld [vmem:[%s5584 + $0x158] sm:$0xff]
    %v5629 = vld [vmem:[%s5584 + $0x160] sm:$0xff]
    %v5630 = vld [vmem:[%s5584 + $0x168] sm:$0xff]
    %v5631 = vld [vmem:[%s5584 + $0x170] sm:$0xff]
    %v5632 = vld [vmem:[%s5584 + $0x178] sm:$0xff]
    %v5633 = vld [vmem:[%s5584 + $0x180] sm:$0xff]
    %v5634 = vld [vmem:[%s5584 + $0x188] sm:$0xff]
    %v5635 = vld [vmem:[%s5584 + $0x190] sm:$0xff]
    %v5636 = vld [vmem:[%s5584 + $0x198] sm:$0xff]
    %v5637 = vld [vmem:[%s5584 + $0x1a0] sm:$0xff]
    %v5638 = vld [vmem:[%s5584 + $0x1a8] sm:$0xff]
    %v5639 = vld [vmem:[%s5584 + $0x1b0] sm:$0xff]
    %v5640 = vld [vmem:[%s5584 + $0x1b8] sm:$0xff]
    %v5641 = vld [vmem:[%s5584 + $0x1c0] sm:$0xff]
    %v5642 = vld [vmem:[%s5584 + $0x1c8] sm:$0xff]
    %v5643 = vld [vmem:[%s5584 + $0x1d0] sm:$0xff]
    %v5644 = vld [vmem:[%s5584 + $0x1d8] sm:$0xff]
    %v5645 = vld [vmem:[%s5584 + $0x1e0] sm:$0xff]
    %v5646 = vld [vmem:[%s5584 + $0x1e8] sm:$0xff]
    %v5647 = vld [vmem:[%s5584 + $0x1f0] sm:$0xff]
    %v5648 = vld [vmem:[%s5584 + $0x1f8] sm:$0xff]
    %v5713 = vunpack.c.l.b16 %v5585
    %v5714 = vunpack.c.h.b16 %v5585
    %v5715 = vunpack.c.l.b16 %v5586
    %v5716 = vunpack.c.h.b16 %v5586
    %v5717 = vunpack.c.l.b16 %v5587
    %v5718 = vunpack.c.h.b16 %v5587
    %v5719 = vunpack.c.l.b16 %v5588
    %v5720 = vunpack.c.h.b16 %v5588
    %v5721 = vunpack.c.l.b16 %v5589
    %v5722 = vunpack.c.h.b16 %v5589
    %v5723 = vunpack.c.l.b16 %v5590
    %v5724 = vunpack.c.h.b16 %v5590
    %v5725 = vunpack.c.l.b16 %v5591
    %v5726 = vunpack.c.h.b16 %v5591
    %v5727 = vunpack.c.l.b16 %v5592
    %v5728 = vunpack.c.h.b16 %v5592
    %v5729 = vunpack.c.l.b16 %v5593
    %v5730 = vunpack.c.h.b16 %v5593
    %v5731 = vunpack.c.l.b16 %v5594
    %v5732 = vunpack.c.h.b16 %v5594
    %v5733 = vunpack.c.l.b16 %v5595
    %v5734 = vunpack.c.h.b16 %v5595
    %v5735 = vunpack.c.l.b16 %v5596
    %v5736 = vunpack.c.h.b16 %v5596
    %v5737 = vunpack.c.l.b16 %v5597
    %v5738 = vunpack.c.h.b16 %v5597
    %v5739 = vunpack.c.l.b16 %v5598
    %v5740 = vunpack.c.h.b16 %v5598
    %v5741 = vunpack.c.l.b16 %v5599
    %v5742 = vunpack.c.h.b16 %v5599
    %v5743 = vunpack.c.l.b16 %v5600
    %v5744 = vunpack.c.h.b16 %v5600
    %v5745 = vunpack.c.l.b16 %v5601
    %v5746 = vunpack.c.h.b16 %v5601
    %v5747 = vunpack.c.l.b16 %v5602
    %v5748 = vunpack.c.h.b16 %v5602
    %v5749 = vunpack.c.l.b16 %v5603
    %v5750 = vunpack.c.h.b16 %v5603
    %v5751 = vunpack.c.l.b16 %v5604
    %v5752 = vunpack.c.h.b16 %v5604
    %v5753 = vunpack.c.l.b16 %v5605
    %v5754 = vunpack.c.h.b16 %v5605
    %v5755 = vunpack.c.l.b16 %v5606
    %v5756 = vunpack.c.h.b16 %v5606
    %v5757 = vunpack.c.l.b16 %v5607
    %v5758 = vunpack.c.h.b16 %v5607
    %v5759 = vunpack.c.l.b16 %v5608
    %v5760 = vunpack.c.h.b16 %v5608
    %v5761 = vunpack.c.l.b16 %v5609
    %v5762 = vunpack.c.h.b16 %v5609
    %v5763 = vunpack.c.l.b16 %v5610
    %v5764 = vunpack.c.h.b16 %v5610
    %v5765 = vunpack.c.l.b16 %v5611
    %v5766 = vunpack.c.h.b16 %v5611
    %v5767 = vunpack.c.l.b16 %v5612
    %v5768 = vunpack.c.h.b16 %v5612
    %v5769 = vunpack.c.l.b16 %v5613
    %v5770 = vunpack.c.h.b16 %v5613
    %v5771 = vunpack.c.l.b16 %v5614
    %v5772 = vunpack.c.h.b16 %v5614
    %v5773 = vunpack.c.l.b16 %v5615
    %v5774 = vunpack.c.h.b16 %v5615
    %v5775 = vunpack.c.l.b16 %v5616
    %v5776 = vunpack.c.h.b16 %v5616
    %v5777 = vunpack.c.l.b16 %v5617
    %v5778 = vunpack.c.h.b16 %v5617
    %v5779 = vunpack.c.l.b16 %v5618
    %v5780 = vunpack.c.h.b16 %v5618
    %v5781 = vunpack.c.l.b16 %v5619
    %v5782 = vunpack.c.h.b16 %v5619
    %v5783 = vunpack.c.l.b16 %v5620
    %v5784 = vunpack.c.h.b16 %v5620
    %v5785 = vunpack.c.l.b16 %v5621
    %v5786 = vunpack.c.h.b16 %v5621
    %v5787 = vunpack.c.l.b16 %v5622
    %v5788 = vunpack.c.h.b16 %v5622
    %v5789 = vunpack.c.l.b16 %v5623
    %v5790 = vunpack.c.h.b16 %v5623
    %v5791 = vunpack.c.l.b16 %v5624
    %v5792 = vunpack.c.h.b16 %v5624
    %v5793 = vunpack.c.l.b16 %v5625
    %v5794 = vunpack.c.h.b16 %v5625
    %v5795 = vunpack.c.l.b16 %v5626
    %v5796 = vunpack.c.h.b16 %v5626
    %v5797 = vunpack.c.l.b16 %v5627
    %v5798 = vunpack.c.h.b16 %v5627
    %v5799 = vunpack.c.l.b16 %v5628
    %v5800 = vunpack.c.h.b16 %v5628
    %v5801 = vunpack.c.l.b16 %v5629
    %v5802 = vunpack.c.h.b16 %v5629
    %v5803 = vunpack.c.l.b16 %v5630
    %v5804 = vunpack.c.h.b16 %v5630
    %v5805 = vunpack.c.l.b16 %v5631
    %v5806 = vunpack.c.h.b16 %v5631
    %v5807 = vunpack.c.l.b16 %v5632
    %v5808 = vunpack.c.h.b16 %v5632
    %v5809 = vunpack.c.l.b16 %v5633
    %v5810 = vunpack.c.h.b16 %v5633
    %v5811 = vunpack.c.l.b16 %v5634
    %v5812 = vunpack.c.h.b16 %v5634
    %v5813 = vunpack.c.l.b16 %v5635
    %v5814 = vunpack.c.h.b16 %v5635
    %v5815 = vunpack.c.l.b16 %v5636
    %v5816 = vunpack.c.h.b16 %v5636
    %v5817 = vunpack.c.l.b16 %v5637
    %v5818 = vunpack.c.h.b16 %v5637
    %v5819 = vunpack.c.l.b16 %v5638
    %v5820 = vunpack.c.h.b16 %v5638
    %v5821 = vunpack.c.l.b16 %v5639
    %v5822 = vunpack.c.h.b16 %v5639
    %v5823 = vunpack.c.l.b16 %v5640
    %v5824 = vunpack.c.h.b16 %v5640
    %v5825 = vunpack.c.l.b16 %v5641
    %v5826 = vunpack.c.h.b16 %v5641
    %v5827 = vunpack.c.l.b16 %v5642
    %v5828 = vunpack.c.h.b16 %v5642
    %v5829 = vunpack.c.l.b16 %v5643
    %v5830 = vunpack.c.h.b16 %v5643
    %v5831 = vunpack.c.l.b16 %v5644
    %v5832 = vunpack.c.h.b16 %v5644
    %v5833 = vunpack.c.l.b16 %v5645
    %v5834 = vunpack.c.h.b16 %v5645
    %v5835 = vunpack.c.l.b16 %v5646
    %v5836 = vunpack.c.h.b16 %v5646
    %v5837 = vunpack.c.l.b16 %v5647
    %v5838 = vunpack.c.h.b16 %v5647
    %v5839 = vunpack.c.l.b16 %v5648
    %v5840 = vunpack.c.h.b16 %v5648
    %v5841 = vpack.c.b16 %v5721, %v5713
    %v5842 = vpack.c.b16 %v5722, %v5714
    %v5843 = vpack.c.b16 %v5723, %v5715
    %v5844 = vpack.c.b16 %v5724, %v5716
    %v5845 = vpack.c.b16 %v5725, %v5717
    %v5846 = vpack.c.b16 %v5726, %v5718
    %v5847 = vpack.c.b16 %v5727, %v5719
    %v5848 = vpack.c.b16 %v5728, %v5720
    %v5849 = vpack.c.b16 %v5737, %v5729
    %v5850 = vpack.c.b16 %v5738, %v5730
    %v5851 = vpack.c.b16 %v5739, %v5731
    %v5852 = vpack.c.b16 %v5740, %v5732
    %v5853 = vpack.c.b16 %v5741, %v5733
    %v5854 = vpack.c.b16 %v5742, %v5734
    %v5855 = vpack.c.b16 %v5743, %v5735
    %v5856 = vpack.c.b16 %v5744, %v5736
    %v5857 = vpack.c.b16 %v5753, %v5745
    %v5858 = vpack.c.b16 %v5754, %v5746
    %v5859 = vpack.c.b16 %v5755, %v5747
    %v5860 = vpack.c.b16 %v5756, %v5748
    %v5861 = vpack.c.b16 %v5757, %v5749
    %v5862 = vpack.c.b16 %v5758, %v5750
    %v5863 = vpack.c.b16 %v5759, %v5751
    %v5864 = vpack.c.b16 %v5760, %v5752
    %v5865 = vpack.c.b16 %v5769, %v5761
    %v5866 = vpack.c.b16 %v5770, %v5762
    %v5867 = vpack.c.b16 %v5771, %v5763
    %v5868 = vpack.c.b16 %v5772, %v5764
    %v5869 = vpack.c.b16 %v5773, %v5765
    %v5870 = vpack.c.b16 %v5774, %v5766
    %v5871 = vpack.c.b16 %v5775, %v5767
    %v5872 = vpack.c.b16 %v5776, %v5768
    %v5873 = vpack.c.b16 %v5785, %v5777
    %v5874 = vpack.c.b16 %v5786, %v5778
    %v5875 = vpack.c.b16 %v5787, %v5779
    %v5876 = vpack.c.b16 %v5788, %v5780
    %v5877 = vpack.c.b16 %v5789, %v5781
    %v5878 = vpack.c.b16 %v5790, %v5782
    %v5879 = vpack.c.b16 %v5791, %v5783
    %v5880 = vpack.c.b16 %v5792, %v5784
    %v5881 = vpack.c.b16 %v5801, %v5793
    %v5882 = vpack.c.b16 %v5802, %v5794
    %v5883 = vpack.c.b16 %v5803, %v5795
    %v5884 = vpack.c.b16 %v5804, %v5796
    %v5885 = vpack.c.b16 %v5805, %v5797
    %v5886 = vpack.c.b16 %v5806, %v5798
    %v5887 = vpack.c.b16 %v5807, %v5799
    %v5888 = vpack.c.b16 %v5808, %v5800
    %v5889 = vpack.c.b16 %v5817, %v5809
    %v5890 = vpack.c.b16 %v5818, %v5810
    %v5891 = vpack.c.b16 %v5819, %v5811
    %v5892 = vpack.c.b16 %v5820, %v5812
    %v5893 = vpack.c.b16 %v5821, %v5813
    %v5894 = vpack.c.b16 %v5822, %v5814
    %v5895 = vpack.c.b16 %v5823, %v5815
    %v5896 = vpack.c.b16 %v5824, %v5816
    %v5897 = vpack.c.b16 %v5833, %v5825
    %v5898 = vpack.c.b16 %v5834, %v5826
    %v5899 = vpack.c.b16 %v5835, %v5827
    %v5900 = vpack.c.b16 %v5836, %v5828
    %v5901 = vpack.c.b16 %v5837, %v5829
    %v5902 = vpack.c.b16 %v5838, %v5830
    %v5903 = vpack.c.b16 %v5839, %v5831
    %v5904 = vpack.c.b16 %v5840, %v5832
    %5969 = vmatprep.subr.bf16.mxu0 %v5898
    %5970 = vmatpush1.bf16.msra.mxu0 %v5897
    %5971 = vmatprep.subr.bf16.mxu0 %v5890
    %5972 = vmatpush1.bf16.msra.mxu0 %v5889
    %5973 = vmatprep.subr.bf16.mxu0 %v5882
    %5974 = vmatpush1.bf16.msra.mxu0 %v5881
    %5975 = vmatprep.subr.bf16.mxu0 %v5874
    %5976 = vmatpush1.bf16.msra.mxu0 %v5873
    %5977 = vmatprep.subr.bf16.mxu0 %v5866
    %5978 = vmatpush1.bf16.msra.mxu0 %v5865
    %5979 = vmatprep.subr.bf16.mxu0 %v5858
    %5980 = vmatpush1.bf16.msra.mxu0 %v5857
    %5981 = vmatprep.subr.bf16.mxu0 %v5850
    %5982 = vmatpush1.bf16.msra.mxu0 %v5849
    %5983 = vmatprep.subr.bf16.mxu0 %v5842
    %5984 = vmatpush1.bf16.msra.mxu0 %v5841
    %5985 = vmatprep.subr.bf16.mxu0 0
    %5986 = vmatpush2.bf16.msra.mxu0 0
    %5987 = vmatprep.subr.bf16.mxu0 0
    %5988 = vmatpush2.bf16.msra.mxu0 0
    %5989 = vmatprep.subr.bf16.mxu0 0
    %5990 = vmatpush2.bf16.msra.mxu0 0
    %5991 = vmatprep.subr.bf16.mxu0 0
    %5992 = vmatpush2.bf16.msra.mxu0 0
    %5993 = vmatprep.subr.bf16.mxu0 0
    %5994 = vmatpush2.bf16.msra.mxu0 0
    %5995 = vmatprep.subr.bf16.mxu0 0
    %5996 = vmatpush2.bf16.msra.mxu0 0
    %5997 = vmatprep.subr.bf16.mxu0 0
    %5998 = vmatpush2.bf16.msra.mxu0 0
    %5999 = vmatprep.subr.bf16.mxu0 0
    %6000 = vmatpush2.bf16.msra.mxu0 0
    %6001 = vmatprep.mubr.bf16.mxu0 0
    %6002 = vmatmul.mubr.bf16.gmra.mxu0 %v5583
    %v6003 = vpop.f32.mrf.mxu0
    %v6004 = vadd.f32 0.0, %v6003
    %v6005 = vpop.f32.mrf.mxu0
    %v6006 = vadd.f32 0.0, %v6005
    %v6007 = vpop.f32.mrf.mxu0
    %v6008 = vpop.f32.mrf.mxu0
    %6009 = vdwg.mxu0
    %6010 = vmatprep.subr.bf16.mxu0 %v5900
    %6011 = vmatpush1.bf16.msra.mxu0 %v5899
    %6012 = vmatprep.subr.bf16.mxu0 %v5892
    %6013 = vmatpush1.bf16.msra.mxu0 %v5891
    %6014 = vmatprep.subr.bf16.mxu0 %v5884
    %6015 = vmatpush1.bf16.msra.mxu0 %v5883
    %6016 = vmatprep.subr.bf16.mxu0 %v5876
    %6017 = vmatpush1.bf16.msra.mxu0 %v5875
    %6018 = vmatprep.subr.bf16.mxu0 %v5868
    %6019 = vmatpush1.bf16.msra.mxu0 %v5867
    %6020 = vmatprep.subr.bf16.mxu0 %v5860
    %6021 = vmatpush1.bf16.msra.mxu0 %v5859
    %6022 = vmatprep.subr.bf16.mxu0 %v5852
    %6023 = vmatpush1.bf16.msra.mxu0 %v5851
    %6024 = vmatprep.subr.bf16.mxu0 %v5844
    %6025 = vmatpush1.bf16.msra.mxu0 %v5843
    %6026 = vmatprep.subr.bf16.mxu0 0
    %6027 = vmatpush2.bf16.msra.mxu0 0
    %6028 = vmatprep.subr.bf16.mxu0 0
    %6029 = vmatpush2.bf16.msra.mxu0 0
    %6030 = vmatprep.subr.bf16.mxu0 0
    %6031 = vmatpush2.bf16.msra.mxu0 0
    %6032 = vmatprep.subr.bf16.mxu0 0
    %6033 = vmatpush2.bf16.msra.mxu0 0
    %6034 = vmatprep.subr.bf16.mxu0 0
    %6035 = vmatpush2.bf16.msra.mxu0 0
    %6036 = vmatprep.subr.bf16.mxu0 0
    %6037 = vmatpush2.bf16.msra.mxu0 0
    %6038 = vmatprep.subr.bf16.mxu0 0
    %6039 = vmatpush2.bf16.msra.mxu0 0
    %6040 = vmatprep.subr.bf16.mxu0 0
    %6041 = vmatpush2.bf16.msra.mxu0 0
    %6042 = vmatprep.mubr.bf16.mxu0 0
    %6043 = vmatmul.mubr.bf16.gmra.mxu0 %v5583
    %v6044 = vpop.f32.mrf.mxu0
    %v6045 = vadd.f32 0.0, %v6044
    %v6046 = vpop.f32.mrf.mxu0
    %v6047 = vadd.f32 0.0, %v6046
    %v6048 = vpop.f32.mrf.mxu0
    %v6049 = vpop.f32.mrf.mxu0
    %6050 = vdwg.mxu0
    %6051 = vmatprep.subr.bf16.mxu0 %v5902
    %6052 = vmatpush1.bf16.msra.mxu0 %v5901
    %6053 = vmatprep.subr.bf16.mxu0 %v5894
    %6054 = vmatpush1.bf16.msra.mxu0 %v5893
    %6055 = vmatprep.subr.bf16.mxu0 %v5886
    %6056 = vmatpush1.bf16.msra.mxu0 %v5885
    %6057 = vmatprep.subr.bf16.mxu0 %v5878
    %6058 = vmatpush1.bf16.msra.mxu0 %v5877
    %6059 = vmatprep.subr.bf16.mxu0 %v5870
    %6060 = vmatpush1.bf16.msra.mxu0 %v5869
    %6061 = vmatprep.subr.bf16.mxu0 %v5862
    %6062 = vmatpush1.bf16.msra.mxu0 %v5861
    %6063 = vmatprep.subr.bf16.mxu0 %v5854
    %6064 = vmatpush1.bf16.msra.mxu0 %v5853
    %6065 = vmatprep.subr.bf16.mxu0 %v5846
    %6066 = vmatpush1.bf16.msra.mxu0 %v5845
    %6067 = vmatprep.subr.bf16.mxu0 0
    %6068 = vmatpush2.bf16.msra.mxu0 0
    %6069 = vmatprep.subr.bf16.mxu0 0
    %6070 = vmatpush2.bf16.msra.mxu0 0
    %6071 = vmatprep.subr.bf16.mxu0 0
    %6072 = vmatpush2.bf16.msra.mxu0 0
    %6073 = vmatprep.subr.bf16.mxu0 0
    %6074 = vmatpush2.bf16.msra.mxu0 0
    %6075 = vmatprep.subr.bf16.mxu0 0
    %6076 = vmatpush2.bf16.msra.mxu0 0
    %6077 = vmatprep.subr.bf16.mxu0 0
    %6078 = vmatpush2.bf16.msra.mxu0 0
    %6079 = vmatprep.subr.bf16.mxu0 0
    %6080 = vmatpush2.bf16.msra.mxu0 0
    %6081 = vmatprep.subr.bf16.mxu0 0
    %6082 = vmatpush2.bf16.msra.mxu0 0
    %6083 = vmatprep.mubr.bf16.mxu0 0
    %6084 = vmatmul.mubr.bf16.gmra.mxu0 %v5583
    %v6085 = vpop.f32.mrf.mxu0
    %v6086 = vadd.f32 0.0, %v6085
    %v6087 = vpop.f32.mrf.mxu0
    %v6088 = vadd.f32 0.0, %v6087
    %v6089 = vpop.f32.mrf.mxu0
    %v6090 = vpop.f32.mrf.mxu0
    %6091 = vdwg.mxu0
    %6092 = vmatprep.subr.bf16.mxu0 %v5904
    %6093 = vmatpush1.bf16.msra.mxu0 %v5903
    %6094 = vmatprep.subr.bf16.mxu0 %v5896
    %6095 = vmatpush1.bf16.msra.mxu0 %v5895
    %6096 = vmatprep.subr.bf16.mxu0 %v5888
    %6097 = vmatpush1.bf16.msra.mxu0 %v5887
    %6098 = vmatprep.subr.bf16.mxu0 %v5880
    %6099 = vmatpush1.bf16.msra.mxu0 %v5879
    %6100 = vmatprep.subr.bf16.mxu0 %v5872
    %6101 = vmatpush1.bf16.msra.mxu0 %v5871
    %6102 = vmatprep.subr.bf16.mxu0 %v5864
    %6103 = vmatpush1.bf16.msra.mxu0 %v5863
    %6104 = vmatprep.subr.bf16.mxu0 %v5856
    %6105 = vmatpush1.bf16.msra.mxu0 %v5855
    %6106 = vmatprep.subr.bf16.mxu0 %v5848
    %6107 = vmatpush1.bf16.msra.mxu0 %v5847
    %6108 = vmatprep.subr.bf16.mxu0 0
    %6109 = vmatpush2.bf16.msra.mxu0 0
    %6110 = vmatprep.subr.bf16.mxu0 0
    %6111 = vmatpush2.bf16.msra.mxu0 0
    %6112 = vmatprep.subr.bf16.mxu0 0
    %6113 = vmatpush2.bf16.msra.mxu0 0
    %6114 = vmatprep.subr.bf16.mxu0 0
    %6115 = vmatpush2.bf16.msra.mxu0 0
    %6116 = vmatprep.subr.bf16.mxu0 0
    %6117 = vmatpush2.bf16.msra.mxu0 0
    %6118 = vmatprep.subr.bf16.mxu0 0
    %6119 = vmatpush2.bf16.msra.mxu0 0
    %6120 = vmatprep.subr.bf16.mxu0 0
    %6121 = vmatpush2.bf16.msra.mxu0 0
    %6122 = vmatprep.subr.bf16.mxu0 0
    %6123 = vmatpush2.bf16.msra.mxu0 0
    %6124 = vmatprep.mubr.bf16.mxu0 0
    %6125 = vmatmul.mubr.bf16.gmra.mxu0 %v5583
    %v6126 = vpop.f32.mrf.mxu0
    %v6127 = vadd.f32 0.0, %v6126
    %v6128 = vpop.f32.mrf.mxu0
    %v6129 = vadd.f32 0.0, %v6128
    %v6130 = vpop.f32.mrf.mxu0
    %v6131 = vpop.f32.mrf.mxu0
    %6132 = vdwg.mxu0
    %v6133 = vadd.f32 %v5529, %v6004
    %v6134 = vadd.f32 %v5530, %v6006
    %v6135 = vadd.f32 %v5531, %v6045
    %v6136 = vadd.f32 %v5532, %v6047
    %v6137 = vadd.f32 %v5533, %v6086
    %v6138 = vadd.f32 %v5534, %v6088
    %v6139 = vadd.f32 %v5535, %v6127
    %v6140 = vadd.f32 %v5536, %v6129
    %s6141 = scalar_lea.vmem %s0, 40
    %v6142 = vld [vmem:[%s6141] sm:$0xf]
    %v6144 = vsel %vm119, %v6142, 0
    %6146 = vmatprep.subr.bf16.mxu0 0
    %6147 = vmatpush1.bf16.msra.mxu0 0
    %6148 = vmatprep.subr.bf16.mxu0 0
    %6149 = vmatpush1.bf16.msra.mxu0 0
    %6150 = vmatprep.subr.bf16.mxu0 0
    %6151 = vmatpush1.bf16.msra.mxu0 0
    %6152 = vmatprep.subr.bf16.mxu0 0
    %6153 = vmatpush1.bf16.msra.mxu0 0
    %6154 = vmatprep.subr.bf16.mxu0 0
    %6155 = vmatpush1.bf16.msra.mxu0 0
    %6156 = vmatprep.subr.bf16.mxu0 0
    %6157 = vmatpush1.bf16.msra.mxu0 0
    %6158 = vmatprep.subr.bf16.mxu0 0
    %6159 = vmatpush1.bf16.msra.mxu0 0
    %6160 = vmatprep.subr.bf16.mxu0 0
    %6161 = vmatpush1.bf16.msra.mxu0 %v117
    %6162 = vmatprep.subr.bf16.mxu0 0
    %6163 = vmatpush2.bf16.msra.mxu0 0
    %6164 = vmatprep.subr.bf16.mxu0 0
    %6165 = vmatpush2.bf16.msra.mxu0 0
    %6166 = vmatprep.subr.bf16.mxu0 0
    %6167 = vmatpush2.bf16.msra.mxu0 0
    %6168 = vmatprep.subr.bf16.mxu0 0
    %6169 = vmatpush2.bf16.msra.mxu0 0
    %6170 = vmatprep.subr.bf16.mxu0 0
    %6171 = vmatpush2.bf16.msra.mxu0 0
    %6172 = vmatprep.subr.bf16.mxu0 0
    %6173 = vmatpush2.bf16.msra.mxu0 0
    %6174 = vmatprep.subr.bf16.mxu0 0
    %6175 = vmatpush2.bf16.msra.mxu0 0
    %6176 = vmatprep.subr.bf16.mxu0 0
    %6177 = vmatpush2.bf16.msra.mxu0 0
    %6178 = vmatprep.mubr.bf16.mxu0 0
    %6179 = vmatmul.mubr.bf16.gmra.mxu0 %v6144
    %v6180 = vpop.f32.mrf.mxu0
    %v6181 = vadd.f32 %v111, %v6180
    %v6182 = vpop.f32.mrf.mxu0
    %v6183 = vpop.f32.mrf.mxu0
    %v6184 = vpop.f32.mrf.mxu0
    %6185 = vdwg.mxu0
    %v6186 = vmax.f32 %v6181, 0.0
    %v6187 = vpack.c.bf16 %v6186, %v6186
    %s6188 = scalar_lea.vmem [#allocation6], 5120
    %v6189 = vld [vmem:[%s6188] sm:$0xff]
    %v6190 = vld [vmem:[%s6188 + $0x8] sm:$0xff]
    %v6191 = vld [vmem:[%s6188 + $0x10] sm:$0xff]
    %v6192 = vld [vmem:[%s6188 + $0x18] sm:$0xff]
    %v6193 = vld [vmem:[%s6188 + $0x20] sm:$0xff]
    %v6194 = vld [vmem:[%s6188 + $0x28] sm:$0xff]
    %v6195 = vld [vmem:[%s6188 + $0x30] sm:$0xff]
    %v6196 = vld [vmem:[%s6188 + $0x38] sm:$0xff]
    %v6197 = vld [vmem:[%s6188 + $0x40] sm:$0xff]
    %v6198 = vld [vmem:[%s6188 + $0x48] sm:$0xff]
    %v6199 = vld [vmem:[%s6188 + $0x50] sm:$0xff]
    %v6200 = vld [vmem:[%s6188 + $0x58] sm:$0xff]
    %v6201 = vld [vmem:[%s6188 + $0x60] sm:$0xff]
    %v6202 = vld [vmem:[%s6188 + $0x68] sm:$0xff]
    %v6203 = vld [vmem:[%s6188 + $0x70] sm:$0xff]
    %v6204 = vld [vmem:[%s6188 + $0x78] sm:$0xff]
    %v6205 = vld [vmem:[%s6188 + $0x80] sm:$0xff]
    %v6206 = vld [vmem:[%s6188 + $0x88] sm:$0xff]
    %v6207 = vld [vmem:[%s6188 + $0x90] sm:$0xff]
    %v6208 = vld [vmem:[%s6188 + $0x98] sm:$0xff]
    %v6209 = vld [vmem:[%s6188 + $0xa0] sm:$0xff]
    %v6210 = vld [vmem:[%s6188 + $0xa8] sm:$0xff]
    %v6211 = vld [vmem:[%s6188 + $0xb0] sm:$0xff]
    %v6212 = vld [vmem:[%s6188 + $0xb8] sm:$0xff]
    %v6213 = vld [vmem:[%s6188 + $0xc0] sm:$0xff]
    %v6214 = vld [vmem:[%s6188 + $0xc8] sm:$0xff]
    %v6215 = vld [vmem:[%s6188 + $0xd0] sm:$0xff]
    %v6216 = vld [vmem:[%s6188 + $0xd8] sm:$0xff]
    %v6217 = vld [vmem:[%s6188 + $0xe0] sm:$0xff]
    %v6218 = vld [vmem:[%s6188 + $0xe8] sm:$0xff]
    %v6219 = vld [vmem:[%s6188 + $0xf0] sm:$0xff]
    %v6220 = vld [vmem:[%s6188 + $0xf8] sm:$0xff]
    %v6221 = vld [vmem:[%s6188 + $0x100] sm:$0xff]
    %v6222 = vld [vmem:[%s6188 + $0x108] sm:$0xff]
    %v6223 = vld [vmem:[%s6188 + $0x110] sm:$0xff]
    %v6224 = vld [vmem:[%s6188 + $0x118] sm:$0xff]
    %v6225 = vld [vmem:[%s6188 + $0x120] sm:$0xff]
    %v6226 = vld [vmem:[%s6188 + $0x128] sm:$0xff]
    %v6227 = vld [vmem:[%s6188 + $0x130] sm:$0xff]
    %v6228 = vld [vmem:[%s6188 + $0x138] sm:$0xff]
    %v6229 = vld [vmem:[%s6188 + $0x140] sm:$0xff]
    %v6230 = vld [vmem:[%s6188 + $0x148] sm:$0xff]
    %v6231 = vld [vmem:[%s6188 + $0x150] sm:$0xff]
    %v6232 = vld [vmem:[%s6188 + $0x158] sm:$0xff]
    %v6233 = vld [vmem:[%s6188 + $0x160] sm:$0xff]
    %v6234 = vld [vmem:[%s6188 + $0x168] sm:$0xff]
    %v6235 = vld [vmem:[%s6188 + $0x170] sm:$0xff]
    %v6236 = vld [vmem:[%s6188 + $0x178] sm:$0xff]
    %v6237 = vld [vmem:[%s6188 + $0x180] sm:$0xff]
    %v6238 = vld [vmem:[%s6188 + $0x188] sm:$0xff]
    %v6239 = vld [vmem:[%s6188 + $0x190] sm:$0xff]
    %v6240 = vld [vmem:[%s6188 + $0x198] sm:$0xff]
    %v6241 = vld [vmem:[%s6188 + $0x1a0] sm:$0xff]
    %v6242 = vld [vmem:[%s6188 + $0x1a8] sm:$0xff]
    %v6243 = vld [vmem:[%s6188 + $0x1b0] sm:$0xff]
    %v6244 = vld [vmem:[%s6188 + $0x1b8] sm:$0xff]
    %v6245 = vld [vmem:[%s6188 + $0x1c0] sm:$0xff]
    %v6246 = vld [vmem:[%s6188 + $0x1c8] sm:$0xff]
    %v6247 = vld [vmem:[%s6188 + $0x1d0] sm:$0xff]
    %v6248 = vld [vmem:[%s6188 + $0x1d8] sm:$0xff]
    %v6249 = vld [vmem:[%s6188 + $0x1e0] sm:$0xff]
    %v6250 = vld [vmem:[%s6188 + $0x1e8] sm:$0xff]
    %v6251 = vld [vmem:[%s6188 + $0x1f0] sm:$0xff]
    %v6252 = vld [vmem:[%s6188 + $0x1f8] sm:$0xff]
    %v6317 = vunpack.c.l.b16 %v6189
    %v6318 = vunpack.c.h.b16 %v6189
    %v6319 = vunpack.c.l.b16 %v6190
    %v6320 = vunpack.c.h.b16 %v6190
    %v6321 = vunpack.c.l.b16 %v6191
    %v6322 = vunpack.c.h.b16 %v6191
    %v6323 = vunpack.c.l.b16 %v6192
    %v6324 = vunpack.c.h.b16 %v6192
    %v6325 = vunpack.c.l.b16 %v6193
    %v6326 = vunpack.c.h.b16 %v6193
    %v6327 = vunpack.c.l.b16 %v6194
    %v6328 = vunpack.c.h.b16 %v6194
    %v6329 = vunpack.c.l.b16 %v6195
    %v6330 = vunpack.c.h.b16 %v6195
    %v6331 = vunpack.c.l.b16 %v6196
    %v6332 = vunpack.c.h.b16 %v6196
    %v6333 = vunpack.c.l.b16 %v6197
    %v6334 = vunpack.c.h.b16 %v6197
    %v6335 = vunpack.c.l.b16 %v6198
    %v6336 = vunpack.c.h.b16 %v6198
    %v6337 = vunpack.c.l.b16 %v6199
    %v6338 = vunpack.c.h.b16 %v6199
    %v6339 = vunpack.c.l.b16 %v6200
    %v6340 = vunpack.c.h.b16 %v6200
    %v6341 = vunpack.c.l.b16 %v6201
    %v6342 = vunpack.c.h.b16 %v6201
    %v6343 = vunpack.c.l.b16 %v6202
    %v6344 = vunpack.c.h.b16 %v6202
    %v6345 = vunpack.c.l.b16 %v6203
    %v6346 = vunpack.c.h.b16 %v6203
    %v6347 = vunpack.c.l.b16 %v6204
    %v6348 = vunpack.c.h.b16 %v6204
    %v6349 = vunpack.c.l.b16 %v6205
    %v6350 = vunpack.c.h.b16 %v6205
    %v6351 = vunpack.c.l.b16 %v6206
    %v6352 = vunpack.c.h.b16 %v6206
    %v6353 = vunpack.c.l.b16 %v6207
    %v6354 = vunpack.c.h.b16 %v6207
    %v6355 = vunpack.c.l.b16 %v6208
    %v6356 = vunpack.c.h.b16 %v6208
    %v6357 = vunpack.c.l.b16 %v6209
    %v6358 = vunpack.c.h.b16 %v6209
    %v6359 = vunpack.c.l.b16 %v6210
    %v6360 = vunpack.c.h.b16 %v6210
    %v6361 = vunpack.c.l.b16 %v6211
    %v6362 = vunpack.c.h.b16 %v6211
    %v6363 = vunpack.c.l.b16 %v6212
    %v6364 = vunpack.c.h.b16 %v6212
    %v6365 = vunpack.c.l.b16 %v6213
    %v6366 = vunpack.c.h.b16 %v6213
    %v6367 = vunpack.c.l.b16 %v6214
    %v6368 = vunpack.c.h.b16 %v6214
    %v6369 = vunpack.c.l.b16 %v6215
    %v6370 = vunpack.c.h.b16 %v6215
    %v6371 = vunpack.c.l.b16 %v6216
    %v6372 = vunpack.c.h.b16 %v6216
    %v6373 = vunpack.c.l.b16 %v6217
    %v6374 = vunpack.c.h.b16 %v6217
    %v6375 = vunpack.c.l.b16 %v6218
    %v6376 = vunpack.c.h.b16 %v6218
    %v6377 = vunpack.c.l.b16 %v6219
    %v6378 = vunpack.c.h.b16 %v6219
    %v6379 = vunpack.c.l.b16 %v6220
    %v6380 = vunpack.c.h.b16 %v6220
    %v6381 = vunpack.c.l.b16 %v6221
    %v6382 = vunpack.c.h.b16 %v6221
    %v6383 = vunpack.c.l.b16 %v6222
    %v6384 = vunpack.c.h.b16 %v6222
    %v6385 = vunpack.c.l.b16 %v6223
    %v6386 = vunpack.c.h.b16 %v6223
    %v6387 = vunpack.c.l.b16 %v6224
    %v6388 = vunpack.c.h.b16 %v6224
    %v6389 = vunpack.c.l.b16 %v6225
    %v6390 = vunpack.c.h.b16 %v6225
    %v6391 = vunpack.c.l.b16 %v6226
    %v6392 = vunpack.c.h.b16 %v6226
    %v6393 = vunpack.c.l.b16 %v6227
    %v6394 = vunpack.c.h.b16 %v6227
    %v6395 = vunpack.c.l.b16 %v6228
    %v6396 = vunpack.c.h.b16 %v6228
    %v6397 = vunpack.c.l.b16 %v6229
    %v6398 = vunpack.c.h.b16 %v6229
    %v6399 = vunpack.c.l.b16 %v6230
    %v6400 = vunpack.c.h.b16 %v6230
    %v6401 = vunpack.c.l.b16 %v6231
    %v6402 = vunpack.c.h.b16 %v6231
    %v6403 = vunpack.c.l.b16 %v6232
    %v6404 = vunpack.c.h.b16 %v6232
    %v6405 = vunpack.c.l.b16 %v6233
    %v6406 = vunpack.c.h.b16 %v6233
    %v6407 = vunpack.c.l.b16 %v6234
    %v6408 = vunpack.c.h.b16 %v6234
    %v6409 = vunpack.c.l.b16 %v6235
    %v6410 = vunpack.c.h.b16 %v6235
    %v6411 = vunpack.c.l.b16 %v6236
    %v6412 = vunpack.c.h.b16 %v6236
    %v6413 = vunpack.c.l.b16 %v6237
    %v6414 = vunpack.c.h.b16 %v6237
    %v6415 = vunpack.c.l.b16 %v6238
    %v6416 = vunpack.c.h.b16 %v6238
    %v6417 = vunpack.c.l.b16 %v6239
    %v6418 = vunpack.c.h.b16 %v6239
    %v6419 = vunpack.c.l.b16 %v6240
    %v6420 = vunpack.c.h.b16 %v6240
    %v6421 = vunpack.c.l.b16 %v6241
    %v6422 = vunpack.c.h.b16 %v6241
    %v6423 = vunpack.c.l.b16 %v6242
    %v6424 = vunpack.c.h.b16 %v6242
    %v6425 = vunpack.c.l.b16 %v6243
    %v6426 = vunpack.c.h.b16 %v6243
    %v6427 = vunpack.c.l.b16 %v6244
    %v6428 = vunpack.c.h.b16 %v6244
    %v6429 = vunpack.c.l.b16 %v6245
    %v6430 = vunpack.c.h.b16 %v6245
    %v6431 = vunpack.c.l.b16 %v6246
    %v6432 = vunpack.c.h.b16 %v6246
    %v6433 = vunpack.c.l.b16 %v6247
    %v6434 = vunpack.c.h.b16 %v6247
    %v6435 = vunpack.c.l.b16 %v6248
    %v6436 = vunpack.c.h.b16 %v6248
    %v6437 = vunpack.c.l.b16 %v6249
    %v6438 = vunpack.c.h.b16 %v6249
    %v6439 = vunpack.c.l.b16 %v6250
    %v6440 = vunpack.c.h.b16 %v6250
    %v6441 = vunpack.c.l.b16 %v6251
    %v6442 = vunpack.c.h.b16 %v6251
    %v6443 = vunpack.c.l.b16 %v6252
    %v6444 = vunpack.c.h.b16 %v6252
    %v6445 = vpack.c.b16 %v6325, %v6317
    %v6446 = vpack.c.b16 %v6326, %v6318
    %v6447 = vpack.c.b16 %v6327, %v6319
    %v6448 = vpack.c.b16 %v6328, %v6320
    %v6449 = vpack.c.b16 %v6329, %v6321
    %v6450 = vpack.c.b16 %v6330, %v6322
    %v6451 = vpack.c.b16 %v6331, %v6323
    %v6452 = vpack.c.b16 %v6332, %v6324
    %v6453 = vpack.c.b16 %v6341, %v6333
    %v6454 = vpack.c.b16 %v6342, %v6334
    %v6455 = vpack.c.b16 %v6343, %v6335
    %v6456 = vpack.c.b16 %v6344, %v6336
    %v6457 = vpack.c.b16 %v6345, %v6337
    %v6458 = vpack.c.b16 %v6346, %v6338
    %v6459 = vpack.c.b16 %v6347, %v6339
    %v6460 = vpack.c.b16 %v6348, %v6340
    %v6461 = vpack.c.b16 %v6357, %v6349
    %v6462 = vpack.c.b16 %v6358, %v6350
    %v6463 = vpack.c.b16 %v6359, %v6351
    %v6464 = vpack.c.b16 %v6360, %v6352
    %v6465 = vpack.c.b16 %v6361, %v6353
    %v6466 = vpack.c.b16 %v6362, %v6354
    %v6467 = vpack.c.b16 %v6363, %v6355
    %v6468 = vpack.c.b16 %v6364, %v6356
    %v6469 = vpack.c.b16 %v6373, %v6365
    %v6470 = vpack.c.b16 %v6374, %v6366
    %v6471 = vpack.c.b16 %v6375, %v6367
    %v6472 = vpack.c.b16 %v6376, %v6368
    %v6473 = vpack.c.b16 %v6377, %v6369
    %v6474 = vpack.c.b16 %v6378, %v6370
    %v6475 = vpack.c.b16 %v6379, %v6371
    %v6476 = vpack.c.b16 %v6380, %v6372
    %v6477 = vpack.c.b16 %v6389, %v6381
    %v6478 = vpack.c.b16 %v6390, %v6382
    %v6479 = vpack.c.b16 %v6391, %v6383
    %v6480 = vpack.c.b16 %v6392, %v6384
    %v6481 = vpack.c.b16 %v6393, %v6385
    %v6482 = vpack.c.b16 %v6394, %v6386
    %v6483 = vpack.c.b16 %v6395, %v6387
    %v6484 = vpack.c.b16 %v6396, %v6388
    %v6485 = vpack.c.b16 %v6405, %v6397
    %v6486 = vpack.c.b16 %v6406, %v6398
    %v6487 = vpack.c.b16 %v6407, %v6399
    %v6488 = vpack.c.b16 %v6408, %v6400
    %v6489 = vpack.c.b16 %v6409, %v6401
    %v6490 = vpack.c.b16 %v6410, %v6402
    %v6491 = vpack.c.b16 %v6411, %v6403
    %v6492 = vpack.c.b16 %v6412, %v6404
    %v6493 = vpack.c.b16 %v6421, %v6413
    %v6494 = vpack.c.b16 %v6422, %v6414
    %v6495 = vpack.c.b16 %v6423, %v6415
    %v6496 = vpack.c.b16 %v6424, %v6416
    %v6497 = vpack.c.b16 %v6425, %v6417
    %v6498 = vpack.c.b16 %v6426, %v6418
    %v6499 = vpack.c.b16 %v6427, %v6419
    %v6500 = vpack.c.b16 %v6428, %v6420
    %v6501 = vpack.c.b16 %v6437, %v6429
    %v6502 = vpack.c.b16 %v6438, %v6430
    %v6503 = vpack.c.b16 %v6439, %v6431
    %v6504 = vpack.c.b16 %v6440, %v6432
    %v6505 = vpack.c.b16 %v6441, %v6433
    %v6506 = vpack.c.b16 %v6442, %v6434
    %v6507 = vpack.c.b16 %v6443, %v6435
    %v6508 = vpack.c.b16 %v6444, %v6436
    %6573 = vmatprep.subr.bf16.mxu0 %v6502
    %6574 = vmatpush1.bf16.msra.mxu0 %v6501
    %6575 = vmatprep.subr.bf16.mxu0 %v6494
    %6576 = vmatpush1.bf16.msra.mxu0 %v6493
    %6577 = vmatprep.subr.bf16.mxu0 %v6486
    %6578 = vmatpush1.bf16.msra.mxu0 %v6485
    %6579 = vmatprep.subr.bf16.mxu0 %v6478
    %6580 = vmatpush1.bf16.msra.mxu0 %v6477
    %6581 = vmatprep.subr.bf16.mxu0 %v6470
    %6582 = vmatpush1.bf16.msra.mxu0 %v6469
    %6583 = vmatprep.subr.bf16.mxu0 %v6462
    %6584 = vmatpush1.bf16.msra.mxu0 %v6461
    %6585 = vmatprep.subr.bf16.mxu0 %v6454
    %6586 = vmatpush1.bf16.msra.mxu0 %v6453
    %6587 = vmatprep.subr.bf16.mxu0 %v6446
    %6588 = vmatpush1.bf16.msra.mxu0 %v6445
    %6589 = vmatprep.subr.bf16.mxu0 0
    %6590 = vmatpush2.bf16.msra.mxu0 0
    %6591 = vmatprep.subr.bf16.mxu0 0
    %6592 = vmatpush2.bf16.msra.mxu0 0
    %6593 = vmatprep.subr.bf16.mxu0 0
    %6594 = vmatpush2.bf16.msra.mxu0 0
    %6595 = vmatprep.subr.bf16.mxu0 0
    %6596 = vmatpush2.bf16.msra.mxu0 0
    %6597 = vmatprep.subr.bf16.mxu0 0
    %6598 = vmatpush2.bf16.msra.mxu0 0
    %6599 = vmatprep.subr.bf16.mxu0 0
    %6600 = vmatpush2.bf16.msra.mxu0 0
    %6601 = vmatprep.subr.bf16.mxu0 0
    %6602 = vmatpush2.bf16.msra.mxu0 0
    %6603 = vmatprep.subr.bf16.mxu0 0
    %6604 = vmatpush2.bf16.msra.mxu0 0
    %6605 = vmatprep.mubr.bf16.mxu0 0
    %6606 = vmatmul.mubr.bf16.gmra.mxu0 %v6187
    %v6607 = vpop.f32.mrf.mxu0
    %v6608 = vadd.f32 0.0, %v6607
    %v6609 = vpop.f32.mrf.mxu0
    %v6610 = vadd.f32 0.0, %v6609
    %v6611 = vpop.f32.mrf.mxu0
    %v6612 = vpop.f32.mrf.mxu0
    %6613 = vdwg.mxu0
    %6614 = vmatprep.subr.bf16.mxu0 %v6504
    %6615 = vmatpush1.bf16.msra.mxu0 %v6503
    %6616 = vmatprep.subr.bf16.mxu0 %v6496
    %6617 = vmatpush1.bf16.msra.mxu0 %v6495
    %6618 = vmatprep.subr.bf16.mxu0 %v6488
    %6619 = vmatpush1.bf16.msra.mxu0 %v6487
    %6620 = vmatprep.subr.bf16.mxu0 %v6480
    %6621 = vmatpush1.bf16.msra.mxu0 %v6479
    %6622 = vmatprep.subr.bf16.mxu0 %v6472
    %6623 = vmatpush1.bf16.msra.mxu0 %v6471
    %6624 = vmatprep.subr.bf16.mxu0 %v6464
    %6625 = vmatpush1.bf16.msra.mxu0 %v6463
    %6626 = vmatprep.subr.bf16.mxu0 %v6456
    %6627 = vmatpush1.bf16.msra.mxu0 %v6455
    %6628 = vmatprep.subr.bf16.mxu0 %v6448
    %6629 = vmatpush1.bf16.msra.mxu0 %v6447
    %6630 = vmatprep.subr.bf16.mxu0 0
    %6631 = vmatpush2.bf16.msra.mxu0 0
    %6632 = vmatprep.subr.bf16.mxu0 0
    %6633 = vmatpush2.bf16.msra.mxu0 0
    %6634 = vmatprep.subr.bf16.mxu0 0
    %6635 = vmatpush2.bf16.msra.mxu0 0
    %6636 = vmatprep.subr.bf16.mxu0 0
    %6637 = vmatpush2.bf16.msra.mxu0 0
    %6638 = vmatprep.subr.bf16.mxu0 0
    %6639 = vmatpush2.bf16.msra.mxu0 0
    %6640 = vmatprep.subr.bf16.mxu0 0
    %6641 = vmatpush2.bf16.msra.mxu0 0
    %6642 = vmatprep.subr.bf16.mxu0 0
    %6643 = vmatpush2.bf16.msra.mxu0 0
    %6644 = vmatprep.subr.bf16.mxu0 0
    %6645 = vmatpush2.bf16.msra.mxu0 0
    %6646 = vmatprep.mubr.bf16.mxu0 0
    %6647 = vmatmul.mubr.bf16.gmra.mxu0 %v6187
    %v6648 = vpop.f32.mrf.mxu0
    %v6649 = vadd.f32 0.0, %v6648
    %v6650 = vpop.f32.mrf.mxu0
    %v6651 = vadd.f32 0.0, %v6650
    %v6652 = vpop.f32.mrf.mxu0
    %v6653 = vpop.f32.mrf.mxu0
    %6654 = vdwg.mxu0
    %6655 = vmatprep.subr.bf16.mxu0 %v6506
    %6656 = vmatpush1.bf16.msra.mxu0 %v6505
    %6657 = vmatprep.subr.bf16.mxu0 %v6498
    %6658 = vmatpush1.bf16.msra.mxu0 %v6497
    %6659 = vmatprep.subr.bf16.mxu0 %v6490
    %6660 = vmatpush1.bf16.msra.mxu0 %v6489
    %6661 = vmatprep.subr.bf16.mxu0 %v6482
    %6662 = vmatpush1.bf16.msra.mxu0 %v6481
    %6663 = vmatprep.subr.bf16.mxu0 %v6474
    %6664 = vmatpush1.bf16.msra.mxu0 %v6473
    %6665 = vmatprep.subr.bf16.mxu0 %v6466
    %6666 = vmatpush1.bf16.msra.mxu0 %v6465
    %6667 = vmatprep.subr.bf16.mxu0 %v6458
    %6668 = vmatpush1.bf16.msra.mxu0 %v6457
    %6669 = vmatprep.subr.bf16.mxu0 %v6450
    %6670 = vmatpush1.bf16.msra.mxu0 %v6449
    %6671 = vmatprep.subr.bf16.mxu0 0
    %6672 = vmatpush2.bf16.msra.mxu0 0
    %6673 = vmatprep.subr.bf16.mxu0 0
    %6674 = vmatpush2.bf16.msra.mxu0 0
    %6675 = vmatprep.subr.bf16.mxu0 0
    %6676 = vmatpush2.bf16.msra.mxu0 0
    %6677 = vmatprep.subr.bf16.mxu0 0
    %6678 = vmatpush2.bf16.msra.mxu0 0
    %6679 = vmatprep.subr.bf16.mxu0 0
    %6680 = vmatpush2.bf16.msra.mxu0 0
    %6681 = vmatprep.subr.bf16.mxu0 0
    %6682 = vmatpush2.bf16.msra.mxu0 0
    %6683 = vmatprep.subr.bf16.mxu0 0
    %6684 = vmatpush2.bf16.msra.mxu0 0
    %6685 = vmatprep.subr.bf16.mxu0 0
    %6686 = vmatpush2.bf16.msra.mxu0 0
    %6687 = vmatprep.mubr.bf16.mxu0 0
    %6688 = vmatmul.mubr.bf16.gmra.mxu0 %v6187
    %v6689 = vpop.f32.mrf.mxu0
    %v6690 = vadd.f32 0.0, %v6689
    %v6691 = vpop.f32.mrf.mxu0
    %v6692 = vadd.f32 0.0, %v6691
    %v6693 = vpop.f32.mrf.mxu0
    %v6694 = vpop.f32.mrf.mxu0
    %6695 = vdwg.mxu0
    %6696 = vmatprep.subr.bf16.mxu0 %v6508
    %6697 = vmatpush1.bf16.msra.mxu0 %v6507
    %6698 = vmatprep.subr.bf16.mxu0 %v6500
    %6699 = vmatpush1.bf16.msra.mxu0 %v6499
    %6700 = vmatprep.subr.bf16.mxu0 %v6492
    %6701 = vmatpush1.bf16.msra.mxu0 %v6491
    %6702 = vmatprep.subr.bf16.mxu0 %v6484
    %6703 = vmatpush1.bf16.msra.mxu0 %v6483
    %6704 = vmatprep.subr.bf16.mxu0 %v6476
    %6705 = vmatpush1.bf16.msra.mxu0 %v6475
    %6706 = vmatprep.subr.bf16.mxu0 %v6468
    %6707 = vmatpush1.bf16.msra.mxu0 %v6467
    %6708 = vmatprep.subr.bf16.mxu0 %v6460
    %6709 = vmatpush1.bf16.msra.mxu0 %v6459
    %6710 = vmatprep.subr.bf16.mxu0 %v6452
    %6711 = vmatpush1.bf16.msra.mxu0 %v6451
    %6712 = vmatprep.subr.bf16.mxu0 0
    %6713 = vmatpush2.bf16.msra.mxu0 0
    %6714 = vmatprep.subr.bf16.mxu0 0
    %6715 = vmatpush2.bf16.msra.mxu0 0
    %6716 = vmatprep.subr.bf16.mxu0 0
    %6717 = vmatpush2.bf16.msra.mxu0 0
    %6718 = vmatprep.subr.bf16.mxu0 0
    %6719 = vmatpush2.bf16.msra.mxu0 0
    %6720 = vmatprep.subr.bf16.mxu0 0
    %6721 = vmatpush2.bf16.msra.mxu0 0
    %6722 = vmatprep.subr.bf16.mxu0 0
    %6723 = vmatpush2.bf16.msra.mxu0 0
    %6724 = vmatprep.subr.bf16.mxu0 0
    %6725 = vmatpush2.bf16.msra.mxu0 0
    %6726 = vmatprep.subr.bf16.mxu0 0
    %6727 = vmatpush2.bf16.msra.mxu0 0
    %6728 = vmatprep.mubr.bf16.mxu0 0
    %6729 = vmatmul.mubr.bf16.gmra.mxu0 %v6187
    %v6730 = vpop.f32.mrf.mxu0
    %v6731 = vadd.f32 0.0, %v6730
    %v6732 = vpop.f32.mrf.mxu0
    %v6733 = vadd.f32 0.0, %v6732
    %v6734 = vpop.f32.mrf.mxu0
    %v6735 = vpop.f32.mrf.mxu0
    %6736 = vdwg.mxu0
    %v6737 = vadd.f32 %v6133, %v6608
    %v6738 = vadd.f32 %v6134, %v6610
    %v6739 = vadd.f32 %v6135, %v6649
    %v6740 = vadd.f32 %v6136, %v6651
    %v6741 = vadd.f32 %v6137, %v6690
    %v6742 = vadd.f32 %v6138, %v6692
    %v6743 = vadd.f32 %v6139, %v6731
    %v6744 = vadd.f32 %v6140, %v6733
    %s6745 = scalar_lea.vmem %s0, 44
    %v6746 = vld [vmem:[%s6745] sm:$0xf]
    %v6748 = vsel %vm119, %v6746, 0
    %6750 = vmatprep.subr.bf16.mxu0 0
    %6751 = vmatpush1.bf16.msra.mxu0 0
    %6752 = vmatprep.subr.bf16.mxu0 0
    %6753 = vmatpush1.bf16.msra.mxu0 0
    %6754 = vmatprep.subr.bf16.mxu0 0
    %6755 = vmatpush1.bf16.msra.mxu0 0
    %6756 = vmatprep.subr.bf16.mxu0 0
    %6757 = vmatpush1.bf16.msra.mxu0 0
    %6758 = vmatprep.subr.bf16.mxu0 0
    %6759 = vmatpush1.bf16.msra.mxu0 0
    %6760 = vmatprep.subr.bf16.mxu0 0
    %6761 = vmatpush1.bf16.msra.mxu0 0
    %6762 = vmatprep.subr.bf16.mxu0 0
    %6763 = vmatpush1.bf16.msra.mxu0 0
    %6764 = vmatprep.subr.bf16.mxu0 0
    %6765 = vmatpush1.bf16.msra.mxu0 %v117
    %6766 = vmatprep.subr.bf16.mxu0 0
    %6767 = vmatpush2.bf16.msra.mxu0 0
    %6768 = vmatprep.subr.bf16.mxu0 0
    %6769 = vmatpush2.bf16.msra.mxu0 0
    %6770 = vmatprep.subr.bf16.mxu0 0
    %6771 = vmatpush2.bf16.msra.mxu0 0
    %6772 = vmatprep.subr.bf16.mxu0 0
    %6773 = vmatpush2.bf16.msra.mxu0 0
    %6774 = vmatprep.subr.bf16.mxu0 0
    %6775 = vmatpush2.bf16.msra.mxu0 0
    %6776 = vmatprep.subr.bf16.mxu0 0
    %6777 = vmatpush2.bf16.msra.mxu0 0
    %6778 = vmatprep.subr.bf16.mxu0 0
    %6779 = vmatpush2.bf16.msra.mxu0 0
    %6780 = vmatprep.subr.bf16.mxu0 0
    %6781 = vmatpush2.bf16.msra.mxu0 0
    %6782 = vmatprep.mubr.bf16.mxu0 0
    %6783 = vmatmul.mubr.bf16.gmra.mxu0 %v6748
    %v6784 = vpop.f32.mrf.mxu0
    %v6785 = vadd.f32 %v111, %v6784
    %v6786 = vpop.f32.mrf.mxu0
    %v6787 = vpop.f32.mrf.mxu0
    %v6788 = vpop.f32.mrf.mxu0
    %6789 = vdwg.mxu0
    %v6790 = vmax.f32 %v6785, 0.0
    %v6791 = vpack.c.bf16 %v6790, %v6790
    %s6792 = scalar_lea.vmem [#allocation6], 5632
    %v6793 = vld [vmem:[%s6792] sm:$0xff]
    %v6794 = vld [vmem:[%s6792 + $0x8] sm:$0xff]
    %v6795 = vld [vmem:[%s6792 + $0x10] sm:$0xff]
    %v6796 = vld [vmem:[%s6792 + $0x18] sm:$0xff]
    %v6797 = vld [vmem:[%s6792 + $0x20] sm:$0xff]
    %v6798 = vld [vmem:[%s6792 + $0x28] sm:$0xff]
    %v6799 = vld [vmem:[%s6792 + $0x30] sm:$0xff]
    %v6800 = vld [vmem:[%s6792 + $0x38] sm:$0xff]
    %v6801 = vld [vmem:[%s6792 + $0x40] sm:$0xff]
    %v6802 = vld [vmem:[%s6792 + $0x48] sm:$0xff]
    %v6803 = vld [vmem:[%s6792 + $0x50] sm:$0xff]
    %v6804 = vld [vmem:[%s6792 + $0x58] sm:$0xff]
    %v6805 = vld [vmem:[%s6792 + $0x60] sm:$0xff]
    %v6806 = vld [vmem:[%s6792 + $0x68] sm:$0xff]
    %v6807 = vld [vmem:[%s6792 + $0x70] sm:$0xff]
    %v6808 = vld [vmem:[%s6792 + $0x78] sm:$0xff]
    %v6809 = vld [vmem:[%s6792 + $0x80] sm:$0xff]
    %v6810 = vld [vmem:[%s6792 + $0x88] sm:$0xff]
    %v6811 = vld [vmem:[%s6792 + $0x90] sm:$0xff]
    %v6812 = vld [vmem:[%s6792 + $0x98] sm:$0xff]
    %v6813 = vld [vmem:[%s6792 + $0xa0] sm:$0xff]
    %v6814 = vld [vmem:[%s6792 + $0xa8] sm:$0xff]
    %v6815 = vld [vmem:[%s6792 + $0xb0] sm:$0xff]
    %v6816 = vld [vmem:[%s6792 + $0xb8] sm:$0xff]
    %v6817 = vld [vmem:[%s6792 + $0xc0] sm:$0xff]
    %v6818 = vld [vmem:[%s6792 + $0xc8] sm:$0xff]
    %v6819 = vld [vmem:[%s6792 + $0xd0] sm:$0xff]
    %v6820 = vld [vmem:[%s6792 + $0xd8] sm:$0xff]
    %v6821 = vld [vmem:[%s6792 + $0xe0] sm:$0xff]
    %v6822 = vld [vmem:[%s6792 + $0xe8] sm:$0xff]
    %v6823 = vld [vmem:[%s6792 + $0xf0] sm:$0xff]
    %v6824 = vld [vmem:[%s6792 + $0xf8] sm:$0xff]
    %v6825 = vld [vmem:[%s6792 + $0x100] sm:$0xff]
    %v6826 = vld [vmem:[%s6792 + $0x108] sm:$0xff]
    %v6827 = vld [vmem:[%s6792 + $0x110] sm:$0xff]
    %v6828 = vld [vmem:[%s6792 + $0x118] sm:$0xff]
    %v6829 = vld [vmem:[%s6792 + $0x120] sm:$0xff]
    %v6830 = vld [vmem:[%s6792 + $0x128] sm:$0xff]
    %v6831 = vld [vmem:[%s6792 + $0x130] sm:$0xff]
    %v6832 = vld [vmem:[%s6792 + $0x138] sm:$0xff]
    %v6833 = vld [vmem:[%s6792 + $0x140] sm:$0xff]
    %v6834 = vld [vmem:[%s6792 + $0x148] sm:$0xff]
    %v6835 = vld [vmem:[%s6792 + $0x150] sm:$0xff]
    %v6836 = vld [vmem:[%s6792 + $0x158] sm:$0xff]
    %v6837 = vld [vmem:[%s6792 + $0x160] sm:$0xff]
    %v6838 = vld [vmem:[%s6792 + $0x168] sm:$0xff]
    %v6839 = vld [vmem:[%s6792 + $0x170] sm:$0xff]
    %v6840 = vld [vmem:[%s6792 + $0x178] sm:$0xff]
    %v6841 = vld [vmem:[%s6792 + $0x180] sm:$0xff]
    %v6842 = vld [vmem:[%s6792 + $0x188] sm:$0xff]
    %v6843 = vld [vmem:[%s6792 + $0x190] sm:$0xff]
    %v6844 = vld [vmem:[%s6792 + $0x198] sm:$0xff]
    %v6845 = vld [vmem:[%s6792 + $0x1a0] sm:$0xff]
    %v6846 = vld [vmem:[%s6792 + $0x1a8] sm:$0xff]
    %v6847 = vld [vmem:[%s6792 + $0x1b0] sm:$0xff]
    %v6848 = vld [vmem:[%s6792 + $0x1b8] sm:$0xff]
    %v6849 = vld [vmem:[%s6792 + $0x1c0] sm:$0xff]
    %v6850 = vld [vmem:[%s6792 + $0x1c8] sm:$0xff]
    %v6851 = vld [vmem:[%s6792 + $0x1d0] sm:$0xff]
    %v6852 = vld [vmem:[%s6792 + $0x1d8] sm:$0xff]
    %v6853 = vld [vmem:[%s6792 + $0x1e0] sm:$0xff]
    %v6854 = vld [vmem:[%s6792 + $0x1e8] sm:$0xff]
    %v6855 = vld [vmem:[%s6792 + $0x1f0] sm:$0xff]
    %v6856 = vld [vmem:[%s6792 + $0x1f8] sm:$0xff]
    %v6921 = vunpack.c.l.b16 %v6793
    %v6922 = vunpack.c.h.b16 %v6793
    %v6923 = vunpack.c.l.b16 %v6794
    %v6924 = vunpack.c.h.b16 %v6794
    %v6925 = vunpack.c.l.b16 %v6795
    %v6926 = vunpack.c.h.b16 %v6795
    %v6927 = vunpack.c.l.b16 %v6796
    %v6928 = vunpack.c.h.b16 %v6796
    %v6929 = vunpack.c.l.b16 %v6797
    %v6930 = vunpack.c.h.b16 %v6797
    %v6931 = vunpack.c.l.b16 %v6798
    %v6932 = vunpack.c.h.b16 %v6798
    %v6933 = vunpack.c.l.b16 %v6799
    %v6934 = vunpack.c.h.b16 %v6799
    %v6935 = vunpack.c.l.b16 %v6800
    %v6936 = vunpack.c.h.b16 %v6800
    %v6937 = vunpack.c.l.b16 %v6801
    %v6938 = vunpack.c.h.b16 %v6801
    %v6939 = vunpack.c.l.b16 %v6802
    %v6940 = vunpack.c.h.b16 %v6802
    %v6941 = vunpack.c.l.b16 %v6803
    %v6942 = vunpack.c.h.b16 %v6803
    %v6943 = vunpack.c.l.b16 %v6804
    %v6944 = vunpack.c.h.b16 %v6804
    %v6945 = vunpack.c.l.b16 %v6805
    %v6946 = vunpack.c.h.b16 %v6805
    %v6947 = vunpack.c.l.b16 %v6806
    %v6948 = vunpack.c.h.b16 %v6806
    %v6949 = vunpack.c.l.b16 %v6807
    %v6950 = vunpack.c.h.b16 %v6807
    %v6951 = vunpack.c.l.b16 %v6808
    %v6952 = vunpack.c.h.b16 %v6808
    %v6953 = vunpack.c.l.b16 %v6809
    %v6954 = vunpack.c.h.b16 %v6809
    %v6955 = vunpack.c.l.b16 %v6810
    %v6956 = vunpack.c.h.b16 %v6810
    %v6957 = vunpack.c.l.b16 %v6811
    %v6958 = vunpack.c.h.b16 %v6811
    %v6959 = vunpack.c.l.b16 %v6812
    %v6960 = vunpack.c.h.b16 %v6812
    %v6961 = vunpack.c.l.b16 %v6813
    %v6962 = vunpack.c.h.b16 %v6813
    %v6963 = vunpack.c.l.b16 %v6814
    %v6964 = vunpack.c.h.b16 %v6814
    %v6965 = vunpack.c.l.b16 %v6815
    %v6966 = vunpack.c.h.b16 %v6815
    %v6967 = vunpack.c.l.b16 %v6816
    %v6968 = vunpack.c.h.b16 %v6816
    %v6969 = vunpack.c.l.b16 %v6817
    %v6970 = vunpack.c.h.b16 %v6817
    %v6971 = vunpack.c.l.b16 %v6818
    %v6972 = vunpack.c.h.b16 %v6818
    %v6973 = vunpack.c.l.b16 %v6819
    %v6974 = vunpack.c.h.b16 %v6819
    %v6975 = vunpack.c.l.b16 %v6820
    %v6976 = vunpack.c.h.b16 %v6820
    %v6977 = vunpack.c.l.b16 %v6821
    %v6978 = vunpack.c.h.b16 %v6821
    %v6979 = vunpack.c.l.b16 %v6822
    %v6980 = vunpack.c.h.b16 %v6822
    %v6981 = vunpack.c.l.b16 %v6823
    %v6982 = vunpack.c.h.b16 %v6823
    %v6983 = vunpack.c.l.b16 %v6824
    %v6984 = vunpack.c.h.b16 %v6824
    %v6985 = vunpack.c.l.b16 %v6825
    %v6986 = vunpack.c.h.b16 %v6825
    %v6987 = vunpack.c.l.b16 %v6826
    %v6988 = vunpack.c.h.b16 %v6826
    %v6989 = vunpack.c.l.b16 %v6827
    %v6990 = vunpack.c.h.b16 %v6827
    %v6991 = vunpack.c.l.b16 %v6828
    %v6992 = vunpack.c.h.b16 %v6828
    %v6993 = vunpack.c.l.b16 %v6829
    %v6994 = vunpack.c.h.b16 %v6829
    %v6995 = vunpack.c.l.b16 %v6830
    %v6996 = vunpack.c.h.b16 %v6830
    %v6997 = vunpack.c.l.b16 %v6831
    %v6998 = vunpack.c.h.b16 %v6831
    %v6999 = vunpack.c.l.b16 %v6832
    %v7000 = vunpack.c.h.b16 %v6832
    %v7001 = vunpack.c.l.b16 %v6833
    %v7002 = vunpack.c.h.b16 %v6833
    %v7003 = vunpack.c.l.b16 %v6834
    %v7004 = vunpack.c.h.b16 %v6834
    %v7005 = vunpack.c.l.b16 %v6835
    %v7006 = vunpack.c.h.b16 %v6835
    %v7007 = vunpack.c.l.b16 %v6836
    %v7008 = vunpack.c.h.b16 %v6836
    %v7009 = vunpack.c.l.b16 %v6837
    %v7010 = vunpack.c.h.b16 %v6837
    %v7011 = vunpack.c.l.b16 %v6838
    %v7012 = vunpack.c.h.b16 %v6838
    %v7013 = vunpack.c.l.b16 %v6839
    %v7014 = vunpack.c.h.b16 %v6839
    %v7015 = vunpack.c.l.b16 %v6840
    %v7016 = vunpack.c.h.b16 %v6840
    %v7017 = vunpack.c.l.b16 %v6841
    %v7018 = vunpack.c.h.b16 %v6841
    %v7019 = vunpack.c.l.b16 %v6842
    %v7020 = vunpack.c.h.b16 %v6842
    %v7021 = vunpack.c.l.b16 %v6843
    %v7022 = vunpack.c.h.b16 %v6843
    %v7023 = vunpack.c.l.b16 %v6844
    %v7024 = vunpack.c.h.b16 %v6844
    %v7025 = vunpack.c.l.b16 %v6845
    %v7026 = vunpack.c.h.b16 %v6845
    %v7027 = vunpack.c.l.b16 %v6846
    %v7028 = vunpack.c.h.b16 %v6846
    %v7029 = vunpack.c.l.b16 %v6847
    %v7030 = vunpack.c.h.b16 %v6847
    %v7031 = vunpack.c.l.b16 %v6848
    %v7032 = vunpack.c.h.b16 %v6848
    %v7033 = vunpack.c.l.b16 %v6849
    %v7034 = vunpack.c.h.b16 %v6849
    %v7035 = vunpack.c.l.b16 %v6850
    %v7036 = vunpack.c.h.b16 %v6850
    %v7037 = vunpack.c.l.b16 %v6851
    %v7038 = vunpack.c.h.b16 %v6851
    %v7039 = vunpack.c.l.b16 %v6852
    %v7040 = vunpack.c.h.b16 %v6852
    %v7041 = vunpack.c.l.b16 %v6853
    %v7042 = vunpack.c.h.b16 %v6853
    %v7043 = vunpack.c.l.b16 %v6854
    %v7044 = vunpack.c.h.b16 %v6854
    %v7045 = vunpack.c.l.b16 %v6855
    %v7046 = vunpack.c.h.b16 %v6855
    %v7047 = vunpack.c.l.b16 %v6856
    %v7048 = vunpack.c.h.b16 %v6856
    %v7049 = vpack.c.b16 %v6929, %v6921
    %v7050 = vpack.c.b16 %v6930, %v6922
    %v7051 = vpack.c.b16 %v6931, %v6923
    %v7052 = vpack.c.b16 %v6932, %v6924
    %v7053 = vpack.c.b16 %v6933, %v6925
    %v7054 = vpack.c.b16 %v6934, %v6926
    %v7055 = vpack.c.b16 %v6935, %v6927
    %v7056 = vpack.c.b16 %v6936, %v6928
    %v7057 = vpack.c.b16 %v6945, %v6937
    %v7058 = vpack.c.b16 %v6946, %v6938
    %v7059 = vpack.c.b16 %v6947, %v6939
    %v7060 = vpack.c.b16 %v6948, %v6940
    %v7061 = vpack.c.b16 %v6949, %v6941
    %v7062 = vpack.c.b16 %v6950, %v6942
    %v7063 = vpack.c.b16 %v6951, %v6943
    %v7064 = vpack.c.b16 %v6952, %v6944
    %v7065 = vpack.c.b16 %v6961, %v6953
    %v7066 = vpack.c.b16 %v6962, %v6954
    %v7067 = vpack.c.b16 %v6963, %v6955
    %v7068 = vpack.c.b16 %v6964, %v6956
    %v7069 = vpack.c.b16 %v6965, %v6957
    %v7070 = vpack.c.b16 %v6966, %v6958
    %v7071 = vpack.c.b16 %v6967, %v6959
    %v7072 = vpack.c.b16 %v6968, %v6960
    %v7073 = vpack.c.b16 %v6977, %v6969
    %v7074 = vpack.c.b16 %v6978, %v6970
    %v7075 = vpack.c.b16 %v6979, %v6971
    %v7076 = vpack.c.b16 %v6980, %v6972
    %v7077 = vpack.c.b16 %v6981, %v6973
    %v7078 = vpack.c.b16 %v6982, %v6974
    %v7079 = vpack.c.b16 %v6983, %v6975
    %v7080 = vpack.c.b16 %v6984, %v6976
    %v7081 = vpack.c.b16 %v6993, %v6985
    %v7082 = vpack.c.b16 %v6994, %v6986
    %v7083 = vpack.c.b16 %v6995, %v6987
    %v7084 = vpack.c.b16 %v6996, %v6988
    %v7085 = vpack.c.b16 %v6997, %v6989
    %v7086 = vpack.c.b16 %v6998, %v6990
    %v7087 = vpack.c.b16 %v6999, %v6991
    %v7088 = vpack.c.b16 %v7000, %v6992
    %v7089 = vpack.c.b16 %v7009, %v7001
    %v7090 = vpack.c.b16 %v7010, %v7002
    %v7091 = vpack.c.b16 %v7011, %v7003
    %v7092 = vpack.c.b16 %v7012, %v7004
    %v7093 = vpack.c.b16 %v7013, %v7005
    %v7094 = vpack.c.b16 %v7014, %v7006
    %v7095 = vpack.c.b16 %v7015, %v7007
    %v7096 = vpack.c.b16 %v7016, %v7008
    %v7097 = vpack.c.b16 %v7025, %v7017
    %v7098 = vpack.c.b16 %v7026, %v7018
    %v7099 = vpack.c.b16 %v7027, %v7019
    %v7100 = vpack.c.b16 %v7028, %v7020
    %v7101 = vpack.c.b16 %v7029, %v7021
    %v7102 = vpack.c.b16 %v7030, %v7022
    %v7103 = vpack.c.b16 %v7031, %v7023
    %v7104 = vpack.c.b16 %v7032, %v7024
    %v7105 = vpack.c.b16 %v7041, %v7033
    %v7106 = vpack.c.b16 %v7042, %v7034
    %v7107 = vpack.c.b16 %v7043, %v7035
    %v7108 = vpack.c.b16 %v7044, %v7036
    %v7109 = vpack.c.b16 %v7045, %v7037
    %v7110 = vpack.c.b16 %v7046, %v7038
    %v7111 = vpack.c.b16 %v7047, %v7039
    %v7112 = vpack.c.b16 %v7048, %v7040
    %7177 = vmatprep.subr.bf16.mxu0 %v7106
    %7178 = vmatpush1.bf16.msra.mxu0 %v7105
    %7179 = vmatprep.subr.bf16.mxu0 %v7098
    %7180 = vmatpush1.bf16.msra.mxu0 %v7097
    %7181 = vmatprep.subr.bf16.mxu0 %v7090
    %7182 = vmatpush1.bf16.msra.mxu0 %v7089
    %7183 = vmatprep.subr.bf16.mxu0 %v7082
    %7184 = vmatpush1.bf16.msra.mxu0 %v7081
    %7185 = vmatprep.subr.bf16.mxu0 %v7074
    %7186 = vmatpush1.bf16.msra.mxu0 %v7073
    %7187 = vmatprep.subr.bf16.mxu0 %v7066
    %7188 = vmatpush1.bf16.msra.mxu0 %v7065
    %7189 = vmatprep.subr.bf16.mxu0 %v7058
    %7190 = vmatpush1.bf16.msra.mxu0 %v7057
    %7191 = vmatprep.subr.bf16.mxu0 %v7050
    %7192 = vmatpush1.bf16.msra.mxu0 %v7049
    %7193 = vmatprep.subr.bf16.mxu0 0
    %7194 = vmatpush2.bf16.msra.mxu0 0
    %7195 = vmatprep.subr.bf16.mxu0 0
    %7196 = vmatpush2.bf16.msra.mxu0 0
    %7197 = vmatprep.subr.bf16.mxu0 0
    %7198 = vmatpush2.bf16.msra.mxu0 0
    %7199 = vmatprep.subr.bf16.mxu0 0
    %7200 = vmatpush2.bf16.msra.mxu0 0
    %7201 = vmatprep.subr.bf16.mxu0 0
    %7202 = vmatpush2.bf16.msra.mxu0 0
    %7203 = vmatprep.subr.bf16.mxu0 0
    %7204 = vmatpush2.bf16.msra.mxu0 0
    %7205 = vmatprep.subr.bf16.mxu0 0
    %7206 = vmatpush2.bf16.msra.mxu0 0
    %7207 = vmatprep.subr.bf16.mxu0 0
    %7208 = vmatpush2.bf16.msra.mxu0 0
    %7209 = vmatprep.mubr.bf16.mxu0 0
    %7210 = vmatmul.mubr.bf16.gmra.mxu0 %v6791
    %v7211 = vpop.f32.mrf.mxu0
    %v7212 = vadd.f32 0.0, %v7211
    %v7213 = vpop.f32.mrf.mxu0
    %v7214 = vadd.f32 0.0, %v7213
    %v7215 = vpop.f32.mrf.mxu0
    %v7216 = vpop.f32.mrf.mxu0
    %7217 = vdwg.mxu0
    %7218 = vmatprep.subr.bf16.mxu0 %v7108
    %7219 = vmatpush1.bf16.msra.mxu0 %v7107
    %7220 = vmatprep.subr.bf16.mxu0 %v7100
    %7221 = vmatpush1.bf16.msra.mxu0 %v7099
    %7222 = vmatprep.subr.bf16.mxu0 %v7092
    %7223 = vmatpush1.bf16.msra.mxu0 %v7091
    %7224 = vmatprep.subr.bf16.mxu0 %v7084
    %7225 = vmatpush1.bf16.msra.mxu0 %v7083
    %7226 = vmatprep.subr.bf16.mxu0 %v7076
    %7227 = vmatpush1.bf16.msra.mxu0 %v7075
    %7228 = vmatprep.subr.bf16.mxu0 %v7068
    %7229 = vmatpush1.bf16.msra.mxu0 %v7067
    %7230 = vmatprep.subr.bf16.mxu0 %v7060
    %7231 = vmatpush1.bf16.msra.mxu0 %v7059
    %7232 = vmatprep.subr.bf16.mxu0 %v7052
    %7233 = vmatpush1.bf16.msra.mxu0 %v7051
    %7234 = vmatprep.subr.bf16.mxu0 0
    %7235 = vmatpush2.bf16.msra.mxu0 0
    %7236 = vmatprep.subr.bf16.mxu0 0
    %7237 = vmatpush2.bf16.msra.mxu0 0
    %7238 = vmatprep.subr.bf16.mxu0 0
    %7239 = vmatpush2.bf16.msra.mxu0 0
    %7240 = vmatprep.subr.bf16.mxu0 0
    %7241 = vmatpush2.bf16.msra.mxu0 0
    %7242 = vmatprep.subr.bf16.mxu0 0
    %7243 = vmatpush2.bf16.msra.mxu0 0
    %7244 = vmatprep.subr.bf16.mxu0 0
    %7245 = vmatpush2.bf16.msra.mxu0 0
    %7246 = vmatprep.subr.bf16.mxu0 0
    %7247 = vmatpush2.bf16.msra.mxu0 0
    %7248 = vmatprep.subr.bf16.mxu0 0
    %7249 = vmatpush2.bf16.msra.mxu0 0
    %7250 = vmatprep.mubr.bf16.mxu0 0
    %7251 = vmatmul.mubr.bf16.gmra.mxu0 %v6791
    %v7252 = vpop.f32.mrf.mxu0
    %v7253 = vadd.f32 0.0, %v7252
    %v7254 = vpop.f32.mrf.mxu0
    %v7255 = vadd.f32 0.0, %v7254
    %v7256 = vpop.f32.mrf.mxu0
    %v7257 = vpop.f32.mrf.mxu0
    %7258 = vdwg.mxu0
    %7259 = vmatprep.subr.bf16.mxu0 %v7110
    %7260 = vmatpush1.bf16.msra.mxu0 %v7109
    %7261 = vmatprep.subr.bf16.mxu0 %v7102
    %7262 = vmatpush1.bf16.msra.mxu0 %v7101
    %7263 = vmatprep.subr.bf16.mxu0 %v7094
    %7264 = vmatpush1.bf16.msra.mxu0 %v7093
    %7265 = vmatprep.subr.bf16.mxu0 %v7086
    %7266 = vmatpush1.bf16.msra.mxu0 %v7085
    %7267 = vmatprep.subr.bf16.mxu0 %v7078
    %7268 = vmatpush1.bf16.msra.mxu0 %v7077
    %7269 = vmatprep.subr.bf16.mxu0 %v7070
    %7270 = vmatpush1.bf16.msra.mxu0 %v7069
    %7271 = vmatprep.subr.bf16.mxu0 %v7062
    %7272 = vmatpush1.bf16.msra.mxu0 %v7061
    %7273 = vmatprep.subr.bf16.mxu0 %v7054
    %7274 = vmatpush1.bf16.msra.mxu0 %v7053
    %7275 = vmatprep.subr.bf16.mxu0 0
    %7276 = vmatpush2.bf16.msra.mxu0 0
    %7277 = vmatprep.subr.bf16.mxu0 0
    %7278 = vmatpush2.bf16.msra.mxu0 0
    %7279 = vmatprep.subr.bf16.mxu0 0
    %7280 = vmatpush2.bf16.msra.mxu0 0
    %7281 = vmatprep.subr.bf16.mxu0 0
    %7282 = vmatpush2.bf16.msra.mxu0 0
    %7283 = vmatprep.subr.bf16.mxu0 0
    %7284 = vmatpush2.bf16.msra.mxu0 0
    %7285 = vmatprep.subr.bf16.mxu0 0
    %7286 = vmatpush2.bf16.msra.mxu0 0
    %7287 = vmatprep.subr.bf16.mxu0 0
    %7288 = vmatpush2.bf16.msra.mxu0 0
    %7289 = vmatprep.subr.bf16.mxu0 0
    %7290 = vmatpush2.bf16.msra.mxu0 0
    %7291 = vmatprep.mubr.bf16.mxu0 0
    %7292 = vmatmul.mubr.bf16.gmra.mxu0 %v6791
    %v7293 = vpop.f32.mrf.mxu0
    %v7294 = vadd.f32 0.0, %v7293
    %v7295 = vpop.f32.mrf.mxu0
    %v7296 = vadd.f32 0.0, %v7295
    %v7297 = vpop.f32.mrf.mxu0
    %v7298 = vpop.f32.mrf.mxu0
    %7299 = vdwg.mxu0
    %7300 = vmatprep.subr.bf16.mxu0 %v7112
    %7301 = vmatpush1.bf16.msra.mxu0 %v7111
    %7302 = vmatprep.subr.bf16.mxu0 %v7104
    %7303 = vmatpush1.bf16.msra.mxu0 %v7103
    %7304 = vmatprep.subr.bf16.mxu0 %v7096
    %7305 = vmatpush1.bf16.msra.mxu0 %v7095
    %7306 = vmatprep.subr.bf16.mxu0 %v7088
    %7307 = vmatpush1.bf16.msra.mxu0 %v7087
    %7308 = vmatprep.subr.bf16.mxu0 %v7080
    %7309 = vmatpush1.bf16.msra.mxu0 %v7079
    %7310 = vmatprep.subr.bf16.mxu0 %v7072
    %7311 = vmatpush1.bf16.msra.mxu0 %v7071
    %7312 = vmatprep.subr.bf16.mxu0 %v7064
    %7313 = vmatpush1.bf16.msra.mxu0 %v7063
    %7314 = vmatprep.subr.bf16.mxu0 %v7056
    %7315 = vmatpush1.bf16.msra.mxu0 %v7055
    %7316 = vmatprep.subr.bf16.mxu0 0
    %7317 = vmatpush2.bf16.msra.mxu0 0
    %7318 = vmatprep.subr.bf16.mxu0 0
    %7319 = vmatpush2.bf16.msra.mxu0 0
    %7320 = vmatprep.subr.bf16.mxu0 0
    %7321 = vmatpush2.bf16.msra.mxu0 0
    %7322 = vmatprep.subr.bf16.mxu0 0
    %7323 = vmatpush2.bf16.msra.mxu0 0
    %7324 = vmatprep.subr.bf16.mxu0 0
    %7325 = vmatpush2.bf16.msra.mxu0 0
    %7326 = vmatprep.subr.bf16.mxu0 0
    %7327 = vmatpush2.bf16.msra.mxu0 0
    %7328 = vmatprep.subr.bf16.mxu0 0
    %7329 = vmatpush2.bf16.msra.mxu0 0
    %7330 = vmatprep.subr.bf16.mxu0 0
    %7331 = vmatpush2.bf16.msra.mxu0 0
    %7332 = vmatprep.mubr.bf16.mxu0 0
    %7333 = vmatmul.mubr.bf16.gmra.mxu0 %v6791
    %v7334 = vpop.f32.mrf.mxu0
    %v7335 = vadd.f32 0.0, %v7334
    %v7336 = vpop.f32.mrf.mxu0
    %v7337 = vadd.f32 0.0, %v7336
    %v7338 = vpop.f32.mrf.mxu0
    %v7339 = vpop.f32.mrf.mxu0
    %7340 = vdwg.mxu0
    %v7341 = vadd.f32 %v6737, %v7212
    %v7342 = vadd.f32 %v6738, %v7214
    %v7343 = vadd.f32 %v6739, %v7253
    %v7344 = vadd.f32 %v6740, %v7255
    %v7345 = vadd.f32 %v6741, %v7294
    %v7346 = vadd.f32 %v6742, %v7296
    %v7347 = vadd.f32 %v6743, %v7335
    %v7348 = vadd.f32 %v6744, %v7337
    %s7349 = scalar_lea.vmem %s0, 48
    %v7350 = vld [vmem:[%s7349] sm:$0xf]
    %v7352 = vsel %vm119, %v7350, 0
    %7354 = vmatprep.subr.bf16.mxu0 0
    %7355 = vmatpush1.bf16.msra.mxu0 0
    %7356 = vmatprep.subr.bf16.mxu0 0
    %7357 = vmatpush1.bf16.msra.mxu0 0
    %7358 = vmatprep.subr.bf16.mxu0 0
    %7359 = vmatpush1.bf16.msra.mxu0 0
    %7360 = vmatprep.subr.bf16.mxu0 0
    %7361 = vmatpush1.bf16.msra.mxu0 0
    %7362 = vmatprep.subr.bf16.mxu0 0
    %7363 = vmatpush1.bf16.msra.mxu0 0
    %7364 = vmatprep.subr.bf16.mxu0 0
    %7365 = vmatpush1.bf16.msra.mxu0 0
    %7366 = vmatprep.subr.bf16.mxu0 0
    %7367 = vmatpush1.bf16.msra.mxu0 0
    %7368 = vmatprep.subr.bf16.mxu0 0
    %7369 = vmatpush1.bf16.msra.mxu0 %v117
    %7370 = vmatprep.subr.bf16.mxu0 0
    %7371 = vmatpush2.bf16.msra.mxu0 0
    %7372 = vmatprep.subr.bf16.mxu0 0
    %7373 = vmatpush2.bf16.msra.mxu0 0
    %7374 = vmatprep.subr.bf16.mxu0 0
    %7375 = vmatpush2.bf16.msra.mxu0 0
    %7376 = vmatprep.subr.bf16.mxu0 0
    %7377 = vmatpush2.bf16.msra.mxu0 0
    %7378 = vmatprep.subr.bf16.mxu0 0
    %7379 = vmatpush2.bf16.msra.mxu0 0
    %7380 = vmatprep.subr.bf16.mxu0 0
    %7381 = vmatpush2.bf16.msra.mxu0 0
    %7382 = vmatprep.subr.bf16.mxu0 0
    %7383 = vmatpush2.bf16.msra.mxu0 0
    %7384 = vmatprep.subr.bf16.mxu0 0
    %7385 = vmatpush2.bf16.msra.mxu0 0
    %7386 = vmatprep.mubr.bf16.mxu0 0
    %7387 = vmatmul.mubr.bf16.gmra.mxu0 %v7352
    %v7388 = vpop.f32.mrf.mxu0
    %v7389 = vadd.f32 %v111, %v7388
    %v7390 = vpop.f32.mrf.mxu0
    %v7391 = vpop.f32.mrf.mxu0
    %v7392 = vpop.f32.mrf.mxu0
    %7393 = vdwg.mxu0
    %v7394 = vmax.f32 %v7389, 0.0
    %v7395 = vpack.c.bf16 %v7394, %v7394
    %s7396 = scalar_lea.vmem [#allocation6], 6144
    %v7397 = vld [vmem:[%s7396] sm:$0xff]
    %v7398 = vld [vmem:[%s7396 + $0x8] sm:$0xff]
    %v7399 = vld [vmem:[%s7396 + $0x10] sm:$0xff]
    %v7400 = vld [vmem:[%s7396 + $0x18] sm:$0xff]
    %v7401 = vld [vmem:[%s7396 + $0x20] sm:$0xff]
    %v7402 = vld [vmem:[%s7396 + $0x28] sm:$0xff]
    %v7403 = vld [vmem:[%s7396 + $0x30] sm:$0xff]
    %v7404 = vld [vmem:[%s7396 + $0x38] sm:$0xff]
    %v7405 = vld [vmem:[%s7396 + $0x40] sm:$0xff]
    %v7406 = vld [vmem:[%s7396 + $0x48] sm:$0xff]
    %v7407 = vld [vmem:[%s7396 + $0x50] sm:$0xff]
    %v7408 = vld [vmem:[%s7396 + $0x58] sm:$0xff]
    %v7409 = vld [vmem:[%s7396 + $0x60] sm:$0xff]
    %v7410 = vld [vmem:[%s7396 + $0x68] sm:$0xff]
    %v7411 = vld [vmem:[%s7396 + $0x70] sm:$0xff]
    %v7412 = vld [vmem:[%s7396 + $0x78] sm:$0xff]
    %v7413 = vld [vmem:[%s7396 + $0x80] sm:$0xff]
    %v7414 = vld [vmem:[%s7396 + $0x88] sm:$0xff]
    %v7415 = vld [vmem:[%s7396 + $0x90] sm:$0xff]
    %v7416 = vld [vmem:[%s7396 + $0x98] sm:$0xff]
    %v7417 = vld [vmem:[%s7396 + $0xa0] sm:$0xff]
    %v7418 = vld [vmem:[%s7396 + $0xa8] sm:$0xff]
    %v7419 = vld [vmem:[%s7396 + $0xb0] sm:$0xff]
    %v7420 = vld [vmem:[%s7396 + $0xb8] sm:$0xff]
    %v7421 = vld [vmem:[%s7396 + $0xc0] sm:$0xff]
    %v7422 = vld [vmem:[%s7396 + $0xc8] sm:$0xff]
    %v7423 = vld [vmem:[%s7396 + $0xd0] sm:$0xff]
    %v7424 = vld [vmem:[%s7396 + $0xd8] sm:$0xff]
    %v7425 = vld [vmem:[%s7396 + $0xe0] sm:$0xff]
    %v7426 = vld [vmem:[%s7396 + $0xe8] sm:$0xff]
    %v7427 = vld [vmem:[%s7396 + $0xf0] sm:$0xff]
    %v7428 = vld [vmem:[%s7396 + $0xf8] sm:$0xff]
    %v7429 = vld [vmem:[%s7396 + $0x100] sm:$0xff]
    %v7430 = vld [vmem:[%s7396 + $0x108] sm:$0xff]
    %v7431 = vld [vmem:[%s7396 + $0x110] sm:$0xff]
    %v7432 = vld [vmem:[%s7396 + $0x118] sm:$0xff]
    %v7433 = vld [vmem:[%s7396 + $0x120] sm:$0xff]
    %v7434 = vld [vmem:[%s7396 + $0x128] sm:$0xff]
    %v7435 = vld [vmem:[%s7396 + $0x130] sm:$0xff]
    %v7436 = vld [vmem:[%s7396 + $0x138] sm:$0xff]
    %v7437 = vld [vmem:[%s7396 + $0x140] sm:$0xff]
    %v7438 = vld [vmem:[%s7396 + $0x148] sm:$0xff]
    %v7439 = vld [vmem:[%s7396 + $0x150] sm:$0xff]
    %v7440 = vld [vmem:[%s7396 + $0x158] sm:$0xff]
    %v7441 = vld [vmem:[%s7396 + $0x160] sm:$0xff]
    %v7442 = vld [vmem:[%s7396 + $0x168] sm:$0xff]
    %v7443 = vld [vmem:[%s7396 + $0x170] sm:$0xff]
    %v7444 = vld [vmem:[%s7396 + $0x178] sm:$0xff]
    %v7445 = vld [vmem:[%s7396 + $0x180] sm:$0xff]
    %v7446 = vld [vmem:[%s7396 + $0x188] sm:$0xff]
    %v7447 = vld [vmem:[%s7396 + $0x190] sm:$0xff]
    %v7448 = vld [vmem:[%s7396 + $0x198] sm:$0xff]
    %v7449 = vld [vmem:[%s7396 + $0x1a0] sm:$0xff]
    %v7450 = vld [vmem:[%s7396 + $0x1a8] sm:$0xff]
    %v7451 = vld [vmem:[%s7396 + $0x1b0] sm:$0xff]
    %v7452 = vld [vmem:[%s7396 + $0x1b8] sm:$0xff]
    %v7453 = vld [vmem:[%s7396 + $0x1c0] sm:$0xff]
    %v7454 = vld [vmem:[%s7396 + $0x1c8] sm:$0xff]
    %v7455 = vld [vmem:[%s7396 + $0x1d0] sm:$0xff]
    %v7456 = vld [vmem:[%s7396 + $0x1d8] sm:$0xff]
    %v7457 = vld [vmem:[%s7396 + $0x1e0] sm:$0xff]
    %v7458 = vld [vmem:[%s7396 + $0x1e8] sm:$0xff]
    %v7459 = vld [vmem:[%s7396 + $0x1f0] sm:$0xff]
    %v7460 = vld [vmem:[%s7396 + $0x1f8] sm:$0xff]
    %v7525 = vunpack.c.l.b16 %v7397
    %v7526 = vunpack.c.h.b16 %v7397
    %v7527 = vunpack.c.l.b16 %v7398
    %v7528 = vunpack.c.h.b16 %v7398
    %v7529 = vunpack.c.l.b16 %v7399
    %v7530 = vunpack.c.h.b16 %v7399
    %v7531 = vunpack.c.l.b16 %v7400
    %v7532 = vunpack.c.h.b16 %v7400
    %v7533 = vunpack.c.l.b16 %v7401
    %v7534 = vunpack.c.h.b16 %v7401
    %v7535 = vunpack.c.l.b16 %v7402
    %v7536 = vunpack.c.h.b16 %v7402
    %v7537 = vunpack.c.l.b16 %v7403
    %v7538 = vunpack.c.h.b16 %v7403
    %v7539 = vunpack.c.l.b16 %v7404
    %v7540 = vunpack.c.h.b16 %v7404
    %v7541 = vunpack.c.l.b16 %v7405
    %v7542 = vunpack.c.h.b16 %v7405
    %v7543 = vunpack.c.l.b16 %v7406
    %v7544 = vunpack.c.h.b16 %v7406
    %v7545 = vunpack.c.l.b16 %v7407
    %v7546 = vunpack.c.h.b16 %v7407
    %v7547 = vunpack.c.l.b16 %v7408
    %v7548 = vunpack.c.h.b16 %v7408
    %v7549 = vunpack.c.l.b16 %v7409
    %v7550 = vunpack.c.h.b16 %v7409
    %v7551 = vunpack.c.l.b16 %v7410
    %v7552 = vunpack.c.h.b16 %v7410
    %v7553 = vunpack.c.l.b16 %v7411
    %v7554 = vunpack.c.h.b16 %v7411
    %v7555 = vunpack.c.l.b16 %v7412
    %v7556 = vunpack.c.h.b16 %v7412
    %v7557 = vunpack.c.l.b16 %v7413
    %v7558 = vunpack.c.h.b16 %v7413
    %v7559 = vunpack.c.l.b16 %v7414
    %v7560 = vunpack.c.h.b16 %v7414
    %v7561 = vunpack.c.l.b16 %v7415
    %v7562 = vunpack.c.h.b16 %v7415
    %v7563 = vunpack.c.l.b16 %v7416
    %v7564 = vunpack.c.h.b16 %v7416
    %v7565 = vunpack.c.l.b16 %v7417
    %v7566 = vunpack.c.h.b16 %v7417
    %v7567 = vunpack.c.l.b16 %v7418
    %v7568 = vunpack.c.h.b16 %v7418
    %v7569 = vunpack.c.l.b16 %v7419
    %v7570 = vunpack.c.h.b16 %v7419
    %v7571 = vunpack.c.l.b16 %v7420
    %v7572 = vunpack.c.h.b16 %v7420
    %v7573 = vunpack.c.l.b16 %v7421
    %v7574 = vunpack.c.h.b16 %v7421
    %v7575 = vunpack.c.l.b16 %v7422
    %v7576 = vunpack.c.h.b16 %v7422
    %v7577 = vunpack.c.l.b16 %v7423
    %v7578 = vunpack.c.h.b16 %v7423
    %v7579 = vunpack.c.l.b16 %v7424
    %v7580 = vunpack.c.h.b16 %v7424
    %v7581 = vunpack.c.l.b16 %v7425
    %v7582 = vunpack.c.h.b16 %v7425
    %v7583 = vunpack.c.l.b16 %v7426
    %v7584 = vunpack.c.h.b16 %v7426
    %v7585 = vunpack.c.l.b16 %v7427
    %v7586 = vunpack.c.h.b16 %v7427
    %v7587 = vunpack.c.l.b16 %v7428
    %v7588 = vunpack.c.h.b16 %v7428
    %v7589 = vunpack.c.l.b16 %v7429
    %v7590 = vunpack.c.h.b16 %v7429
    %v7591 = vunpack.c.l.b16 %v7430
    %v7592 = vunpack.c.h.b16 %v7430
    %v7593 = vunpack.c.l.b16 %v7431
    %v7594 = vunpack.c.h.b16 %v7431
    %v7595 = vunpack.c.l.b16 %v7432
    %v7596 = vunpack.c.h.b16 %v7432
    %v7597 = vunpack.c.l.b16 %v7433
    %v7598 = vunpack.c.h.b16 %v7433
    %v7599 = vunpack.c.l.b16 %v7434
    %v7600 = vunpack.c.h.b16 %v7434
    %v7601 = vunpack.c.l.b16 %v7435
    %v7602 = vunpack.c.h.b16 %v7435
    %v7603 = vunpack.c.l.b16 %v7436
    %v7604 = vunpack.c.h.b16 %v7436
    %v7605 = vunpack.c.l.b16 %v7437
    %v7606 = vunpack.c.h.b16 %v7437
    %v7607 = vunpack.c.l.b16 %v7438
    %v7608 = vunpack.c.h.b16 %v7438
    %v7609 = vunpack.c.l.b16 %v7439
    %v7610 = vunpack.c.h.b16 %v7439
    %v7611 = vunpack.c.l.b16 %v7440
    %v7612 = vunpack.c.h.b16 %v7440
    %v7613 = vunpack.c.l.b16 %v7441
    %v7614 = vunpack.c.h.b16 %v7441
    %v7615 = vunpack.c.l.b16 %v7442
    %v7616 = vunpack.c.h.b16 %v7442
    %v7617 = vunpack.c.l.b16 %v7443
    %v7618 = vunpack.c.h.b16 %v7443
    %v7619 = vunpack.c.l.b16 %v7444
    %v7620 = vunpack.c.h.b16 %v7444
    %v7621 = vunpack.c.l.b16 %v7445
    %v7622 = vunpack.c.h.b16 %v7445
    %v7623 = vunpack.c.l.b16 %v7446
    %v7624 = vunpack.c.h.b16 %v7446
    %v7625 = vunpack.c.l.b16 %v7447
    %v7626 = vunpack.c.h.b16 %v7447
    %v7627 = vunpack.c.l.b16 %v7448
    %v7628 = vunpack.c.h.b16 %v7448
    %v7629 = vunpack.c.l.b16 %v7449
    %v7630 = vunpack.c.h.b16 %v7449
    %v7631 = vunpack.c.l.b16 %v7450
    %v7632 = vunpack.c.h.b16 %v7450
    %v7633 = vunpack.c.l.b16 %v7451
    %v7634 = vunpack.c.h.b16 %v7451
    %v7635 = vunpack.c.l.b16 %v7452
    %v7636 = vunpack.c.h.b16 %v7452
    %v7637 = vunpack.c.l.b16 %v7453
    %v7638 = vunpack.c.h.b16 %v7453
    %v7639 = vunpack.c.l.b16 %v7454
    %v7640 = vunpack.c.h.b16 %v7454
    %v7641 = vunpack.c.l.b16 %v7455
    %v7642 = vunpack.c.h.b16 %v7455
    %v7643 = vunpack.c.l.b16 %v7456
    %v7644 = vunpack.c.h.b16 %v7456
    %v7645 = vunpack.c.l.b16 %v7457
    %v7646 = vunpack.c.h.b16 %v7457
    %v7647 = vunpack.c.l.b16 %v7458
    %v7648 = vunpack.c.h.b16 %v7458
    %v7649 = vunpack.c.l.b16 %v7459
    %v7650 = vunpack.c.h.b16 %v7459
    %v7651 = vunpack.c.l.b16 %v7460
    %v7652 = vunpack.c.h.b16 %v7460
    %v7653 = vpack.c.b16 %v7533, %v7525
    %v7654 = vpack.c.b16 %v7534, %v7526
    %v7655 = vpack.c.b16 %v7535, %v7527
    %v7656 = vpack.c.b16 %v7536, %v7528
    %v7657 = vpack.c.b16 %v7537, %v7529
    %v7658 = vpack.c.b16 %v7538, %v7530
    %v7659 = vpack.c.b16 %v7539, %v7531
    %v7660 = vpack.c.b16 %v7540, %v7532
    %v7661 = vpack.c.b16 %v7549, %v7541
    %v7662 = vpack.c.b16 %v7550, %v7542
    %v7663 = vpack.c.b16 %v7551, %v7543
    %v7664 = vpack.c.b16 %v7552, %v7544
    %v7665 = vpack.c.b16 %v7553, %v7545
    %v7666 = vpack.c.b16 %v7554, %v7546
    %v7667 = vpack.c.b16 %v7555, %v7547
    %v7668 = vpack.c.b16 %v7556, %v7548
    %v7669 = vpack.c.b16 %v7565, %v7557
    %v7670 = vpack.c.b16 %v7566, %v7558
    %v7671 = vpack.c.b16 %v7567, %v7559
    %v7672 = vpack.c.b16 %v7568, %v7560
    %v7673 = vpack.c.b16 %v7569, %v7561
    %v7674 = vpack.c.b16 %v7570, %v7562
    %v7675 = vpack.c.b16 %v7571, %v7563
    %v7676 = vpack.c.b16 %v7572, %v7564
    %v7677 = vpack.c.b16 %v7581, %v7573
    %v7678 = vpack.c.b16 %v7582, %v7574
    %v7679 = vpack.c.b16 %v7583, %v7575
    %v7680 = vpack.c.b16 %v7584, %v7576
    %v7681 = vpack.c.b16 %v7585, %v7577
    %v7682 = vpack.c.b16 %v7586, %v7578
    %v7683 = vpack.c.b16 %v7587, %v7579
    %v7684 = vpack.c.b16 %v7588, %v7580
    %v7685 = vpack.c.b16 %v7597, %v7589
    %v7686 = vpack.c.b16 %v7598, %v7590
    %v7687 = vpack.c.b16 %v7599, %v7591
    %v7688 = vpack.c.b16 %v7600, %v7592
    %v7689 = vpack.c.b16 %v7601, %v7593
    %v7690 = vpack.c.b16 %v7602, %v7594
    %v7691 = vpack.c.b16 %v7603, %v7595
    %v7692 = vpack.c.b16 %v7604, %v7596
    %v7693 = vpack.c.b16 %v7613, %v7605
    %v7694 = vpack.c.b16 %v7614, %v7606
    %v7695 = vpack.c.b16 %v7615, %v7607
    %v7696 = vpack.c.b16 %v7616, %v7608
    %v7697 = vpack.c.b16 %v7617, %v7609
    %v7698 = vpack.c.b16 %v7618, %v7610
    %v7699 = vpack.c.b16 %v7619, %v7611
    %v7700 = vpack.c.b16 %v7620, %v7612
    %v7701 = vpack.c.b16 %v7629, %v7621
    %v7702 = vpack.c.b16 %v7630, %v7622
    %v7703 = vpack.c.b16 %v7631, %v7623
    %v7704 = vpack.c.b16 %v7632, %v7624
    %v7705 = vpack.c.b16 %v7633, %v7625
    %v7706 = vpack.c.b16 %v7634, %v7626
    %v7707 = vpack.c.b16 %v7635, %v7627
    %v7708 = vpack.c.b16 %v7636, %v7628
    %v7709 = vpack.c.b16 %v7645, %v7637
    %v7710 = vpack.c.b16 %v7646, %v7638
    %v7711 = vpack.c.b16 %v7647, %v7639
    %v7712 = vpack.c.b16 %v7648, %v7640
    %v7713 = vpack.c.b16 %v7649, %v7641
    %v7714 = vpack.c.b16 %v7650, %v7642
    %v7715 = vpack.c.b16 %v7651, %v7643
    %v7716 = vpack.c.b16 %v7652, %v7644
    %7781 = vmatprep.subr.bf16.mxu0 %v7710
    %7782 = vmatpush1.bf16.msra.mxu0 %v7709
    %7783 = vmatprep.subr.bf16.mxu0 %v7702
    %7784 = vmatpush1.bf16.msra.mxu0 %v7701
    %7785 = vmatprep.subr.bf16.mxu0 %v7694
    %7786 = vmatpush1.bf16.msra.mxu0 %v7693
    %7787 = vmatprep.subr.bf16.mxu0 %v7686
    %7788 = vmatpush1.bf16.msra.mxu0 %v7685
    %7789 = vmatprep.subr.bf16.mxu0 %v7678
    %7790 = vmatpush1.bf16.msra.mxu0 %v7677
    %7791 = vmatprep.subr.bf16.mxu0 %v7670
    %7792 = vmatpush1.bf16.msra.mxu0 %v7669
    %7793 = vmatprep.subr.bf16.mxu0 %v7662
    %7794 = vmatpush1.bf16.msra.mxu0 %v7661
    %7795 = vmatprep.subr.bf16.mxu0 %v7654
    %7796 = vmatpush1.bf16.msra.mxu0 %v7653
    %7797 = vmatprep.subr.bf16.mxu0 0
    %7798 = vmatpush2.bf16.msra.mxu0 0
    %7799 = vmatprep.subr.bf16.mxu0 0
    %7800 = vmatpush2.bf16.msra.mxu0 0
    %7801 = vmatprep.subr.bf16.mxu0 0
    %7802 = vmatpush2.bf16.msra.mxu0 0
    %7803 = vmatprep.subr.bf16.mxu0 0
    %7804 = vmatpush2.bf16.msra.mxu0 0
    %7805 = vmatprep.subr.bf16.mxu0 0
    %7806 = vmatpush2.bf16.msra.mxu0 0
    %7807 = vmatprep.subr.bf16.mxu0 0
    %7808 = vmatpush2.bf16.msra.mxu0 0
    %7809 = vmatprep.subr.bf16.mxu0 0
    %7810 = vmatpush2.bf16.msra.mxu0 0
    %7811 = vmatprep.subr.bf16.mxu0 0
    %7812 = vmatpush2.bf16.msra.mxu0 0
    %7813 = vmatprep.mubr.bf16.mxu0 0
    %7814 = vmatmul.mubr.bf16.gmra.mxu0 %v7395
    %v7815 = vpop.f32.mrf.mxu0
    %v7816 = vadd.f32 0.0, %v7815
    %v7817 = vpop.f32.mrf.mxu0
    %v7818 = vadd.f32 0.0, %v7817
    %v7819 = vpop.f32.mrf.mxu0
    %v7820 = vpop.f32.mrf.mxu0
    %7821 = vdwg.mxu0
    %7822 = vmatprep.subr.bf16.mxu0 %v7712
    %7823 = vmatpush1.bf16.msra.mxu0 %v7711
    %7824 = vmatprep.subr.bf16.mxu0 %v7704
    %7825 = vmatpush1.bf16.msra.mxu0 %v7703
    %7826 = vmatprep.subr.bf16.mxu0 %v7696
    %7827 = vmatpush1.bf16.msra.mxu0 %v7695
    %7828 = vmatprep.subr.bf16.mxu0 %v7688
    %7829 = vmatpush1.bf16.msra.mxu0 %v7687
    %7830 = vmatprep.subr.bf16.mxu0 %v7680
    %7831 = vmatpush1.bf16.msra.mxu0 %v7679
    %7832 = vmatprep.subr.bf16.mxu0 %v7672
    %7833 = vmatpush1.bf16.msra.mxu0 %v7671
    %7834 = vmatprep.subr.bf16.mxu0 %v7664
    %7835 = vmatpush1.bf16.msra.mxu0 %v7663
    %7836 = vmatprep.subr.bf16.mxu0 %v7656
    %7837 = vmatpush1.bf16.msra.mxu0 %v7655
    %7838 = vmatprep.subr.bf16.mxu0 0
    %7839 = vmatpush2.bf16.msra.mxu0 0
    %7840 = vmatprep.subr.bf16.mxu0 0
    %7841 = vmatpush2.bf16.msra.mxu0 0
    %7842 = vmatprep.subr.bf16.mxu0 0
    %7843 = vmatpush2.bf16.msra.mxu0 0
    %7844 = vmatprep.subr.bf16.mxu0 0
    %7845 = vmatpush2.bf16.msra.mxu0 0
    %7846 = vmatprep.subr.bf16.mxu0 0
    %7847 = vmatpush2.bf16.msra.mxu0 0
    %7848 = vmatprep.subr.bf16.mxu0 0
    %7849 = vmatpush2.bf16.msra.mxu0 0
    %7850 = vmatprep.subr.bf16.mxu0 0
    %7851 = vmatpush2.bf16.msra.mxu0 0
    %7852 = vmatprep.subr.bf16.mxu0 0
    %7853 = vmatpush2.bf16.msra.mxu0 0
    %7854 = vmatprep.mubr.bf16.mxu0 0
    %7855 = vmatmul.mubr.bf16.gmra.mxu0 %v7395
    %v7856 = vpop.f32.mrf.mxu0
    %v7857 = vadd.f32 0.0, %v7856
    %v7858 = vpop.f32.mrf.mxu0
    %v7859 = vadd.f32 0.0, %v7858
    %v7860 = vpop.f32.mrf.mxu0
    %v7861 = vpop.f32.mrf.mxu0
    %7862 = vdwg.mxu0
    %7863 = vmatprep.subr.bf16.mxu0 %v7714
    %7864 = vmatpush1.bf16.msra.mxu0 %v7713
    %7865 = vmatprep.subr.bf16.mxu0 %v7706
    %7866 = vmatpush1.bf16.msra.mxu0 %v7705
    %7867 = vmatprep.subr.bf16.mxu0 %v7698
    %7868 = vmatpush1.bf16.msra.mxu0 %v7697
    %7869 = vmatprep.subr.bf16.mxu0 %v7690
    %7870 = vmatpush1.bf16.msra.mxu0 %v7689
    %7871 = vmatprep.subr.bf16.mxu0 %v7682
    %7872 = vmatpush1.bf16.msra.mxu0 %v7681
    %7873 = vmatprep.subr.bf16.mxu0 %v7674
    %7874 = vmatpush1.bf16.msra.mxu0 %v7673
    %7875 = vmatprep.subr.bf16.mxu0 %v7666
    %7876 = vmatpush1.bf16.msra.mxu0 %v7665
    %7877 = vmatprep.subr.bf16.mxu0 %v7658
    %7878 = vmatpush1.bf16.msra.mxu0 %v7657
    %7879 = vmatprep.subr.bf16.mxu0 0
    %7880 = vmatpush2.bf16.msra.mxu0 0
    %7881 = vmatprep.subr.bf16.mxu0 0
    %7882 = vmatpush2.bf16.msra.mxu0 0
    %7883 = vmatprep.subr.bf16.mxu0 0
    %7884 = vmatpush2.bf16.msra.mxu0 0
    %7885 = vmatprep.subr.bf16.mxu0 0
    %7886 = vmatpush2.bf16.msra.mxu0 0
    %7887 = vmatprep.subr.bf16.mxu0 0
    %7888 = vmatpush2.bf16.msra.mxu0 0
    %7889 = vmatprep.subr.bf16.mxu0 0
    %7890 = vmatpush2.bf16.msra.mxu0 0
    %7891 = vmatprep.subr.bf16.mxu0 0
    %7892 = vmatpush2.bf16.msra.mxu0 0
    %7893 = vmatprep.subr.bf16.mxu0 0
    %7894 = vmatpush2.bf16.msra.mxu0 0
    %7895 = vmatprep.mubr.bf16.mxu0 0
    %7896 = vmatmul.mubr.bf16.gmra.mxu0 %v7395
    %v7897 = vpop.f32.mrf.mxu0
    %v7898 = vadd.f32 0.0, %v7897
    %v7899 = vpop.f32.mrf.mxu0
    %v7900 = vadd.f32 0.0, %v7899
    %v7901 = vpop.f32.mrf.mxu0
    %v7902 = vpop.f32.mrf.mxu0
    %7903 = vdwg.mxu0
    %7904 = vmatprep.subr.bf16.mxu0 %v7716
    %7905 = vmatpush1.bf16.msra.mxu0 %v7715
    %7906 = vmatprep.subr.bf16.mxu0 %v7708
    %7907 = vmatpush1.bf16.msra.mxu0 %v7707
    %7908 = vmatprep.subr.bf16.mxu0 %v7700
    %7909 = vmatpush1.bf16.msra.mxu0 %v7699
    %7910 = vmatprep.subr.bf16.mxu0 %v7692
    %7911 = vmatpush1.bf16.msra.mxu0 %v7691
    %7912 = vmatprep.subr.bf16.mxu0 %v7684
    %7913 = vmatpush1.bf16.msra.mxu0 %v7683
    %7914 = vmatprep.subr.bf16.mxu0 %v7676
    %7915 = vmatpush1.bf16.msra.mxu0 %v7675
    %7916 = vmatprep.subr.bf16.mxu0 %v7668
    %7917 = vmatpush1.bf16.msra.mxu0 %v7667
    %7918 = vmatprep.subr.bf16.mxu0 %v7660
    %7919 = vmatpush1.bf16.msra.mxu0 %v7659
    %7920 = vmatprep.subr.bf16.mxu0 0
    %7921 = vmatpush2.bf16.msra.mxu0 0
    %7922 = vmatprep.subr.bf16.mxu0 0
    %7923 = vmatpush2.bf16.msra.mxu0 0
    %7924 = vmatprep.subr.bf16.mxu0 0
    %7925 = vmatpush2.bf16.msra.mxu0 0
    %7926 = vmatprep.subr.bf16.mxu0 0
    %7927 = vmatpush2.bf16.msra.mxu0 0
    %7928 = vmatprep.subr.bf16.mxu0 0
    %7929 = vmatpush2.bf16.msra.mxu0 0
    %7930 = vmatprep.subr.bf16.mxu0 0
    %7931 = vmatpush2.bf16.msra.mxu0 0
    %7932 = vmatprep.subr.bf16.mxu0 0
    %7933 = vmatpush2.bf16.msra.mxu0 0
    %7934 = vmatprep.subr.bf16.mxu0 0
    %7935 = vmatpush2.bf16.msra.mxu0 0
    %7936 = vmatprep.mubr.bf16.mxu0 0
    %7937 = vmatmul.mubr.bf16.gmra.mxu0 %v7395
    %v7938 = vpop.f32.mrf.mxu0
    %v7939 = vadd.f32 0.0, %v7938
    %v7940 = vpop.f32.mrf.mxu0
    %v7941 = vadd.f32 0.0, %v7940
    %v7942 = vpop.f32.mrf.mxu0
    %v7943 = vpop.f32.mrf.mxu0
    %7944 = vdwg.mxu0
    %v7945 = vadd.f32 %v7341, %v7816
    %v7946 = vadd.f32 %v7342, %v7818
    %v7947 = vadd.f32 %v7343, %v7857
    %v7948 = vadd.f32 %v7344, %v7859
    %v7949 = vadd.f32 %v7345, %v7898
    %v7950 = vadd.f32 %v7346, %v7900
    %v7951 = vadd.f32 %v7347, %v7939
    %v7952 = vadd.f32 %v7348, %v7941
    %s7953 = scalar_lea.vmem %s0, 52
    %v7954 = vld [vmem:[%s7953] sm:$0xf]
    %v7956 = vsel %vm119, %v7954, 0
    %7958 = vmatprep.subr.bf16.mxu0 0
    %7959 = vmatpush1.bf16.msra.mxu0 0
    %7960 = vmatprep.subr.bf16.mxu0 0
    %7961 = vmatpush1.bf16.msra.mxu0 0
    %7962 = vmatprep.subr.bf16.mxu0 0
    %7963 = vmatpush1.bf16.msra.mxu0 0
    %7964 = vmatprep.subr.bf16.mxu0 0
    %7965 = vmatpush1.bf16.msra.mxu0 0
    %7966 = vmatprep.subr.bf16.mxu0 0
    %7967 = vmatpush1.bf16.msra.mxu0 0
    %7968 = vmatprep.subr.bf16.mxu0 0
    %7969 = vmatpush1.bf16.msra.mxu0 0
    %7970 = vmatprep.subr.bf16.mxu0 0
    %7971 = vmatpush1.bf16.msra.mxu0 0
    %7972 = vmatprep.subr.bf16.mxu0 0
    %7973 = vmatpush1.bf16.msra.mxu0 %v117
    %7974 = vmatprep.subr.bf16.mxu0 0
    %7975 = vmatpush2.bf16.msra.mxu0 0
    %7976 = vmatprep.subr.bf16.mxu0 0
    %7977 = vmatpush2.bf16.msra.mxu0 0
    %7978 = vmatprep.subr.bf16.mxu0 0
    %7979 = vmatpush2.bf16.msra.mxu0 0
    %7980 = vmatprep.subr.bf16.mxu0 0
    %7981 = vmatpush2.bf16.msra.mxu0 0
    %7982 = vmatprep.subr.bf16.mxu0 0
    %7983 = vmatpush2.bf16.msra.mxu0 0
    %7984 = vmatprep.subr.bf16.mxu0 0
    %7985 = vmatpush2.bf16.msra.mxu0 0
    %7986 = vmatprep.subr.bf16.mxu0 0
    %7987 = vmatpush2.bf16.msra.mxu0 0
    %7988 = vmatprep.subr.bf16.mxu0 0
    %7989 = vmatpush2.bf16.msra.mxu0 0
    %7990 = vmatprep.mubr.bf16.mxu0 0
    %7991 = vmatmul.mubr.bf16.gmra.mxu0 %v7956
    %v7992 = vpop.f32.mrf.mxu0
    %v7993 = vadd.f32 %v111, %v7992
    %v7994 = vpop.f32.mrf.mxu0
    %v7995 = vpop.f32.mrf.mxu0
    %v7996 = vpop.f32.mrf.mxu0
    %7997 = vdwg.mxu0
    %v7998 = vmax.f32 %v7993, 0.0
    %v7999 = vpack.c.bf16 %v7998, %v7998
    %s8000 = scalar_lea.vmem [#allocation6], 6656
    %v8001 = vld [vmem:[%s8000] sm:$0xff]
    %v8002 = vld [vmem:[%s8000 + $0x8] sm:$0xff]
    %v8003 = vld [vmem:[%s8000 + $0x10] sm:$0xff]
    %v8004 = vld [vmem:[%s8000 + $0x18] sm:$0xff]
    %v8005 = vld [vmem:[%s8000 + $0x20] sm:$0xff]
    %v8006 = vld [vmem:[%s8000 + $0x28] sm:$0xff]
    %v8007 = vld [vmem:[%s8000 + $0x30] sm:$0xff]
    %v8008 = vld [vmem:[%s8000 + $0x38] sm:$0xff]
    %v8009 = vld [vmem:[%s8000 + $0x40] sm:$0xff]
    %v8010 = vld [vmem:[%s8000 + $0x48] sm:$0xff]
    %v8011 = vld [vmem:[%s8000 + $0x50] sm:$0xff]
    %v8012 = vld [vmem:[%s8000 + $0x58] sm:$0xff]
    %v8013 = vld [vmem:[%s8000 + $0x60] sm:$0xff]
    %v8014 = vld [vmem:[%s8000 + $0x68] sm:$0xff]
    %v8015 = vld [vmem:[%s8000 + $0x70] sm:$0xff]
    %v8016 = vld [vmem:[%s8000 + $0x78] sm:$0xff]
    %v8017 = vld [vmem:[%s8000 + $0x80] sm:$0xff]
    %v8018 = vld [vmem:[%s8000 + $0x88] sm:$0xff]
    %v8019 = vld [vmem:[%s8000 + $0x90] sm:$0xff]
    %v8020 = vld [vmem:[%s8000 + $0x98] sm:$0xff]
    %v8021 = vld [vmem:[%s8000 + $0xa0] sm:$0xff]
    %v8022 = vld [vmem:[%s8000 + $0xa8] sm:$0xff]
    %v8023 = vld [vmem:[%s8000 + $0xb0] sm:$0xff]
    %v8024 = vld [vmem:[%s8000 + $0xb8] sm:$0xff]
    %v8025 = vld [vmem:[%s8000 + $0xc0] sm:$0xff]
    %v8026 = vld [vmem:[%s8000 + $0xc8] sm:$0xff]
    %v8027 = vld [vmem:[%s8000 + $0xd0] sm:$0xff]
    %v8028 = vld [vmem:[%s8000 + $0xd8] sm:$0xff]
    %v8029 = vld [vmem:[%s8000 + $0xe0] sm:$0xff]
    %v8030 = vld [vmem:[%s8000 + $0xe8] sm:$0xff]
    %v8031 = vld [vmem:[%s8000 + $0xf0] sm:$0xff]
    %v8032 = vld [vmem:[%s8000 + $0xf8] sm:$0xff]
    %v8033 = vld [vmem:[%s8000 + $0x100] sm:$0xff]
    %v8034 = vld [vmem:[%s8000 + $0x108] sm:$0xff]
    %v8035 = vld [vmem:[%s8000 + $0x110] sm:$0xff]
    %v8036 = vld [vmem:[%s8000 + $0x118] sm:$0xff]
    %v8037 = vld [vmem:[%s8000 + $0x120] sm:$0xff]
    %v8038 = vld [vmem:[%s8000 + $0x128] sm:$0xff]
    %v8039 = vld [vmem:[%s8000 + $0x130] sm:$0xff]
    %v8040 = vld [vmem:[%s8000 + $0x138] sm:$0xff]
    %v8041 = vld [vmem:[%s8000 + $0x140] sm:$0xff]
    %v8042 = vld [vmem:[%s8000 + $0x148] sm:$0xff]
    %v8043 = vld [vmem:[%s8000 + $0x150] sm:$0xff]
    %v8044 = vld [vmem:[%s8000 + $0x158] sm:$0xff]
    %v8045 = vld [vmem:[%s8000 + $0x160] sm:$0xff]
    %v8046 = vld [vmem:[%s8000 + $0x168] sm:$0xff]
    %v8047 = vld [vmem:[%s8000 + $0x170] sm:$0xff]
    %v8048 = vld [vmem:[%s8000 + $0x178] sm:$0xff]
    %v8049 = vld [vmem:[%s8000 + $0x180] sm:$0xff]
    %v8050 = vld [vmem:[%s8000 + $0x188] sm:$0xff]
    %v8051 = vld [vmem:[%s8000 + $0x190] sm:$0xff]
    %v8052 = vld [vmem:[%s8000 + $0x198] sm:$0xff]
    %v8053 = vld [vmem:[%s8000 + $0x1a0] sm:$0xff]
    %v8054 = vld [vmem:[%s8000 + $0x1a8] sm:$0xff]
    %v8055 = vld [vmem:[%s8000 + $0x1b0] sm:$0xff]
    %v8056 = vld [vmem:[%s8000 + $0x1b8] sm:$0xff]
    %v8057 = vld [vmem:[%s8000 + $0x1c0] sm:$0xff]
    %v8058 = vld [vmem:[%s8000 + $0x1c8] sm:$0xff]
    %v8059 = vld [vmem:[%s8000 + $0x1d0] sm:$0xff]
    %v8060 = vld [vmem:[%s8000 + $0x1d8] sm:$0xff]
    %v8061 = vld [vmem:[%s8000 + $0x1e0] sm:$0xff]
    %v8062 = vld [vmem:[%s8000 + $0x1e8] sm:$0xff]
    %v8063 = vld [vmem:[%s8000 + $0x1f0] sm:$0xff]
    %v8064 = vld [vmem:[%s8000 + $0x1f8] sm:$0xff]
    %v8129 = vunpack.c.l.b16 %v8001
    %v8130 = vunpack.c.h.b16 %v8001
    %v8131 = vunpack.c.l.b16 %v8002
    %v8132 = vunpack.c.h.b16 %v8002
    %v8133 = vunpack.c.l.b16 %v8003
    %v8134 = vunpack.c.h.b16 %v8003
    %v8135 = vunpack.c.l.b16 %v8004
    %v8136 = vunpack.c.h.b16 %v8004
    %v8137 = vunpack.c.l.b16 %v8005
    %v8138 = vunpack.c.h.b16 %v8005
    %v8139 = vunpack.c.l.b16 %v8006
    %v8140 = vunpack.c.h.b16 %v8006
    %v8141 = vunpack.c.l.b16 %v8007
    %v8142 = vunpack.c.h.b16 %v8007
    %v8143 = vunpack.c.l.b16 %v8008
    %v8144 = vunpack.c.h.b16 %v8008
    %v8145 = vunpack.c.l.b16 %v8009
    %v8146 = vunpack.c.h.b16 %v8009
    %v8147 = vunpack.c.l.b16 %v8010
    %v8148 = vunpack.c.h.b16 %v8010
    %v8149 = vunpack.c.l.b16 %v8011
    %v8150 = vunpack.c.h.b16 %v8011
    %v8151 = vunpack.c.l.b16 %v8012
    %v8152 = vunpack.c.h.b16 %v8012
    %v8153 = vunpack.c.l.b16 %v8013
    %v8154 = vunpack.c.h.b16 %v8013
    %v8155 = vunpack.c.l.b16 %v8014
    %v8156 = vunpack.c.h.b16 %v8014
    %v8157 = vunpack.c.l.b16 %v8015
    %v8158 = vunpack.c.h.b16 %v8015
    %v8159 = vunpack.c.l.b16 %v8016
    %v8160 = vunpack.c.h.b16 %v8016
    %v8161 = vunpack.c.l.b16 %v8017
    %v8162 = vunpack.c.h.b16 %v8017
    %v8163 = vunpack.c.l.b16 %v8018
    %v8164 = vunpack.c.h.b16 %v8018
    %v8165 = vunpack.c.l.b16 %v8019
    %v8166 = vunpack.c.h.b16 %v8019
    %v8167 = vunpack.c.l.b16 %v8020
    %v8168 = vunpack.c.h.b16 %v8020
    %v8169 = vunpack.c.l.b16 %v8021
    %v8170 = vunpack.c.h.b16 %v8021
    %v8171 = vunpack.c.l.b16 %v8022
    %v8172 = vunpack.c.h.b16 %v8022
    %v8173 = vunpack.c.l.b16 %v8023
    %v8174 = vunpack.c.h.b16 %v8023
    %v8175 = vunpack.c.l.b16 %v8024
    %v8176 = vunpack.c.h.b16 %v8024
    %v8177 = vunpack.c.l.b16 %v8025
    %v8178 = vunpack.c.h.b16 %v8025
    %v8179 = vunpack.c.l.b16 %v8026
    %v8180 = vunpack.c.h.b16 %v8026
    %v8181 = vunpack.c.l.b16 %v8027
    %v8182 = vunpack.c.h.b16 %v8027
    %v8183 = vunpack.c.l.b16 %v8028
    %v8184 = vunpack.c.h.b16 %v8028
    %v8185 = vunpack.c.l.b16 %v8029
    %v8186 = vunpack.c.h.b16 %v8029
    %v8187 = vunpack.c.l.b16 %v8030
    %v8188 = vunpack.c.h.b16 %v8030
    %v8189 = vunpack.c.l.b16 %v8031
    %v8190 = vunpack.c.h.b16 %v8031
    %v8191 = vunpack.c.l.b16 %v8032
    %v8192 = vunpack.c.h.b16 %v8032
    %v8193 = vunpack.c.l.b16 %v8033
    %v8194 = vunpack.c.h.b16 %v8033
    %v8195 = vunpack.c.l.b16 %v8034
    %v8196 = vunpack.c.h.b16 %v8034
    %v8197 = vunpack.c.l.b16 %v8035
    %v8198 = vunpack.c.h.b16 %v8035
    %v8199 = vunpack.c.l.b16 %v8036
    %v8200 = vunpack.c.h.b16 %v8036
    %v8201 = vunpack.c.l.b16 %v8037
    %v8202 = vunpack.c.h.b16 %v8037
    %v8203 = vunpack.c.l.b16 %v8038
    %v8204 = vunpack.c.h.b16 %v8038
    %v8205 = vunpack.c.l.b16 %v8039
    %v8206 = vunpack.c.h.b16 %v8039
    %v8207 = vunpack.c.l.b16 %v8040
    %v8208 = vunpack.c.h.b16 %v8040
    %v8209 = vunpack.c.l.b16 %v8041
    %v8210 = vunpack.c.h.b16 %v8041
    %v8211 = vunpack.c.l.b16 %v8042
    %v8212 = vunpack.c.h.b16 %v8042
    %v8213 = vunpack.c.l.b16 %v8043
    %v8214 = vunpack.c.h.b16 %v8043
    %v8215 = vunpack.c.l.b16 %v8044
    %v8216 = vunpack.c.h.b16 %v8044
    %v8217 = vunpack.c.l.b16 %v8045
    %v8218 = vunpack.c.h.b16 %v8045
    %v8219 = vunpack.c.l.b16 %v8046
    %v8220 = vunpack.c.h.b16 %v8046
    %v8221 = vunpack.c.l.b16 %v8047
    %v8222 = vunpack.c.h.b16 %v8047
    %v8223 = vunpack.c.l.b16 %v8048
    %v8224 = vunpack.c.h.b16 %v8048
    %v8225 = vunpack.c.l.b16 %v8049
    %v8226 = vunpack.c.h.b16 %v8049
    %v8227 = vunpack.c.l.b16 %v8050
    %v8228 = vunpack.c.h.b16 %v8050
    %v8229 = vunpack.c.l.b16 %v8051
    %v8230 = vunpack.c.h.b16 %v8051
    %v8231 = vunpack.c.l.b16 %v8052
    %v8232 = vunpack.c.h.b16 %v8052
    %v8233 = vunpack.c.l.b16 %v8053
    %v8234 = vunpack.c.h.b16 %v8053
    %v8235 = vunpack.c.l.b16 %v8054
    %v8236 = vunpack.c.h.b16 %v8054
    %v8237 = vunpack.c.l.b16 %v8055
    %v8238 = vunpack.c.h.b16 %v8055
    %v8239 = vunpack.c.l.b16 %v8056
    %v8240 = vunpack.c.h.b16 %v8056
    %v8241 = vunpack.c.l.b16 %v8057
    %v8242 = vunpack.c.h.b16 %v8057
    %v8243 = vunpack.c.l.b16 %v8058
    %v8244 = vunpack.c.h.b16 %v8058
    %v8245 = vunpack.c.l.b16 %v8059
    %v8246 = vunpack.c.h.b16 %v8059
    %v8247 = vunpack.c.l.b16 %v8060
    %v8248 = vunpack.c.h.b16 %v8060
    %v8249 = vunpack.c.l.b16 %v8061
    %v8250 = vunpack.c.h.b16 %v8061
    %v8251 = vunpack.c.l.b16 %v8062
    %v8252 = vunpack.c.h.b16 %v8062
    %v8253 = vunpack.c.l.b16 %v8063
    %v8254 = vunpack.c.h.b16 %v8063
    %v8255 = vunpack.c.l.b16 %v8064
    %v8256 = vunpack.c.h.b16 %v8064
    %v8257 = vpack.c.b16 %v8137, %v8129
    %v8258 = vpack.c.b16 %v8138, %v8130
    %v8259 = vpack.c.b16 %v8139, %v8131
    %v8260 = vpack.c.b16 %v8140, %v8132
    %v8261 = vpack.c.b16 %v8141, %v8133
    %v8262 = vpack.c.b16 %v8142, %v8134
    %v8263 = vpack.c.b16 %v8143, %v8135
    %v8264 = vpack.c.b16 %v8144, %v8136
    %v8265 = vpack.c.b16 %v8153, %v8145
    %v8266 = vpack.c.b16 %v8154, %v8146
    %v8267 = vpack.c.b16 %v8155, %v8147
    %v8268 = vpack.c.b16 %v8156, %v8148
    %v8269 = vpack.c.b16 %v8157, %v8149
    %v8270 = vpack.c.b16 %v8158, %v8150
    %v8271 = vpack.c.b16 %v8159, %v8151
    %v8272 = vpack.c.b16 %v8160, %v8152
    %v8273 = vpack.c.b16 %v8169, %v8161
    %v8274 = vpack.c.b16 %v8170, %v8162
    %v8275 = vpack.c.b16 %v8171, %v8163
    %v8276 = vpack.c.b16 %v8172, %v8164
    %v8277 = vpack.c.b16 %v8173, %v8165
    %v8278 = vpack.c.b16 %v8174, %v8166
    %v8279 = vpack.c.b16 %v8175, %v8167
    %v8280 = vpack.c.b16 %v8176, %v8168
    %v8281 = vpack.c.b16 %v8185, %v8177
    %v8282 = vpack.c.b16 %v8186, %v8178
    %v8283 = vpack.c.b16 %v8187, %v8179
    %v8284 = vpack.c.b16 %v8188, %v8180
    %v8285 = vpack.c.b16 %v8189, %v8181
    %v8286 = vpack.c.b16 %v8190, %v8182
    %v8287 = vpack.c.b16 %v8191, %v8183
    %v8288 = vpack.c.b16 %v8192, %v8184
    %v8289 = vpack.c.b16 %v8201, %v8193
    %v8290 = vpack.c.b16 %v8202, %v8194
    %v8291 = vpack.c.b16 %v8203, %v8195
    %v8292 = vpack.c.b16 %v8204, %v8196
    %v8293 = vpack.c.b16 %v8205, %v8197
    %v8294 = vpack.c.b16 %v8206, %v8198
    %v8295 = vpack.c.b16 %v8207, %v8199
    %v8296 = vpack.c.b16 %v8208, %v8200
    %v8297 = vpack.c.b16 %v8217, %v8209
    %v8298 = vpack.c.b16 %v8218, %v8210
    %v8299 = vpack.c.b16 %v8219, %v8211
    %v8300 = vpack.c.b16 %v8220, %v8212
    %v8301 = vpack.c.b16 %v8221, %v8213
    %v8302 = vpack.c.b16 %v8222, %v8214
    %v8303 = vpack.c.b16 %v8223, %v8215
    %v8304 = vpack.c.b16 %v8224, %v8216
    %v8305 = vpack.c.b16 %v8233, %v8225
    %v8306 = vpack.c.b16 %v8234, %v8226
    %v8307 = vpack.c.b16 %v8235, %v8227
    %v8308 = vpack.c.b16 %v8236, %v8228
    %v8309 = vpack.c.b16 %v8237, %v8229
    %v8310 = vpack.c.b16 %v8238, %v8230
    %v8311 = vpack.c.b16 %v8239, %v8231
    %v8312 = vpack.c.b16 %v8240, %v8232
    %v8313 = vpack.c.b16 %v8249, %v8241
    %v8314 = vpack.c.b16 %v8250, %v8242
    %v8315 = vpack.c.b16 %v8251, %v8243
    %v8316 = vpack.c.b16 %v8252, %v8244
    %v8317 = vpack.c.b16 %v8253, %v8245
    %v8318 = vpack.c.b16 %v8254, %v8246
    %v8319 = vpack.c.b16 %v8255, %v8247
    %v8320 = vpack.c.b16 %v8256, %v8248
    %8385 = vmatprep.subr.bf16.mxu0 %v8314
    %8386 = vmatpush1.bf16.msra.mxu0 %v8313
    %8387 = vmatprep.subr.bf16.mxu0 %v8306
    %8388 = vmatpush1.bf16.msra.mxu0 %v8305
    %8389 = vmatprep.subr.bf16.mxu0 %v8298
    %8390 = vmatpush1.bf16.msra.mxu0 %v8297
    %8391 = vmatprep.subr.bf16.mxu0 %v8290
    %8392 = vmatpush1.bf16.msra.mxu0 %v8289
    %8393 = vmatprep.subr.bf16.mxu0 %v8282
    %8394 = vmatpush1.bf16.msra.mxu0 %v8281
    %8395 = vmatprep.subr.bf16.mxu0 %v8274
    %8396 = vmatpush1.bf16.msra.mxu0 %v8273
    %8397 = vmatprep.subr.bf16.mxu0 %v8266
    %8398 = vmatpush1.bf16.msra.mxu0 %v8265
    %8399 = vmatprep.subr.bf16.mxu0 %v8258
    %8400 = vmatpush1.bf16.msra.mxu0 %v8257
    %8401 = vmatprep.subr.bf16.mxu0 0
    %8402 = vmatpush2.bf16.msra.mxu0 0
    %8403 = vmatprep.subr.bf16.mxu0 0
    %8404 = vmatpush2.bf16.msra.mxu0 0
    %8405 = vmatprep.subr.bf16.mxu0 0
    %8406 = vmatpush2.bf16.msra.mxu0 0
    %8407 = vmatprep.subr.bf16.mxu0 0
    %8408 = vmatpush2.bf16.msra.mxu0 0
    %8409 = vmatprep.subr.bf16.mxu0 0
    %8410 = vmatpush2.bf16.msra.mxu0 0
    %8411 = vmatprep.subr.bf16.mxu0 0
    %8412 = vmatpush2.bf16.msra.mxu0 0
    %8413 = vmatprep.subr.bf16.mxu0 0
    %8414 = vmatpush2.bf16.msra.mxu0 0
    %8415 = vmatprep.subr.bf16.mxu0 0
    %8416 = vmatpush2.bf16.msra.mxu0 0
    %8417 = vmatprep.mubr.bf16.mxu0 0
    %8418 = vmatmul.mubr.bf16.gmra.mxu0 %v7999
    %v8419 = vpop.f32.mrf.mxu0
    %v8420 = vadd.f32 0.0, %v8419
    %v8421 = vpop.f32.mrf.mxu0
    %v8422 = vadd.f32 0.0, %v8421
    %v8423 = vpop.f32.mrf.mxu0
    %v8424 = vpop.f32.mrf.mxu0
    %8425 = vdwg.mxu0
    %8426 = vmatprep.subr.bf16.mxu0 %v8316
    %8427 = vmatpush1.bf16.msra.mxu0 %v8315
    %8428 = vmatprep.subr.bf16.mxu0 %v8308
    %8429 = vmatpush1.bf16.msra.mxu0 %v8307
    %8430 = vmatprep.subr.bf16.mxu0 %v8300
    %8431 = vmatpush1.bf16.msra.mxu0 %v8299
    %8432 = vmatprep.subr.bf16.mxu0 %v8292
    %8433 = vmatpush1.bf16.msra.mxu0 %v8291
    %8434 = vmatprep.subr.bf16.mxu0 %v8284
    %8435 = vmatpush1.bf16.msra.mxu0 %v8283
    %8436 = vmatprep.subr.bf16.mxu0 %v8276
    %8437 = vmatpush1.bf16.msra.mxu0 %v8275
    %8438 = vmatprep.subr.bf16.mxu0 %v8268
    %8439 = vmatpush1.bf16.msra.mxu0 %v8267
    %8440 = vmatprep.subr.bf16.mxu0 %v8260
    %8441 = vmatpush1.bf16.msra.mxu0 %v8259
    %8442 = vmatprep.subr.bf16.mxu0 0
    %8443 = vmatpush2.bf16.msra.mxu0 0
    %8444 = vmatprep.subr.bf16.mxu0 0
    %8445 = vmatpush2.bf16.msra.mxu0 0
    %8446 = vmatprep.subr.bf16.mxu0 0
    %8447 = vmatpush2.bf16.msra.mxu0 0
    %8448 = vmatprep.subr.bf16.mxu0 0
    %8449 = vmatpush2.bf16.msra.mxu0 0
    %8450 = vmatprep.subr.bf16.mxu0 0
    %8451 = vmatpush2.bf16.msra.mxu0 0
    %8452 = vmatprep.subr.bf16.mxu0 0
    %8453 = vmatpush2.bf16.msra.mxu0 0
    %8454 = vmatprep.subr.bf16.mxu0 0
    %8455 = vmatpush2.bf16.msra.mxu0 0
    %8456 = vmatprep.subr.bf16.mxu0 0
    %8457 = vmatpush2.bf16.msra.mxu0 0
    %8458 = vmatprep.mubr.bf16.mxu0 0
    %8459 = vmatmul.mubr.bf16.gmra.mxu0 %v7999
    %v8460 = vpop.f32.mrf.mxu0
    %v8461 = vadd.f32 0.0, %v8460
    %v8462 = vpop.f32.mrf.mxu0
    %v8463 = vadd.f32 0.0, %v8462
    %v8464 = vpop.f32.mrf.mxu0
    %v8465 = vpop.f32.mrf.mxu0
    %8466 = vdwg.mxu0
    %8467 = vmatprep.subr.bf16.mxu0 %v8318
    %8468 = vmatpush1.bf16.msra.mxu0 %v8317
    %8469 = vmatprep.subr.bf16.mxu0 %v8310
    %8470 = vmatpush1.bf16.msra.mxu0 %v8309
    %8471 = vmatprep.subr.bf16.mxu0 %v8302
    %8472 = vmatpush1.bf16.msra.mxu0 %v8301
    %8473 = vmatprep.subr.bf16.mxu0 %v8294
    %8474 = vmatpush1.bf16.msra.mxu0 %v8293
    %8475 = vmatprep.subr.bf16.mxu0 %v8286
    %8476 = vmatpush1.bf16.msra.mxu0 %v8285
    %8477 = vmatprep.subr.bf16.mxu0 %v8278
    %8478 = vmatpush1.bf16.msra.mxu0 %v8277
    %8479 = vmatprep.subr.bf16.mxu0 %v8270
    %8480 = vmatpush1.bf16.msra.mxu0 %v8269
    %8481 = vmatprep.subr.bf16.mxu0 %v8262
    %8482 = vmatpush1.bf16.msra.mxu0 %v8261
    %8483 = vmatprep.subr.bf16.mxu0 0
    %8484 = vmatpush2.bf16.msra.mxu0 0
    %8485 = vmatprep.subr.bf16.mxu0 0
    %8486 = vmatpush2.bf16.msra.mxu0 0
    %8487 = vmatprep.subr.bf16.mxu0 0
    %8488 = vmatpush2.bf16.msra.mxu0 0
    %8489 = vmatprep.subr.bf16.mxu0 0
    %8490 = vmatpush2.bf16.msra.mxu0 0
    %8491 = vmatprep.subr.bf16.mxu0 0
    %8492 = vmatpush2.bf16.msra.mxu0 0
    %8493 = vmatprep.subr.bf16.mxu0 0
    %8494 = vmatpush2.bf16.msra.mxu0 0
    %8495 = vmatprep.subr.bf16.mxu0 0
    %8496 = vmatpush2.bf16.msra.mxu0 0
    %8497 = vmatprep.subr.bf16.mxu0 0
    %8498 = vmatpush2.bf16.msra.mxu0 0
    %8499 = vmatprep.mubr.bf16.mxu0 0
    %8500 = vmatmul.mubr.bf16.gmra.mxu0 %v7999
    %v8501 = vpop.f32.mrf.mxu0
    %v8502 = vadd.f32 0.0, %v8501
    %v8503 = vpop.f32.mrf.mxu0
    %v8504 = vadd.f32 0.0, %v8503
    %v8505 = vpop.f32.mrf.mxu0
    %v8506 = vpop.f32.mrf.mxu0
    %8507 = vdwg.mxu0
    %8508 = vmatprep.subr.bf16.mxu0 %v8320
    %8509 = vmatpush1.bf16.msra.mxu0 %v8319
    %8510 = vmatprep.subr.bf16.mxu0 %v8312
    %8511 = vmatpush1.bf16.msra.mxu0 %v8311
    %8512 = vmatprep.subr.bf16.mxu0 %v8304
    %8513 = vmatpush1.bf16.msra.mxu0 %v8303
    %8514 = vmatprep.subr.bf16.mxu0 %v8296
    %8515 = vmatpush1.bf16.msra.mxu0 %v8295
    %8516 = vmatprep.subr.bf16.mxu0 %v8288
    %8517 = vmatpush1.bf16.msra.mxu0 %v8287
    %8518 = vmatprep.subr.bf16.mxu0 %v8280
    %8519 = vmatpush1.bf16.msra.mxu0 %v8279
    %8520 = vmatprep.subr.bf16.mxu0 %v8272
    %8521 = vmatpush1.bf16.msra.mxu0 %v8271
    %8522 = vmatprep.subr.bf16.mxu0 %v8264
    %8523 = vmatpush1.bf16.msra.mxu0 %v8263
    %8524 = vmatprep.subr.bf16.mxu0 0
    %8525 = vmatpush2.bf16.msra.mxu0 0
    %8526 = vmatprep.subr.bf16.mxu0 0
    %8527 = vmatpush2.bf16.msra.mxu0 0
    %8528 = vmatprep.subr.bf16.mxu0 0
    %8529 = vmatpush2.bf16.msra.mxu0 0
    %8530 = vmatprep.subr.bf16.mxu0 0
    %8531 = vmatpush2.bf16.msra.mxu0 0
    %8532 = vmatprep.subr.bf16.mxu0 0
    %8533 = vmatpush2.bf16.msra.mxu0 0
    %8534 = vmatprep.subr.bf16.mxu0 0
    %8535 = vmatpush2.bf16.msra.mxu0 0
    %8536 = vmatprep.subr.bf16.mxu0 0
    %8537 = vmatpush2.bf16.msra.mxu0 0
    %8538 = vmatprep.subr.bf16.mxu0 0
    %8539 = vmatpush2.bf16.msra.mxu0 0
    %8540 = vmatprep.mubr.bf16.mxu0 0
    %8541 = vmatmul.mubr.bf16.gmra.mxu0 %v7999
    %v8542 = vpop.f32.mrf.mxu0
    %v8543 = vadd.f32 0.0, %v8542
    %v8544 = vpop.f32.mrf.mxu0
    %v8545 = vadd.f32 0.0, %v8544
    %v8546 = vpop.f32.mrf.mxu0
    %v8547 = vpop.f32.mrf.mxu0
    %8548 = vdwg.mxu0
    %v8549 = vadd.f32 %v7945, %v8420
    %v8550 = vadd.f32 %v7946, %v8422
    %v8551 = vadd.f32 %v7947, %v8461
    %v8552 = vadd.f32 %v7948, %v8463
    %v8553 = vadd.f32 %v7949, %v8502
    %v8554 = vadd.f32 %v7950, %v8504
    %v8555 = vadd.f32 %v7951, %v8543
    %v8556 = vadd.f32 %v7952, %v8545
    %s8557 = scalar_lea.vmem %s0, 56
    %v8558 = vld [vmem:[%s8557] sm:$0xf]
    %v8560 = vsel %vm119, %v8558, 0
    %8562 = vmatprep.subr.bf16.mxu0 0
    %8563 = vmatpush1.bf16.msra.mxu0 0
    %8564 = vmatprep.subr.bf16.mxu0 0
    %8565 = vmatpush1.bf16.msra.mxu0 0
    %8566 = vmatprep.subr.bf16.mxu0 0
    %8567 = vmatpush1.bf16.msra.mxu0 0
    %8568 = vmatprep.subr.bf16.mxu0 0
    %8569 = vmatpush1.bf16.msra.mxu0 0
    %8570 = vmatprep.subr.bf16.mxu0 0
    %8571 = vmatpush1.bf16.msra.mxu0 0
    %8572 = vmatprep.subr.bf16.mxu0 0
    %8573 = vmatpush1.bf16.msra.mxu0 0
    %8574 = vmatprep.subr.bf16.mxu0 0
    %8575 = vmatpush1.bf16.msra.mxu0 0
    %8576 = vmatprep.subr.bf16.mxu0 0
    %8577 = vmatpush1.bf16.msra.mxu0 %v117
    %8578 = vmatprep.subr.bf16.mxu0 0
    %8579 = vmatpush2.bf16.msra.mxu0 0
    %8580 = vmatprep.subr.bf16.mxu0 0
    %8581 = vmatpush2.bf16.msra.mxu0 0
    %8582 = vmatprep.subr.bf16.mxu0 0
    %8583 = vmatpush2.bf16.msra.mxu0 0
    %8584 = vmatprep.subr.bf16.mxu0 0
    %8585 = vmatpush2.bf16.msra.mxu0 0
    %8586 = vmatprep.subr.bf16.mxu0 0
    %8587 = vmatpush2.bf16.msra.mxu0 0
    %8588 = vmatprep.subr.bf16.mxu0 0
    %8589 = vmatpush2.bf16.msra.mxu0 0
    %8590 = vmatprep.subr.bf16.mxu0 0
    %8591 = vmatpush2.bf16.msra.mxu0 0
    %8592 = vmatprep.subr.bf16.mxu0 0
    %8593 = vmatpush2.bf16.msra.mxu0 0
    %8594 = vmatprep.mubr.bf16.mxu0 0
    %8595 = vmatmul.mubr.bf16.gmra.mxu0 %v8560
    %v8596 = vpop.f32.mrf.mxu0
    %v8597 = vadd.f32 %v111, %v8596
    %v8598 = vpop.f32.mrf.mxu0
    %v8599 = vpop.f32.mrf.mxu0
    %v8600 = vpop.f32.mrf.mxu0
    %8601 = vdwg.mxu0
    %v8602 = vmax.f32 %v8597, 0.0
    %v8603 = vpack.c.bf16 %v8602, %v8602
    %s8604 = scalar_lea.vmem [#allocation6], 7168
    %v8605 = vld [vmem:[%s8604] sm:$0xff]
    %v8606 = vld [vmem:[%s8604 + $0x8] sm:$0xff]
    %v8607 = vld [vmem:[%s8604 + $0x10] sm:$0xff]
    %v8608 = vld [vmem:[%s8604 + $0x18] sm:$0xff]
    %v8609 = vld [vmem:[%s8604 + $0x20] sm:$0xff]
    %v8610 = vld [vmem:[%s8604 + $0x28] sm:$0xff]
    %v8611 = vld [vmem:[%s8604 + $0x30] sm:$0xff]
    %v8612 = vld [vmem:[%s8604 + $0x38] sm:$0xff]
    %v8613 = vld [vmem:[%s8604 + $0x40] sm:$0xff]
    %v8614 = vld [vmem:[%s8604 + $0x48] sm:$0xff]
    %v8615 = vld [vmem:[%s8604 + $0x50] sm:$0xff]
    %v8616 = vld [vmem:[%s8604 + $0x58] sm:$0xff]
    %v8617 = vld [vmem:[%s8604 + $0x60] sm:$0xff]
    %v8618 = vld [vmem:[%s8604 + $0x68] sm:$0xff]
    %v8619 = vld [vmem:[%s8604 + $0x70] sm:$0xff]
    %v8620 = vld [vmem:[%s8604 + $0x78] sm:$0xff]
    %v8621 = vld [vmem:[%s8604 + $0x80] sm:$0xff]
    %v8622 = vld [vmem:[%s8604 + $0x88] sm:$0xff]
    %v8623 = vld [vmem:[%s8604 + $0x90] sm:$0xff]
    %v8624 = vld [vmem:[%s8604 + $0x98] sm:$0xff]
    %v8625 = vld [vmem:[%s8604 + $0xa0] sm:$0xff]
    %v8626 = vld [vmem:[%s8604 + $0xa8] sm:$0xff]
    %v8627 = vld [vmem:[%s8604 + $0xb0] sm:$0xff]
    %v8628 = vld [vmem:[%s8604 + $0xb8] sm:$0xff]
    %v8629 = vld [vmem:[%s8604 + $0xc0] sm:$0xff]
    %v8630 = vld [vmem:[%s8604 + $0xc8] sm:$0xff]
    %v8631 = vld [vmem:[%s8604 + $0xd0] sm:$0xff]
    %v8632 = vld [vmem:[%s8604 + $0xd8] sm:$0xff]
    %v8633 = vld [vmem:[%s8604 + $0xe0] sm:$0xff]
    %v8634 = vld [vmem:[%s8604 + $0xe8] sm:$0xff]
    %v8635 = vld [vmem:[%s8604 + $0xf0] sm:$0xff]
    %v8636 = vld [vmem:[%s8604 + $0xf8] sm:$0xff]
    %v8637 = vld [vmem:[%s8604 + $0x100] sm:$0xff]
    %v8638 = vld [vmem:[%s8604 + $0x108] sm:$0xff]
    %v8639 = vld [vmem:[%s8604 + $0x110] sm:$0xff]
    %v8640 = vld [vmem:[%s8604 + $0x118] sm:$0xff]
    %v8641 = vld [vmem:[%s8604 + $0x120] sm:$0xff]
    %v8642 = vld [vmem:[%s8604 + $0x128] sm:$0xff]
    %v8643 = vld [vmem:[%s8604 + $0x130] sm:$0xff]
    %v8644 = vld [vmem:[%s8604 + $0x138] sm:$0xff]
    %v8645 = vld [vmem:[%s8604 + $0x140] sm:$0xff]
    %v8646 = vld [vmem:[%s8604 + $0x148] sm:$0xff]
    %v8647 = vld [vmem:[%s8604 + $0x150] sm:$0xff]
    %v8648 = vld [vmem:[%s8604 + $0x158] sm:$0xff]
    %v8649 = vld [vmem:[%s8604 + $0x160] sm:$0xff]
    %v8650 = vld [vmem:[%s8604 + $0x168] sm:$0xff]
    %v8651 = vld [vmem:[%s8604 + $0x170] sm:$0xff]
    %v8652 = vld [vmem:[%s8604 + $0x178] sm:$0xff]
    %v8653 = vld [vmem:[%s8604 + $0x180] sm:$0xff]
    %v8654 = vld [vmem:[%s8604 + $0x188] sm:$0xff]
    %v8655 = vld [vmem:[%s8604 + $0x190] sm:$0xff]
    %v8656 = vld [vmem:[%s8604 + $0x198] sm:$0xff]
    %v8657 = vld [vmem:[%s8604 + $0x1a0] sm:$0xff]
    %v8658 = vld [vmem:[%s8604 + $0x1a8] sm:$0xff]
    %v8659 = vld [vmem:[%s8604 + $0x1b0] sm:$0xff]
    %v8660 = vld [vmem:[%s8604 + $0x1b8] sm:$0xff]
    %v8661 = vld [vmem:[%s8604 + $0x1c0] sm:$0xff]
    %v8662 = vld [vmem:[%s8604 + $0x1c8] sm:$0xff]
    %v8663 = vld [vmem:[%s8604 + $0x1d0] sm:$0xff]
    %v8664 = vld [vmem:[%s8604 + $0x1d8] sm:$0xff]
    %v8665 = vld [vmem:[%s8604 + $0x1e0] sm:$0xff]
    %v8666 = vld [vmem:[%s8604 + $0x1e8] sm:$0xff]
    %v8667 = vld [vmem:[%s8604 + $0x1f0] sm:$0xff]
    %v8668 = vld [vmem:[%s8604 + $0x1f8] sm:$0xff]
    %v8733 = vunpack.c.l.b16 %v8605
    %v8734 = vunpack.c.h.b16 %v8605
    %v8735 = vunpack.c.l.b16 %v8606
    %v8736 = vunpack.c.h.b16 %v8606
    %v8737 = vunpack.c.l.b16 %v8607
    %v8738 = vunpack.c.h.b16 %v8607
    %v8739 = vunpack.c.l.b16 %v8608
    %v8740 = vunpack.c.h.b16 %v8608
    %v8741 = vunpack.c.l.b16 %v8609
    %v8742 = vunpack.c.h.b16 %v8609
    %v8743 = vunpack.c.l.b16 %v8610
    %v8744 = vunpack.c.h.b16 %v8610
    %v8745 = vunpack.c.l.b16 %v8611
    %v8746 = vunpack.c.h.b16 %v8611
    %v8747 = vunpack.c.l.b16 %v8612
    %v8748 = vunpack.c.h.b16 %v8612
    %v8749 = vunpack.c.l.b16 %v8613
    %v8750 = vunpack.c.h.b16 %v8613
    %v8751 = vunpack.c.l.b16 %v8614
    %v8752 = vunpack.c.h.b16 %v8614
    %v8753 = vunpack.c.l.b16 %v8615
    %v8754 = vunpack.c.h.b16 %v8615
    %v8755 = vunpack.c.l.b16 %v8616
    %v8756 = vunpack.c.h.b16 %v8616
    %v8757 = vunpack.c.l.b16 %v8617
    %v8758 = vunpack.c.h.b16 %v8617
    %v8759 = vunpack.c.l.b16 %v8618
    %v8760 = vunpack.c.h.b16 %v8618
    %v8761 = vunpack.c.l.b16 %v8619
    %v8762 = vunpack.c.h.b16 %v8619
    %v8763 = vunpack.c.l.b16 %v8620
    %v8764 = vunpack.c.h.b16 %v8620
    %v8765 = vunpack.c.l.b16 %v8621
    %v8766 = vunpack.c.h.b16 %v8621
    %v8767 = vunpack.c.l.b16 %v8622
    %v8768 = vunpack.c.h.b16 %v8622
    %v8769 = vunpack.c.l.b16 %v8623
    %v8770 = vunpack.c.h.b16 %v8623
    %v8771 = vunpack.c.l.b16 %v8624
    %v8772 = vunpack.c.h.b16 %v8624
    %v8773 = vunpack.c.l.b16 %v8625
    %v8774 = vunpack.c.h.b16 %v8625
    %v8775 = vunpack.c.l.b16 %v8626
    %v8776 = vunpack.c.h.b16 %v8626
    %v8777 = vunpack.c.l.b16 %v8627
    %v8778 = vunpack.c.h.b16 %v8627
    %v8779 = vunpack.c.l.b16 %v8628
    %v8780 = vunpack.c.h.b16 %v8628
    %v8781 = vunpack.c.l.b16 %v8629
    %v8782 = vunpack.c.h.b16 %v8629
    %v8783 = vunpack.c.l.b16 %v8630
    %v8784 = vunpack.c.h.b16 %v8630
    %v8785 = vunpack.c.l.b16 %v8631
    %v8786 = vunpack.c.h.b16 %v8631
    %v8787 = vunpack.c.l.b16 %v8632
    %v8788 = vunpack.c.h.b16 %v8632
    %v8789 = vunpack.c.l.b16 %v8633
    %v8790 = vunpack.c.h.b16 %v8633
    %v8791 = vunpack.c.l.b16 %v8634
    %v8792 = vunpack.c.h.b16 %v8634
    %v8793 = vunpack.c.l.b16 %v8635
    %v8794 = vunpack.c.h.b16 %v8635
    %v8795 = vunpack.c.l.b16 %v8636
    %v8796 = vunpack.c.h.b16 %v8636
    %v8797 = vunpack.c.l.b16 %v8637
    %v8798 = vunpack.c.h.b16 %v8637
    %v8799 = vunpack.c.l.b16 %v8638
    %v8800 = vunpack.c.h.b16 %v8638
    %v8801 = vunpack.c.l.b16 %v8639
    %v8802 = vunpack.c.h.b16 %v8639
    %v8803 = vunpack.c.l.b16 %v8640
    %v8804 = vunpack.c.h.b16 %v8640
    %v8805 = vunpack.c.l.b16 %v8641
    %v8806 = vunpack.c.h.b16 %v8641
    %v8807 = vunpack.c.l.b16 %v8642
    %v8808 = vunpack.c.h.b16 %v8642
    %v8809 = vunpack.c.l.b16 %v8643
    %v8810 = vunpack.c.h.b16 %v8643
    %v8811 = vunpack.c.l.b16 %v8644
    %v8812 = vunpack.c.h.b16 %v8644
    %v8813 = vunpack.c.l.b16 %v8645
    %v8814 = vunpack.c.h.b16 %v8645
    %v8815 = vunpack.c.l.b16 %v8646
    %v8816 = vunpack.c.h.b16 %v8646
    %v8817 = vunpack.c.l.b16 %v8647
    %v8818 = vunpack.c.h.b16 %v8647
    %v8819 = vunpack.c.l.b16 %v8648
    %v8820 = vunpack.c.h.b16 %v8648
    %v8821 = vunpack.c.l.b16 %v8649
    %v8822 = vunpack.c.h.b16 %v8649
    %v8823 = vunpack.c.l.b16 %v8650
    %v8824 = vunpack.c.h.b16 %v8650
    %v8825 = vunpack.c.l.b16 %v8651
    %v8826 = vunpack.c.h.b16 %v8651
    %v8827 = vunpack.c.l.b16 %v8652
    %v8828 = vunpack.c.h.b16 %v8652
    %v8829 = vunpack.c.l.b16 %v8653
    %v8830 = vunpack.c.h.b16 %v8653
    %v8831 = vunpack.c.l.b16 %v8654
    %v8832 = vunpack.c.h.b16 %v8654
    %v8833 = vunpack.c.l.b16 %v8655
    %v8834 = vunpack.c.h.b16 %v8655
    %v8835 = vunpack.c.l.b16 %v8656
    %v8836 = vunpack.c.h.b16 %v8656
    %v8837 = vunpack.c.l.b16 %v8657
    %v8838 = vunpack.c.h.b16 %v8657
    %v8839 = vunpack.c.l.b16 %v8658
    %v8840 = vunpack.c.h.b16 %v8658
    %v8841 = vunpack.c.l.b16 %v8659
    %v8842 = vunpack.c.h.b16 %v8659
    %v8843 = vunpack.c.l.b16 %v8660
    %v8844 = vunpack.c.h.b16 %v8660
    %v8845 = vunpack.c.l.b16 %v8661
    %v8846 = vunpack.c.h.b16 %v8661
    %v8847 = vunpack.c.l.b16 %v8662
    %v8848 = vunpack.c.h.b16 %v8662
    %v8849 = vunpack.c.l.b16 %v8663
    %v8850 = vunpack.c.h.b16 %v8663
    %v8851 = vunpack.c.l.b16 %v8664
    %v8852 = vunpack.c.h.b16 %v8664
    %v8853 = vunpack.c.l.b16 %v8665
    %v8854 = vunpack.c.h.b16 %v8665
    %v8855 = vunpack.c.l.b16 %v8666
    %v8856 = vunpack.c.h.b16 %v8666
    %v8857 = vunpack.c.l.b16 %v8667
    %v8858 = vunpack.c.h.b16 %v8667
    %v8859 = vunpack.c.l.b16 %v8668
    %v8860 = vunpack.c.h.b16 %v8668
    %v8861 = vpack.c.b16 %v8741, %v8733
    %v8862 = vpack.c.b16 %v8742, %v8734
    %v8863 = vpack.c.b16 %v8743, %v8735
    %v8864 = vpack.c.b16 %v8744, %v8736
    %v8865 = vpack.c.b16 %v8745, %v8737
    %v8866 = vpack.c.b16 %v8746, %v8738
    %v8867 = vpack.c.b16 %v8747, %v8739
    %v8868 = vpack.c.b16 %v8748, %v8740
    %v8869 = vpack.c.b16 %v8757, %v8749
    %v8870 = vpack.c.b16 %v8758, %v8750
    %v8871 = vpack.c.b16 %v8759, %v8751
    %v8872 = vpack.c.b16 %v8760, %v8752
    %v8873 = vpack.c.b16 %v8761, %v8753
    %v8874 = vpack.c.b16 %v8762, %v8754
    %v8875 = vpack.c.b16 %v8763, %v8755
    %v8876 = vpack.c.b16 %v8764, %v8756
    %v8877 = vpack.c.b16 %v8773, %v8765
    %v8878 = vpack.c.b16 %v8774, %v8766
    %v8879 = vpack.c.b16 %v8775, %v8767
    %v8880 = vpack.c.b16 %v8776, %v8768
    %v8881 = vpack.c.b16 %v8777, %v8769
    %v8882 = vpack.c.b16 %v8778, %v8770
    %v8883 = vpack.c.b16 %v8779, %v8771
    %v8884 = vpack.c.b16 %v8780, %v8772
    %v8885 = vpack.c.b16 %v8789, %v8781
    %v8886 = vpack.c.b16 %v8790, %v8782
    %v8887 = vpack.c.b16 %v8791, %v8783
    %v8888 = vpack.c.b16 %v8792, %v8784
    %v8889 = vpack.c.b16 %v8793, %v8785
    %v8890 = vpack.c.b16 %v8794, %v8786
    %v8891 = vpack.c.b16 %v8795, %v8787
    %v8892 = vpack.c.b16 %v8796, %v8788
    %v8893 = vpack.c.b16 %v8805, %v8797
    %v8894 = vpack.c.b16 %v8806, %v8798
    %v8895 = vpack.c.b16 %v8807, %v8799
    %v8896 = vpack.c.b16 %v8808, %v8800
    %v8897 = vpack.c.b16 %v8809, %v8801
    %v8898 = vpack.c.b16 %v8810, %v8802
    %v8899 = vpack.c.b16 %v8811, %v8803
    %v8900 = vpack.c.b16 %v8812, %v8804
    %v8901 = vpack.c.b16 %v8821, %v8813
    %v8902 = vpack.c.b16 %v8822, %v8814
    %v8903 = vpack.c.b16 %v8823, %v8815
    %v8904 = vpack.c.b16 %v8824, %v8816
    %v8905 = vpack.c.b16 %v8825, %v8817
    %v8906 = vpack.c.b16 %v8826, %v8818
    %v8907 = vpack.c.b16 %v8827, %v8819
    %v8908 = vpack.c.b16 %v8828, %v8820
    %v8909 = vpack.c.b16 %v8837, %v8829
    %v8910 = vpack.c.b16 %v8838, %v8830
    %v8911 = vpack.c.b16 %v8839, %v8831
    %v8912 = vpack.c.b16 %v8840, %v8832
    %v8913 = vpack.c.b16 %v8841, %v8833
    %v8914 = vpack.c.b16 %v8842, %v8834
    %v8915 = vpack.c.b16 %v8843, %v8835
    %v8916 = vpack.c.b16 %v8844, %v8836
    %v8917 = vpack.c.b16 %v8853, %v8845
    %v8918 = vpack.c.b16 %v8854, %v8846
    %v8919 = vpack.c.b16 %v8855, %v8847
    %v8920 = vpack.c.b16 %v8856, %v8848
    %v8921 = vpack.c.b16 %v8857, %v8849
    %v8922 = vpack.c.b16 %v8858, %v8850
    %v8923 = vpack.c.b16 %v8859, %v8851
    %v8924 = vpack.c.b16 %v8860, %v8852
    %8989 = vmatprep.subr.bf16.mxu0 %v8918
    %8990 = vmatpush1.bf16.msra.mxu0 %v8917
    %8991 = vmatprep.subr.bf16.mxu0 %v8910
    %8992 = vmatpush1.bf16.msra.mxu0 %v8909
    %8993 = vmatprep.subr.bf16.mxu0 %v8902
    %8994 = vmatpush1.bf16.msra.mxu0 %v8901
    %8995 = vmatprep.subr.bf16.mxu0 %v8894
    %8996 = vmatpush1.bf16.msra.mxu0 %v8893
    %8997 = vmatprep.subr.bf16.mxu0 %v8886
    %8998 = vmatpush1.bf16.msra.mxu0 %v8885
    %8999 = vmatprep.subr.bf16.mxu0 %v8878
    %9000 = vmatpush1.bf16.msra.mxu0 %v8877
    %9001 = vmatprep.subr.bf16.mxu0 %v8870
    %9002 = vmatpush1.bf16.msra.mxu0 %v8869
    %9003 = vmatprep.subr.bf16.mxu0 %v8862
    %9004 = vmatpush1.bf16.msra.mxu0 %v8861
    %9005 = vmatprep.subr.bf16.mxu0 0
    %9006 = vmatpush2.bf16.msra.mxu0 0
    %9007 = vmatprep.subr.bf16.mxu0 0
    %9008 = vmatpush2.bf16.msra.mxu0 0
    %9009 = vmatprep.subr.bf16.mxu0 0
    %9010 = vmatpush2.bf16.msra.mxu0 0
    %9011 = vmatprep.subr.bf16.mxu0 0
    %9012 = vmatpush2.bf16.msra.mxu0 0
    %9013 = vmatprep.subr.bf16.mxu0 0
    %9014 = vmatpush2.bf16.msra.mxu0 0
    %9015 = vmatprep.subr.bf16.mxu0 0
    %9016 = vmatpush2.bf16.msra.mxu0 0
    %9017 = vmatprep.subr.bf16.mxu0 0
    %9018 = vmatpush2.bf16.msra.mxu0 0
    %9019 = vmatprep.subr.bf16.mxu0 0
    %9020 = vmatpush2.bf16.msra.mxu0 0
    %9021 = vmatprep.mubr.bf16.mxu0 0
    %9022 = vmatmul.mubr.bf16.gmra.mxu0 %v8603
    %v9023 = vpop.f32.mrf.mxu0
    %v9024 = vadd.f32 0.0, %v9023
    %v9025 = vpop.f32.mrf.mxu0
    %v9026 = vadd.f32 0.0, %v9025
    %v9027 = vpop.f32.mrf.mxu0
    %v9028 = vpop.f32.mrf.mxu0
    %9029 = vdwg.mxu0
    %9030 = vmatprep.subr.bf16.mxu0 %v8920
    %9031 = vmatpush1.bf16.msra.mxu0 %v8919
    %9032 = vmatprep.subr.bf16.mxu0 %v8912
    %9033 = vmatpush1.bf16.msra.mxu0 %v8911
    %9034 = vmatprep.subr.bf16.mxu0 %v8904
    %9035 = vmatpush1.bf16.msra.mxu0 %v8903
    %9036 = vmatprep.subr.bf16.mxu0 %v8896
    %9037 = vmatpush1.bf16.msra.mxu0 %v8895
    %9038 = vmatprep.subr.bf16.mxu0 %v8888
    %9039 = vmatpush1.bf16.msra.mxu0 %v8887
    %9040 = vmatprep.subr.bf16.mxu0 %v8880
    %9041 = vmatpush1.bf16.msra.mxu0 %v8879
    %9042 = vmatprep.subr.bf16.mxu0 %v8872
    %9043 = vmatpush1.bf16.msra.mxu0 %v8871
    %9044 = vmatprep.subr.bf16.mxu0 %v8864
    %9045 = vmatpush1.bf16.msra.mxu0 %v8863
    %9046 = vmatprep.subr.bf16.mxu0 0
    %9047 = vmatpush2.bf16.msra.mxu0 0
    %9048 = vmatprep.subr.bf16.mxu0 0
    %9049 = vmatpush2.bf16.msra.mxu0 0
    %9050 = vmatprep.subr.bf16.mxu0 0
    %9051 = vmatpush2.bf16.msra.mxu0 0
    %9052 = vmatprep.subr.bf16.mxu0 0
    %9053 = vmatpush2.bf16.msra.mxu0 0
    %9054 = vmatprep.subr.bf16.mxu0 0
    %9055 = vmatpush2.bf16.msra.mxu0 0
    %9056 = vmatprep.subr.bf16.mxu0 0
    %9057 = vmatpush2.bf16.msra.mxu0 0
    %9058 = vmatprep.subr.bf16.mxu0 0
    %9059 = vmatpush2.bf16.msra.mxu0 0
    %9060 = vmatprep.subr.bf16.mxu0 0
    %9061 = vmatpush2.bf16.msra.mxu0 0
    %9062 = vmatprep.mubr.bf16.mxu0 0
    %9063 = vmatmul.mubr.bf16.gmra.mxu0 %v8603
    %v9064 = vpop.f32.mrf.mxu0
    %v9065 = vadd.f32 0.0, %v9064
    %v9066 = vpop.f32.mrf.mxu0
    %v9067 = vadd.f32 0.0, %v9066
    %v9068 = vpop.f32.mrf.mxu0
    %v9069 = vpop.f32.mrf.mxu0
    %9070 = vdwg.mxu0
    %9071 = vmatprep.subr.bf16.mxu0 %v8922
    %9072 = vmatpush1.bf16.msra.mxu0 %v8921
    %9073 = vmatprep.subr.bf16.mxu0 %v8914
    %9074 = vmatpush1.bf16.msra.mxu0 %v8913
    %9075 = vmatprep.subr.bf16.mxu0 %v8906
    %9076 = vmatpush1.bf16.msra.mxu0 %v8905
    %9077 = vmatprep.subr.bf16.mxu0 %v8898
    %9078 = vmatpush1.bf16.msra.mxu0 %v8897
    %9079 = vmatprep.subr.bf16.mxu0 %v8890
    %9080 = vmatpush1.bf16.msra.mxu0 %v8889
    %9081 = vmatprep.subr.bf16.mxu0 %v8882
    %9082 = vmatpush1.bf16.msra.mxu0 %v8881
    %9083 = vmatprep.subr.bf16.mxu0 %v8874
    %9084 = vmatpush1.bf16.msra.mxu0 %v8873
    %9085 = vmatprep.subr.bf16.mxu0 %v8866
    %9086 = vmatpush1.bf16.msra.mxu0 %v8865
    %9087 = vmatprep.subr.bf16.mxu0 0
    %9088 = vmatpush2.bf16.msra.mxu0 0
    %9089 = vmatprep.subr.bf16.mxu0 0
    %9090 = vmatpush2.bf16.msra.mxu0 0
    %9091 = vmatprep.subr.bf16.mxu0 0
    %9092 = vmatpush2.bf16.msra.mxu0 0
    %9093 = vmatprep.subr.bf16.mxu0 0
    %9094 = vmatpush2.bf16.msra.mxu0 0
    %9095 = vmatprep.subr.bf16.mxu0 0
    %9096 = vmatpush2.bf16.msra.mxu0 0
    %9097 = vmatprep.subr.bf16.mxu0 0
    %9098 = vmatpush2.bf16.msra.mxu0 0
    %9099 = vmatprep.subr.bf16.mxu0 0
    %9100 = vmatpush2.bf16.msra.mxu0 0
    %9101 = vmatprep.subr.bf16.mxu0 0
    %9102 = vmatpush2.bf16.msra.mxu0 0
    %9103 = vmatprep.mubr.bf16.mxu0 0
    %9104 = vmatmul.mubr.bf16.gmra.mxu0 %v8603
    %v9105 = vpop.f32.mrf.mxu0
    %v9106 = vadd.f32 0.0, %v9105
    %v9107 = vpop.f32.mrf.mxu0
    %v9108 = vadd.f32 0.0, %v9107
    %v9109 = vpop.f32.mrf.mxu0
    %v9110 = vpop.f32.mrf.mxu0
    %9111 = vdwg.mxu0
    %9112 = vmatprep.subr.bf16.mxu0 %v8924
    %9113 = vmatpush1.bf16.msra.mxu0 %v8923
    %9114 = vmatprep.subr.bf16.mxu0 %v8916
    %9115 = vmatpush1.bf16.msra.mxu0 %v8915
    %9116 = vmatprep.subr.bf16.mxu0 %v8908
    %9117 = vmatpush1.bf16.msra.mxu0 %v8907
    %9118 = vmatprep.subr.bf16.mxu0 %v8900
    %9119 = vmatpush1.bf16.msra.mxu0 %v8899
    %9120 = vmatprep.subr.bf16.mxu0 %v8892
    %9121 = vmatpush1.bf16.msra.mxu0 %v8891
    %9122 = vmatprep.subr.bf16.mxu0 %v8884
    %9123 = vmatpush1.bf16.msra.mxu0 %v8883
    %9124 = vmatprep.subr.bf16.mxu0 %v8876
    %9125 = vmatpush1.bf16.msra.mxu0 %v8875
    %9126 = vmatprep.subr.bf16.mxu0 %v8868
    %9127 = vmatpush1.bf16.msra.mxu0 %v8867
    %9128 = vmatprep.subr.bf16.mxu0 0
    %9129 = vmatpush2.bf16.msra.mxu0 0
    %9130 = vmatprep.subr.bf16.mxu0 0
    %9131 = vmatpush2.bf16.msra.mxu0 0
    %9132 = vmatprep.subr.bf16.mxu0 0
    %9133 = vmatpush2.bf16.msra.mxu0 0
    %9134 = vmatprep.subr.bf16.mxu0 0
    %9135 = vmatpush2.bf16.msra.mxu0 0
    %9136 = vmatprep.subr.bf16.mxu0 0
    %9137 = vmatpush2.bf16.msra.mxu0 0
    %9138 = vmatprep.subr.bf16.mxu0 0
    %9139 = vmatpush2.bf16.msra.mxu0 0
    %9140 = vmatprep.subr.bf16.mxu0 0
    %9141 = vmatpush2.bf16.msra.mxu0 0
    %9142 = vmatprep.subr.bf16.mxu0 0
    %9143 = vmatpush2.bf16.msra.mxu0 0
    %9144 = vmatprep.mubr.bf16.mxu0 0
    %9145 = vmatmul.mubr.bf16.gmra.mxu0 %v8603
    %v9146 = vpop.f32.mrf.mxu0
    %v9147 = vadd.f32 0.0, %v9146
    %v9148 = vpop.f32.mrf.mxu0
    %v9149 = vadd.f32 0.0, %v9148
    %v9150 = vpop.f32.mrf.mxu0
    %v9151 = vpop.f32.mrf.mxu0
    %9152 = vdwg.mxu0
    %v9153 = vadd.f32 %v8549, %v9024
    %v9154 = vadd.f32 %v8550, %v9026
    %v9155 = vadd.f32 %v8551, %v9065
    %v9156 = vadd.f32 %v8552, %v9067
    %v9157 = vadd.f32 %v8553, %v9106
    %v9158 = vadd.f32 %v8554, %v9108
    %v9159 = vadd.f32 %v8555, %v9147
    %v9160 = vadd.f32 %v8556, %v9149
    %s9161 = scalar_lea.vmem %s0, 60
    %v9162 = vld [vmem:[%s9161] sm:$0xf]
    %v9164 = vsel %vm119, %v9162, 0
    %9166 = vmatprep.subr.bf16.mxu0 0
    %9167 = vmatpush1.bf16.msra.mxu0 0
    %9168 = vmatprep.subr.bf16.mxu0 0
    %9169 = vmatpush1.bf16.msra.mxu0 0
    %9170 = vmatprep.subr.bf16.mxu0 0
    %9171 = vmatpush1.bf16.msra.mxu0 0
    %9172 = vmatprep.subr.bf16.mxu0 0
    %9173 = vmatpush1.bf16.msra.mxu0 0
    %9174 = vmatprep.subr.bf16.mxu0 0
    %9175 = vmatpush1.bf16.msra.mxu0 0
    %9176 = vmatprep.subr.bf16.mxu0 0
    %9177 = vmatpush1.bf16.msra.mxu0 0
    %9178 = vmatprep.subr.bf16.mxu0 0
    %9179 = vmatpush1.bf16.msra.mxu0 0
    %9180 = vmatprep.subr.bf16.mxu0 0
    %9181 = vmatpush1.bf16.msra.mxu0 %v117
    %9182 = vmatprep.subr.bf16.mxu0 0
    %9183 = vmatpush2.bf16.msra.mxu0 0
    %9184 = vmatprep.subr.bf16.mxu0 0
    %9185 = vmatpush2.bf16.msra.mxu0 0
    %9186 = vmatprep.subr.bf16.mxu0 0
    %9187 = vmatpush2.bf16.msra.mxu0 0
    %9188 = vmatprep.subr.bf16.mxu0 0
    %9189 = vmatpush2.bf16.msra.mxu0 0
    %9190 = vmatprep.subr.bf16.mxu0 0
    %9191 = vmatpush2.bf16.msra.mxu0 0
    %9192 = vmatprep.subr.bf16.mxu0 0
    %9193 = vmatpush2.bf16.msra.mxu0 0
    %9194 = vmatprep.subr.bf16.mxu0 0
    %9195 = vmatpush2.bf16.msra.mxu0 0
    %9196 = vmatprep.subr.bf16.mxu0 0
    %9197 = vmatpush2.bf16.msra.mxu0 0
    %9198 = vmatprep.mubr.bf16.mxu0 0
    %9199 = vmatmul.mubr.bf16.gmra.mxu0 %v9164
    %v9200 = vpop.f32.mrf.mxu0
    %v9201 = vadd.f32 %v111, %v9200
    %v9202 = vpop.f32.mrf.mxu0
    %v9203 = vpop.f32.mrf.mxu0
    %v9204 = vpop.f32.mrf.mxu0
    %9205 = vdwg.mxu0
    %v9206 = vmax.f32 %v9201, 0.0
    %v9207 = vpack.c.bf16 %v9206, %v9206
    %s9208 = scalar_lea.vmem [#allocation6], 7680
    %v9209 = vld [vmem:[%s9208] sm:$0xff]
    %v9210 = vld [vmem:[%s9208 + $0x8] sm:$0xff]
    %v9211 = vld [vmem:[%s9208 + $0x10] sm:$0xff]
    %v9212 = vld [vmem:[%s9208 + $0x18] sm:$0xff]
    %v9213 = vld [vmem:[%s9208 + $0x20] sm:$0xff]
    %v9214 = vld [vmem:[%s9208 + $0x28] sm:$0xff]
    %v9215 = vld [vmem:[%s9208 + $0x30] sm:$0xff]
    %v9216 = vld [vmem:[%s9208 + $0x38] sm:$0xff]
    %v9217 = vld [vmem:[%s9208 + $0x40] sm:$0xff]
    %v9218 = vld [vmem:[%s9208 + $0x48] sm:$0xff]
    %v9219 = vld [vmem:[%s9208 + $0x50] sm:$0xff]
    %v9220 = vld [vmem:[%s9208 + $0x58] sm:$0xff]
    %v9221 = vld [vmem:[%s9208 + $0x60] sm:$0xff]
    %v9222 = vld [vmem:[%s9208 + $0x68] sm:$0xff]
    %v9223 = vld [vmem:[%s9208 + $0x70] sm:$0xff]
    %v9224 = vld [vmem:[%s9208 + $0x78] sm:$0xff]
    %v9225 = vld [vmem:[%s9208 + $0x80] sm:$0xff]
    %v9226 = vld [vmem:[%s9208 + $0x88] sm:$0xff]
    %v9227 = vld [vmem:[%s9208 + $0x90] sm:$0xff]
    %v9228 = vld [vmem:[%s9208 + $0x98] sm:$0xff]
    %v9229 = vld [vmem:[%s9208 + $0xa0] sm:$0xff]
    %v9230 = vld [vmem:[%s9208 + $0xa8] sm:$0xff]
    %v9231 = vld [vmem:[%s9208 + $0xb0] sm:$0xff]
    %v9232 = vld [vmem:[%s9208 + $0xb8] sm:$0xff]
    %v9233 = vld [vmem:[%s9208 + $0xc0] sm:$0xff]
    %v9234 = vld [vmem:[%s9208 + $0xc8] sm:$0xff]
    %v9235 = vld [vmem:[%s9208 + $0xd0] sm:$0xff]
    %v9236 = vld [vmem:[%s9208 + $0xd8] sm:$0xff]
    %v9237 = vld [vmem:[%s9208 + $0xe0] sm:$0xff]
    %v9238 = vld [vmem:[%s9208 + $0xe8] sm:$0xff]
    %v9239 = vld [vmem:[%s9208 + $0xf0] sm:$0xff]
    %v9240 = vld [vmem:[%s9208 + $0xf8] sm:$0xff]
    %v9241 = vld [vmem:[%s9208 + $0x100] sm:$0xff]
    %v9242 = vld [vmem:[%s9208 + $0x108] sm:$0xff]
    %v9243 = vld [vmem:[%s9208 + $0x110] sm:$0xff]
    %v9244 = vld [vmem:[%s9208 + $0x118] sm:$0xff]
    %v9245 = vld [vmem:[%s9208 + $0x120] sm:$0xff]
    %v9246 = vld [vmem:[%s9208 + $0x128] sm:$0xff]
    %v9247 = vld [vmem:[%s9208 + $0x130] sm:$0xff]
    %v9248 = vld [vmem:[%s9208 + $0x138] sm:$0xff]
    %v9249 = vld [vmem:[%s9208 + $0x140] sm:$0xff]
    %v9250 = vld [vmem:[%s9208 + $0x148] sm:$0xff]
    %v9251 = vld [vmem:[%s9208 + $0x150] sm:$0xff]
    %v9252 = vld [vmem:[%s9208 + $0x158] sm:$0xff]
    %v9253 = vld [vmem:[%s9208 + $0x160] sm:$0xff]
    %v9254 = vld [vmem:[%s9208 + $0x168] sm:$0xff]
    %v9255 = vld [vmem:[%s9208 + $0x170] sm:$0xff]
    %v9256 = vld [vmem:[%s9208 + $0x178] sm:$0xff]
    %v9257 = vld [vmem:[%s9208 + $0x180] sm:$0xff]
    %v9258 = vld [vmem:[%s9208 + $0x188] sm:$0xff]
    %v9259 = vld [vmem:[%s9208 + $0x190] sm:$0xff]
    %v9260 = vld [vmem:[%s9208 + $0x198] sm:$0xff]
    %v9261 = vld [vmem:[%s9208 + $0x1a0] sm:$0xff]
    %v9262 = vld [vmem:[%s9208 + $0x1a8] sm:$0xff]
    %v9263 = vld [vmem:[%s9208 + $0x1b0] sm:$0xff]
    %v9264 = vld [vmem:[%s9208 + $0x1b8] sm:$0xff]
    %v9265 = vld [vmem:[%s9208 + $0x1c0] sm:$0xff]
    %v9266 = vld [vmem:[%s9208 + $0x1c8] sm:$0xff]
    %v9267 = vld [vmem:[%s9208 + $0x1d0] sm:$0xff]
    %v9268 = vld [vmem:[%s9208 + $0x1d8] sm:$0xff]
    %v9269 = vld [vmem:[%s9208 + $0x1e0] sm:$0xff]
    %v9270 = vld [vmem:[%s9208 + $0x1e8] sm:$0xff]
    %v9271 = vld [vmem:[%s9208 + $0x1f0] sm:$0xff]
    %v9272 = vld [vmem:[%s9208 + $0x1f8] sm:$0xff]
    %v9337 = vunpack.c.l.b16 %v9209
    %v9338 = vunpack.c.h.b16 %v9209
    %v9339 = vunpack.c.l.b16 %v9210
    %v9340 = vunpack.c.h.b16 %v9210
    %v9341 = vunpack.c.l.b16 %v9211
    %v9342 = vunpack.c.h.b16 %v9211
    %v9343 = vunpack.c.l.b16 %v9212
    %v9344 = vunpack.c.h.b16 %v9212
    %v9345 = vunpack.c.l.b16 %v9213
    %v9346 = vunpack.c.h.b16 %v9213
    %v9347 = vunpack.c.l.b16 %v9214
    %v9348 = vunpack.c.h.b16 %v9214
    %v9349 = vunpack.c.l.b16 %v9215
    %v9350 = vunpack.c.h.b16 %v9215
    %v9351 = vunpack.c.l.b16 %v9216
    %v9352 = vunpack.c.h.b16 %v9216
    %v9353 = vunpack.c.l.b16 %v9217
    %v9354 = vunpack.c.h.b16 %v9217
    %v9355 = vunpack.c.l.b16 %v9218
    %v9356 = vunpack.c.h.b16 %v9218
    %v9357 = vunpack.c.l.b16 %v9219
    %v9358 = vunpack.c.h.b16 %v9219
    %v9359 = vunpack.c.l.b16 %v9220
    %v9360 = vunpack.c.h.b16 %v9220
    %v9361 = vunpack.c.l.b16 %v9221
    %v9362 = vunpack.c.h.b16 %v9221
    %v9363 = vunpack.c.l.b16 %v9222
    %v9364 = vunpack.c.h.b16 %v9222
    %v9365 = vunpack.c.l.b16 %v9223
    %v9366 = vunpack.c.h.b16 %v9223
    %v9367 = vunpack.c.l.b16 %v9224
    %v9368 = vunpack.c.h.b16 %v9224
    %v9369 = vunpack.c.l.b16 %v9225
    %v9370 = vunpack.c.h.b16 %v9225
    %v9371 = vunpack.c.l.b16 %v9226
    %v9372 = vunpack.c.h.b16 %v9226
    %v9373 = vunpack.c.l.b16 %v9227
    %v9374 = vunpack.c.h.b16 %v9227
    %v9375 = vunpack.c.l.b16 %v9228
    %v9376 = vunpack.c.h.b16 %v9228
    %v9377 = vunpack.c.l.b16 %v9229
    %v9378 = vunpack.c.h.b16 %v9229
    %v9379 = vunpack.c.l.b16 %v9230
    %v9380 = vunpack.c.h.b16 %v9230
    %v9381 = vunpack.c.l.b16 %v9231
    %v9382 = vunpack.c.h.b16 %v9231
    %v9383 = vunpack.c.l.b16 %v9232
    %v9384 = vunpack.c.h.b16 %v9232
    %v9385 = vunpack.c.l.b16 %v9233
    %v9386 = vunpack.c.h.b16 %v9233
    %v9387 = vunpack.c.l.b16 %v9234
    %v9388 = vunpack.c.h.b16 %v9234
    %v9389 = vunpack.c.l.b16 %v9235
    %v9390 = vunpack.c.h.b16 %v9235
    %v9391 = vunpack.c.l.b16 %v9236
    %v9392 = vunpack.c.h.b16 %v9236
    %v9393 = vunpack.c.l.b16 %v9237
    %v9394 = vunpack.c.h.b16 %v9237
    %v9395 = vunpack.c.l.b16 %v9238
    %v9396 = vunpack.c.h.b16 %v9238
    %v9397 = vunpack.c.l.b16 %v9239
    %v9398 = vunpack.c.h.b16 %v9239
    %v9399 = vunpack.c.l.b16 %v9240
    %v9400 = vunpack.c.h.b16 %v9240
    %v9401 = vunpack.c.l.b16 %v9241
    %v9402 = vunpack.c.h.b16 %v9241
    %v9403 = vunpack.c.l.b16 %v9242
    %v9404 = vunpack.c.h.b16 %v9242
    %v9405 = vunpack.c.l.b16 %v9243
    %v9406 = vunpack.c.h.b16 %v9243
    %v9407 = vunpack.c.l.b16 %v9244
    %v9408 = vunpack.c.h.b16 %v9244
    %v9409 = vunpack.c.l.b16 %v9245
    %v9410 = vunpack.c.h.b16 %v9245
    %v9411 = vunpack.c.l.b16 %v9246
    %v9412 = vunpack.c.h.b16 %v9246
    %v9413 = vunpack.c.l.b16 %v9247
    %v9414 = vunpack.c.h.b16 %v9247
    %v9415 = vunpack.c.l.b16 %v9248
    %v9416 = vunpack.c.h.b16 %v9248
    %v9417 = vunpack.c.l.b16 %v9249
    %v9418 = vunpack.c.h.b16 %v9249
    %v9419 = vunpack.c.l.b16 %v9250
    %v9420 = vunpack.c.h.b16 %v9250
    %v9421 = vunpack.c.l.b16 %v9251
    %v9422 = vunpack.c.h.b16 %v9251
    %v9423 = vunpack.c.l.b16 %v9252
    %v9424 = vunpack.c.h.b16 %v9252
    %v9425 = vunpack.c.l.b16 %v9253
    %v9426 = vunpack.c.h.b16 %v9253
    %v9427 = vunpack.c.l.b16 %v9254
    %v9428 = vunpack.c.h.b16 %v9254
    %v9429 = vunpack.c.l.b16 %v9255
    %v9430 = vunpack.c.h.b16 %v9255
    %v9431 = vunpack.c.l.b16 %v9256
    %v9432 = vunpack.c.h.b16 %v9256
    %v9433 = vunpack.c.l.b16 %v9257
    %v9434 = vunpack.c.h.b16 %v9257
    %v9435 = vunpack.c.l.b16 %v9258
    %v9436 = vunpack.c.h.b16 %v9258
    %v9437 = vunpack.c.l.b16 %v9259
    %v9438 = vunpack.c.h.b16 %v9259
    %v9439 = vunpack.c.l.b16 %v9260
    %v9440 = vunpack.c.h.b16 %v9260
    %v9441 = vunpack.c.l.b16 %v9261
    %v9442 = vunpack.c.h.b16 %v9261
    %v9443 = vunpack.c.l.b16 %v9262
    %v9444 = vunpack.c.h.b16 %v9262
    %v9445 = vunpack.c.l.b16 %v9263
    %v9446 = vunpack.c.h.b16 %v9263
    %v9447 = vunpack.c.l.b16 %v9264
    %v9448 = vunpack.c.h.b16 %v9264
    %v9449 = vunpack.c.l.b16 %v9265
    %v9450 = vunpack.c.h.b16 %v9265
    %v9451 = vunpack.c.l.b16 %v9266
    %v9452 = vunpack.c.h.b16 %v9266
    %v9453 = vunpack.c.l.b16 %v9267
    %v9454 = vunpack.c.h.b16 %v9267
    %v9455 = vunpack.c.l.b16 %v9268
    %v9456 = vunpack.c.h.b16 %v9268
    %v9457 = vunpack.c.l.b16 %v9269
    %v9458 = vunpack.c.h.b16 %v9269
    %v9459 = vunpack.c.l.b16 %v9270
    %v9460 = vunpack.c.h.b16 %v9270
    %v9461 = vunpack.c.l.b16 %v9271
    %v9462 = vunpack.c.h.b16 %v9271
    %v9463 = vunpack.c.l.b16 %v9272
    %v9464 = vunpack.c.h.b16 %v9272
    %v9465 = vpack.c.b16 %v9345, %v9337
    %v9466 = vpack.c.b16 %v9346, %v9338
    %v9467 = vpack.c.b16 %v9347, %v9339
    %v9468 = vpack.c.b16 %v9348, %v9340
    %v9469 = vpack.c.b16 %v9349, %v9341
    %v9470 = vpack.c.b16 %v9350, %v9342
    %v9471 = vpack.c.b16 %v9351, %v9343
    %v9472 = vpack.c.b16 %v9352, %v9344
    %v9473 = vpack.c.b16 %v9361, %v9353
    %v9474 = vpack.c.b16 %v9362, %v9354
    %v9475 = vpack.c.b16 %v9363, %v9355
    %v9476 = vpack.c.b16 %v9364, %v9356
    %v9477 = vpack.c.b16 %v9365, %v9357
    %v9478 = vpack.c.b16 %v9366, %v9358
    %v9479 = vpack.c.b16 %v9367, %v9359
    %v9480 = vpack.c.b16 %v9368, %v9360
    %v9481 = vpack.c.b16 %v9377, %v9369
    %v9482 = vpack.c.b16 %v9378, %v9370
    %v9483 = vpack.c.b16 %v9379, %v9371
    %v9484 = vpack.c.b16 %v9380, %v9372
    %v9485 = vpack.c.b16 %v9381, %v9373
    %v9486 = vpack.c.b16 %v9382, %v9374
    %v9487 = vpack.c.b16 %v9383, %v9375
    %v9488 = vpack.c.b16 %v9384, %v9376
    %v9489 = vpack.c.b16 %v9393, %v9385
    %v9490 = vpack.c.b16 %v9394, %v9386
    %v9491 = vpack.c.b16 %v9395, %v9387
    %v9492 = vpack.c.b16 %v9396, %v9388
    %v9493 = vpack.c.b16 %v9397, %v9389
    %v9494 = vpack.c.b16 %v9398, %v9390
    %v9495 = vpack.c.b16 %v9399, %v9391
    %v9496 = vpack.c.b16 %v9400, %v9392
    %v9497 = vpack.c.b16 %v9409, %v9401
    %v9498 = vpack.c.b16 %v9410, %v9402
    %v9499 = vpack.c.b16 %v9411, %v9403
    %v9500 = vpack.c.b16 %v9412, %v9404
    %v9501 = vpack.c.b16 %v9413, %v9405
    %v9502 = vpack.c.b16 %v9414, %v9406
    %v9503 = vpack.c.b16 %v9415, %v9407
    %v9504 = vpack.c.b16 %v9416, %v9408
    %v9505 = vpack.c.b16 %v9425, %v9417
    %v9506 = vpack.c.b16 %v9426, %v9418
    %v9507 = vpack.c.b16 %v9427, %v9419
    %v9508 = vpack.c.b16 %v9428, %v9420
    %v9509 = vpack.c.b16 %v9429, %v9421
    %v9510 = vpack.c.b16 %v9430, %v9422
    %v9511 = vpack.c.b16 %v9431, %v9423
    %v9512 = vpack.c.b16 %v9432, %v9424
    %v9513 = vpack.c.b16 %v9441, %v9433
    %v9514 = vpack.c.b16 %v9442, %v9434
    %v9515 = vpack.c.b16 %v9443, %v9435
    %v9516 = vpack.c.b16 %v9444, %v9436
    %v9517 = vpack.c.b16 %v9445, %v9437
    %v9518 = vpack.c.b16 %v9446, %v9438
    %v9519 = vpack.c.b16 %v9447, %v9439
    %v9520 = vpack.c.b16 %v9448, %v9440
    %v9521 = vpack.c.b16 %v9457, %v9449
    %v9522 = vpack.c.b16 %v9458, %v9450
    %v9523 = vpack.c.b16 %v9459, %v9451
    %v9524 = vpack.c.b16 %v9460, %v9452
    %v9525 = vpack.c.b16 %v9461, %v9453
    %v9526 = vpack.c.b16 %v9462, %v9454
    %v9527 = vpack.c.b16 %v9463, %v9455
    %v9528 = vpack.c.b16 %v9464, %v9456
    %9593 = vmatprep.subr.bf16.mxu0 %v9522
    %9594 = vmatpush1.bf16.msra.mxu0 %v9521
    %9595 = vmatprep.subr.bf16.mxu0 %v9514
    %9596 = vmatpush1.bf16.msra.mxu0 %v9513
    %9597 = vmatprep.subr.bf16.mxu0 %v9506
    %9598 = vmatpush1.bf16.msra.mxu0 %v9505
    %9599 = vmatprep.subr.bf16.mxu0 %v9498
    %9600 = vmatpush1.bf16.msra.mxu0 %v9497
    %9601 = vmatprep.subr.bf16.mxu0 %v9490
    %9602 = vmatpush1.bf16.msra.mxu0 %v9489
    %9603 = vmatprep.subr.bf16.mxu0 %v9482
    %9604 = vmatpush1.bf16.msra.mxu0 %v9481
    %9605 = vmatprep.subr.bf16.mxu0 %v9474
    %9606 = vmatpush1.bf16.msra.mxu0 %v9473
    %9607 = vmatprep.subr.bf16.mxu0 %v9466
    %9608 = vmatpush1.bf16.msra.mxu0 %v9465
    %9609 = vmatprep.subr.bf16.mxu0 0
    %9610 = vmatpush2.bf16.msra.mxu0 0
    %9611 = vmatprep.subr.bf16.mxu0 0
    %9612 = vmatpush2.bf16.msra.mxu0 0
    %9613 = vmatprep.subr.bf16.mxu0 0
    %9614 = vmatpush2.bf16.msra.mxu0 0
    %9615 = vmatprep.subr.bf16.mxu0 0
    %9616 = vmatpush2.bf16.msra.mxu0 0
    %9617 = vmatprep.subr.bf16.mxu0 0
    %9618 = vmatpush2.bf16.msra.mxu0 0
    %9619 = vmatprep.subr.bf16.mxu0 0
    %9620 = vmatpush2.bf16.msra.mxu0 0
    %9621 = vmatprep.subr.bf16.mxu0 0
    %9622 = vmatpush2.bf16.msra.mxu0 0
    %9623 = vmatprep.subr.bf16.mxu0 0
    %9624 = vmatpush2.bf16.msra.mxu0 0
    %9625 = vmatprep.mubr.bf16.mxu0 0
    %9626 = vmatmul.mubr.bf16.gmra.mxu0 %v9207
    %v9627 = vpop.f32.mrf.mxu0
    %v9628 = vadd.f32 0.0, %v9627
    %v9629 = vpop.f32.mrf.mxu0
    %v9630 = vadd.f32 0.0, %v9629
    %v9631 = vpop.f32.mrf.mxu0
    %v9632 = vpop.f32.mrf.mxu0
    %9633 = vdwg.mxu0
    %9634 = vmatprep.subr.bf16.mxu0 %v9524
    %9635 = vmatpush1.bf16.msra.mxu0 %v9523
    %9636 = vmatprep.subr.bf16.mxu0 %v9516
    %9637 = vmatpush1.bf16.msra.mxu0 %v9515
    %9638 = vmatprep.subr.bf16.mxu0 %v9508
    %9639 = vmatpush1.bf16.msra.mxu0 %v9507
    %9640 = vmatprep.subr.bf16.mxu0 %v9500
    %9641 = vmatpush1.bf16.msra.mxu0 %v9499
    %9642 = vmatprep.subr.bf16.mxu0 %v9492
    %9643 = vmatpush1.bf16.msra.mxu0 %v9491
    %9644 = vmatprep.subr.bf16.mxu0 %v9484
    %9645 = vmatpush1.bf16.msra.mxu0 %v9483
    %9646 = vmatprep.subr.bf16.mxu0 %v9476
    %9647 = vmatpush1.bf16.msra.mxu0 %v9475
    %9648 = vmatprep.subr.bf16.mxu0 %v9468
    %9649 = vmatpush1.bf16.msra.mxu0 %v9467
    %9650 = vmatprep.subr.bf16.mxu0 0
    %9651 = vmatpush2.bf16.msra.mxu0 0
    %9652 = vmatprep.subr.bf16.mxu0 0
    %9653 = vmatpush2.bf16.msra.mxu0 0
    %9654 = vmatprep.subr.bf16.mxu0 0
    %9655 = vmatpush2.bf16.msra.mxu0 0
    %9656 = vmatprep.subr.bf16.mxu0 0
    %9657 = vmatpush2.bf16.msra.mxu0 0
    %9658 = vmatprep.subr.bf16.mxu0 0
    %9659 = vmatpush2.bf16.msra.mxu0 0
    %9660 = vmatprep.subr.bf16.mxu0 0
    %9661 = vmatpush2.bf16.msra.mxu0 0
    %9662 = vmatprep.subr.bf16.mxu0 0
    %9663 = vmatpush2.bf16.msra.mxu0 0
    %9664 = vmatprep.subr.bf16.mxu0 0
    %9665 = vmatpush2.bf16.msra.mxu0 0
    %9666 = vmatprep.mubr.bf16.mxu0 0
    %9667 = vmatmul.mubr.bf16.gmra.mxu0 %v9207
    %v9668 = vpop.f32.mrf.mxu0
    %v9669 = vadd.f32 0.0, %v9668
    %v9670 = vpop.f32.mrf.mxu0
    %v9671 = vadd.f32 0.0, %v9670
    %v9672 = vpop.f32.mrf.mxu0
    %v9673 = vpop.f32.mrf.mxu0
    %9674 = vdwg.mxu0
    %9675 = vmatprep.subr.bf16.mxu0 %v9526
    %9676 = vmatpush1.bf16.msra.mxu0 %v9525
    %9677 = vmatprep.subr.bf16.mxu0 %v9518
    %9678 = vmatpush1.bf16.msra.mxu0 %v9517
    %9679 = vmatprep.subr.bf16.mxu0 %v9510
    %9680 = vmatpush1.bf16.msra.mxu0 %v9509
    %9681 = vmatprep.subr.bf16.mxu0 %v9502
    %9682 = vmatpush1.bf16.msra.mxu0 %v9501
    %9683 = vmatprep.subr.bf16.mxu0 %v9494
    %9684 = vmatpush1.bf16.msra.mxu0 %v9493
    %9685 = vmatprep.subr.bf16.mxu0 %v9486
    %9686 = vmatpush1.bf16.msra.mxu0 %v9485
    %9687 = vmatprep.subr.bf16.mxu0 %v9478
    %9688 = vmatpush1.bf16.msra.mxu0 %v9477
    %9689 = vmatprep.subr.bf16.mxu0 %v9470
    %9690 = vmatpush1.bf16.msra.mxu0 %v9469
    %9691 = vmatprep.subr.bf16.mxu0 0
    %9692 = vmatpush2.bf16.msra.mxu0 0
    %9693 = vmatprep.subr.bf16.mxu0 0
    %9694 = vmatpush2.bf16.msra.mxu0 0
    %9695 = vmatprep.subr.bf16.mxu0 0
    %9696 = vmatpush2.bf16.msra.mxu0 0
    %9697 = vmatprep.subr.bf16.mxu0 0
    %9698 = vmatpush2.bf16.msra.mxu0 0
    %9699 = vmatprep.subr.bf16.mxu0 0
    %9700 = vmatpush2.bf16.msra.mxu0 0
    %9701 = vmatprep.subr.bf16.mxu0 0
    %9702 = vmatpush2.bf16.msra.mxu0 0
    %9703 = vmatprep.subr.bf16.mxu0 0
    %9704 = vmatpush2.bf16.msra.mxu0 0
    %9705 = vmatprep.subr.bf16.mxu0 0
    %9706 = vmatpush2.bf16.msra.mxu0 0
    %9707 = vmatprep.mubr.bf16.mxu0 0
    %9708 = vmatmul.mubr.bf16.gmra.mxu0 %v9207
    %v9709 = vpop.f32.mrf.mxu0
    %v9710 = vadd.f32 0.0, %v9709
    %v9711 = vpop.f32.mrf.mxu0
    %v9712 = vadd.f32 0.0, %v9711
    %v9713 = vpop.f32.mrf.mxu0
    %v9714 = vpop.f32.mrf.mxu0
    %9715 = vdwg.mxu0
    %9716 = vmatprep.subr.bf16.mxu0 %v9528
    %9717 = vmatpush1.bf16.msra.mxu0 %v9527
    %9718 = vmatprep.subr.bf16.mxu0 %v9520
    %9719 = vmatpush1.bf16.msra.mxu0 %v9519
    %9720 = vmatprep.subr.bf16.mxu0 %v9512
    %9721 = vmatpush1.bf16.msra.mxu0 %v9511
    %9722 = vmatprep.subr.bf16.mxu0 %v9504
    %9723 = vmatpush1.bf16.msra.mxu0 %v9503
    %9724 = vmatprep.subr.bf16.mxu0 %v9496
    %9725 = vmatpush1.bf16.msra.mxu0 %v9495
    %9726 = vmatprep.subr.bf16.mxu0 %v9488
    %9727 = vmatpush1.bf16.msra.mxu0 %v9487
    %9728 = vmatprep.subr.bf16.mxu0 %v9480
    %9729 = vmatpush1.bf16.msra.mxu0 %v9479
    %9730 = vmatprep.subr.bf16.mxu0 %v9472
    %9731 = vmatpush1.bf16.msra.mxu0 %v9471
    %9732 = vmatprep.subr.bf16.mxu0 0
    %9733 = vmatpush2.bf16.msra.mxu0 0
    %9734 = vmatprep.subr.bf16.mxu0 0
    %9735 = vmatpush2.bf16.msra.mxu0 0
    %9736 = vmatprep.subr.bf16.mxu0 0
    %9737 = vmatpush2.bf16.msra.mxu0 0
    %9738 = vmatprep.subr.bf16.mxu0 0
    %9739 = vmatpush2.bf16.msra.mxu0 0
    %9740 = vmatprep.subr.bf16.mxu0 0
    %9741 = vmatpush2.bf16.msra.mxu0 0
    %9742 = vmatprep.subr.bf16.mxu0 0
    %9743 = vmatpush2.bf16.msra.mxu0 0
    %9744 = vmatprep.subr.bf16.mxu0 0
    %9745 = vmatpush2.bf16.msra.mxu0 0
    %9746 = vmatprep.subr.bf16.mxu0 0
    %9747 = vmatpush2.bf16.msra.mxu0 0
    %9748 = vmatprep.mubr.bf16.mxu0 0
    %9749 = vmatmul.mubr.bf16.gmra.mxu0 %v9207
    %v9750 = vpop.f32.mrf.mxu0
    %v9751 = vadd.f32 0.0, %v9750
    %v9752 = vpop.f32.mrf.mxu0
    %v9753 = vadd.f32 0.0, %v9752
    %v9754 = vpop.f32.mrf.mxu0
    %v9755 = vpop.f32.mrf.mxu0
    %9756 = vdwg.mxu0
    %v9757 = vadd.f32 %v9153, %v9628
    %v9758 = vadd.f32 %v9154, %v9630
    %v9759 = vadd.f32 %v9155, %v9669
    %v9760 = vadd.f32 %v9156, %v9671
    %v9761 = vadd.f32 %v9157, %v9710
    %v9762 = vadd.f32 %v9158, %v9712
    %v9763 = vadd.f32 %v9159, %v9751
    %v9764 = vadd.f32 %v9160, %v9753
    %v9765 = vld [vmem:[#allocation7] sm:$0xff]
    %v9767 = vlaneseq
    %v9768 = vshrl.u32 %v9767, 7
    %v9769 = vsub.s32 0, %v9768
    %v9770 = vrot.slane %v9765, %v9769
    %v9771 = vlaneseq
    %v9772 = vshrl.u32 %v9771, 7
    %v9773 = vsub.s32 1, %v9772
    %v9774 = vrot.slane %v9765, %v9773
    %v9775 = vlaneseq
    %v9776 = vshrl.u32 %v9775, 7
    %v9777 = vsub.s32 2, %v9776
    %v9778 = vrot.slane %v9765, %v9777
    %v9779 = vlaneseq
    %v9780 = vshrl.u32 %v9779, 7
    %v9781 = vsub.s32 3, %v9780
    %v9782 = vrot.slane %v9765, %v9781
    %v9783 = vlaneseq
    %v9784 = vshrl.u32 %v9783, 7
    %v9785 = vsub.s32 4, %v9784
    %v9786 = vrot.slane %v9765, %v9785
    %v9787 = vlaneseq
    %v9788 = vshrl.u32 %v9787, 7
    %v9789 = vsub.s32 5, %v9788
    %v9790 = vrot.slane %v9765, %v9789
    %v9791 = vlaneseq
    %v9792 = vshrl.u32 %v9791, 7
    %v9793 = vsub.s32 6, %v9792
    %v9794 = vrot.slane %v9765, %v9793
    %v9795 = vlaneseq
    %v9796 = vshrl.u32 %v9795, 7
    %v9797 = vsub.s32 7, %v9796
    %v9798 = vrot.slane %v9765, %v9797
    %v9807 = vadd.f32 %v9757, %v9770
    %v9808 = vadd.f32 %v9758, %v9774
    %v9809 = vadd.f32 %v9759, %v9778
    %v9810 = vadd.f32 %v9760, %v9782
    %v9811 = vadd.f32 %v9761, %v9786
    %v9812 = vadd.f32 %v9762, %v9790
    %v9813 = vadd.f32 %v9763, %v9794
    %v9814 = vadd.f32 %v9764, %v9798
    %v9815 = vmax.f32 %v9807, 0.0
    %v9816 = vmax.f32 %v9808, 0.0
    %v9817 = vmax.f32 %v9809, 0.0
    %v9818 = vmax.f32 %v9810, 0.0
    %v9819 = vmax.f32 %v9811, 0.0
    %v9820 = vmax.f32 %v9812, 0.0
    %v9821 = vmax.f32 %v9813, 0.0
    %v9822 = vmax.f32 %v9814, 0.0
    %v9823 = vpack.c.bf16 %v9815, %v9815
    %v9824 = vpack.c.bf16 %v9816, %v9816
    %v9825 = vpack.c.bf16 %v9817, %v9817
    %v9826 = vpack.c.bf16 %v9818, %v9818
    %v9827 = vpack.c.bf16 %v9819, %v9819
    %v9828 = vpack.c.bf16 %v9820, %v9820
    %v9829 = vpack.c.bf16 %v9821, %v9821
    %v9830 = vpack.c.bf16 %v9822, %v9822
    %v9831 = vld [vmem:[#allocation9] sm:$0xf]
    %v9832 = vld [vmem:[#allocation9 + $0x4] sm:$0xf]
    %v9833 = vld [vmem:[#allocation9 + $0x8] sm:$0xf]
    %v9834 = vld [vmem:[#allocation9 + $0xc] sm:$0xf]
    %v9835 = vld [vmem:[#allocation9 + $0x10] sm:$0xf]
    %v9836 = vld [vmem:[#allocation9 + $0x14] sm:$0xf]
    %v9837 = vld [vmem:[#allocation9 + $0x18] sm:$0xf]
    %v9838 = vld [vmem:[#allocation9 + $0x1c] sm:$0xf]
    %v9839 = vld [vmem:[#allocation9 + $0x20] sm:$0xf]
    %v9840 = vld [vmem:[#allocation9 + $0x24] sm:$0xf]
    %v9841 = vld [vmem:[#allocation9 + $0x28] sm:$0xf]
    %v9842 = vld [vmem:[#allocation9 + $0x2c] sm:$0xf]
    %v9843 = vld [vmem:[#allocation9 + $0x30] sm:$0xf]
    %v9844 = vld [vmem:[#allocation9 + $0x34] sm:$0xf]
    %v9845 = vld [vmem:[#allocation9 + $0x38] sm:$0xf]
    %v9846 = vld [vmem:[#allocation9 + $0x3c] sm:$0xf]
    %v9847 = vld [vmem:[#allocation9 + $0x40] sm:$0xf]
    %v9848 = vld [vmem:[#allocation9 + $0x44] sm:$0xf]
    %v9849 = vld [vmem:[#allocation9 + $0x48] sm:$0xf]
    %v9850 = vld [vmem:[#allocation9 + $0x4c] sm:$0xf]
    %v9851 = vld [vmem:[#allocation9 + $0x50] sm:$0xf]
    %v9852 = vld [vmem:[#allocation9 + $0x54] sm:$0xf]
    %v9853 = vld [vmem:[#allocation9 + $0x58] sm:$0xf]
    %v9854 = vld [vmem:[#allocation9 + $0x5c] sm:$0xf]
    %v9855 = vld [vmem:[#allocation9 + $0x60] sm:$0xf]
    %v9856 = vld [vmem:[#allocation9 + $0x64] sm:$0xf]
    %v9857 = vld [vmem:[#allocation9 + $0x68] sm:$0xf]
    %v9858 = vld [vmem:[#allocation9 + $0x6c] sm:$0xf]
    %v9859 = vld [vmem:[#allocation9 + $0x70] sm:$0xf]
    %v9860 = vld [vmem:[#allocation9 + $0x74] sm:$0xf]
    %v9861 = vld [vmem:[#allocation9 + $0x78] sm:$0xf]
    %v9862 = vld [vmem:[#allocation9 + $0x7c] sm:$0xf]
    %v9863 = vld [vmem:[#allocation9 + $0x80] sm:$0xf]
    %v9864 = vld [vmem:[#allocation9 + $0x84] sm:$0xf]
    %v9865 = vld [vmem:[#allocation9 + $0x88] sm:$0xf]
    %v9866 = vld [vmem:[#allocation9 + $0x8c] sm:$0xf]
    %v9867 = vld [vmem:[#allocation9 + $0x90] sm:$0xf]
    %v9868 = vld [vmem:[#allocation9 + $0x94] sm:$0xf]
    %v9869 = vld [vmem:[#allocation9 + $0x98] sm:$0xf]
    %v9870 = vld [vmem:[#allocation9 + $0x9c] sm:$0xf]
    %v9871 = vld [vmem:[#allocation9 + $0xa0] sm:$0xf]
    %v9872 = vld [vmem:[#allocation9 + $0xa4] sm:$0xf]
    %v9873 = vld [vmem:[#allocation9 + $0xa8] sm:$0xf]
    %v9874 = vld [vmem:[#allocation9 + $0xac] sm:$0xf]
    %v9875 = vld [vmem:[#allocation9 + $0xb0] sm:$0xf]
    %v9876 = vld [vmem:[#allocation9 + $0xb4] sm:$0xf]
    %v9877 = vld [vmem:[#allocation9 + $0xb8] sm:$0xf]
    %v9878 = vld [vmem:[#allocation9 + $0xbc] sm:$0xf]
    %v9879 = vld [vmem:[#allocation9 + $0xc0] sm:$0xf]
    %v9880 = vld [vmem:[#allocation9 + $0xc4] sm:$0xf]
    %v9881 = vld [vmem:[#allocation9 + $0xc8] sm:$0xf]
    %v9882 = vld [vmem:[#allocation9 + $0xcc] sm:$0xf]
    %v9883 = vld [vmem:[#allocation9 + $0xd0] sm:$0xf]
    %v9884 = vld [vmem:[#allocation9 + $0xd4] sm:$0xf]
    %v9885 = vld [vmem:[#allocation9 + $0xd8] sm:$0xf]
    %v9886 = vld [vmem:[#allocation9 + $0xdc] sm:$0xf]
    %v9887 = vld [vmem:[#allocation9 + $0xe0] sm:$0xf]
    %v9888 = vld [vmem:[#allocation9 + $0xe4] sm:$0xf]
    %v9889 = vld [vmem:[#allocation9 + $0xe8] sm:$0xf]
    %v9890 = vld [vmem:[#allocation9 + $0xec] sm:$0xf]
    %v9891 = vld [vmem:[#allocation9 + $0xf0] sm:$0xf]
    %v9892 = vld [vmem:[#allocation9 + $0xf4] sm:$0xf]
    %v9893 = vld [vmem:[#allocation9 + $0xf8] sm:$0xf]
    %v9894 = vld [vmem:[#allocation9 + $0xfc] sm:$0xf]
    %v9895 = vld [vmem:[#allocation9 + $0x100] sm:$0xf]
    %v9896 = vld [vmem:[#allocation9 + $0x104] sm:$0xf]
    %v9897 = vld [vmem:[#allocation9 + $0x108] sm:$0xf]
    %v9898 = vld [vmem:[#allocation9 + $0x10c] sm:$0xf]
    %v9899 = vld [vmem:[#allocation9 + $0x110] sm:$0xf]
    %v9900 = vld [vmem:[#allocation9 + $0x114] sm:$0xf]
    %v9901 = vld [vmem:[#allocation9 + $0x118] sm:$0xf]
    %v9902 = vld [vmem:[#allocation9 + $0x11c] sm:$0xf]
    %v9903 = vld [vmem:[#allocation9 + $0x120] sm:$0xf]
    %v9904 = vld [vmem:[#allocation9 + $0x124] sm:$0xf]
    %v9905 = vld [vmem:[#allocation9 + $0x128] sm:$0xf]
    %v9906 = vld [vmem:[#allocation9 + $0x12c] sm:$0xf]
    %v9907 = vld [vmem:[#allocation9 + $0x130] sm:$0xf]
    %v9908 = vld [vmem:[#allocation9 + $0x134] sm:$0xf]
    %v9909 = vld [vmem:[#allocation9 + $0x138] sm:$0xf]
    %v9910 = vld [vmem:[#allocation9 + $0x13c] sm:$0xf]
    %v9911 = vld [vmem:[#allocation9 + $0x140] sm:$0xf]
    %v9912 = vld [vmem:[#allocation9 + $0x144] sm:$0xf]
    %v9913 = vld [vmem:[#allocation9 + $0x148] sm:$0xf]
    %v9914 = vld [vmem:[#allocation9 + $0x14c] sm:$0xf]
    %v9915 = vld [vmem:[#allocation9 + $0x150] sm:$0xf]
    %v9916 = vld [vmem:[#allocation9 + $0x154] sm:$0xf]
    %v9917 = vld [vmem:[#allocation9 + $0x158] sm:$0xf]
    %v9918 = vld [vmem:[#allocation9 + $0x15c] sm:$0xf]
    %v9919 = vld [vmem:[#allocation9 + $0x160] sm:$0xf]
    %v9920 = vld [vmem:[#allocation9 + $0x164] sm:$0xf]
    %v9921 = vld [vmem:[#allocation9 + $0x168] sm:$0xf]
    %v9922 = vld [vmem:[#allocation9 + $0x16c] sm:$0xf]
    %v9923 = vld [vmem:[#allocation9 + $0x170] sm:$0xf]
    %v9924 = vld [vmem:[#allocation9 + $0x174] sm:$0xf]
    %v9925 = vld [vmem:[#allocation9 + $0x178] sm:$0xf]
    %v9926 = vld [vmem:[#allocation9 + $0x17c] sm:$0xf]
    %v9927 = vld [vmem:[#allocation9 + $0x180] sm:$0xf]
    %v9928 = vld [vmem:[#allocation9 + $0x184] sm:$0xf]
    %v9929 = vld [vmem:[#allocation9 + $0x188] sm:$0xf]
    %v9930 = vld [vmem:[#allocation9 + $0x18c] sm:$0xf]
    %v9931 = vld [vmem:[#allocation9 + $0x190] sm:$0xf]
    %v9932 = vld [vmem:[#allocation9 + $0x194] sm:$0xf]
    %v9933 = vld [vmem:[#allocation9 + $0x198] sm:$0xf]
    %v9934 = vld [vmem:[#allocation9 + $0x19c] sm:$0xf]
    %v9935 = vld [vmem:[#allocation9 + $0x1a0] sm:$0xf]
    %v9936 = vld [vmem:[#allocation9 + $0x1a4] sm:$0xf]
    %v9937 = vld [vmem:[#allocation9 + $0x1a8] sm:$0xf]
    %v9938 = vld [vmem:[#allocation9 + $0x1ac] sm:$0xf]
    %v9939 = vld [vmem:[#allocation9 + $0x1b0] sm:$0xf]
    %v9940 = vld [vmem:[#allocation9 + $0x1b4] sm:$0xf]
    %v9941 = vld [vmem:[#allocation9 + $0x1b8] sm:$0xf]
    %v9942 = vld [vmem:[#allocation9 + $0x1bc] sm:$0xf]
    %v9943 = vld [vmem:[#allocation9 + $0x1c0] sm:$0xf]
    %v9944 = vld [vmem:[#allocation9 + $0x1c4] sm:$0xf]
    %v9945 = vld [vmem:[#allocation9 + $0x1c8] sm:$0xf]
    %v9946 = vld [vmem:[#allocation9 + $0x1cc] sm:$0xf]
    %v9947 = vld [vmem:[#allocation9 + $0x1d0] sm:$0xf]
    %v9948 = vld [vmem:[#allocation9 + $0x1d4] sm:$0xf]
    %v9949 = vld [vmem:[#allocation9 + $0x1d8] sm:$0xf]
    %v9950 = vld [vmem:[#allocation9 + $0x1dc] sm:$0xf]
    %v9951 = vld [vmem:[#allocation9 + $0x1e0] sm:$0xf]
    %v9952 = vld [vmem:[#allocation9 + $0x1e4] sm:$0xf]
    %v9953 = vld [vmem:[#allocation9 + $0x1e8] sm:$0xf]
    %v9954 = vld [vmem:[#allocation9 + $0x1ec] sm:$0xf]
    %v9955 = vld [vmem:[#allocation9 + $0x1f0] sm:$0xf]
    %v9956 = vld [vmem:[#allocation9 + $0x1f4] sm:$0xf]
    %v9957 = vld [vmem:[#allocation9 + $0x1f8] sm:$0xf]
    %v9958 = vld [vmem:[#allocation9 + $0x1fc] sm:$0xf]
    %v9959 = vld [vmem:[#allocation10] sm:$0x1]
    %v9961 = vlaneseq
    %v9962 = vshrl.u32 %v9961, 7
    %v9963 = vsub.s32 0, %v9962
    %v9964 = vrot.slane %v9959, %v9963
    %v10094 = vunpack.c.l.b16 %v9831
    %v10095 = vunpack.c.l.b16 %v9832
    %v10096 = vunpack.c.l.b16 %v9833
    %v10097 = vunpack.c.l.b16 %v9834
    %v10098 = vunpack.c.l.b16 %v9835
    %v10099 = vunpack.c.l.b16 %v9836
    %v10100 = vunpack.c.l.b16 %v9837
    %v10101 = vunpack.c.l.b16 %v9838
    %v10102 = vunpack.c.l.b16 %v9839
    %v10103 = vunpack.c.l.b16 %v9840
    %v10104 = vunpack.c.l.b16 %v9841
    %v10105 = vunpack.c.l.b16 %v9842
    %v10106 = vunpack.c.l.b16 %v9843
    %v10107 = vunpack.c.l.b16 %v9844
    %v10108 = vunpack.c.l.b16 %v9845
    %v10109 = vunpack.c.l.b16 %v9846
    %v10110 = vunpack.c.l.b16 %v9847
    %v10111 = vunpack.c.l.b16 %v9848
    %v10112 = vunpack.c.l.b16 %v9849
    %v10113 = vunpack.c.l.b16 %v9850
    %v10114 = vunpack.c.l.b16 %v9851
    %v10115 = vunpack.c.l.b16 %v9852
    %v10116 = vunpack.c.l.b16 %v9853
    %v10117 = vunpack.c.l.b16 %v9854
    %v10118 = vunpack.c.l.b16 %v9855
    %v10119 = vunpack.c.l.b16 %v9856
    %v10120 = vunpack.c.l.b16 %v9857
    %v10121 = vunpack.c.l.b16 %v9858
    %v10122 = vunpack.c.l.b16 %v9859
    %v10123 = vunpack.c.l.b16 %v9860
    %v10124 = vunpack.c.l.b16 %v9861
    %v10125 = vunpack.c.l.b16 %v9862
    %v10126 = vunpack.c.l.b16 %v9863
    %v10127 = vunpack.c.l.b16 %v9864
    %v10128 = vunpack.c.l.b16 %v9865
    %v10129 = vunpack.c.l.b16 %v9866
    %v10130 = vunpack.c.l.b16 %v9867
    %v10131 = vunpack.c.l.b16 %v9868
    %v10132 = vunpack.c.l.b16 %v9869
    %v10133 = vunpack.c.l.b16 %v9870
    %v10134 = vunpack.c.l.b16 %v9871
    %v10135 = vunpack.c.l.b16 %v9872
    %v10136 = vunpack.c.l.b16 %v9873
    %v10137 = vunpack.c.l.b16 %v9874
    %v10138 = vunpack.c.l.b16 %v9875
    %v10139 = vunpack.c.l.b16 %v9876
    %v10140 = vunpack.c.l.b16 %v9877
    %v10141 = vunpack.c.l.b16 %v9878
    %v10142 = vunpack.c.l.b16 %v9879
    %v10143 = vunpack.c.l.b16 %v9880
    %v10144 = vunpack.c.l.b16 %v9881
    %v10145 = vunpack.c.l.b16 %v9882
    %v10146 = vunpack.c.l.b16 %v9883
    %v10147 = vunpack.c.l.b16 %v9884
    %v10148 = vunpack.c.l.b16 %v9885
    %v10149 = vunpack.c.l.b16 %v9886
    %v10150 = vunpack.c.l.b16 %v9887
    %v10151 = vunpack.c.l.b16 %v9888
    %v10152 = vunpack.c.l.b16 %v9889
    %v10153 = vunpack.c.l.b16 %v9890
    %v10154 = vunpack.c.l.b16 %v9891
    %v10155 = vunpack.c.l.b16 %v9892
    %v10156 = vunpack.c.l.b16 %v9893
    %v10157 = vunpack.c.l.b16 %v9894
    %v10158 = vunpack.c.l.b16 %v9895
    %v10159 = vunpack.c.l.b16 %v9896
    %v10160 = vunpack.c.l.b16 %v9897
    %v10161 = vunpack.c.l.b16 %v9898
    %v10162 = vunpack.c.l.b16 %v9899
    %v10163 = vunpack.c.l.b16 %v9900
    %v10164 = vunpack.c.l.b16 %v9901
    %v10165 = vunpack.c.l.b16 %v9902
    %v10166 = vunpack.c.l.b16 %v9903
    %v10167 = vunpack.c.l.b16 %v9904
    %v10168 = vunpack.c.l.b16 %v9905
    %v10169 = vunpack.c.l.b16 %v9906
    %v10170 = vunpack.c.l.b16 %v9907
    %v10171 = vunpack.c.l.b16 %v9908
    %v10172 = vunpack.c.l.b16 %v9909
    %v10173 = vunpack.c.l.b16 %v9910
    %v10174 = vunpack.c.l.b16 %v9911
    %v10175 = vunpack.c.l.b16 %v9912
    %v10176 = vunpack.c.l.b16 %v9913
    %v10177 = vunpack.c.l.b16 %v9914
    %v10178 = vunpack.c.l.b16 %v9915
    %v10179 = vunpack.c.l.b16 %v9916
    %v10180 = vunpack.c.l.b16 %v9917
    %v10181 = vunpack.c.l.b16 %v9918
    %v10182 = vunpack.c.l.b16 %v9919
    %v10183 = vunpack.c.l.b16 %v9920
    %v10184 = vunpack.c.l.b16 %v9921
    %v10185 = vunpack.c.l.b16 %v9922
    %v10186 = vunpack.c.l.b16 %v9923
    %v10187 = vunpack.c.l.b16 %v9924
    %v10188 = vunpack.c.l.b16 %v9925
    %v10189 = vunpack.c.l.b16 %v9926
    %v10190 = vunpack.c.l.b16 %v9927
    %v10191 = vunpack.c.l.b16 %v9928
    %v10192 = vunpack.c.l.b16 %v9929
    %v10193 = vunpack.c.l.b16 %v9930
    %v10194 = vunpack.c.l.b16 %v9931
    %v10195 = vunpack.c.l.b16 %v9932
    %v10196 = vunpack.c.l.b16 %v9933
    %v10197 = vunpack.c.l.b16 %v9934
    %v10198 = vunpack.c.l.b16 %v9935
    %v10199 = vunpack.c.l.b16 %v9936
    %v10200 = vunpack.c.l.b16 %v9937
    %v10201 = vunpack.c.l.b16 %v9938
    %v10202 = vunpack.c.l.b16 %v9939
    %v10203 = vunpack.c.l.b16 %v9940
    %v10204 = vunpack.c.l.b16 %v9941
    %v10205 = vunpack.c.l.b16 %v9942
    %v10206 = vunpack.c.l.b16 %v9943
    %v10207 = vunpack.c.l.b16 %v9944
    %v10208 = vunpack.c.l.b16 %v9945
    %v10209 = vunpack.c.l.b16 %v9946
    %v10210 = vunpack.c.l.b16 %v9947
    %v10211 = vunpack.c.l.b16 %v9948
    %v10212 = vunpack.c.l.b16 %v9949
    %v10213 = vunpack.c.l.b16 %v9950
    %v10214 = vunpack.c.l.b16 %v9951
    %v10215 = vunpack.c.l.b16 %v9952
    %v10216 = vunpack.c.l.b16 %v9953
    %v10217 = vunpack.c.l.b16 %v9954
    %v10218 = vunpack.c.l.b16 %v9955
    %v10219 = vunpack.c.l.b16 %v9956
    %v10220 = vunpack.c.l.b16 %v9957
    %v10221 = vunpack.c.l.b16 %v9958
    %v10222 = vpack.c.b16 %v10095, %v10094
    %v10223 = vpack.c.b16 %v10097, %v10096
    %v10224 = vpack.c.b16 %v10099, %v10098
    %v10225 = vpack.c.b16 %v10101, %v10100
    %v10226 = vpack.c.b16 %v10103, %v10102
    %v10227 = vpack.c.b16 %v10105, %v10104
    %v10228 = vpack.c.b16 %v10107, %v10106
    %v10229 = vpack.c.b16 %v10109, %v10108
    %v10230 = vpack.c.b16 %v10111, %v10110
    %v10231 = vpack.c.b16 %v10113, %v10112
    %v10232 = vpack.c.b16 %v10115, %v10114
    %v10233 = vpack.c.b16 %v10117, %v10116
    %v10234 = vpack.c.b16 %v10119, %v10118
    %v10235 = vpack.c.b16 %v10121, %v10120
    %v10236 = vpack.c.b16 %v10123, %v10122
    %v10237 = vpack.c.b16 %v10125, %v10124
    %v10238 = vpack.c.b16 %v10127, %v10126
    %v10239 = vpack.c.b16 %v10129, %v10128
    %v10240 = vpack.c.b16 %v10131, %v10130
    %v10241 = vpack.c.b16 %v10133, %v10132
    %v10242 = vpack.c.b16 %v10135, %v10134
    %v10243 = vpack.c.b16 %v10137, %v10136
    %v10244 = vpack.c.b16 %v10139, %v10138
    %v10245 = vpack.c.b16 %v10141, %v10140
    %v10246 = vpack.c.b16 %v10143, %v10142
    %v10247 = vpack.c.b16 %v10145, %v10144
    %v10248 = vpack.c.b16 %v10147, %v10146
    %v10249 = vpack.c.b16 %v10149, %v10148
    %v10250 = vpack.c.b16 %v10151, %v10150
    %v10251 = vpack.c.b16 %v10153, %v10152
    %v10252 = vpack.c.b16 %v10155, %v10154
    %v10253 = vpack.c.b16 %v10157, %v10156
    %v10254 = vpack.c.b16 %v10159, %v10158
    %v10255 = vpack.c.b16 %v10161, %v10160
    %v10256 = vpack.c.b16 %v10163, %v10162
    %v10257 = vpack.c.b16 %v10165, %v10164
    %v10258 = vpack.c.b16 %v10167, %v10166
    %v10259 = vpack.c.b16 %v10169, %v10168
    %v10260 = vpack.c.b16 %v10171, %v10170
    %v10261 = vpack.c.b16 %v10173, %v10172
    %v10262 = vpack.c.b16 %v10175, %v10174
    %v10263 = vpack.c.b16 %v10177, %v10176
    %v10264 = vpack.c.b16 %v10179, %v10178
    %v10265 = vpack.c.b16 %v10181, %v10180
    %v10266 = vpack.c.b16 %v10183, %v10182
    %v10267 = vpack.c.b16 %v10185, %v10184
    %v10268 = vpack.c.b16 %v10187, %v10186
    %v10269 = vpack.c.b16 %v10189, %v10188
    %v10270 = vpack.c.b16 %v10191, %v10190
    %v10271 = vpack.c.b16 %v10193, %v10192
    %v10272 = vpack.c.b16 %v10195, %v10194
    %v10273 = vpack.c.b16 %v10197, %v10196
    %v10274 = vpack.c.b16 %v10199, %v10198
    %v10275 = vpack.c.b16 %v10201, %v10200
    %v10276 = vpack.c.b16 %v10203, %v10202
    %v10277 = vpack.c.b16 %v10205, %v10204
    %v10278 = vpack.c.b16 %v10207, %v10206
    %v10279 = vpack.c.b16 %v10209, %v10208
    %v10280 = vpack.c.b16 %v10211, %v10210
    %v10281 = vpack.c.b16 %v10213, %v10212
    %v10282 = vpack.c.b16 %v10215, %v10214
    %v10283 = vpack.c.b16 %v10217, %v10216
    %v10284 = vpack.c.b16 %v10219, %v10218
    %v10285 = vpack.c.b16 %v10221, %v10220
    %10350 = vmatprep.subr.bf16.mxu0 0
    %10351 = vmatpush1.bf16.msra.mxu0 %v10229
    %10352 = vmatprep.subr.bf16.mxu0 0
    %10353 = vmatpush1.bf16.msra.mxu0 %v10228
    %10354 = vmatprep.subr.bf16.mxu0 0
    %10355 = vmatpush1.bf16.msra.mxu0 %v10227
    %10356 = vmatprep.subr.bf16.mxu0 0
    %10357 = vmatpush1.bf16.msra.mxu0 %v10226
    %10358 = vmatprep.subr.bf16.mxu0 0
    %10359 = vmatpush1.bf16.msra.mxu0 %v10225
    %10360 = vmatprep.subr.bf16.mxu0 0
    %10361 = vmatpush1.bf16.msra.mxu0 %v10224
    %10362 = vmatprep.subr.bf16.mxu0 0
    %10363 = vmatpush1.bf16.msra.mxu0 %v10223
    %10364 = vmatprep.subr.bf16.mxu0 0
    %10365 = vmatpush1.bf16.msra.mxu0 %v10222
    %10366 = vmatprep.subr.bf16.mxu0 0
    %10367 = vmatpush2.bf16.msra.mxu0 %v10237
    %10368 = vmatprep.subr.bf16.mxu0 0
    %10369 = vmatpush2.bf16.msra.mxu0 %v10236
    %10370 = vmatprep.subr.bf16.mxu0 0
    %10371 = vmatpush2.bf16.msra.mxu0 %v10235
    %10372 = vmatprep.subr.bf16.mxu0 0
    %10373 = vmatpush2.bf16.msra.mxu0 %v10234
    %10374 = vmatprep.subr.bf16.mxu0 0
    %10375 = vmatpush2.bf16.msra.mxu0 %v10233
    %10376 = vmatprep.subr.bf16.mxu0 0
    %10377 = vmatpush2.bf16.msra.mxu0 %v10232
    %10378 = vmatprep.subr.bf16.mxu0 0
    %10379 = vmatpush2.bf16.msra.mxu0 %v10231
    %10380 = vmatprep.subr.bf16.mxu0 0
    %10381 = vmatpush2.bf16.msra.mxu0 %v10230
    %10382 = vmatprep.mubr.bf16.mxu0 %v9824
    %10383 = vmatmul.mubr.bf16.gmra.mxu0 %v9823
    %v10384 = vpop.f32.mrf.mxu0
    %v10385 = vadd.f32 %v9964, %v10384
    %v10386 = vpop.f32.mrf.mxu0
    %v10387 = vpop.f32.mrf.mxu0
    %v10388 = vpop.f32.mrf.mxu0
    %10389 = vdwg.mxu0
    %10390 = vmatprep.subr.bf16.mxu0 0
    %10391 = vmatpush1.bf16.msra.mxu0 %v10245
    %10392 = vmatprep.subr.bf16.mxu0 0
    %10393 = vmatpush1.bf16.msra.mxu0 %v10244
    %10394 = vmatprep.subr.bf16.mxu0 0
    %10395 = vmatpush1.bf16.msra.mxu0 %v10243
    %10396 = vmatprep.subr.bf16.mxu0 0
    %10397 = vmatpush1.bf16.msra.mxu0 %v10242
    %10398 = vmatprep.subr.bf16.mxu0 0
    %10399 = vmatpush1.bf16.msra.mxu0 %v10241
    %10400 = vmatprep.subr.bf16.mxu0 0
    %10401 = vmatpush1.bf16.msra.mxu0 %v10240
    %10402 = vmatprep.subr.bf16.mxu0 0
    %10403 = vmatpush1.bf16.msra.mxu0 %v10239
    %10404 = vmatprep.subr.bf16.mxu0 0
    %10405 = vmatpush1.bf16.msra.mxu0 %v10238
    %10406 = vmatprep.subr.bf16.mxu0 0
    %10407 = vmatpush2.bf16.msra.mxu0 %v10253
    %10408 = vmatprep.subr.bf16.mxu0 0
    %10409 = vmatpush2.bf16.msra.mxu0 %v10252
    %10410 = vmatprep.subr.bf16.mxu0 0
    %10411 = vmatpush2.bf16.msra.mxu0 %v10251
    %10412 = vmatprep.subr.bf16.mxu0 0
    %10413 = vmatpush2.bf16.msra.mxu0 %v10250
    %10414 = vmatprep.subr.bf16.mxu0 0
    %10415 = vmatpush2.bf16.msra.mxu0 %v10249
    %10416 = vmatprep.subr.bf16.mxu0 0
    %10417 = vmatpush2.bf16.msra.mxu0 %v10248
    %10418 = vmatprep.subr.bf16.mxu0 0
    %10419 = vmatpush2.bf16.msra.mxu0 %v10247
    %10420 = vmatprep.subr.bf16.mxu0 0
    %10421 = vmatpush2.bf16.msra.mxu0 %v10246
    %10422 = vmatprep.mubr.bf16.mxu0 %v9826
    %10423 = vmatmul.mubr.bf16.gmra.mxu0 %v9825
    %v10424 = vpop.f32.mrf.mxu0
    %v10425 = vadd.f32 %v10385, %v10424
    %v10426 = vpop.f32.mrf.mxu0
    %v10427 = vpop.f32.mrf.mxu0
    %v10428 = vpop.f32.mrf.mxu0
    %10429 = vdwg.mxu0
    %10430 = vmatprep.subr.bf16.mxu0 0
    %10431 = vmatpush1.bf16.msra.mxu0 %v10261
    %10432 = vmatprep.subr.bf16.mxu0 0
    %10433 = vmatpush1.bf16.msra.mxu0 %v10260
    %10434 = vmatprep.subr.bf16.mxu0 0
    %10435 = vmatpush1.bf16.msra.mxu0 %v10259
    %10436 = vmatprep.subr.bf16.mxu0 0
    %10437 = vmatpush1.bf16.msra.mxu0 %v10258
    %10438 = vmatprep.subr.bf16.mxu0 0
    %10439 = vmatpush1.bf16.msra.mxu0 %v10257
    %10440 = vmatprep.subr.bf16.mxu0 0
    %10441 = vmatpush1.bf16.msra.mxu0 %v10256
    %10442 = vmatprep.subr.bf16.mxu0 0
    %10443 = vmatpush1.bf16.msra.mxu0 %v10255
    %10444 = vmatprep.subr.bf16.mxu0 0
    %10445 = vmatpush1.bf16.msra.mxu0 %v10254
    %10446 = vmatprep.subr.bf16.mxu0 0
    %10447 = vmatpush2.bf16.msra.mxu0 %v10269
    %10448 = vmatprep.subr.bf16.mxu0 0
    %10449 = vmatpush2.bf16.msra.mxu0 %v10268
    %10450 = vmatprep.subr.bf16.mxu0 0
    %10451 = vmatpush2.bf16.msra.mxu0 %v10267
    %10452 = vmatprep.subr.bf16.mxu0 0
    %10453 = vmatpush2.bf16.msra.mxu0 %v10266
    %10454 = vmatprep.subr.bf16.mxu0 0
    %10455 = vmatpush2.bf16.msra.mxu0 %v10265
    %10456 = vmatprep.subr.bf16.mxu0 0
    %10457 = vmatpush2.bf16.msra.mxu0 %v10264
    %10458 = vmatprep.subr.bf16.mxu0 0
    %10459 = vmatpush2.bf16.msra.mxu0 %v10263
    %10460 = vmatprep.subr.bf16.mxu0 0
    %10461 = vmatpush2.bf16.msra.mxu0 %v10262
    %10462 = vmatprep.mubr.bf16.mxu0 %v9828
    %10463 = vmatmul.mubr.bf16.gmra.mxu0 %v9827
    %v10464 = vpop.f32.mrf.mxu0
    %v10465 = vadd.f32 %v10425, %v10464
    %v10466 = vpop.f32.mrf.mxu0
    %v10467 = vpop.f32.mrf.mxu0
    %v10468 = vpop.f32.mrf.mxu0
    %10469 = vdwg.mxu0
    %10470 = vmatprep.subr.bf16.mxu0 0
    %10471 = vmatpush1.bf16.msra.mxu0 %v10277
    %10472 = vmatprep.subr.bf16.mxu0 0
    %10473 = vmatpush1.bf16.msra.mxu0 %v10276
    %10474 = vmatprep.subr.bf16.mxu0 0
    %10475 = vmatpush1.bf16.msra.mxu0 %v10275
    %10476 = vmatprep.subr.bf16.mxu0 0
    %10477 = vmatpush1.bf16.msra.mxu0 %v10274
    %10478 = vmatprep.subr.bf16.mxu0 0
    %10479 = vmatpush1.bf16.msra.mxu0 %v10273
    %10480 = vmatprep.subr.bf16.mxu0 0
    %10481 = vmatpush1.bf16.msra.mxu0 %v10272
    %10482 = vmatprep.subr.bf16.mxu0 0
    %10483 = vmatpush1.bf16.msra.mxu0 %v10271
    %10484 = vmatprep.subr.bf16.mxu0 0
    %10485 = vmatpush1.bf16.msra.mxu0 %v10270
    %10486 = vmatprep.subr.bf16.mxu0 0
    %10487 = vmatpush2.bf16.msra.mxu0 %v10285
    %10488 = vmatprep.subr.bf16.mxu0 0
    %10489 = vmatpush2.bf16.msra.mxu0 %v10284
    %10490 = vmatprep.subr.bf16.mxu0 0
    %10491 = vmatpush2.bf16.msra.mxu0 %v10283
    %10492 = vmatprep.subr.bf16.mxu0 0
    %10493 = vmatpush2.bf16.msra.mxu0 %v10282
    %10494 = vmatprep.subr.bf16.mxu0 0
    %10495 = vmatpush2.bf16.msra.mxu0 %v10281
    %10496 = vmatprep.subr.bf16.mxu0 0
    %10497 = vmatpush2.bf16.msra.mxu0 %v10280
    %10498 = vmatprep.subr.bf16.mxu0 0
    %10499 = vmatpush2.bf16.msra.mxu0 %v10279
    %10500 = vmatprep.subr.bf16.mxu0 0
    %10501 = vmatpush2.bf16.msra.mxu0 %v10278
    %10502 = vmatprep.mubr.bf16.mxu0 %v9830
    %10503 = vmatmul.mubr.bf16.gmra.mxu0 %v9829
    %v10504 = vpop.f32.mrf.mxu0
    %v10505 = vadd.f32 %v10465, %v10504
    %v10506 = vpop.f32.mrf.mxu0
    %v10507 = vpop.f32.mrf.mxu0
    %v10508 = vpop.f32.mrf.mxu0
    %10509 = vdwg.mxu0
    %10510 = vst [vmem:[%s7] sm:$0xff] %v10505
    // Predicated region
    $region54: #{inception_aux.1} parent=1 // pred_check
      _
    $region55: #{inception_aux.1} parent=1 // pred_check_branch
      %10512 = sbr.rel (0) target = $region57
    $region56: #{inception_aux.1} parent=1 // pred_region
      _
    $region57: #{inception_aux.1} parent=1 // pred_fallthru
      _
    // Predicated region
    $region58: #{inception_aux.1} parent=1 // pred_check
      _
    $region59: #{inception_aux.1} parent=1 // pred_check_branch
      %10514 = sbr.rel (0) target = $region61
    $region60: #{inception_aux.1} parent=1 // pred_region
      _
    $region61: #{inception_aux.1} parent=1 // pred_fallthru
      _
    %10515 = vsyncpa [#allocation3], 1
    %10516 = vsyncpa [#allocation5], 1
    %10517 = vsyncpa [#allocation8], 1
    %10518 = vsyncpa [#allocation11], 1

</llo_original>
